<compile_context>
chip_gen: v7x
topology: tpu7x:2x2x1
jax: 0.10.0
libtpu: 0.0.40
codegen_flags: <defaults>
</compile_context>

<pallas_src>
import functools

import jax
import jax.numpy as jnp
from jax.experimental import pallas as pl
from jax.experimental.pallas import tpu as pltpu

C_IN = 2      # in_dim of SpatialGate
K1 = 3        # first conv kernel size
K2 = 7        # second conv kernel size
EPS = 1e-5    # torch.nn.InstanceNorm2d default eps


def _spatial_gate_kernel(x_ref, w1_ref, w2_ref, o_ref, *, W, NB):
    """One batch-group (NB images packed along lanes) per grid step.

    x_ref : (1, C, H, L) VMEM, L = NB*W, lane index = nb*W + w
    w1_ref: (C*C*K1*K1,) SMEM, conv1 weights flattened [co, ci, kh, kw]
    w2_ref: (C*K2*K2,)   SMEM, conv2 weights flattened [0,  ci, kh, kw]
    o_ref : (1, C, H, L) VMEM
    """
    _, C, H, L = x_ref.shape
    inv_hw = 1.0 / float(H * W)
    f32 = jnp.float32

    # ---- index planes (cheap iota; boundary masks built lazily from these) --
    row_ids = jax.lax.broadcasted_iota(jnp.int32, (H, L), 0)
    lane_ids = jax.lax.broadcasted_iota(jnp.int32, (H, L), 1)
    if W & (W - 1) == 0:
        col_ids = lane_ids & (W - 1)                 # column within image
    else:
        # No vector int-div needed: count image boundaries below each lane.
        img = jnp.zeros_like(lane_ids)
        for n in range(1, NB):
            img = img + (lane_ids >= n * W).astype(jnp.int32)
        col_ids = lane_ids - img * W

    # One-hot image-membership map (NB, L): onehot_t[n, l] = 1 iff lane l is in
    # image n.  Drives MXU segment-sum / broadcast for InstanceNorm.
    n_ids = jax.lax.broadcasted_iota(jnp.int32, (NB, L), 0)
    l_ids = jax.lax.broadcasted_iota(jnp.int32, (NB, L), 1)
    onehot_t = ((l_ids >= n_ids * W) & (l_ids < (n_ids + 1) * W)).astype(f32)

    def shifted_conv(planes, w_ref, c_in, c_out, k):
        """Direct conv over lane-packed planes, 'weight first, roll once'.

        part[co, dw] = sum_{ci, dh} w[co, ci, dh, dw] * row_shift(plane[ci], dh)
        out[co]      = sum_{dw} col_mask(lane_roll(part[co, dw], dw))
        Roll is linear, so this is exactly the padded 2-D convolution.
        """
        r = k // 2
        parts = {(co, dw): None for co in range(c_out) for dw in range(-r, r + 1)}
        for dh in range(-r, r + 1):
            rmask = None
            if dh > 0:
                rmask = row_ids < (H - dh)
            elif dh < 0:
                rmask = row_ids >= (-dh)
            for ci in range(c_in):
                p = planes[ci]
                if dh != 0:
                    p = pltpu.roll(p, (-dh) % H, axis=0)   # sublane roll (XLU)
                    p = jnp.where(rmask, p, 0.0)           # zero-padding rows
                for co in range(c_out):
                    for dw in range(-r, r + 1):
                        wv = w_ref[((co * c_in + ci) * k + (dh + r)) * k + (dw + r)]
                        key = (co, dw)
                        t = wv * p
                        parts[key] = t if parts[key] is None else parts[key] + t
        outs = [None] * c_out
        for dw in range(-r, r + 1):
            cmask = None
            if dw > 0:
                cmask = col_ids < (W - dw)
            elif dw < 0:
                cmask = col_ids >= (-dw)
            for co in range(c_out):
                q = parts[(co, dw)]
                if dw != 0:
                    q = pltpu.roll(q, (-dw) % L, axis=1)   # ONE lane roll per (co, dw)
                    q = jnp.where(cmask, q, 0.0)           # zero-pad + image isolation
                outs[co] = q if outs[co] is None else outs[co] + q
        return outs

    def seg_mean(v):
        """(1, L) per-lane column sums -> per-image mean broadcast back to lanes."""
        # Segment sum over the W lanes of each image (MXU, contract L) ...
        s = jax.lax.dot_general(v, onehot_t, (((1,), (1,)), ((), ())),
                                precision=jax.lax.Precision.HIGHEST,
                                preferred_element_type=f32)           # (1, NB)
        # ... and broadcast back to every lane of its image (MXU, contract NB).
        b = jax.lax.dot_general(s, onehot_t, (((1,), (0,)), ((), ())),
                                precision=jax.lax.Precision.HIGHEST,
                                preferred_element_type=f32)           # (1, L)
        return b * inv_hw

    def instance_norm(acc):
        """Per-image InstanceNorm on the lane-packed plane (biased variance).
        Single-pass E[x^2] - mean^2 in f32 (same formulation/tolerance as v1)."""
        mean_l = seg_mean(jnp.sum(acc, axis=0, keepdims=True))        # (1, L)
        ex2_l = seg_mean(jnp.sum(acc * acc, axis=0, keepdims=True))   # (1, L)
        var_l = ex2_l - mean_l * mean_l
        return (acc - mean_l) * jax.lax.rsqrt(var_l + EPS)

    # ---- SpatialGate forward -------------------------------------------------
    x_planes = [x_ref[0, c].astype(f32) for c in range(C)]

    # BasicConv #1: 3x3 (C->C, pad 1) + InstanceNorm + ReLU
    y1 = shifted_conv(x_planes, w1_ref, C, C, K1)
    y1 = [jnp.maximum(instance_norm(a), 0.0) for a in y1]

    # BasicConv #2: 7x7 (C->1, pad 3) + InstanceNorm (no ReLU)
    # TODO(synk): if a v6e bundle dump shows the 7x7 FMA chain saturating VALU,
    # consider offloading it to the MXU via a small im2col (per perf review).
    y2 = shifted_conv(y1, w2_ref, C, 1, K2)[0]
    y2 = instance_norm(y2)

    attn = jax.nn.sigmoid(y2)                                         # (H, L)
    for c in range(C):
        o_ref[0, c] = (x_ref[0, c].astype(f32) * attn).astype(o_ref.dtype)


def _choose_batch_pack(n, w, target_lanes=256, min_lanes=128):
    """Number of images packed side-by-side along the lane axis per grid step."""
    granule = max(1, min_lanes // w)                   # images per 128 lanes
    nb = max(1, min(n, max(1, target_lanes // w)))     # aim for ~256 lanes/step
    nb = max(granule, (nb // granule) * granule)       # keep L a multiple of 128
    # v7x megacore: prefer >= 2 grid steps when the batch allows it.
    if pl.cdiv(n, nb) < 2 and n >= 2 * granule:
        nb = granule * max(1, pl.cdiv(n, 2) // granule)
    return nb


def spatial_gate(x, w1, w2):
    """x: (N, C, H, W); w1: (C, C, 3, 3); w2: (1, C, 7, 7). Returns (N, C, H, W)."""
    N, C, H, W = x.shape
    assert C == C_IN
    assert w1.shape == (C, C, K1, K1) and w2.shape == (1, C, K2, K2)

    NB = _choose_batch_pack(N, W)
    G = pl.cdiv(N, NB)
    n_pad = G * NB
    x_in = x
    if n_pad != N:
        x_in = jnp.concatenate(
            [x, jnp.zeros((n_pad - N, C, H, W), x.dtype)], axis=0)
    L = NB * W
    # (G, NB, C, H, W) -> (G, C, H, NB, W) -> (G, C, H, NB*W): lane = nb*W + w.
    xp = x_in.reshape(G, NB, C, H, W).transpose(0, 2, 3, 1, 4).reshape(G, C, H, L)

    w1_flat = w1.reshape(-1).astype(jnp.float32)
    w2_flat = w2.reshape(-1).astype(jnp.float32)

    kernel = functools.partial(_spatial_gate_kernel, W=W, NB=NB)
    out_p = pl.pallas_call(
        kernel,
        out_shape=jax.ShapeDtypeStruct((G, C, H, L), x.dtype),
        grid=(G,),
        in_specs=[
            pl.BlockSpec((1, C, H, L), lambda g: (g, 0, 0, 0)),
            pl.BlockSpec(memory_space=pltpu.MemorySpace.SMEM),
            pl.BlockSpec(memory_space=pltpu.MemorySpace.SMEM),
        ],
        out_specs=pl.BlockSpec((1, C, H, L), lambda g: (g, 0, 0, 0)),
        compiler_params=pltpu.CompilerParams(
            dimension_semantics=("parallel",)),   # batch groups shard across TCs (v7x)
    )(xp, w1_flat, w2_flat)

    out = (out_p.reshape(G, C, H, NB, W)
           .transpose(0, 3, 1, 2, 4)
           .reshape(n_pad, C, H, W))
    return out[:N]


def spatial_gate_ref(x, w1, w2):
    """Pure-JAX reference with identical semantics (for verification)."""
    def conv(y, w, pad):
        return jax.lax.conv_general_dilated(
            y, w, window_strides=(1, 1), padding=[(pad, pad), (pad, pad)],
            dimension_numbers=("NCHW", "OIHW", "NCHW"),
            precision=jax.lax.Precision.HIGHEST)

    def inorm(y):
        mean = jnp.mean(y, axis=(2, 3), keepdims=True)
        var = jnp.mean((y - mean) ** 2, axis=(2, 3), keepdims=True)
        return (y - mean) * jax.lax.rsqrt(var + EPS)

    y = jnp.maximum(inorm(conv(x, w1, 1)), 0.0)
    y = inorm(conv(y, w2, 3))
    return x * jax.nn.sigmoid(y)


if __name__ == "__main__":
    key = jax.random.PRNGKey(0)
    kx, k1, k2 = jax.random.split(key, 3)
    # N=16, W=16 -> NB=8 images per step (128 lanes), G=2 grid steps
    # (both v7x TensorCores busy under dimension_semantics=("parallel",)).
    N, C, H, W = 16, C_IN, 16, 16

    x = jax.random.normal(kx, (N, C, H, W), jnp.float32)
    w1 = jax.random.normal(k1, (C, C, K1, K1), jnp.float32) * (1.0 / (C * K1 * K1) ** 0.5)
    w2 = jax.random.normal(k2, (1, C, K2, K2), jnp.float32) * (1.0 / (C * K2 * K2) ** 0.5)

    out = jax.block_until_ready(spatial_gate(x, w1, w2))
    ref = jax.block_until_ready(spatial_gate_ref(x, w1, w2))

    assert out.shape == (N, C, H, W)
    max_err = float(jnp.max(jnp.abs(out - ref)))
    assert jnp.allclose(out, ref, atol=2e-4, rtol=2e-4), max_err
    print("KERNEL_OK")
</pallas_src>

<mosaic_0001>
module attributes {stable_mosaic.version = 11 : i64} {
  func.func @_spatial_gate_kernel(%arg0: i32, %arg1: memref<1x2x16x128xf32, #tpu.memory_space<vmem>>, %arg2: memref<36xf32, #tpu.memory_space<smem>>, %arg3: memref<98xf32, #tpu.memory_space<smem>>, %arg4: memref<1x2x16x128xf32, #tpu.memory_space<vmem>>) attributes {dimension_semantics = [#tpu.dimension_semantics<parallel>], iteration_bounds = array<i64: 2>, scalar_prefetch = 0 : i64, scratch_operands = 0 : i64, tpu.core_type = #tpu.core_type<tc>, window_params = [{transform_indices = @transform_0, window_bounds = array<i64: 1, 2, 16, 128>}, {transform_indices = @transform_1, window_bounds = array<i64: 36>}, {transform_indices = @transform_2, window_bounds = array<i64: 98>}, {transform_indices = @transform_3, window_bounds = array<i64: 1, 2, 16, 128>}]} {
    %0 = tpu.iota {dimensions = array<i32: 0>} : vector<16x128xi32>
    %1 = tpu.iota {dimensions = array<i32: 1>} : vector<16x128xi32>
    %c15_i32 = arith.constant 15 : i32
    %2 = vector.broadcast %c15_i32 : i32 to vector<16x128xi32>
    %3 = arith.andi %1, %2 : vector<16x128xi32>
    %4 = tpu.iota {dimensions = array<i32: 0>} : vector<8x128xi32>
    %5 = tpu.iota {dimensions = array<i32: 1>} : vector<8x128xi32>
    %c16_i32 = arith.constant 16 : i32
    %6 = vector.broadcast %c16_i32 : i32 to vector<8x128xi32>
    %7 = arith.muli %4, %6 : vector<8x128xi32>
    %8 = arith.cmpi sge, %5, %7 : vector<8x128xi32>
    %c1_i32 = arith.constant 1 : i32
    %9 = vector.broadcast %c1_i32 : i32 to vector<8x128xi32>
    %10 = arith.addi %4, %9 : vector<8x128xi32>
    %c16_i32_0 = arith.constant 16 : i32
    %11 = vector.broadcast %c16_i32_0 : i32 to vector<8x128xi32>
    %12 = arith.muli %10, %11 : vector<8x128xi32>
    %13 = arith.cmpi slt, %5, %12 : vector<8x128xi32>
    %14 = arith.andi %8, %13 : vector<8x128xi1>
    %15 = arith.extui %14 : vector<8x128xi1> to vector<8x128xi32>
    %16 = arith.sitofp %15 : vector<8x128xi32> to vector<8x128xf32>
    %c0 = arith.constant 0 : index
    %c0_1 = arith.constant 0 : index
    %c0_2 = arith.constant 0 : index
    %c0_3 = arith.constant 0 : index
    %17 = vector.load %arg1[%c0, %c0_1, %c0_2, %c0_3] : memref<1x2x16x128xf32, #tpu.memory_space<vmem>>, vector<1x1x16x128xf32>
    %18 = vector.shape_cast %17 : vector<1x1x16x128xf32> to vector<16x128xf32>
    %c0_4 = arith.constant 0 : index
    %c1 = arith.constant 1 : index
    %c0_5 = arith.constant 0 : index
    %c0_6 = arith.constant 0 : index
    %19 = vector.load %arg1[%c0_4, %c1, %c0_5, %c0_6] : memref<1x2x16x128xf32, #tpu.memory_space<vmem>>, vector<1x1x16x128xf32>
    %20 = vector.shape_cast %19 : vector<1x1x16x128xf32> to vector<16x128xf32>
    %c1_i32_7 = arith.constant 1 : i32
    %21 = vector.broadcast %c1_i32_7 : i32 to vector<16x128xi32>
    %22 = arith.cmpi sge, %0, %21 : vector<16x128xi32>
    %c1_i32_8 = arith.constant 1 : i32
    %23 = tpu.dynamic_rotate %18 by %c1_i32_8 dim 0 : vector<16x128xf32>, i32 -> vector<16x128xf32>
    %cst = arith.constant 0.000000e+00 : f32
    %24 = vector.broadcast %cst : f32 to vector<16x128xf32>
    %25 = arith.select %22, %23, %24 : vector<16x128xi1>, vector<16x128xf32>
    %c0_9 = arith.constant 0 : index
    %26 = memref.load %arg2[%c0_9] : memref<36xf32, #tpu.memory_space<smem>>
    %27 = vector.broadcast %26 : f32 to vector<16x128xf32>
    %28 = arith.mulf %27, %25 : vector<16x128xf32>
    %c1_10 = arith.constant 1 : index
    %29 = memref.load %arg2[%c1_10] : memref<36xf32, #tpu.memory_space<smem>>
    %30 = vector.broadcast %29 : f32 to vector<16x128xf32>
    %31 = arith.mulf %30, %25 : vector<16x128xf32>
    %c2 = arith.constant 2 : index
    %32 = memref.load %arg2[%c2] : memref<36xf32, #tpu.memory_space<smem>>
    %33 = vector.broadcast %32 : f32 to vector<16x128xf32>
    %34 = arith.mulf %33, %25 : vector<16x128xf32>
    %c18 = arith.constant 18 : index
    %35 = memref.load %arg2[%c18] : memref<36xf32, #tpu.memory_space<smem>>
    %36 = vector.broadcast %35 : f32 to vector<16x128xf32>
    %37 = arith.mulf %36, %25 : vector<16x128xf32>
    %c19 = arith.constant 19 : index
    %38 = memref.load %arg2[%c19] : memref<36xf32, #tpu.memory_space<smem>>
    %39 = vector.broadcast %38 : f32 to vector<16x128xf32>
    %40 = arith.mulf %39, %25 : vector<16x128xf32>
    %c20 = arith.constant 20 : index
    %41 = memref.load %arg2[%c20] : memref<36xf32, #tpu.memory_space<smem>>
    %42 = vector.broadcast %41 : f32 to vector<16x128xf32>
    %43 = arith.mulf %42, %25 : vector<16x128xf32>
    %c1_i32_11 = arith.constant 1 : i32
    %44 = tpu.dynamic_rotate %20 by %c1_i32_11 dim 0 : vector<16x128xf32>, i32 -> vector<16x128xf32>
    %cst_12 = arith.constant 0.000000e+00 : f32
    %45 = vector.broadcast %cst_12 : f32 to vector<16x128xf32>
    %46 = arith.select %22, %44, %45 : vector<16x128xi1>, vector<16x128xf32>
    %c9 = arith.constant 9 : index
    %47 = memref.load %arg2[%c9] : memref<36xf32, #tpu.memory_space<smem>>
    %48 = vector.broadcast %47 : f32 to vector<16x128xf32>
    %49 = arith.mulf %48, %46 : vector<16x128xf32>
    %50 = arith.addf %28, %49 : vector<16x128xf32>
    %c10 = arith.constant 10 : index
    %51 = memref.load %arg2[%c10] : memref<36xf32, #tpu.memory_space<smem>>
    %52 = vector.broadcast %51 : f32 to vector<16x128xf32>
    %53 = arith.mulf %52, %46 : vector<16x128xf32>
    %54 = arith.addf %31, %53 : vector<16x128xf32>
    %c11 = arith.constant 11 : index
    %55 = memref.load %arg2[%c11] : memref<36xf32, #tpu.memory_space<smem>>
    %56 = vector.broadcast %55 : f32 to vector<16x128xf32>
    %57 = arith.mulf %56, %46 : vector<16x128xf32>
    %58 = arith.addf %34, %57 : vector<16x128xf32>
    %c27 = arith.constant 27 : index
    %59 = memref.load %arg2[%c27] : memref<36xf32, #tpu.memory_space<smem>>
    %60 = vector.broadcast %59 : f32 to vector<16x128xf32>
    %61 = arith.mulf %60, %46 : vector<16x128xf32>
    %62 = arith.addf %37, %61 : vector<16x128xf32>
    %c28 = arith.constant 28 : index
    %63 = memref.load %arg2[%c28] : memref<36xf32, #tpu.memory_space<smem>>
    %64 = vector.broadcast %63 : f32 to vector<16x128xf32>
    %65 = arith.mulf %64, %46 : vector<16x128xf32>
    %66 = arith.addf %40, %65 : vector<16x128xf32>
    %c29 = arith.constant 29 : index
    %67 = memref.load %arg2[%c29] : memref<36xf32, #tpu.memory_space<smem>>
    %68 = vector.broadcast %67 : f32 to vector<16x128xf32>
    %69 = arith.mulf %68, %46 : vector<16x128xf32>
    %70 = arith.addf %43, %69 : vector<16x128xf32>
    %c3 = arith.constant 3 : index
    %71 = memref.load %arg2[%c3] : memref<36xf32, #tpu.memory_space<smem>>
    %72 = vector.broadcast %71 : f32 to vector<16x128xf32>
    %73 = arith.mulf %72, %18 : vector<16x128xf32>
    %74 = arith.addf %50, %73 : vector<16x128xf32>
    %c4 = arith.constant 4 : index
    %75 = memref.load %arg2[%c4] : memref<36xf32, #tpu.memory_space<smem>>
    %76 = vector.broadcast %75 : f32 to vector<16x128xf32>
    %77 = arith.mulf %76, %18 : vector<16x128xf32>
    %78 = arith.addf %54, %77 : vector<16x128xf32>
    %c5 = arith.constant 5 : index
    %79 = memref.load %arg2[%c5] : memref<36xf32, #tpu.memory_space<smem>>
    %80 = vector.broadcast %79 : f32 to vector<16x128xf32>
    %81 = arith.mulf %80, %18 : vector<16x128xf32>
    %82 = arith.addf %58, %81 : vector<16x128xf32>
    %c21 = arith.constant 21 : index
    %83 = memref.load %arg2[%c21] : memref<36xf32, #tpu.memory_space<smem>>
    %84 = vector.broadcast %83 : f32 to vector<16x128xf32>
    %85 = arith.mulf %84, %18 : vector<16x128xf32>
    %86 = arith.addf %62, %85 : vector<16x128xf32>
    %c22 = arith.constant 22 : index
    %87 = memref.load %arg2[%c22] : memref<36xf32, #tpu.memory_space<smem>>
    %88 = vector.broadcast %87 : f32 to vector<16x128xf32>
    %89 = arith.mulf %88, %18 : vector<16x128xf32>
    %90 = arith.addf %66, %89 : vector<16x128xf32>
    %c23 = arith.constant 23 : index
    %91 = memref.load %arg2[%c23] : memref<36xf32, #tpu.memory_space<smem>>
    %92 = vector.broadcast %91 : f32 to vector<16x128xf32>
    %93 = arith.mulf %92, %18 : vector<16x128xf32>
    %94 = arith.addf %70, %93 : vector<16x128xf32>
    %c12 = arith.constant 12 : index
    %95 = memref.load %arg2[%c12] : memref<36xf32, #tpu.memory_space<smem>>
    %96 = vector.broadcast %95 : f32 to vector<16x128xf32>
    %97 = arith.mulf %96, %20 : vector<16x128xf32>
    %98 = arith.addf %74, %97 : vector<16x128xf32>
    %c13 = arith.constant 13 : index
    %99 = memref.load %arg2[%c13] : memref<36xf32, #tpu.memory_space<smem>>
    %100 = vector.broadcast %99 : f32 to vector<16x128xf32>
    %101 = arith.mulf %100, %20 : vector<16x128xf32>
    %102 = arith.addf %78, %101 : vector<16x128xf32>
    %c14 = arith.constant 14 : index
    %103 = memref.load %arg2[%c14] : memref<36xf32, #tpu.memory_space<smem>>
    %104 = vector.broadcast %103 : f32 to vector<16x128xf32>
    %105 = arith.mulf %104, %20 : vector<16x128xf32>
    %106 = arith.addf %82, %105 : vector<16x128xf32>
    %c30 = arith.constant 30 : index
    %107 = memref.load %arg2[%c30] : memref<36xf32, #tpu.memory_space<smem>>
    %108 = vector.broadcast %107 : f32 to vector<16x128xf32>
    %109 = arith.mulf %108, %20 : vector<16x128xf32>
    %110 = arith.addf %86, %109 : vector<16x128xf32>
    %c31 = arith.constant 31 : index
    %111 = memref.load %arg2[%c31] : memref<36xf32, #tpu.memory_space<smem>>
    %112 = vector.broadcast %111 : f32 to vector<16x128xf32>
    %113 = arith.mulf %112, %20 : vector<16x128xf32>
    %114 = arith.addf %90, %113 : vector<16x128xf32>
    %c32 = arith.constant 32 : index
    %115 = memref.load %arg2[%c32] : memref<36xf32, #tpu.memory_space<smem>>
    %116 = vector.broadcast %115 : f32 to vector<16x128xf32>
    %117 = arith.mulf %116, %20 : vector<16x128xf32>
    %118 = arith.addf %94, %117 : vector<16x128xf32>
    %c15_i32_13 = arith.constant 15 : i32
    %119 = vector.broadcast %c15_i32_13 : i32 to vector<16x128xi32>
    %120 = arith.cmpi slt, %0, %119 : vector<16x128xi32>
    %c15_i32_14 = arith.constant 15 : i32
    %121 = tpu.dynamic_rotate %18 by %c15_i32_14 dim 0 : vector<16x128xf32>, i32 -> vector<16x128xf32>
    %cst_15 = arith.constant 0.000000e+00 : f32
    %122 = vector.broadcast %cst_15 : f32 to vector<16x128xf32>
    %123 = arith.select %120, %121, %122 : vector<16x128xi1>, vector<16x128xf32>
    %c6 = arith.constant 6 : index
    %124 = memref.load %arg2[%c6] : memref<36xf32, #tpu.memory_space<smem>>
    %125 = vector.broadcast %124 : f32 to vector<16x128xf32>
    %126 = arith.mulf %125, %123 : vector<16x128xf32>
    %127 = arith.addf %98, %126 : vector<16x128xf32>
    %c7 = arith.constant 7 : index
    %128 = memref.load %arg2[%c7] : memref<36xf32, #tpu.memory_space<smem>>
    %129 = vector.broadcast %128 : f32 to vector<16x128xf32>
    %130 = arith.mulf %129, %123 : vector<16x128xf32>
    %131 = arith.addf %102, %130 : vector<16x128xf32>
    %c8 = arith.constant 8 : index
    %132 = memref.load %arg2[%c8] : memref<36xf32, #tpu.memory_space<smem>>
    %133 = vector.broadcast %132 : f32 to vector<16x128xf32>
    %134 = arith.mulf %133, %123 : vector<16x128xf32>
    %135 = arith.addf %106, %134 : vector<16x128xf32>
    %c24 = arith.constant 24 : index
    %136 = memref.load %arg2[%c24] : memref<36xf32, #tpu.memory_space<smem>>
    %137 = vector.broadcast %136 : f32 to vector<16x128xf32>
    %138 = arith.mulf %137, %123 : vector<16x128xf32>
    %139 = arith.addf %110, %138 : vector<16x128xf32>
    %c25 = arith.constant 25 : index
    %140 = memref.load %arg2[%c25] : memref<36xf32, #tpu.memory_space<smem>>
    %141 = vector.broadcast %140 : f32 to vector<16x128xf32>
    %142 = arith.mulf %141, %123 : vector<16x128xf32>
    %143 = arith.addf %114, %142 : vector<16x128xf32>
    %c26 = arith.constant 26 : index
    %144 = memref.load %arg2[%c26] : memref<36xf32, #tpu.memory_space<smem>>
    %145 = vector.broadcast %144 : f32 to vector<16x128xf32>
    %146 = arith.mulf %145, %123 : vector<16x128xf32>
    %147 = arith.addf %118, %146 : vector<16x128xf32>
    %c15_i32_16 = arith.constant 15 : i32
    %148 = tpu.dynamic_rotate %20 by %c15_i32_16 dim 0 : vector<16x128xf32>, i32 -> vector<16x128xf32>
    %cst_17 = arith.constant 0.000000e+00 : f32
    %149 = vector.broadcast %cst_17 : f32 to vector<16x128xf32>
    %150 = arith.select %120, %148, %149 : vector<16x128xi1>, vector<16x128xf32>
    %c15 = arith.constant 15 : index
    %151 = memref.load %arg2[%c15] : memref<36xf32, #tpu.memory_space<smem>>
    %152 = vector.broadcast %151 : f32 to vector<16x128xf32>
    %153 = arith.mulf %152, %150 : vector<16x128xf32>
    %154 = arith.addf %127, %153 : vector<16x128xf32>
    %c16 = arith.constant 16 : index
    %155 = memref.load %arg2[%c16] : memref<36xf32, #tpu.memory_space<smem>>
    %156 = vector.broadcast %155 : f32 to vector<16x128xf32>
    %157 = arith.mulf %156, %150 : vector<16x128xf32>
    %158 = arith.addf %131, %157 : vector<16x128xf32>
    %c17 = arith.constant 17 : index
    %159 = memref.load %arg2[%c17] : memref<36xf32, #tpu.memory_space<smem>>
    %160 = vector.broadcast %159 : f32 to vector<16x128xf32>
    %161 = arith.mulf %160, %150 : vector<16x128xf32>
    %162 = arith.addf %135, %161 : vector<16x128xf32>
    %c33 = arith.constant 33 : index
    %163 = memref.load %arg2[%c33] : memref<36xf32, #tpu.memory_space<smem>>
    %164 = vector.broadcast %163 : f32 to vector<16x128xf32>
    %165 = arith.mulf %164, %150 : vector<16x128xf32>
    %166 = arith.addf %139, %165 : vector<16x128xf32>
    %c34 = arith.constant 34 : index
    %167 = memref.load %arg2[%c34] : memref<36xf32, #tpu.memory_space<smem>>
    %168 = vector.broadcast %167 : f32 to vector<16x128xf32>
    %169 = arith.mulf %168, %150 : vector<16x128xf32>
    %170 = arith.addf %143, %169 : vector<16x128xf32>
    %c35 = arith.constant 35 : index
    %171 = memref.load %arg2[%c35] : memref<36xf32, #tpu.memory_space<smem>>
    %172 = vector.broadcast %171 : f32 to vector<16x128xf32>
    %173 = arith.mulf %172, %150 : vector<16x128xf32>
    %174 = arith.addf %147, %173 : vector<16x128xf32>
    %c1_i32_18 = arith.constant 1 : i32
    %175 = vector.broadcast %c1_i32_18 : i32 to vector<16x128xi32>
    %176 = arith.cmpi sge, %3, %175 : vector<16x128xi32>
    %c1_i32_19 = arith.constant 1 : i32
    %177 = tpu.dynamic_rotate %154 by %c1_i32_19 dim 1 : vector<16x128xf32>, i32 -> vector<16x128xf32>
    %cst_20 = arith.constant 0.000000e+00 : f32
    %178 = vector.broadcast %cst_20 : f32 to vector<16x128xf32>
    %179 = arith.select %176, %177, %178 : vector<16x128xi1>, vector<16x128xf32>
    %c1_i32_21 = arith.constant 1 : i32
    %180 = tpu.dynamic_rotate %166 by %c1_i32_21 dim 1 : vector<16x128xf32>, i32 -> vector<16x128xf32>
    %cst_22 = arith.constant 0.000000e+00 : f32
    %181 = vector.broadcast %cst_22 : f32 to vector<16x128xf32>
    %182 = arith.select %176, %180, %181 : vector<16x128xi1>, vector<16x128xf32>
    %183 = arith.addf %179, %158 : vector<16x128xf32>
    %184 = arith.addf %182, %170 : vector<16x128xf32>
    %c15_i32_23 = arith.constant 15 : i32
    %185 = vector.broadcast %c15_i32_23 : i32 to vector<16x128xi32>
    %186 = arith.cmpi slt, %3, %185 : vector<16x128xi32>
    %c127_i32 = arith.constant 127 : i32
    %187 = tpu.dynamic_rotate %162 by %c127_i32 dim 1 : vector<16x128xf32>, i32 -> vector<16x128xf32>
    %cst_24 = arith.constant 0.000000e+00 : f32
    %188 = vector.broadcast %cst_24 : f32 to vector<16x128xf32>
    %189 = arith.select %186, %187, %188 : vector<16x128xi1>, vector<16x128xf32>
    %190 = arith.addf %183, %189 : vector<16x128xf32>
    %c127_i32_25 = arith.constant 127 : i32
    %191 = tpu.dynamic_rotate %174 by %c127_i32_25 dim 1 : vector<16x128xf32>, i32 -> vector<16x128xf32>
    %cst_26 = arith.constant 0.000000e+00 : f32
    %192 = vector.broadcast %cst_26 : f32 to vector<16x128xf32>
    %193 = arith.select %186, %191, %192 : vector<16x128xi1>, vector<16x128xf32>
    %194 = arith.addf %184, %193 : vector<16x128xf32>
    %cst_27 = arith.constant dense<0.000000e+00> : vector<128xf32>
    %195 = vector.multi_reduction <add>, %190, %cst_27 [0] : vector<16x128xf32> to vector<128xf32>
    %196 = vector.shape_cast %195 : vector<128xf32> to vector<1x128xf32>
    %cst_28 = arith.constant dense<0.000000e+00> : vector<1x8xf32>
    %197 = tpu.matmul %196, %16, %cst_28 {dimension_numbers = #tpu.dot_dimension_numbers<[1], [1], [0], [0], [0, 0, 1, 0], [], []>, precision = #tpu.contract_precision<fp32>} : vector<1x128xf32>, vector<8x128xf32>, vector<1x8xf32> -> vector<1x8xf32>
    %cst_29 = arith.constant dense<0.000000e+00> : vector<1x128xf32>
    %198 = tpu.matmul %197, %16, %cst_29 {dimension_numbers = #tpu.dot_dimension_numbers<[1], [0], [0], [1], [0, 0, 1, 1], [], []>, precision = #tpu.contract_precision<fp32>} : vector<1x8xf32>, vector<8x128xf32>, vector<1x128xf32> -> vector<1x128xf32>
    %cst_30 = arith.constant 3.906250e-03 : f32
    %199 = vector.broadcast %cst_30 : f32 to vector<1x128xf32>
    %200 = arith.mulf %198, %199 : vector<1x128xf32>
    %201 = arith.mulf %190, %190 : vector<16x128xf32>
    %cst_31 = arith.constant dense<0.000000e+00> : vector<128xf32>
    %202 = vector.multi_reduction <add>, %201, %cst_31 [0] : vector<16x128xf32> to vector<128xf32>
    %203 = vector.shape_cast %202 : vector<128xf32> to vector<1x128xf32>
    %cst_32 = arith.constant dense<0.000000e+00> : vector<1x8xf32>
    %204 = tpu.matmul %203, %16, %cst_32 {dimension_numbers = #tpu.dot_dimension_numbers<[1], [1], [0], [0], [0, 0, 1, 0], [], []>, precision = #tpu.contract_precision<fp32>} : vector<1x128xf32>, vector<8x128xf32>, vector<1x8xf32> -> vector<1x8xf32>
    %cst_33 = arith.constant dense<0.000000e+00> : vector<1x128xf32>
    %205 = tpu.matmul %204, %16, %cst_33 {dimension_numbers = #tpu.dot_dimension_numbers<[1], [0], [0], [1], [0, 0, 1, 1], [], []>, precision = #tpu.contract_precision<fp32>} : vector<1x8xf32>, vector<8x128xf32>, vector<1x128xf32> -> vector<1x128xf32>
    %cst_34 = arith.constant 3.906250e-03 : f32
    %206 = vector.broadcast %cst_34 : f32 to vector<1x128xf32>
    %207 = arith.mulf %205, %206 : vector<1x128xf32>
    %208 = arith.mulf %200, %200 : vector<1x128xf32>
    %209 = arith.subf %207, %208 : vector<1x128xf32>
    %210 = vector.broadcast %200 : vector<1x128xf32> to vector<16x128xf32>
    %211 = arith.subf %190, %210 : vector<16x128xf32>
    %cst_35 = arith.constant 9.99999974E-6 : f32
    %212 = vector.broadcast %cst_35 : f32 to vector<1x128xf32>
    %213 = arith.addf %209, %212 : vector<1x128xf32>
    %214 = math.rsqrt %213 : vector<1x128xf32>
    %215 = vector.broadcast %214 : vector<1x128xf32> to vector<16x128xf32>
    %216 = arith.mulf %211, %215 : vector<16x128xf32>
    %cst_36 = arith.constant 0.000000e+00 : f32
    %217 = vector.broadcast %cst_36 : f32 to vector<16x128xf32>
    %218 = arith.maximumf %216, %217 : vector<16x128xf32>
    %cst_37 = arith.constant dense<0.000000e+00> : vector<128xf32>
    %219 = vector.multi_reduction <add>, %194, %cst_37 [0] : vector<16x128xf32> to vector<128xf32>
    %220 = vector.shape_cast %219 : vector<128xf32> to vector<1x128xf32>
    %cst_38 = arith.constant dense<0.000000e+00> : vector<1x8xf32>
    %221 = tpu.matmul %220, %16, %cst_38 {dimension_numbers = #tpu.dot_dimension_numbers<[1], [1], [0], [0], [0, 0, 1, 0], [], []>, precision = #tpu.contract_precision<fp32>} : vector<1x128xf32>, vector<8x128xf32>, vector<1x8xf32> -> vector<1x8xf32>
    %cst_39 = arith.constant dense<0.000000e+00> : vector<1x128xf32>
    %222 = tpu.matmul %221, %16, %cst_39 {dimension_numbers = #tpu.dot_dimension_numbers<[1], [0], [0], [1], [0, 0, 1, 1], [], []>, precision = #tpu.contract_precision<fp32>} : vector<1x8xf32>, vector<8x128xf32>, vector<1x128xf32> -> vector<1x128xf32>
    %cst_40 = arith.constant 3.906250e-03 : f32
    %223 = vector.broadcast %cst_40 : f32 to vector<1x128xf32>
    %224 = arith.mulf %222, %223 : vector<1x128xf32>
    %225 = arith.mulf %194, %194 : vector<16x128xf32>
    %cst_41 = arith.constant dense<0.000000e+00> : vector<128xf32>
    %226 = vector.multi_reduction <add>, %225, %cst_41 [0] : vector<16x128xf32> to vector<128xf32>
    %227 = vector.shape_cast %226 : vector<128xf32> to vector<1x128xf32>
    %cst_42 = arith.constant dense<0.000000e+00> : vector<1x8xf32>
    %228 = tpu.matmul %227, %16, %cst_42 {dimension_numbers = #tpu.dot_dimension_numbers<[1], [1], [0], [0], [0, 0, 1, 0], [], []>, precision = #tpu.contract_precision<fp32>} : vector<1x128xf32>, vector<8x128xf32>, vector<1x8xf32> -> vector<1x8xf32>
    %cst_43 = arith.constant dense<0.000000e+00> : vector<1x128xf32>
    %229 = tpu.matmul %228, %16, %cst_43 {dimension_numbers = #tpu.dot_dimension_numbers<[1], [0], [0], [1], [0, 0, 1, 1], [], []>, precision = #tpu.contract_precision<fp32>} : vector<1x8xf32>, vector<8x128xf32>, vector<1x128xf32> -> vector<1x128xf32>
    %cst_44 = arith.constant 3.906250e-03 : f32
    %230 = vector.broadcast %cst_44 : f32 to vector<1x128xf32>
    %231 = arith.mulf %229, %230 : vector<1x128xf32>
    %232 = arith.mulf %224, %224 : vector<1x128xf32>
    %233 = arith.subf %231, %232 : vector<1x128xf32>
    %234 = vector.broadcast %224 : vector<1x128xf32> to vector<16x128xf32>
    %235 = arith.subf %194, %234 : vector<16x128xf32>
    %cst_45 = arith.constant 9.99999974E-6 : f32
    %236 = vector.broadcast %cst_45 : f32 to vector<1x128xf32>
    %237 = arith.addf %233, %236 : vector<1x128xf32>
    %238 = math.rsqrt %237 : vector<1x128xf32>
    %239 = vector.broadcast %238 : vector<1x128xf32> to vector<16x128xf32>
    %240 = arith.mulf %235, %239 : vector<16x128xf32>
    %cst_46 = arith.constant 0.000000e+00 : f32
    %241 = vector.broadcast %cst_46 : f32 to vector<16x128xf32>
    %242 = arith.maximumf %240, %241 : vector<16x128xf32>
    %c3_i32 = arith.constant 3 : i32
    %243 = vector.broadcast %c3_i32 : i32 to vector<16x128xi32>
    %244 = arith.cmpi sge, %0, %243 : vector<16x128xi32>
    %c3_i32_47 = arith.constant 3 : i32
    %245 = tpu.dynamic_rotate %218 by %c3_i32_47 dim 0 : vector<16x128xf32>, i32 -> vector<16x128xf32>
    %cst_48 = arith.constant 0.000000e+00 : f32
    %246 = vector.broadcast %cst_48 : f32 to vector<16x128xf32>
    %247 = arith.select %244, %245, %246 : vector<16x128xi1>, vector<16x128xf32>
    %c0_49 = arith.constant 0 : index
    %248 = memref.load %arg3[%c0_49] : memref<98xf32, #tpu.memory_space<smem>>
    %249 = vector.broadcast %248 : f32 to vector<16x128xf32>
    %250 = arith.mulf %249, %247 : vector<16x128xf32>
    %c1_50 = arith.constant 1 : index
    %251 = memref.load %arg3[%c1_50] : memref<98xf32, #tpu.memory_space<smem>>
    %252 = vector.broadcast %251 : f32 to vector<16x128xf32>
    %253 = arith.mulf %252, %247 : vector<16x128xf32>
    %c2_51 = arith.constant 2 : index
    %254 = memref.load %arg3[%c2_51] : memref<98xf32, #tpu.memory_space<smem>>
    %255 = vector.broadcast %254 : f32 to vector<16x128xf32>
    %256 = arith.mulf %255, %247 : vector<16x128xf32>
    %c3_52 = arith.constant 3 : index
    %257 = memref.load %arg3[%c3_52] : memref<98xf32, #tpu.memory_space<smem>>
    %258 = vector.broadcast %257 : f32 to vector<16x128xf32>
    %259 = arith.mulf %258, %247 : vector<16x128xf32>
    %c4_53 = arith.constant 4 : index
    %260 = memref.load %arg3[%c4_53] : memref<98xf32, #tpu.memory_space<smem>>
    %261 = vector.broadcast %260 : f32 to vector<16x128xf32>
    %262 = arith.mulf %261, %247 : vector<16x128xf32>
    %c5_54 = arith.constant 5 : index
    %263 = memref.load %arg3[%c5_54] : memref<98xf32, #tpu.memory_space<smem>>
    %264 = vector.broadcast %263 : f32 to vector<16x128xf32>
    %265 = arith.mulf %264, %247 : vector<16x128xf32>
    %c6_55 = arith.constant 6 : index
    %266 = memref.load %arg3[%c6_55] : memref<98xf32, #tpu.memory_space<smem>>
    %267 = vector.broadcast %266 : f32 to vector<16x128xf32>
    %268 = arith.mulf %267, %247 : vector<16x128xf32>
    %c3_i32_56 = arith.constant 3 : i32
    %269 = tpu.dynamic_rotate %242 by %c3_i32_56 dim 0 : vector<16x128xf32>, i32 -> vector<16x128xf32>
    %cst_57 = arith.constant 0.000000e+00 : f32
    %270 = vector.broadcast %cst_57 : f32 to vector<16x128xf32>
    %271 = arith.select %244, %269, %270 : vector<16x128xi1>, vector<16x128xf32>
    %c49 = arith.constant 49 : index
    %272 = memref.load %arg3[%c49] : memref<98xf32, #tpu.memory_space<smem>>
    %273 = vector.broadcast %272 : f32 to vector<16x128xf32>
    %274 = arith.mulf %273, %271 : vector<16x128xf32>
    %275 = arith.addf %250, %274 : vector<16x128xf32>
    %c50 = arith.constant 50 : index
    %276 = memref.load %arg3[%c50] : memref<98xf32, #tpu.memory_space<smem>>
    %277 = vector.broadcast %276 : f32 to vector<16x128xf32>
    %278 = arith.mulf %277, %271 : vector<16x128xf32>
    %279 = arith.addf %253, %278 : vector<16x128xf32>
    %c51 = arith.constant 51 : index
    %280 = memref.load %arg3[%c51] : memref<98xf32, #tpu.memory_space<smem>>
    %281 = vector.broadcast %280 : f32 to vector<16x128xf32>
    %282 = arith.mulf %281, %271 : vector<16x128xf32>
    %283 = arith.addf %256, %282 : vector<16x128xf32>
    %c52 = arith.constant 52 : index
    %284 = memref.load %arg3[%c52] : memref<98xf32, #tpu.memory_space<smem>>
    %285 = vector.broadcast %284 : f32 to vector<16x128xf32>
    %286 = arith.mulf %285, %271 : vector<16x128xf32>
    %287 = arith.addf %259, %286 : vector<16x128xf32>
    %c53 = arith.constant 53 : index
    %288 = memref.load %arg3[%c53] : memref<98xf32, #tpu.memory_space<smem>>
    %289 = vector.broadcast %288 : f32 to vector<16x128xf32>
    %290 = arith.mulf %289, %271 : vector<16x128xf32>
    %291 = arith.addf %262, %290 : vector<16x128xf32>
    %c54 = arith.constant 54 : index
    %292 = memref.load %arg3[%c54] : memref<98xf32, #tpu.memory_space<smem>>
    %293 = vector.broadcast %292 : f32 to vector<16x128xf32>
    %294 = arith.mulf %293, %271 : vector<16x128xf32>
    %295 = arith.addf %265, %294 : vector<16x128xf32>
    %c55 = arith.constant 55 : index
    %296 = memref.load %arg3[%c55] : memref<98xf32, #tpu.memory_space<smem>>
    %297 = vector.broadcast %296 : f32 to vector<16x128xf32>
    %298 = arith.mulf %297, %271 : vector<16x128xf32>
    %299 = arith.addf %268, %298 : vector<16x128xf32>
    %c2_i32 = arith.constant 2 : i32
    %300 = vector.broadcast %c2_i32 : i32 to vector<16x128xi32>
    %301 = arith.cmpi sge, %0, %300 : vector<16x128xi32>
    %c2_i32_58 = arith.constant 2 : i32
    %302 = tpu.dynamic_rotate %218 by %c2_i32_58 dim 0 : vector<16x128xf32>, i32 -> vector<16x128xf32>
    %cst_59 = arith.constant 0.000000e+00 : f32
    %303 = vector.broadcast %cst_59 : f32 to vector<16x128xf32>
    %304 = arith.select %301, %302, %303 : vector<16x128xi1>, vector<16x128xf32>
    %c7_60 = arith.constant 7 : index
    %305 = memref.load %arg3[%c7_60] : memref<98xf32, #tpu.memory_space<smem>>
    %306 = vector.broadcast %305 : f32 to vector<16x128xf32>
    %307 = arith.mulf %306, %304 : vector<16x128xf32>
    %308 = arith.addf %275, %307 : vector<16x128xf32>
    %c8_61 = arith.constant 8 : index
    %309 = memref.load %arg3[%c8_61] : memref<98xf32, #tpu.memory_space<smem>>
    %310 = vector.broadcast %309 : f32 to vector<16x128xf32>
    %311 = arith.mulf %310, %304 : vector<16x128xf32>
    %312 = arith.addf %279, %311 : vector<16x128xf32>
    %c9_62 = arith.constant 9 : index
    %313 = memref.load %arg3[%c9_62] : memref<98xf32, #tpu.memory_space<smem>>
    %314 = vector.broadcast %313 : f32 to vector<16x128xf32>
    %315 = arith.mulf %314, %304 : vector<16x128xf32>
    %316 = arith.addf %283, %315 : vector<16x128xf32>
    %c10_63 = arith.constant 10 : index
    %317 = memref.load %arg3[%c10_63] : memref<98xf32, #tpu.memory_space<smem>>
    %318 = vector.broadcast %317 : f32 to vector<16x128xf32>
    %319 = arith.mulf %318, %304 : vector<16x128xf32>
    %320 = arith.addf %287, %319 : vector<16x128xf32>
    %c11_64 = arith.constant 11 : index
    %321 = memref.load %arg3[%c11_64] : memref<98xf32, #tpu.memory_space<smem>>
    %322 = vector.broadcast %321 : f32 to vector<16x128xf32>
    %323 = arith.mulf %322, %304 : vector<16x128xf32>
    %324 = arith.addf %291, %323 : vector<16x128xf32>
    %c12_65 = arith.constant 12 : index
    %325 = memref.load %arg3[%c12_65] : memref<98xf32, #tpu.memory_space<smem>>
    %326 = vector.broadcast %325 : f32 to vector<16x128xf32>
    %327 = arith.mulf %326, %304 : vector<16x128xf32>
    %328 = arith.addf %295, %327 : vector<16x128xf32>
    %c13_66 = arith.constant 13 : index
    %329 = memref.load %arg3[%c13_66] : memref<98xf32, #tpu.memory_space<smem>>
    %330 = vector.broadcast %329 : f32 to vector<16x128xf32>
    %331 = arith.mulf %330, %304 : vector<16x128xf32>
    %332 = arith.addf %299, %331 : vector<16x128xf32>
    %c2_i32_67 = arith.constant 2 : i32
    %333 = tpu.dynamic_rotate %242 by %c2_i32_67 dim 0 : vector<16x128xf32>, i32 -> vector<16x128xf32>
    %cst_68 = arith.constant 0.000000e+00 : f32
    %334 = vector.broadcast %cst_68 : f32 to vector<16x128xf32>
    %335 = arith.select %301, %333, %334 : vector<16x128xi1>, vector<16x128xf32>
    %c56 = arith.constant 56 : index
    %336 = memref.load %arg3[%c56] : memref<98xf32, #tpu.memory_space<smem>>
    %337 = vector.broadcast %336 : f32 to vector<16x128xf32>
    %338 = arith.mulf %337, %335 : vector<16x128xf32>
    %339 = arith.addf %308, %338 : vector<16x128xf32>
    %c57 = arith.constant 57 : index
    %340 = memref.load %arg3[%c57] : memref<98xf32, #tpu.memory_space<smem>>
    %341 = vector.broadcast %340 : f32 to vector<16x128xf32>
    %342 = arith.mulf %341, %335 : vector<16x128xf32>
    %343 = arith.addf %312, %342 : vector<16x128xf32>
    %c58 = arith.constant 58 : index
    %344 = memref.load %arg3[%c58] : memref<98xf32, #tpu.memory_space<smem>>
    %345 = vector.broadcast %344 : f32 to vector<16x128xf32>
    %346 = arith.mulf %345, %335 : vector<16x128xf32>
    %347 = arith.addf %316, %346 : vector<16x128xf32>
    %c59 = arith.constant 59 : index
    %348 = memref.load %arg3[%c59] : memref<98xf32, #tpu.memory_space<smem>>
    %349 = vector.broadcast %348 : f32 to vector<16x128xf32>
    %350 = arith.mulf %349, %335 : vector<16x128xf32>
    %351 = arith.addf %320, %350 : vector<16x128xf32>
    %c60 = arith.constant 60 : index
    %352 = memref.load %arg3[%c60] : memref<98xf32, #tpu.memory_space<smem>>
    %353 = vector.broadcast %352 : f32 to vector<16x128xf32>
    %354 = arith.mulf %353, %335 : vector<16x128xf32>
    %355 = arith.addf %324, %354 : vector<16x128xf32>
    %c61 = arith.constant 61 : index
    %356 = memref.load %arg3[%c61] : memref<98xf32, #tpu.memory_space<smem>>
    %357 = vector.broadcast %356 : f32 to vector<16x128xf32>
    %358 = arith.mulf %357, %335 : vector<16x128xf32>
    %359 = arith.addf %328, %358 : vector<16x128xf32>
    %c62 = arith.constant 62 : index
    %360 = memref.load %arg3[%c62] : memref<98xf32, #tpu.memory_space<smem>>
    %361 = vector.broadcast %360 : f32 to vector<16x128xf32>
    %362 = arith.mulf %361, %335 : vector<16x128xf32>
    %363 = arith.addf %332, %362 : vector<16x128xf32>
    %c1_i32_69 = arith.constant 1 : i32
    %364 = vector.broadcast %c1_i32_69 : i32 to vector<16x128xi32>
    %365 = arith.cmpi sge, %0, %364 : vector<16x128xi32>
    %c1_i32_70 = arith.constant 1 : i32
    %366 = tpu.dynamic_rotate %218 by %c1_i32_70 dim 0 : vector<16x128xf32>, i32 -> vector<16x128xf32>
    %cst_71 = arith.constant 0.000000e+00 : f32
    %367 = vector.broadcast %cst_71 : f32 to vector<16x128xf32>
    %368 = arith.select %365, %366, %367 : vector<16x128xi1>, vector<16x128xf32>
    %c14_72 = arith.constant 14 : index
    %369 = memref.load %arg3[%c14_72] : memref<98xf32, #tpu.memory_space<smem>>
    %370 = vector.broadcast %369 : f32 to vector<16x128xf32>
    %371 = arith.mulf %370, %368 : vector<16x128xf32>
    %372 = arith.addf %339, %371 : vector<16x128xf32>
    %c15_73 = arith.constant 15 : index
    %373 = memref.load %arg3[%c15_73] : memref<98xf32, #tpu.memory_space<smem>>
    %374 = vector.broadcast %373 : f32 to vector<16x128xf32>
    %375 = arith.mulf %374, %368 : vector<16x128xf32>
    %376 = arith.addf %343, %375 : vector<16x128xf32>
    %c16_74 = arith.constant 16 : index
    %377 = memref.load %arg3[%c16_74] : memref<98xf32, #tpu.memory_space<smem>>
    %378 = vector.broadcast %377 : f32 to vector<16x128xf32>
    %379 = arith.mulf %378, %368 : vector<16x128xf32>
    %380 = arith.addf %347, %379 : vector<16x128xf32>
    %c17_75 = arith.constant 17 : index
    %381 = memref.load %arg3[%c17_75] : memref<98xf32, #tpu.memory_space<smem>>
    %382 = vector.broadcast %381 : f32 to vector<16x128xf32>
    %383 = arith.mulf %382, %368 : vector<16x128xf32>
    %384 = arith.addf %351, %383 : vector<16x128xf32>
    %c18_76 = arith.constant 18 : index
    %385 = memref.load %arg3[%c18_76] : memref<98xf32, #tpu.memory_space<smem>>
    %386 = vector.broadcast %385 : f32 to vector<16x128xf32>
    %387 = arith.mulf %386, %368 : vector<16x128xf32>
    %388 = arith.addf %355, %387 : vector<16x128xf32>
    %c19_77 = arith.constant 19 : index
    %389 = memref.load %arg3[%c19_77] : memref<98xf32, #tpu.memory_space<smem>>
    %390 = vector.broadcast %389 : f32 to vector<16x128xf32>
    %391 = arith.mulf %390, %368 : vector<16x128xf32>
    %392 = arith.addf %359, %391 : vector<16x128xf32>
    %c20_78 = arith.constant 20 : index
    %393 = memref.load %arg3[%c20_78] : memref<98xf32, #tpu.memory_space<smem>>
    %394 = vector.broadcast %393 : f32 to vector<16x128xf32>
    %395 = arith.mulf %394, %368 : vector<16x128xf32>
    %396 = arith.addf %363, %395 : vector<16x128xf32>
    %c1_i32_79 = arith.constant 1 : i32
    %397 = tpu.dynamic_rotate %242 by %c1_i32_79 dim 0 : vector<16x128xf32>, i32 -> vector<16x128xf32>
    %cst_80 = arith.constant 0.000000e+00 : f32
    %398 = vector.broadcast %cst_80 : f32 to vector<16x128xf32>
    %399 = arith.select %365, %397, %398 : vector<16x128xi1>, vector<16x128xf32>
    %c63 = arith.constant 63 : index
    %400 = memref.load %arg3[%c63] : memref<98xf32, #tpu.memory_space<smem>>
    %401 = vector.broadcast %400 : f32 to vector<16x128xf32>
    %402 = arith.mulf %401, %399 : vector<16x128xf32>
    %403 = arith.addf %372, %402 : vector<16x128xf32>
    %c64 = arith.constant 64 : index
    %404 = memref.load %arg3[%c64] : memref<98xf32, #tpu.memory_space<smem>>
    %405 = vector.broadcast %404 : f32 to vector<16x128xf32>
    %406 = arith.mulf %405, %399 : vector<16x128xf32>
    %407 = arith.addf %376, %406 : vector<16x128xf32>
    %c65 = arith.constant 65 : index
    %408 = memref.load %arg3[%c65] : memref<98xf32, #tpu.memory_space<smem>>
    %409 = vector.broadcast %408 : f32 to vector<16x128xf32>
    %410 = arith.mulf %409, %399 : vector<16x128xf32>
    %411 = arith.addf %380, %410 : vector<16x128xf32>
    %c66 = arith.constant 66 : index
    %412 = memref.load %arg3[%c66] : memref<98xf32, #tpu.memory_space<smem>>
    %413 = vector.broadcast %412 : f32 to vector<16x128xf32>
    %414 = arith.mulf %413, %399 : vector<16x128xf32>
    %415 = arith.addf %384, %414 : vector<16x128xf32>
    %c67 = arith.constant 67 : index
    %416 = memref.load %arg3[%c67] : memref<98xf32, #tpu.memory_space<smem>>
    %417 = vector.broadcast %416 : f32 to vector<16x128xf32>
    %418 = arith.mulf %417, %399 : vector<16x128xf32>
    %419 = arith.addf %388, %418 : vector<16x128xf32>
    %c68 = arith.constant 68 : index
    %420 = memref.load %arg3[%c68] : memref<98xf32, #tpu.memory_space<smem>>
    %421 = vector.broadcast %420 : f32 to vector<16x128xf32>
    %422 = arith.mulf %421, %399 : vector<16x128xf32>
    %423 = arith.addf %392, %422 : vector<16x128xf32>
    %c69 = arith.constant 69 : index
    %424 = memref.load %arg3[%c69] : memref<98xf32, #tpu.memory_space<smem>>
    %425 = vector.broadcast %424 : f32 to vector<16x128xf32>
    %426 = arith.mulf %425, %399 : vector<16x128xf32>
    %427 = arith.addf %396, %426 : vector<16x128xf32>
    %c21_81 = arith.constant 21 : index
    %428 = memref.load %arg3[%c21_81] : memref<98xf32, #tpu.memory_space<smem>>
    %429 = vector.broadcast %428 : f32 to vector<16x128xf32>
    %430 = arith.mulf %429, %218 : vector<16x128xf32>
    %431 = arith.addf %403, %430 : vector<16x128xf32>
    %c22_82 = arith.constant 22 : index
    %432 = memref.load %arg3[%c22_82] : memref<98xf32, #tpu.memory_space<smem>>
    %433 = vector.broadcast %432 : f32 to vector<16x128xf32>
    %434 = arith.mulf %433, %218 : vector<16x128xf32>
    %435 = arith.addf %407, %434 : vector<16x128xf32>
    %c23_83 = arith.constant 23 : index
    %436 = memref.load %arg3[%c23_83] : memref<98xf32, #tpu.memory_space<smem>>
    %437 = vector.broadcast %436 : f32 to vector<16x128xf32>
    %438 = arith.mulf %437, %218 : vector<16x128xf32>
    %439 = arith.addf %411, %438 : vector<16x128xf32>
    %c24_84 = arith.constant 24 : index
    %440 = memref.load %arg3[%c24_84] : memref<98xf32, #tpu.memory_space<smem>>
    %441 = vector.broadcast %440 : f32 to vector<16x128xf32>
    %442 = arith.mulf %441, %218 : vector<16x128xf32>
    %443 = arith.addf %415, %442 : vector<16x128xf32>
    %c25_85 = arith.constant 25 : index
    %444 = memref.load %arg3[%c25_85] : memref<98xf32, #tpu.memory_space<smem>>
    %445 = vector.broadcast %444 : f32 to vector<16x128xf32>
    %446 = arith.mulf %445, %218 : vector<16x128xf32>
    %447 = arith.addf %419, %446 : vector<16x128xf32>
    %c26_86 = arith.constant 26 : index
    %448 = memref.load %arg3[%c26_86] : memref<98xf32, #tpu.memory_space<smem>>
    %449 = vector.broadcast %448 : f32 to vector<16x128xf32>
    %450 = arith.mulf %449, %218 : vector<16x128xf32>
    %451 = arith.addf %423, %450 : vector<16x128xf32>
    %c27_87 = arith.constant 27 : index
    %452 = memref.load %arg3[%c27_87] : memref<98xf32, #tpu.memory_space<smem>>
    %453 = vector.broadcast %452 : f32 to vector<16x128xf32>
    %454 = arith.mulf %453, %218 : vector<16x128xf32>
    %455 = arith.addf %427, %454 : vector<16x128xf32>
    %c70 = arith.constant 70 : index
    %456 = memref.load %arg3[%c70] : memref<98xf32, #tpu.memory_space<smem>>
    %457 = vector.broadcast %456 : f32 to vector<16x128xf32>
    %458 = arith.mulf %457, %242 : vector<16x128xf32>
    %459 = arith.addf %431, %458 : vector<16x128xf32>
    %c71 = arith.constant 71 : index
    %460 = memref.load %arg3[%c71] : memref<98xf32, #tpu.memory_space<smem>>
    %461 = vector.broadcast %460 : f32 to vector<16x128xf32>
    %462 = arith.mulf %461, %242 : vector<16x128xf32>
    %463 = arith.addf %435, %462 : vector<16x128xf32>
    %c72 = arith.constant 72 : index
    %464 = memref.load %arg3[%c72] : memref<98xf32, #tpu.memory_space<smem>>
    %465 = vector.broadcast %464 : f32 to vector<16x128xf32>
    %466 = arith.mulf %465, %242 : vector<16x128xf32>
    %467 = arith.addf %439, %466 : vector<16x128xf32>
    %c73 = arith.constant 73 : index
    %468 = memref.load %arg3[%c73] : memref<98xf32, #tpu.memory_space<smem>>
    %469 = vector.broadcast %468 : f32 to vector<16x128xf32>
    %470 = arith.mulf %469, %242 : vector<16x128xf32>
    %471 = arith.addf %443, %470 : vector<16x128xf32>
    %c74 = arith.constant 74 : index
    %472 = memref.load %arg3[%c74] : memref<98xf32, #tpu.memory_space<smem>>
    %473 = vector.broadcast %472 : f32 to vector<16x128xf32>
    %474 = arith.mulf %473, %242 : vector<16x128xf32>
    %475 = arith.addf %447, %474 : vector<16x128xf32>
    %c75 = arith.constant 75 : index
    %476 = memref.load %arg3[%c75] : memref<98xf32, #tpu.memory_space<smem>>
    %477 = vector.broadcast %476 : f32 to vector<16x128xf32>
    %478 = arith.mulf %477, %242 : vector<16x128xf32>
    %479 = arith.addf %451, %478 : vector<16x128xf32>
    %c76 = arith.constant 76 : index
    %480 = memref.load %arg3[%c76] : memref<98xf32, #tpu.memory_space<smem>>
    %481 = vector.broadcast %480 : f32 to vector<16x128xf32>
    %482 = arith.mulf %481, %242 : vector<16x128xf32>
    %483 = arith.addf %455, %482 : vector<16x128xf32>
    %c15_i32_88 = arith.constant 15 : i32
    %484 = vector.broadcast %c15_i32_88 : i32 to vector<16x128xi32>
    %485 = arith.cmpi slt, %0, %484 : vector<16x128xi32>
    %c15_i32_89 = arith.constant 15 : i32
    %486 = tpu.dynamic_rotate %218 by %c15_i32_89 dim 0 : vector<16x128xf32>, i32 -> vector<16x128xf32>
    %cst_90 = arith.constant 0.000000e+00 : f32
    %487 = vector.broadcast %cst_90 : f32 to vector<16x128xf32>
    %488 = arith.select %485, %486, %487 : vector<16x128xi1>, vector<16x128xf32>
    %c28_91 = arith.constant 28 : index
    %489 = memref.load %arg3[%c28_91] : memref<98xf32, #tpu.memory_space<smem>>
    %490 = vector.broadcast %489 : f32 to vector<16x128xf32>
    %491 = arith.mulf %490, %488 : vector<16x128xf32>
    %492 = arith.addf %459, %491 : vector<16x128xf32>
    %c29_92 = arith.constant 29 : index
    %493 = memref.load %arg3[%c29_92] : memref<98xf32, #tpu.memory_space<smem>>
    %494 = vector.broadcast %493 : f32 to vector<16x128xf32>
    %495 = arith.mulf %494, %488 : vector<16x128xf32>
    %496 = arith.addf %463, %495 : vector<16x128xf32>
    %c30_93 = arith.constant 30 : index
    %497 = memref.load %arg3[%c30_93] : memref<98xf32, #tpu.memory_space<smem>>
    %498 = vector.broadcast %497 : f32 to vector<16x128xf32>
    %499 = arith.mulf %498, %488 : vector<16x128xf32>
    %500 = arith.addf %467, %499 : vector<16x128xf32>
    %c31_94 = arith.constant 31 : index
    %501 = memref.load %arg3[%c31_94] : memref<98xf32, #tpu.memory_space<smem>>
    %502 = vector.broadcast %501 : f32 to vector<16x128xf32>
    %503 = arith.mulf %502, %488 : vector<16x128xf32>
    %504 = arith.addf %471, %503 : vector<16x128xf32>
    %c32_95 = arith.constant 32 : index
    %505 = memref.load %arg3[%c32_95] : memref<98xf32, #tpu.memory_space<smem>>
    %506 = vector.broadcast %505 : f32 to vector<16x128xf32>
    %507 = arith.mulf %506, %488 : vector<16x128xf32>
    %508 = arith.addf %475, %507 : vector<16x128xf32>
    %c33_96 = arith.constant 33 : index
    %509 = memref.load %arg3[%c33_96] : memref<98xf32, #tpu.memory_space<smem>>
    %510 = vector.broadcast %509 : f32 to vector<16x128xf32>
    %511 = arith.mulf %510, %488 : vector<16x128xf32>
    %512 = arith.addf %479, %511 : vector<16x128xf32>
    %c34_97 = arith.constant 34 : index
    %513 = memref.load %arg3[%c34_97] : memref<98xf32, #tpu.memory_space<smem>>
    %514 = vector.broadcast %513 : f32 to vector<16x128xf32>
    %515 = arith.mulf %514, %488 : vector<16x128xf32>
    %516 = arith.addf %483, %515 : vector<16x128xf32>
    %c15_i32_98 = arith.constant 15 : i32
    %517 = tpu.dynamic_rotate %242 by %c15_i32_98 dim 0 : vector<16x128xf32>, i32 -> vector<16x128xf32>
    %cst_99 = arith.constant 0.000000e+00 : f32
    %518 = vector.broadcast %cst_99 : f32 to vector<16x128xf32>
    %519 = arith.select %485, %517, %518 : vector<16x128xi1>, vector<16x128xf32>
    %c77 = arith.constant 77 : index
    %520 = memref.load %arg3[%c77] : memref<98xf32, #tpu.memory_space<smem>>
    %521 = vector.broadcast %520 : f32 to vector<16x128xf32>
    %522 = arith.mulf %521, %519 : vector<16x128xf32>
    %523 = arith.addf %492, %522 : vector<16x128xf32>
    %c78 = arith.constant 78 : index
    %524 = memref.load %arg3[%c78] : memref<98xf32, #tpu.memory_space<smem>>
    %525 = vector.broadcast %524 : f32 to vector<16x128xf32>
    %526 = arith.mulf %525, %519 : vector<16x128xf32>
    %527 = arith.addf %496, %526 : vector<16x128xf32>
    %c79 = arith.constant 79 : index
    %528 = memref.load %arg3[%c79] : memref<98xf32, #tpu.memory_space<smem>>
    %529 = vector.broadcast %528 : f32 to vector<16x128xf32>
    %530 = arith.mulf %529, %519 : vector<16x128xf32>
    %531 = arith.addf %500, %530 : vector<16x128xf32>
    %c80 = arith.constant 80 : index
    %532 = memref.load %arg3[%c80] : memref<98xf32, #tpu.memory_space<smem>>
    %533 = vector.broadcast %532 : f32 to vector<16x128xf32>
    %534 = arith.mulf %533, %519 : vector<16x128xf32>
    %535 = arith.addf %504, %534 : vector<16x128xf32>
    %c81 = arith.constant 81 : index
    %536 = memref.load %arg3[%c81] : memref<98xf32, #tpu.memory_space<smem>>
    %537 = vector.broadcast %536 : f32 to vector<16x128xf32>
    %538 = arith.mulf %537, %519 : vector<16x128xf32>
    %539 = arith.addf %508, %538 : vector<16x128xf32>
    %c82 = arith.constant 82 : index
    %540 = memref.load %arg3[%c82] : memref<98xf32, #tpu.memory_space<smem>>
    %541 = vector.broadcast %540 : f32 to vector<16x128xf32>
    %542 = arith.mulf %541, %519 : vector<16x128xf32>
    %543 = arith.addf %512, %542 : vector<16x128xf32>
    %c83 = arith.constant 83 : index
    %544 = memref.load %arg3[%c83] : memref<98xf32, #tpu.memory_space<smem>>
    %545 = vector.broadcast %544 : f32 to vector<16x128xf32>
    %546 = arith.mulf %545, %519 : vector<16x128xf32>
    %547 = arith.addf %516, %546 : vector<16x128xf32>
    %c14_i32 = arith.constant 14 : i32
    %548 = vector.broadcast %c14_i32 : i32 to vector<16x128xi32>
    %549 = arith.cmpi slt, %0, %548 : vector<16x128xi32>
    %c14_i32_100 = arith.constant 14 : i32
    %550 = tpu.dynamic_rotate %218 by %c14_i32_100 dim 0 : vector<16x128xf32>, i32 -> vector<16x128xf32>
    %cst_101 = arith.constant 0.000000e+00 : f32
    %551 = vector.broadcast %cst_101 : f32 to vector<16x128xf32>
    %552 = arith.select %549, %550, %551 : vector<16x128xi1>, vector<16x128xf32>
    %c35_102 = arith.constant 35 : index
    %553 = memref.load %arg3[%c35_102] : memref<98xf32, #tpu.memory_space<smem>>
    %554 = vector.broadcast %553 : f32 to vector<16x128xf32>
    %555 = arith.mulf %554, %552 : vector<16x128xf32>
    %556 = arith.addf %523, %555 : vector<16x128xf32>
    %c36 = arith.constant 36 : index
    %557 = memref.load %arg3[%c36] : memref<98xf32, #tpu.memory_space<smem>>
    %558 = vector.broadcast %557 : f32 to vector<16x128xf32>
    %559 = arith.mulf %558, %552 : vector<16x128xf32>
    %560 = arith.addf %527, %559 : vector<16x128xf32>
    %c37 = arith.constant 37 : index
    %561 = memref.load %arg3[%c37] : memref<98xf32, #tpu.memory_space<smem>>
    %562 = vector.broadcast %561 : f32 to vector<16x128xf32>
    %563 = arith.mulf %562, %552 : vector<16x128xf32>
    %564 = arith.addf %531, %563 : vector<16x128xf32>
    %c38 = arith.constant 38 : index
    %565 = memref.load %arg3[%c38] : memref<98xf32, #tpu.memory_space<smem>>
    %566 = vector.broadcast %565 : f32 to vector<16x128xf32>
    %567 = arith.mulf %566, %552 : vector<16x128xf32>
    %568 = arith.addf %535, %567 : vector<16x128xf32>
    %c39 = arith.constant 39 : index
    %569 = memref.load %arg3[%c39] : memref<98xf32, #tpu.memory_space<smem>>
    %570 = vector.broadcast %569 : f32 to vector<16x128xf32>
    %571 = arith.mulf %570, %552 : vector<16x128xf32>
    %572 = arith.addf %539, %571 : vector<16x128xf32>
    %c40 = arith.constant 40 : index
    %573 = memref.load %arg3[%c40] : memref<98xf32, #tpu.memory_space<smem>>
    %574 = vector.broadcast %573 : f32 to vector<16x128xf32>
    %575 = arith.mulf %574, %552 : vector<16x128xf32>
    %576 = arith.addf %543, %575 : vector<16x128xf32>
    %c41 = arith.constant 41 : index
    %577 = memref.load %arg3[%c41] : memref<98xf32, #tpu.memory_space<smem>>
    %578 = vector.broadcast %577 : f32 to vector<16x128xf32>
    %579 = arith.mulf %578, %552 : vector<16x128xf32>
    %580 = arith.addf %547, %579 : vector<16x128xf32>
    %c14_i32_103 = arith.constant 14 : i32
    %581 = tpu.dynamic_rotate %242 by %c14_i32_103 dim 0 : vector<16x128xf32>, i32 -> vector<16x128xf32>
    %cst_104 = arith.constant 0.000000e+00 : f32
    %582 = vector.broadcast %cst_104 : f32 to vector<16x128xf32>
    %583 = arith.select %549, %581, %582 : vector<16x128xi1>, vector<16x128xf32>
    %c84 = arith.constant 84 : index
    %584 = memref.load %arg3[%c84] : memref<98xf32, #tpu.memory_space<smem>>
    %585 = vector.broadcast %584 : f32 to vector<16x128xf32>
    %586 = arith.mulf %585, %583 : vector<16x128xf32>
    %587 = arith.addf %556, %586 : vector<16x128xf32>
    %c85 = arith.constant 85 : index
    %588 = memref.load %arg3[%c85] : memref<98xf32, #tpu.memory_space<smem>>
    %589 = vector.broadcast %588 : f32 to vector<16x128xf32>
    %590 = arith.mulf %589, %583 : vector<16x128xf32>
    %591 = arith.addf %560, %590 : vector<16x128xf32>
    %c86 = arith.constant 86 : index
    %592 = memref.load %arg3[%c86] : memref<98xf32, #tpu.memory_space<smem>>
    %593 = vector.broadcast %592 : f32 to vector<16x128xf32>
    %594 = arith.mulf %593, %583 : vector<16x128xf32>
    %595 = arith.addf %564, %594 : vector<16x128xf32>
    %c87 = arith.constant 87 : index
    %596 = memref.load %arg3[%c87] : memref<98xf32, #tpu.memory_space<smem>>
    %597 = vector.broadcast %596 : f32 to vector<16x128xf32>
    %598 = arith.mulf %597, %583 : vector<16x128xf32>
    %599 = arith.addf %568, %598 : vector<16x128xf32>
    %c88 = arith.constant 88 : index
    %600 = memref.load %arg3[%c88] : memref<98xf32, #tpu.memory_space<smem>>
    %601 = vector.broadcast %600 : f32 to vector<16x128xf32>
    %602 = arith.mulf %601, %583 : vector<16x128xf32>
    %603 = arith.addf %572, %602 : vector<16x128xf32>
    %c89 = arith.constant 89 : index
    %604 = memref.load %arg3[%c89] : memref<98xf32, #tpu.memory_space<smem>>
    %605 = vector.broadcast %604 : f32 to vector<16x128xf32>
    %606 = arith.mulf %605, %583 : vector<16x128xf32>
    %607 = arith.addf %576, %606 : vector<16x128xf32>
    %c90 = arith.constant 90 : index
    %608 = memref.load %arg3[%c90] : memref<98xf32, #tpu.memory_space<smem>>
    %609 = vector.broadcast %608 : f32 to vector<16x128xf32>
    %610 = arith.mulf %609, %583 : vector<16x128xf32>
    %611 = arith.addf %580, %610 : vector<16x128xf32>
    %c13_i32 = arith.constant 13 : i32
    %612 = vector.broadcast %c13_i32 : i32 to vector<16x128xi32>
    %613 = arith.cmpi slt, %0, %612 : vector<16x128xi32>
    %c13_i32_105 = arith.constant 13 : i32
    %614 = tpu.dynamic_rotate %218 by %c13_i32_105 dim 0 : vector<16x128xf32>, i32 -> vector<16x128xf32>
    %cst_106 = arith.constant 0.000000e+00 : f32
    %615 = vector.broadcast %cst_106 : f32 to vector<16x128xf32>
    %616 = arith.select %613, %614, %615 : vector<16x128xi1>, vector<16x128xf32>
    %c42 = arith.constant 42 : index
    %617 = memref.load %arg3[%c42] : memref<98xf32, #tpu.memory_space<smem>>
    %618 = vector.broadcast %617 : f32 to vector<16x128xf32>
    %619 = arith.mulf %618, %616 : vector<16x128xf32>
    %620 = arith.addf %587, %619 : vector<16x128xf32>
    %c43 = arith.constant 43 : index
    %621 = memref.load %arg3[%c43] : memref<98xf32, #tpu.memory_space<smem>>
    %622 = vector.broadcast %621 : f32 to vector<16x128xf32>
    %623 = arith.mulf %622, %616 : vector<16x128xf32>
    %624 = arith.addf %591, %623 : vector<16x128xf32>
    %c44 = arith.constant 44 : index
    %625 = memref.load %arg3[%c44] : memref<98xf32, #tpu.memory_space<smem>>
    %626 = vector.broadcast %625 : f32 to vector<16x128xf32>
    %627 = arith.mulf %626, %616 : vector<16x128xf32>
    %628 = arith.addf %595, %627 : vector<16x128xf32>
    %c45 = arith.constant 45 : index
    %629 = memref.load %arg3[%c45] : memref<98xf32, #tpu.memory_space<smem>>
    %630 = vector.broadcast %629 : f32 to vector<16x128xf32>
    %631 = arith.mulf %630, %616 : vector<16x128xf32>
    %632 = arith.addf %599, %631 : vector<16x128xf32>
    %c46 = arith.constant 46 : index
    %633 = memref.load %arg3[%c46] : memref<98xf32, #tpu.memory_space<smem>>
    %634 = vector.broadcast %633 : f32 to vector<16x128xf32>
    %635 = arith.mulf %634, %616 : vector<16x128xf32>
    %636 = arith.addf %603, %635 : vector<16x128xf32>
    %c47 = arith.constant 47 : index
    %637 = memref.load %arg3[%c47] : memref<98xf32, #tpu.memory_space<smem>>
    %638 = vector.broadcast %637 : f32 to vector<16x128xf32>
    %639 = arith.mulf %638, %616 : vector<16x128xf32>
    %640 = arith.addf %607, %639 : vector<16x128xf32>
    %c48 = arith.constant 48 : index
    %641 = memref.load %arg3[%c48] : memref<98xf32, #tpu.memory_space<smem>>
    %642 = vector.broadcast %641 : f32 to vector<16x128xf32>
    %643 = arith.mulf %642, %616 : vector<16x128xf32>
    %644 = arith.addf %611, %643 : vector<16x128xf32>
    %c13_i32_107 = arith.constant 13 : i32
    %645 = tpu.dynamic_rotate %242 by %c13_i32_107 dim 0 : vector<16x128xf32>, i32 -> vector<16x128xf32>
    %cst_108 = arith.constant 0.000000e+00 : f32
    %646 = vector.broadcast %cst_108 : f32 to vector<16x128xf32>
    %647 = arith.select %613, %645, %646 : vector<16x128xi1>, vector<16x128xf32>
    %c91 = arith.constant 91 : index
    %648 = memref.load %arg3[%c91] : memref<98xf32, #tpu.memory_space<smem>>
    %649 = vector.broadcast %648 : f32 to vector<16x128xf32>
    %650 = arith.mulf %649, %647 : vector<16x128xf32>
    %651 = arith.addf %620, %650 : vector<16x128xf32>
    %c92 = arith.constant 92 : index
    %652 = memref.load %arg3[%c92] : memref<98xf32, #tpu.memory_space<smem>>
    %653 = vector.broadcast %652 : f32 to vector<16x128xf32>
    %654 = arith.mulf %653, %647 : vector<16x128xf32>
    %655 = arith.addf %624, %654 : vector<16x128xf32>
    %c93 = arith.constant 93 : index
    %656 = memref.load %arg3[%c93] : memref<98xf32, #tpu.memory_space<smem>>
    %657 = vector.broadcast %656 : f32 to vector<16x128xf32>
    %658 = arith.mulf %657, %647 : vector<16x128xf32>
    %659 = arith.addf %628, %658 : vector<16x128xf32>
    %c94 = arith.constant 94 : index
    %660 = memref.load %arg3[%c94] : memref<98xf32, #tpu.memory_space<smem>>
    %661 = vector.broadcast %660 : f32 to vector<16x128xf32>
    %662 = arith.mulf %661, %647 : vector<16x128xf32>
    %663 = arith.addf %632, %662 : vector<16x128xf32>
    %c95 = arith.constant 95 : index
    %664 = memref.load %arg3[%c95] : memref<98xf32, #tpu.memory_space<smem>>
    %665 = vector.broadcast %664 : f32 to vector<16x128xf32>
    %666 = arith.mulf %665, %647 : vector<16x128xf32>
    %667 = arith.addf %636, %666 : vector<16x128xf32>
    %c96 = arith.constant 96 : index
    %668 = memref.load %arg3[%c96] : memref<98xf32, #tpu.memory_space<smem>>
    %669 = vector.broadcast %668 : f32 to vector<16x128xf32>
    %670 = arith.mulf %669, %647 : vector<16x128xf32>
    %671 = arith.addf %640, %670 : vector<16x128xf32>
    %c97 = arith.constant 97 : index
    %672 = memref.load %arg3[%c97] : memref<98xf32, #tpu.memory_space<smem>>
    %673 = vector.broadcast %672 : f32 to vector<16x128xf32>
    %674 = arith.mulf %673, %647 : vector<16x128xf32>
    %675 = arith.addf %644, %674 : vector<16x128xf32>
    %c3_i32_109 = arith.constant 3 : i32
    %676 = vector.broadcast %c3_i32_109 : i32 to vector<16x128xi32>
    %677 = arith.cmpi sge, %3, %676 : vector<16x128xi32>
    %c3_i32_110 = arith.constant 3 : i32
    %678 = tpu.dynamic_rotate %651 by %c3_i32_110 dim 1 : vector<16x128xf32>, i32 -> vector<16x128xf32>
    %cst_111 = arith.constant 0.000000e+00 : f32
    %679 = vector.broadcast %cst_111 : f32 to vector<16x128xf32>
    %680 = arith.select %677, %678, %679 : vector<16x128xi1>, vector<16x128xf32>
    %c2_i32_112 = arith.constant 2 : i32
    %681 = vector.broadcast %c2_i32_112 : i32 to vector<16x128xi32>
    %682 = arith.cmpi sge, %3, %681 : vector<16x128xi32>
    %c2_i32_113 = arith.constant 2 : i32
    %683 = tpu.dynamic_rotate %655 by %c2_i32_113 dim 1 : vector<16x128xf32>, i32 -> vector<16x128xf32>
    %cst_114 = arith.constant 0.000000e+00 : f32
    %684 = vector.broadcast %cst_114 : f32 to vector<16x128xf32>
    %685 = arith.select %682, %683, %684 : vector<16x128xi1>, vector<16x128xf32>
    %686 = arith.addf %680, %685 : vector<16x128xf32>
    %c1_i32_115 = arith.constant 1 : i32
    %687 = vector.broadcast %c1_i32_115 : i32 to vector<16x128xi32>
    %688 = arith.cmpi sge, %3, %687 : vector<16x128xi32>
    %c1_i32_116 = arith.constant 1 : i32
    %689 = tpu.dynamic_rotate %659 by %c1_i32_116 dim 1 : vector<16x128xf32>, i32 -> vector<16x128xf32>
    %cst_117 = arith.constant 0.000000e+00 : f32
    %690 = vector.broadcast %cst_117 : f32 to vector<16x128xf32>
    %691 = arith.select %688, %689, %690 : vector<16x128xi1>, vector<16x128xf32>
    %692 = arith.addf %686, %691 : vector<16x128xf32>
    %693 = arith.addf %692, %663 : vector<16x128xf32>
    %c15_i32_118 = arith.constant 15 : i32
    %694 = vector.broadcast %c15_i32_118 : i32 to vector<16x128xi32>
    %695 = arith.cmpi slt, %3, %694 : vector<16x128xi32>
    %c127_i32_119 = arith.constant 127 : i32
    %696 = tpu.dynamic_rotate %667 by %c127_i32_119 dim 1 : vector<16x128xf32>, i32 -> vector<16x128xf32>
    %cst_120 = arith.constant 0.000000e+00 : f32
    %697 = vector.broadcast %cst_120 : f32 to vector<16x128xf32>
    %698 = arith.select %695, %696, %697 : vector<16x128xi1>, vector<16x128xf32>
    %699 = arith.addf %693, %698 : vector<16x128xf32>
    %c14_i32_121 = arith.constant 14 : i32
    %700 = vector.broadcast %c14_i32_121 : i32 to vector<16x128xi32>
    %701 = arith.cmpi slt, %3, %700 : vector<16x128xi32>
    %c126_i32 = arith.constant 126 : i32
    %702 = tpu.dynamic_rotate %671 by %c126_i32 dim 1 : vector<16x128xf32>, i32 -> vector<16x128xf32>
    %cst_122 = arith.constant 0.000000e+00 : f32
    %703 = vector.broadcast %cst_122 : f32 to vector<16x128xf32>
    %704 = arith.select %701, %702, %703 : vector<16x128xi1>, vector<16x128xf32>
    %705 = arith.addf %699, %704 : vector<16x128xf32>
    %c13_i32_123 = arith.constant 13 : i32
    %706 = vector.broadcast %c13_i32_123 : i32 to vector<16x128xi32>
    %707 = arith.cmpi slt, %3, %706 : vector<16x128xi32>
    %c125_i32 = arith.constant 125 : i32
    %708 = tpu.dynamic_rotate %675 by %c125_i32 dim 1 : vector<16x128xf32>, i32 -> vector<16x128xf32>
    %cst_124 = arith.constant 0.000000e+00 : f32
    %709 = vector.broadcast %cst_124 : f32 to vector<16x128xf32>
    %710 = arith.select %707, %708, %709 : vector<16x128xi1>, vector<16x128xf32>
    %711 = arith.addf %705, %710 : vector<16x128xf32>
    %cst_125 = arith.constant dense<0.000000e+00> : vector<128xf32>
    %712 = vector.multi_reduction <add>, %711, %cst_125 [0] : vector<16x128xf32> to vector<128xf32>
    %713 = vector.shape_cast %712 : vector<128xf32> to vector<1x128xf32>
    %cst_126 = arith.constant dense<0.000000e+00> : vector<1x8xf32>
    %714 = tpu.matmul %713, %16, %cst_126 {dimension_numbers = #tpu.dot_dimension_numbers<[1], [1], [0], [0], [0, 0, 1, 0], [], []>, precision = #tpu.contract_precision<fp32>} : vector<1x128xf32>, vector<8x128xf32>, vector<1x8xf32> -> vector<1x8xf32>
    %cst_127 = arith.constant dense<0.000000e+00> : vector<1x128xf32>
    %715 = tpu.matmul %714, %16, %cst_127 {dimension_numbers = #tpu.dot_dimension_numbers<[1], [0], [0], [1], [0, 0, 1, 1], [], []>, precision = #tpu.contract_precision<fp32>} : vector<1x8xf32>, vector<8x128xf32>, vector<1x128xf32> -> vector<1x128xf32>
    %cst_128 = arith.constant 3.906250e-03 : f32
    %716 = vector.broadcast %cst_128 : f32 to vector<1x128xf32>
    %717 = arith.mulf %715, %716 : vector<1x128xf32>
    %718 = arith.mulf %711, %711 : vector<16x128xf32>
    %cst_129 = arith.constant dense<0.000000e+00> : vector<128xf32>
    %719 = vector.multi_reduction <add>, %718, %cst_129 [0] : vector<16x128xf32> to vector<128xf32>
    %720 = vector.shape_cast %719 : vector<128xf32> to vector<1x128xf32>
    %cst_130 = arith.constant dense<0.000000e+00> : vector<1x8xf32>
    %721 = tpu.matmul %720, %16, %cst_130 {dimension_numbers = #tpu.dot_dimension_numbers<[1], [1], [0], [0], [0, 0, 1, 0], [], []>, precision = #tpu.contract_precision<fp32>} : vector<1x128xf32>, vector<8x128xf32>, vector<1x8xf32> -> vector<1x8xf32>
    %cst_131 = arith.constant dense<0.000000e+00> : vector<1x128xf32>
    %722 = tpu.matmul %721, %16, %cst_131 {dimension_numbers = #tpu.dot_dimension_numbers<[1], [0], [0], [1], [0, 0, 1, 1], [], []>, precision = #tpu.contract_precision<fp32>} : vector<1x8xf32>, vector<8x128xf32>, vector<1x128xf32> -> vector<1x128xf32>
    %cst_132 = arith.constant 3.906250e-03 : f32
    %723 = vector.broadcast %cst_132 : f32 to vector<1x128xf32>
    %724 = arith.mulf %722, %723 : vector<1x128xf32>
    %725 = arith.mulf %717, %717 : vector<1x128xf32>
    %726 = arith.subf %724, %725 : vector<1x128xf32>
    %727 = vector.broadcast %717 : vector<1x128xf32> to vector<16x128xf32>
    %728 = arith.subf %711, %727 : vector<16x128xf32>
    %cst_133 = arith.constant 9.99999974E-6 : f32
    %729 = vector.broadcast %cst_133 : f32 to vector<1x128xf32>
    %730 = arith.addf %726, %729 : vector<1x128xf32>
    %731 = math.rsqrt %730 : vector<1x128xf32>
    %732 = vector.broadcast %731 : vector<1x128xf32> to vector<16x128xf32>
    %733 = arith.mulf %728, %732 : vector<16x128xf32>
    %734 = arith.negf %733 : vector<16x128xf32>
    %735 = math.exp %734 : vector<16x128xf32>
    %cst_134 = arith.constant 1.000000e+00 : f32
    %736 = vector.broadcast %cst_134 : f32 to vector<16x128xf32>
    %737 = arith.addf %736, %735 : vector<16x128xf32>
    %738 = arith.divf %736, %737 : vector<16x128xf32>
    %c0_135 = arith.constant 0 : index
    %c0_136 = arith.constant 0 : index
    %c0_137 = arith.constant 0 : index
    %c0_138 = arith.constant 0 : index
    %739 = vector.load %arg1[%c0_135, %c0_136, %c0_137, %c0_138] : memref<1x2x16x128xf32, #tpu.memory_space<vmem>>, vector<1x1x16x128xf32>
    %740 = vector.shape_cast %739 : vector<1x1x16x128xf32> to vector<16x128xf32>
    %741 = arith.mulf %740, %738 : vector<16x128xf32>
    %c0_139 = arith.constant 0 : index
    %c0_140 = arith.constant 0 : index
    %c0_141 = arith.constant 0 : index
    %c0_142 = arith.constant 0 : index
    %742 = vector.load %arg4[%c0_139, %c0_140, %c0_141, %c0_142] : memref<1x2x16x128xf32, #tpu.memory_space<vmem>>, vector<1x1x16x128xf32>
    %743 = vector.shape_cast %742 : vector<1x1x16x128xf32> to vector<16x128xf32>
    %744 = vector.shape_cast %741 : vector<16x128xf32> to vector<1x1x16x128xf32>
    tpu.vector_store %arg4[%c0_139, %c0_140, %c0_141, %c0_142], %744 {strides = array<i32>} : memref<1x2x16x128xf32, #tpu.memory_space<vmem>>, vector<1x1x16x128xf32>,
    %c0_143 = arith.constant 0 : index
    %c1_144 = arith.constant 1 : index
    %c0_145 = arith.constant 0 : index
    %c0_146 = arith.constant 0 : index
    %745 = vector.load %arg1[%c0_143, %c1_144, %c0_145, %c0_146] : memref<1x2x16x128xf32, #tpu.memory_space<vmem>>, vector<1x1x16x128xf32>
    %746 = vector.shape_cast %745 : vector<1x1x16x128xf32> to vector<16x128xf32>
    %747 = arith.mulf %746, %738 : vector<16x128xf32>
    %c0_147 = arith.constant 0 : index
    %c1_148 = arith.constant 1 : index
    %c0_149 = arith.constant 0 : index
    %c0_150 = arith.constant 0 : index
    %748 = vector.load %arg4[%c0_147, %c1_148, %c0_149, %c0_150] : memref<1x2x16x128xf32, #tpu.memory_space<vmem>>, vector<1x1x16x128xf32>
    %749 = vector.shape_cast %748 : vector<1x1x16x128xf32> to vector<16x128xf32>
    %750 = vector.shape_cast %747 : vector<16x128xf32> to vector<1x1x16x128xf32>
    tpu.vector_store %arg4[%c0_147, %c1_148, %c0_149, %c0_150], %750 {strides = array<i32>} : memref<1x2x16x128xf32, #tpu.memory_space<vmem>>, vector<1x1x16x128xf32>,
    return
  }
  func.func @transform_0(%arg0: i32) -> (i32, i32, i32, i32) {
    %c0_i32 = arith.constant 0 : i32
    %c0_i32_0 = arith.constant 0 : i32
    %c0_i32_1 = arith.constant 0 : i32
    %c0_i32_2 = arith.constant 0 : i32
    return %arg0, %c0_i32, %c0_i32_0, %c0_i32_1 : i32, i32, i32, i32
  }
  func.func @transform_1(%arg0: i32) -> i32 {
    %c0_i32 = arith.constant 0 : i32
    %c0_i32_0 = arith.constant 0 : i32
    return %c0_i32 : i32
  }
  func.func @transform_2(%arg0: i32) -> i32 {
    %c0_i32 = arith.constant 0 : i32
    %c0_i32_0 = arith.constant 0 : i32
    return %c0_i32 : i32
  }
  func.func @transform_3(%arg0: i32) -> (i32, i32, i32, i32) {
    %c0_i32 = arith.constant 0 : i32
    %c0_i32_0 = arith.constant 0 : i32
    %c0_i32_1 = arith.constant 0 : i32
    %c0_i32_2 = arith.constant 0 : i32
    return %arg0, %c0_i32, %c0_i32_0, %c0_i32_1 : i32, i32, i32, i32
  }
}

</mosaic_0001>

<llo_original>
// kernel: tpu_custom_call.1
$region0: #{tpu_custom_call.1}
  #allocation0 [shape = 'u32[]', space=smem, size = 0x4, offset = 0x4, fixed_abs, tag = 'smem constant byte address 0x4 - core index']
  #allocation1 [shape = 'u32[144,128]{1,0:T(1,128)}', space=vmem, size = 0x12000, scoped, tag = 'internal scratch']
  %s0 = inlined_call_operand.hbm [shape: f32[2,2,16,128], index: 0, kind: input, shape index: {}]
  %s1 = inlined_call_operand.vmem [shape: f32[36], index: 1, kind: input, shape index: {}]
  %s2 = inlined_call_operand.vmem [shape: f32[98], index: 2, kind: input, shape index: {}]
  %s3 = inlined_call_operand.hbm [shape: f32[2,2,16,128], index: 3, kind: output, shape index: {}]
  %s4 = sld [smem:[#allocation0]]
  $region57: #{tpu_custom_call.1} parent=0
    _
  %s6 = ssub.s32 1, %s4
  %s7 = scalar_select 0, %s6, %s4
  $region1: #{tpu_custom_call.1} parent=0
    #allocation2 [shape = 'u8[32768]{0}', space=vmem, size = 0x8000, scoped, tag = 'input window, operand 0']
    #allocation3 [shape = 's32[2]{0}', space=sflag, size = 0x8, scoped, tag = 'scoped memory for tpu_custom_call.1']
    #allocation4 [shape = 's32[2]{0}', space=sflag, size = 0x8, scoped, tag = 'scoped memory for tpu_custom_call.1']
    #allocation5 [shape = 's32[2]{0}', space=sflag, size = 0x8, scoped, tag = 'scoped memory for tpu_custom_call.1']
    #allocation6 [shape = 'u8[512]{0}', space=smem, size = 0x200, scoped, tag = 'input window, operand 1, single buffered']
    #allocation7 [shape = 'u8[512]{0}', space=smem, size = 0x200, scoped, tag = 'input window, operand 2, single buffered']
    #allocation8 [shape = 's32[1]{0}', space=sflag, size = 0x4, scoped, tag = 'scoped memory for tpu_custom_call.1']
    #allocation9 [shape = 'u8[32768]{0}', space=vmem, size = 0x8000, scoped, tag = 'output window, operand 0']
    %8 = vsyncpa [#allocation3], 0
    %s9 = scalar_lea.sflag [#allocation3], 1
    %10 = vsyncpa %s9, 0
    %11 = vsyncpa [#allocation5], 0
    %12 = vsyncpa [#allocation8], 0
    %13 = vsyncpa [#allocation4], 0
    %s14 = scalar_lea.sflag [#allocation4], 1
    %15 = vsyncpa %s14, 0
    loop: start=0, step=1, limit=4
    $region2: #{tpu_custom_call.1} parent=1 // loop_pre_header
      _
    $region3: #{tpu_custom_call.1} parent=1 // loop_header
      %s17 = sphi 0, %s21
      %p18 = scmp.ge.s32.totalorder %s17, 4
      %s27 = sphi 0, %s29
      %s30 = sphi 0, %s27
      %s31 = sphi 0, %s30
      %s47 = sphi 0, %s31
      %s51 = sphi 0, %s51
      %s53 = sphi 0, %s51
      %s54 = sphi 0, %s53
      %s68 = sphi 0, %s54
      %s72 = sphi 0, %s72
      %s74 = sphi 0, %s72
      %s75 = sphi 0, %s74
      %s89 = sphi 0, %s75
      %s95 = sphi 0, %s97
      %s98 = sphi 0, %s95
      %s99 = sphi 0, %s98
      %s115 = sphi 0, %s99
    $region4: #{tpu_custom_call.1} parent=1 // loop_header_branch
      %20 = sbr.rel (%p18) target = $region8
    $region5: #{tpu_custom_call.1} parent=1 // loop_body
      %s22 = ssub.s32 %s17, 1
      %s23 = ssub.s32 %s17, 2
      %s24 = sadd.s32 %s17, 1
      %s25 = ssub.s32 %s17, %s24
      %p26 = scmp.eq.s32.totalorder %s25, 0
      %s28 = sadd.s32 %s27, 1
      %s29 = scalar_select %p26, %s27, %s28
      %p32 = pneg %p26
      %p33 = scmp.eq.s32.totalorder %s17, 1
      %p34 = por %p32, %p33
      %p35 = scmp.ne.s32.totalorder %s27, %s30
      %p36 = scmp.eq.s32.totalorder %s17, 0
      %p37 = por %p35, %p36
      %p38 = scmp.ne.s32.totalorder %s27, %s30
      %p39 = scmp.eq.s32.totalorder %s22, 1
      %p40 = por %p38, %p39
      %p41 = scmp.ne.s32.totalorder %s30, %s31
      %p42 = scmp.eq.s32.totalorder %s22, 0
      %p43 = por %p41, %p42
      %p44 = scmp.ne.s32.totalorder %s30, %s31
      %p45 = scmp.eq.s32.totalorder %s23, 1
      %p46 = por %p44, %p45
      %p48 = scmp.ne.s32.totalorder %s31, %s47
      %p49 = scmp.eq.s32.totalorder %s23, 0
      %p50 = por %p48, %p49
      %s52 = sadd.s32 %s51, 1
      %p55 = scmp.eq.s32.totalorder %s17, 1
      %p56 = scmp.ne.s32.totalorder %s51, %s53
      %p57 = scmp.eq.s32.totalorder %s17, 0
      %p58 = por %p56, %p57
      %p59 = scmp.ne.s32.totalorder %s51, %s53
      %p60 = scmp.eq.s32.totalorder %s22, 1
      %p61 = por %p59, %p60
      %p62 = scmp.ne.s32.totalorder %s53, %s54
      %p63 = scmp.eq.s32.totalorder %s22, 0
      %p64 = por %p62, %p63
      %p65 = scmp.ne.s32.totalorder %s53, %s54
      %p66 = scmp.eq.s32.totalorder %s23, 1
      %p67 = por %p65, %p66
      %p69 = scmp.ne.s32.totalorder %s54, %s68
      %p70 = scmp.eq.s32.totalorder %s23, 0
      %p71 = por %p69, %p70
      %s73 = sadd.s32 %s72, 1
      %p76 = scmp.eq.s32.totalorder %s17, 1
      %p77 = scmp.ne.s32.totalorder %s72, %s74
      %p78 = scmp.eq.s32.totalorder %s17, 0
      %p79 = por %p77, %p78
      %p80 = scmp.ne.s32.totalorder %s72, %s74
      %p81 = scmp.eq.s32.totalorder %s22, 1
      %p82 = por %p80, %p81
      %p83 = scmp.ne.s32.totalorder %s74, %s75
      %p84 = scmp.eq.s32.totalorder %s22, 0
      %p85 = por %p83, %p84
      %p86 = scmp.ne.s32.totalorder %s74, %s75
      %p87 = scmp.eq.s32.totalorder %s23, 1
      %p88 = por %p86, %p87
      %p90 = scmp.ne.s32.totalorder %s75, %s89
      %p91 = scmp.eq.s32.totalorder %s23, 0
      %p92 = por %p90, %p91
      %s93 = ssub.s32 %s17, %s24
      %p94 = scmp.eq.s32.totalorder %s93, 0
      %s96 = sadd.s32 %s95, 1
      %s97 = scalar_select %p94, %s95, %s96
      %p100 = pneg %p94
      %p101 = scmp.eq.s32.totalorder %s17, 1
      %p102 = por %p100, %p101
      %p103 = scmp.ne.s32.totalorder %s95, %s98
      %p104 = scmp.eq.s32.totalorder %s17, 0
      %p105 = por %p103, %p104
      %p106 = scmp.ne.s32.totalorder %s95, %s98
      %p107 = scmp.eq.s32.totalorder %s22, 1
      %p108 = por %p106, %p107
      %p109 = scmp.ne.s32.totalorder %s98, %s99
      %p110 = scmp.eq.s32.totalorder %s22, 0
      %p111 = por %p109, %p110
      %p112 = scmp.ne.s32.totalorder %s98, %s99
      %p113 = scmp.eq.s32.totalorder %s23, 1
      %p114 = por %p112, %p113
      %p116 = scmp.ne.s32.totalorder %s99, %s115
      %p117 = scmp.eq.s32.totalorder %s23, 0
      %p118 = por %p116, %p117
      %p119 = scmp.le.s32.totalorder 1, %s17
      %p120 = scmp.lt.s32.totalorder %s17, 3
      %p121 = pnand %p119, %p120
      %p122 = pneg %p121
      // Predicated region
      $region9: #{tpu_custom_call.1} parent=5 // pred_check
        _
      $region10: #{tpu_custom_call.1} parent=5 // pred_check_branch
        %124 = sbr.rel (%p121) target = $region12
      $region11: #{tpu_custom_call.1} parent=5 // pred_region
        %s125 = ssub.s32 %s17, 1
        // Predicated region
        $region13: #{tpu_custom_call.1} parent=11 // pred_check
          %p126 = pneg %p64
        $region14: #{tpu_custom_call.1} parent=11 // pred_check_branch
          %128 = sbr.rel (%p126) target = $region16
        $region15: #{tpu_custom_call.1} parent=11 // pred_region
          %s130 = ssub.s32 16, 16
          %131 = vsyncadd [#allocation5], %s130
          %s133 = sshll.u32 %s1, 4
          %s134 = int_to_ptr.vmem [resolvable:$true] %s133
          %136 = dma.vmem_to_smem %s134, 16, [#allocation6], [#allocation5]
        $region16: #{tpu_custom_call.1} parent=11 // pred_fallthru
          _
        // Predicated region
        $region17: #{tpu_custom_call.1} parent=11 // pred_check
          %p137 = pneg %p85
        $region18: #{tpu_custom_call.1} parent=11 // pred_check_branch
          %139 = sbr.rel (%p137) target = $region20
        $region19: #{tpu_custom_call.1} parent=11 // pred_region
          %s141 = ssub.s32 16, 16
          %142 = vsyncadd [#allocation8], %s141
          %s144 = sshll.u32 %s2, 4
          %s145 = int_to_ptr.vmem [resolvable:$true] %s144
          %147 = dma.vmem_to_smem %s145, 16, [#allocation7], [#allocation8]
        $region20: #{tpu_custom_call.1} parent=11 // pred_fallthru
          _
      $region12: #{tpu_custom_call.1} parent=5 // pred_fallthru
        _
      %p148 = scmp.lt.s32.totalorder %s17, 2
      // Predicated region
      $region21: #{tpu_custom_call.1} parent=5 // pred_check
        %p149 = pneg %p148
      $region22: #{tpu_custom_call.1} parent=5 // pred_check_branch
        %151 = sbr.rel (%p149) target = $region24
      $region23: #{tpu_custom_call.1} parent=5 // pred_region
        // Predicated region
        $region25: #{tpu_custom_call.1} parent=23 // pred_check
          %p152 = pneg %p37
        $region26: #{tpu_custom_call.1} parent=23 // pred_check_branch
          %154 = sbr.rel (%p152) target = $region28
        $region27: #{tpu_custom_call.1} parent=23 // pred_region
          %s155 = sand.u32 %s27, 1
          %s156 = scalar_lea.sflag [#allocation3], %s155
          %s157 = sand.u32 %s27, 1
          %s158 = smul.addr %s157, 32
          %s159 = scalar_lea.vmem [#allocation2], %s158
          %s161 = ssub.s32 512, 512
          %162 = vsyncadd %s156, %s161
          %s163 = smul.addr %s17, 4
          %s164 = smul.addr %s163, 128
          %s165 = scalar_lea.hbm %s0, %s164
          %s166 = sshll.u32 %s159, 4
          %s167 = int_to_ptr.vmem [resolvable:$true] %s166
          %172 = dma.hbm_to_vmem [thread:$0]  %s165, 512, %s167, %s156, 128, 128, 8
        $region28: #{tpu_custom_call.1} parent=23 // pred_fallthru
          _
      $region24: #{tpu_custom_call.1} parent=5 // pred_fallthru
        _
      %p173 = scmp.le.s32.totalorder 1, %s17
      %p174 = scmp.lt.s32.totalorder %s17, 3
      %p175 = pnand %p173, %p174
      %p176 = pneg %p175
      // Predicated region
      $region29: #{tpu_custom_call.1} parent=5 // pred_check
        _
      $region30: #{tpu_custom_call.1} parent=5 // pred_check_branch
        %178 = sbr.rel (%p175) target = $region32
      $region31: #{tpu_custom_call.1} parent=5 // pred_region
        %s179 = ssub.s32 %s17, 1
        %s180 = sand.u32 %s30, 1
        %s181 = scalar_lea.sflag [#allocation3], %s180
        %s182 = sand.u32 %s30, 1
        %s183 = smul.addr %s182, 32
        %s184 = scalar_lea.vmem [#allocation2], %s183
        // Predicated region
        $region33: #{tpu_custom_call.1} parent=31 // pred_check
          %p185 = pneg %p43
        $region34: #{tpu_custom_call.1} parent=31 // pred_check_branch
          %187 = sbr.rel (%p185) target = $region36
        $region35: #{tpu_custom_call.1} parent=31 // pred_region
          %188 = dma.done %s181, 512
        $region36: #{tpu_custom_call.1} parent=31 // pred_fallthru
          _
        // Predicated region
        $region37: #{tpu_custom_call.1} parent=31 // pred_check
          %p189 = pneg %p64
        $region38: #{tpu_custom_call.1} parent=31 // pred_check_branch
          %191 = sbr.rel (%p189) target = $region40
        $region39: #{tpu_custom_call.1} parent=31 // pred_region
          %192 = dma.done [#allocation5], 16
        $region40: #{tpu_custom_call.1} parent=31 // pred_fallthru
          _
        // Predicated region
        $region41: #{tpu_custom_call.1} parent=31 // pred_check
          %p193 = pneg %p85
        $region42: #{tpu_custom_call.1} parent=31 // pred_check_branch
          %195 = sbr.rel (%p193) target = $region44
        $region43: #{tpu_custom_call.1} parent=31 // pred_region
          %196 = dma.done [#allocation8], 16
        $region44: #{tpu_custom_call.1} parent=31 // pred_fallthru
          _
        %197 = sfence
        %s198 = sand.u32 %s30, 1
        %s199 = scalar_lea.sflag [#allocation3], %s198
        %s200 = sand.u32 %s30, 1
        %s201 = smul.addr %s200, 32
        %s202 = scalar_lea.vmem [#allocation2], %s201
        %p203 = pneg %p43
        %p204 = pneg %p40
        %p205 = pneg %p64
        %p206 = pneg %p61
        %p207 = pneg %p85
        %p208 = pneg %p82
        %p209 = pneg %p111
        %p210 = pneg %p108
        %s211 = sand.u32 %s98, 1
        %s212 = scalar_lea.sflag [#allocation4], %s211
        %s213 = sand.u32 %s98, 1
        %s214 = smul.addr %s213, 32
        %s215 = scalar_lea.vmem [#allocation9], %s214
        %v216 = vlaneseq
        %v217 = vshrl.u32 %v216, 7
        %v218 = vadd.s32 %v217, 8
        %v219 = vlaneseq
        %v220 = vand.u32 %v219, 127
        %v221 = vand.u32 %v220, 15
        %v222 = vmul.u32 %v217, 16
        %vm223 = vcmp.ge.s32.totalorder %v220, %v222
        %v224 = vadd.s32 %v217, 1
        %v225 = vmul.u32 %v224, 16
        %vm226 = vcmp.lt.s32.totalorder %v220, %v225
        %vm227 = vmand %vm223, %vm226
        %v228 = vsel %vm227, 1, 0
        %v229 = vcvt.s32.f32 %v228
        %v230 = vld [vmem:[%s184] sm:$0xff]
        %v231 = vld [vmem:[%s184 + $0x8] sm:$0xff]
        %s232 = scalar_lea.vmem %s184, 16 [#allocation2]
        %v233 = vld [vmem:[%s232] sm:$0xff]
        %v234 = vld [vmem:[%s232 + $0x8] sm:$0xff]
        %vm235 = vcmp.ge.s32.totalorder %v217, 1
        %vm236 = vcmp.ge.s32.totalorder %v218, 1
        %v237 = vrot.slane %v230, 7
        %v238 = vrot.slane %v231, 7
        %vm239 = vcmp.lt.s32.totalorder %v217, 1
        %v240 = vsel %vm239, %v237, %v238
        %v241 = vsel %vm239, %v238, %v237
        %v242 = vsel %vm235, %v241, 0.0
        %v243 = vsel %vm236, %v240, 0.0
        %s244 = sld [smem:[#allocation6]]
        %v245 = vstv %s244
        %v246 = vmul.f32 %v245, %v242
        %v247 = vmul.f32 %v245, %v243
        %s248 = sld [smem:[#allocation6 + $0x1]]
        %v249 = vstv %s248
        %v250 = vmul.f32 %v249, %v242
        %v251 = vmul.f32 %v249, %v243
        %s252 = sld [smem:[#allocation6 + $0x2]]
        %v253 = vstv %s252
        %v254 = vmul.f32 %v253, %v242
        %v255 = vmul.f32 %v253, %v243
        %s256 = sld [smem:[#allocation6 + $0x12]]
        %v257 = vstv %s256
        %v258 = vmul.f32 %v257, %v242
        %v259 = vmul.f32 %v257, %v243
        %s260 = sld [smem:[#allocation6 + $0x13]]
        %v261 = vstv %s260
        %v262 = vmul.f32 %v261, %v242
        %v263 = vmul.f32 %v261, %v243
        %s264 = sld [smem:[#allocation6 + $0x14]]
        %v265 = vstv %s264
        %v266 = vmul.f32 %v265, %v242
        %v267 = vmul.f32 %v265, %v243
        %v268 = vrot.slane %v233, 7
        %v269 = vrot.slane %v234, 7
        %v270 = vsel %vm239, %v268, %v269
        %v271 = vsel %vm239, %v269, %v268
        %v272 = vsel %vm235, %v271, 0.0
        %v273 = vsel %vm236, %v270, 0.0
        %s274 = sld [smem:[#allocation6 + $0x9]]
        %v275 = vstv %s274
        %v276 = vmul.f32 %v275, %v272
        %v277 = vmul.f32 %v275, %v273
        %v278 = vadd.f32 %v246, %v276
        %v279 = vadd.f32 %v247, %v277
        %s280 = sld [smem:[#allocation6 + $0xa]]
        %v281 = vstv %s280
        %v282 = vmul.f32 %v281, %v272
        %v283 = vmul.f32 %v281, %v273
        %v284 = vadd.f32 %v250, %v282
        %v285 = vadd.f32 %v251, %v283
        %s286 = sld [smem:[#allocation6 + $0xb]]
        %v287 = vstv %s286
        %v288 = vmul.f32 %v287, %v272
        %v289 = vmul.f32 %v287, %v273
        %v290 = vadd.f32 %v254, %v288
        %v291 = vadd.f32 %v255, %v289
        %s292 = sld [smem:[#allocation6 + $0x1b]]
        %v293 = vstv %s292
        %v294 = vmul.f32 %v293, %v272
        %v295 = vmul.f32 %v293, %v273
        %v296 = vadd.f32 %v258, %v294
        %v297 = vadd.f32 %v259, %v295
        %s298 = sld [smem:[#allocation6 + $0x1c]]
        %v299 = vstv %s298
        %v300 = vmul.f32 %v299, %v272
        %v301 = vmul.f32 %v299, %v273
        %v302 = vadd.f32 %v262, %v300
        %v303 = vadd.f32 %v263, %v301
        %s304 = sld [smem:[#allocation6 + $0x1d]]
        %v305 = vstv %s304
        %v306 = vmul.f32 %v305, %v272
        %v307 = vmul.f32 %v305, %v273
        %v308 = vadd.f32 %v266, %v306
        %v309 = vadd.f32 %v267, %v307
        %s310 = sld [smem:[#allocation6 + $0x3]]
        %v311 = vstv %s310
        %v312 = vmul.f32 %v311, %v230
        %v313 = vmul.f32 %v311, %v231
        %v314 = vadd.f32 %v278, %v312
        %v315 = vadd.f32 %v279, %v313
        %s316 = sld [smem:[#allocation6 + $0x4]]
        %v317 = vstv %s316
        %v318 = vmul.f32 %v317, %v230
        %v319 = vmul.f32 %v317, %v231
        %v320 = vadd.f32 %v284, %v318
        %v321 = vadd.f32 %v285, %v319
        %s322 = sld [smem:[#allocation6 + $0x5]]
        %v323 = vstv %s322
        %v324 = vmul.f32 %v323, %v230
        %v325 = vmul.f32 %v323, %v231
        %v326 = vadd.f32 %v290, %v324
        %v327 = vadd.f32 %v291, %v325
        %s328 = sld [smem:[#allocation6 + $0x15]]
        %v329 = vstv %s328
        %v330 = vmul.f32 %v329, %v230
        %v331 = vmul.f32 %v329, %v231
        %v332 = vadd.f32 %v296, %v330
        %v333 = vadd.f32 %v297, %v331
        %s334 = sld [smem:[#allocation6 + $0x16]]
        %v335 = vstv %s334
        %v336 = vmul.f32 %v335, %v230
        %v337 = vmul.f32 %v335, %v231
        %v338 = vadd.f32 %v302, %v336
        %v339 = vadd.f32 %v303, %v337
        %s340 = sld [smem:[#allocation6 + $0x17]]
        %v341 = vstv %s340
        %v342 = vmul.f32 %v341, %v230
        %v343 = vmul.f32 %v341, %v231
        %v344 = vadd.f32 %v308, %v342
        %v345 = vadd.f32 %v309, %v343
        %s346 = sld [smem:[#allocation6 + $0xc]]
        %v347 = vstv %s346
        %v348 = vmul.f32 %v347, %v233
        %v349 = vmul.f32 %v347, %v234
        %v350 = vadd.f32 %v314, %v348
        %v351 = vadd.f32 %v315, %v349
        %s352 = sld [smem:[#allocation6 + $0xd]]
        %v353 = vstv %s352
        %v354 = vmul.f32 %v353, %v233
        %v355 = vmul.f32 %v353, %v234
        %v356 = vadd.f32 %v320, %v354
        %v357 = vadd.f32 %v321, %v355
        %s358 = sld [smem:[#allocation6 + $0xe]]
        %v359 = vstv %s358
        %v360 = vmul.f32 %v359, %v233
        %v361 = vmul.f32 %v359, %v234
        %v362 = vadd.f32 %v326, %v360
        %v363 = vadd.f32 %v327, %v361
        %s364 = sld [smem:[#allocation6 + $0x1e]]
        %v365 = vstv %s364
        %v366 = vmul.f32 %v365, %v233
        %v367 = vmul.f32 %v365, %v234
        %v368 = vadd.f32 %v332, %v366
        %v369 = vadd.f32 %v333, %v367
        %s370 = sld [smem:[#allocation6 + $0x1f]]
        %v371 = vstv %s370
        %v372 = vmul.f32 %v371, %v233
        %v373 = vmul.f32 %v371, %v234
        %v374 = vadd.f32 %v338, %v372
        %v375 = vadd.f32 %v339, %v373
        %s376 = sld [smem:[#allocation6 + $0x20]]
        %v377 = vstv %s376
        %v378 = vmul.f32 %v377, %v233
        %v379 = vmul.f32 %v377, %v234
        %v380 = vadd.f32 %v344, %v378
        %v381 = vadd.f32 %v345, %v379
        %vm382 = vcmp.lt.s32.totalorder %v217, 15
        %vm383 = vcmp.lt.s32.totalorder %v218, 15
        %v384 = vrot.slane %v230, 1
        %v385 = vrot.slane %v231, 1
        %vm386 = vcmp.lt.s32.totalorder %v217, 7
        %v387 = vsel %vm386, %v384, %v385
        %v388 = vsel %vm386, %v385, %v384
        %v389 = vsel %vm382, %v387, 0.0
        %v390 = vsel %vm383, %v388, 0.0
        %s391 = sld [smem:[#allocation6 + $0x6]]
        %v392 = vstv %s391
        %v393 = vmul.f32 %v392, %v389
        %v394 = vmul.f32 %v392, %v390
        %v395 = vadd.f32 %v350, %v393
        %v396 = vadd.f32 %v351, %v394
        %s397 = sld [smem:[#allocation6 + $0x7]]
        %v398 = vstv %s397
        %v399 = vmul.f32 %v398, %v389
        %v400 = vmul.f32 %v398, %v390
        %v401 = vadd.f32 %v356, %v399
        %v402 = vadd.f32 %v357, %v400
        %s403 = sld [smem:[#allocation6 + $0x8]]
        %v404 = vstv %s403
        %v405 = vmul.f32 %v404, %v389
        %v406 = vmul.f32 %v404, %v390
        %v407 = vadd.f32 %v362, %v405
        %v408 = vadd.f32 %v363, %v406
        %s409 = sld [smem:[#allocation6 + $0x18]]
        %v410 = vstv %s409
        %v411 = vmul.f32 %v410, %v389
        %v412 = vmul.f32 %v410, %v390
        %v413 = vadd.f32 %v368, %v411
        %v414 = vadd.f32 %v369, %v412
        %s415 = sld [smem:[#allocation6 + $0x19]]
        %v416 = vstv %s415
        %v417 = vmul.f32 %v416, %v389
        %v418 = vmul.f32 %v416, %v390
        %v419 = vadd.f32 %v374, %v417
        %v420 = vadd.f32 %v375, %v418
        %s421 = sld [smem:[#allocation6 + $0x1a]]
        %v422 = vstv %s421
        %v423 = vmul.f32 %v422, %v389
        %v424 = vmul.f32 %v422, %v390
        %v425 = vadd.f32 %v380, %v423
        %v426 = vadd.f32 %v381, %v424
        %v427 = vrot.slane %v233, 1
        %v428 = vrot.slane %v234, 1
        %v429 = vsel %vm386, %v427, %v428
        %v430 = vsel %vm386, %v428, %v427
        %v431 = vsel %vm382, %v429, 0.0
        %v432 = vsel %vm383, %v430, 0.0
        %s433 = sld [smem:[#allocation6 + $0xf]]
        %v434 = vstv %s433
        %v435 = vmul.f32 %v434, %v431
        %v436 = vmul.f32 %v434, %v432
        %v437 = vadd.f32 %v395, %v435
        %v438 = vadd.f32 %v396, %v436
        %s439 = sld [smem:[#allocation6 + $0x10]]
        %v440 = vstv %s439
        %v441 = vmul.f32 %v440, %v431
        %v442 = vmul.f32 %v440, %v432
        %v443 = vadd.f32 %v401, %v441
        %v444 = vadd.f32 %v402, %v442
        %s445 = sld [smem:[#allocation6 + $0x11]]
        %v446 = vstv %s445
        %v447 = vmul.f32 %v446, %v431
        %v448 = vmul.f32 %v446, %v432
        %v449 = vadd.f32 %v407, %v447
        %v450 = vadd.f32 %v408, %v448
        %s451 = sld [smem:[#allocation6 + $0x21]]
        %v452 = vstv %s451
        %v453 = vmul.f32 %v452, %v431
        %v454 = vmul.f32 %v452, %v432
        %v455 = vadd.f32 %v413, %v453
        %v456 = vadd.f32 %v414, %v454
        %s457 = sld [smem:[#allocation6 + $0x22]]
        %v458 = vstv %s457
        %v459 = vmul.f32 %v458, %v431
        %v460 = vmul.f32 %v458, %v432
        %v461 = vadd.f32 %v419, %v459
        %v462 = vadd.f32 %v420, %v460
        %s463 = sld [smem:[#allocation6 + $0x23]]
        %v464 = vstv %s463
        %v465 = vmul.f32 %v464, %v431
        %v466 = vmul.f32 %v464, %v432
        %v467 = vadd.f32 %v425, %v465
        %v468 = vadd.f32 %v426, %v466
        %vm469 = vcmp.ge.s32.totalorder %v221, 1
        %470 = vrot.lane.b32.xlu0 %v437, 1
        %v471 = vpop.permute.xlu0 %470
        %472 = vrot.lane.b32.xlu0 %v438, 1
        %v473 = vpop.permute.xlu0 %472
        %v474 = vsel %vm469, %v471, 0.0
        %v475 = vsel %vm469, %v473, 0.0
        %476 = vrot.lane.b32.xlu0 %v455, 1
        %v477 = vpop.permute.xlu0 %476
        %478 = vrot.lane.b32.xlu0 %v456, 1
        %v479 = vpop.permute.xlu0 %478
        %v480 = vsel %vm469, %v477, 0.0
        %v481 = vsel %vm469, %v479, 0.0
        %v482 = vadd.f32 %v474, %v443
        %v483 = vadd.f32 %v475, %v444
        %v484 = vadd.f32 %v480, %v461
        %v485 = vadd.f32 %v481, %v462
        %vm486 = vcmp.lt.s32.totalorder %v221, 15
        %487 = vrot.lane.b32.xlu0 %v449, 127
        %v488 = vpop.permute.xlu0 %487
        %489 = vrot.lane.b32.xlu0 %v450, 127
        %v490 = vpop.permute.xlu0 %489
        %v491 = vsel %vm486, %v488, 0.0
        %v492 = vsel %vm486, %v490, 0.0
        %v493 = vadd.f32 %v482, %v491
        %v494 = vadd.f32 %v483, %v492
        %495 = vrot.lane.b32.xlu0 %v467, 127
        %v496 = vpop.permute.xlu0 %495
        %497 = vrot.lane.b32.xlu0 %v468, 127
        %v498 = vpop.permute.xlu0 %497
        %v499 = vsel %vm486, %v496, 0.0
        %v500 = vsel %vm486, %v498, 0.0
        %v501 = vadd.f32 %v484, %v499
        %v502 = vadd.f32 %v485, %v500
        %v503 = vadd.f32 %v493, %v494
        %v504 = vrot.slane %v503, 4
        %v505 = vadd.f32 %v503, %v504
        %v506 = vrot.slane %v505, 2
        %v507 = vadd.f32 %v505, %v506
        %v508 = vrot.slane %v507, 1
        %v509 = vadd.f32 %v507, %v508
        %510 = vmatprep.subr.mxu0 0.0
        %v511 = vand.u32 %v229, 4294901760
        %512 = vmatpush1.xpose.msra.mxu0 %v511
        %513 = vmatprep.subr.mxu0 0.0
        %514 = vmatpush1.xpose.msra.mxu0 0.0
        %515 = vmatprep.subr.mxu0 0.0
        %516 = vmatpush1.xpose.msra.mxu0 0.0
        %517 = vmatprep.subr.mxu0 0.0
        %518 = vmatpush1.xpose.msra.mxu0 0.0
        %519 = vmatprep.subr.mxu0 0.0
        %520 = vmatpush1.xpose.msra.mxu0 0.0
        %521 = vmatprep.subr.mxu0 0.0
        %522 = vmatpush1.xpose.msra.mxu0 0.0
        %523 = vmatprep.subr.mxu0 0.0
        %524 = vmatpush1.xpose.msra.mxu0 0.0
        %525 = vmatprep.subr.mxu0 0.0
        %526 = vmatpush1.xpose.msra.mxu0 0.0
        %527 = vmatprep.subr.mxu0 0.0
        %528 = vmatpush1.xpose.msra.mxu0 0.0
        %529 = vmatprep.subr.mxu0 0.0
        %530 = vmatpush1.xpose.msra.mxu0 0.0
        %531 = vmatprep.subr.mxu0 0.0
        %532 = vmatpush1.xpose.msra.mxu0 0.0
        %533 = vmatprep.subr.mxu0 0.0
        %534 = vmatpush1.xpose.msra.mxu0 0.0
        %535 = vmatprep.subr.mxu0 0.0
        %536 = vmatpush1.xpose.msra.mxu0 0.0
        %537 = vmatprep.subr.mxu0 0.0
        %538 = vmatpush1.xpose.msra.mxu0 0.0
        %539 = vmatprep.subr.mxu0 0.0
        %540 = vmatpush1.xpose.msra.mxu0 0.0
        %541 = vmatprep.subr.mxu0 0.0
        %542 = vmatpush1.xpose.msra.mxu0 0.0
        %543 = vmatprep.subr.mxu0 0.0
        %544 = vmatpush1.xpose.msra.mxu0 0.0
        %545 = vmatprep.subr.mxu0 0.0
        %546 = vmatpush1.xpose.msra.mxu0 0.0
        %547 = vmatprep.subr.mxu0 0.0
        %548 = vmatpush1.xpose.msra.mxu0 0.0
        %549 = vmatprep.subr.mxu0 0.0
        %550 = vmatpush1.xpose.msra.mxu0 0.0
        %551 = vmatprep.subr.mxu0 0.0
        %552 = vmatpush1.xpose.msra.mxu0 0.0
        %553 = vmatprep.subr.mxu0 0.0
        %554 = vmatpush1.xpose.msra.mxu0 0.0
        %555 = vmatprep.subr.mxu0 0.0
        %556 = vmatpush1.xpose.msra.mxu0 0.0
        %557 = vmatprep.subr.mxu0 0.0
        %558 = vmatpush1.xpose.msra.mxu0 0.0
        %559 = vmatprep.subr.mxu0 0.0
        %560 = vmatpush1.xpose.msra.mxu0 0.0
        %561 = vmatprep.subr.mxu0 0.0
        %562 = vmatpush1.xpose.msra.mxu0 0.0
        %563 = vmatprep.subr.mxu0 0.0
        %564 = vmatpush1.xpose.msra.mxu0 0.0
        %565 = vmatprep.subr.mxu0 0.0
        %566 = vmatpush1.xpose.msra.mxu0 0.0
        %567 = vmatprep.subr.mxu0 0.0
        %568 = vmatpush1.xpose.msra.mxu0 0.0
        %569 = vmatprep.subr.mxu0 0.0
        %570 = vmatpush1.xpose.msra.mxu0 0.0
        %571 = vmatprep.subr.mxu0 0.0
        %572 = vmatpush1.xpose.msra.mxu0 0.0
        %573 = vmatprep.subr.mxu0 0.0
        %574 = vmatpush1.xpose.msra.mxu0 0.0
        %575 = vmatprep.mubr.f32.mxu0 0.0
        %v576 = vand.u32 %v509, 4294901760
        %v577 = vsub.f32 %v509, %v576
        %v578 = vand.u32 %v577, 4294901760
        %v579 = vsub.f32 %v577, %v578
        %v580 = vand.u32 %v579, 4294901760
        %581 = vmatmul.mubr.f32.gmra.mrb[0].mxu0 %v580
        %v582 = vpop.f32.mrb[0].mxu0
        %v583 = vadd.f32 0.0, %v582
        %v584 = vpop.f32.mrb[0].mxu0
        %585 = vdwg.mxu0
        %586 = vmatprep.subr.mxu0 0.0
        %v587 = vand.u32 %v229, 4294901760
        %v588 = vsub.f32 %v229, %v587
        %v589 = vand.u32 %v588, 4294901760
        %v590 = vsub.f32 %v588, %v589
        %v591 = vand.u32 %v590, 4294901760
        %592 = vmatpush1.xpose.msra.mxu0 %v591
        %593 = vmatprep.subr.mxu0 0.0
        %594 = vmatpush1.xpose.msra.mxu0 0.0
        %595 = vmatprep.subr.mxu0 0.0
        %596 = vmatpush1.xpose.msra.mxu0 0.0
        %597 = vmatprep.subr.mxu0 0.0
        %598 = vmatpush1.xpose.msra.mxu0 0.0
        %599 = vmatprep.subr.mxu0 0.0
        %600 = vmatpush1.xpose.msra.mxu0 0.0
        %601 = vmatprep.subr.mxu0 0.0
        %602 = vmatpush1.xpose.msra.mxu0 0.0
        %603 = vmatprep.subr.mxu0 0.0
        %604 = vmatpush1.xpose.msra.mxu0 0.0
        %605 = vmatprep.subr.mxu0 0.0
        %606 = vmatpush1.xpose.msra.mxu0 0.0
        %607 = vmatprep.subr.mxu0 0.0
        %608 = vmatpush1.xpose.msra.mxu0 0.0
        %609 = vmatprep.subr.mxu0 0.0
        %610 = vmatpush1.xpose.msra.mxu0 0.0
        %611 = vmatprep.subr.mxu0 0.0
        %612 = vmatpush1.xpose.msra.mxu0 0.0
        %613 = vmatprep.subr.mxu0 0.0
        %614 = vmatpush1.xpose.msra.mxu0 0.0
        %615 = vmatprep.subr.mxu0 0.0
        %616 = vmatpush1.xpose.msra.mxu0 0.0
        %617 = vmatprep.subr.mxu0 0.0
        %618 = vmatpush1.xpose.msra.mxu0 0.0
        %619 = vmatprep.subr.mxu0 0.0
        %620 = vmatpush1.xpose.msra.mxu0 0.0
        %621 = vmatprep.subr.mxu0 0.0
        %622 = vmatpush1.xpose.msra.mxu0 0.0
        %623 = vmatprep.subr.mxu0 0.0
        %624 = vmatpush1.xpose.msra.mxu0 0.0
        %625 = vmatprep.subr.mxu0 0.0
        %626 = vmatpush1.xpose.msra.mxu0 0.0
        %627 = vmatprep.subr.mxu0 0.0
        %628 = vmatpush1.xpose.msra.mxu0 0.0
        %629 = vmatprep.subr.mxu0 0.0
        %630 = vmatpush1.xpose.msra.mxu0 0.0
        %631 = vmatprep.subr.mxu0 0.0
        %632 = vmatpush1.xpose.msra.mxu0 0.0
        %633 = vmatprep.subr.mxu0 0.0
        %634 = vmatpush1.xpose.msra.mxu0 0.0
        %635 = vmatprep.subr.mxu0 0.0
        %636 = vmatpush1.xpose.msra.mxu0 0.0
        %637 = vmatprep.subr.mxu0 0.0
        %638 = vmatpush1.xpose.msra.mxu0 0.0
        %639 = vmatprep.subr.mxu0 0.0
        %640 = vmatpush1.xpose.msra.mxu0 0.0
        %641 = vmatprep.subr.mxu0 0.0
        %642 = vmatpush1.xpose.msra.mxu0 0.0
        %643 = vmatprep.subr.mxu0 0.0
        %644 = vmatpush1.xpose.msra.mxu0 0.0
        %645 = vmatprep.subr.mxu0 0.0
        %646 = vmatpush1.xpose.msra.mxu0 0.0
        %647 = vmatprep.subr.mxu0 0.0
        %648 = vmatpush1.xpose.msra.mxu0 0.0
        %649 = vmatprep.subr.mxu0 0.0
        %650 = vmatpush1.xpose.msra.mxu0 0.0
        %651 = vmatprep.subr.mxu0 0.0
        %652 = vmatpush1.xpose.msra.mxu0 0.0
        %653 = vmatprep.subr.mxu0 0.0
        %654 = vmatpush1.xpose.msra.mxu0 0.0
        %655 = vmatprep.mubr.f32.mxu0 0.0
        %v656 = vand.u32 %v509, 4294901760
        %657 = vmatmul.mubr.f32.gmra.mrb[0].mxu0 %v656
        %v658 = vpop.f32.mrb[0].mxu0
        %v659 = vadd.f32 %v583, %v658
        %v660 = vpop.f32.mrb[0].mxu0
        %661 = vdwg.mxu0
        %662 = vmatprep.subr.mxu0 0.0
        %v663 = vand.u32 %v229, 4294901760
        %v664 = vsub.f32 %v229, %v663
        %665 = vmatpush1.xpose.msra.mxu0 %v664
        %666 = vmatprep.subr.mxu0 0.0
        %667 = vmatpush1.xpose.msra.mxu0 0.0
        %668 = vmatprep.subr.mxu0 0.0
        %669 = vmatpush1.xpose.msra.mxu0 0.0
        %670 = vmatprep.subr.mxu0 0.0
        %671 = vmatpush1.xpose.msra.mxu0 0.0
        %672 = vmatprep.subr.mxu0 0.0
        %673 = vmatpush1.xpose.msra.mxu0 0.0
        %674 = vmatprep.subr.mxu0 0.0
        %675 = vmatpush1.xpose.msra.mxu0 0.0
        %676 = vmatprep.subr.mxu0 0.0
        %677 = vmatpush1.xpose.msra.mxu0 0.0
        %678 = vmatprep.subr.mxu0 0.0
        %679 = vmatpush1.xpose.msra.mxu0 0.0
        %680 = vmatprep.subr.mxu0 0.0
        %681 = vmatpush1.xpose.msra.mxu0 0.0
        %682 = vmatprep.subr.mxu0 0.0
        %683 = vmatpush1.xpose.msra.mxu0 0.0
        %684 = vmatprep.subr.mxu0 0.0
        %685 = vmatpush1.xpose.msra.mxu0 0.0
        %686 = vmatprep.subr.mxu0 0.0
        %687 = vmatpush1.xpose.msra.mxu0 0.0
        %688 = vmatprep.subr.mxu0 0.0
        %689 = vmatpush1.xpose.msra.mxu0 0.0
        %690 = vmatprep.subr.mxu0 0.0
        %691 = vmatpush1.xpose.msra.mxu0 0.0
        %692 = vmatprep.subr.mxu0 0.0
        %693 = vmatpush1.xpose.msra.mxu0 0.0
        %694 = vmatprep.subr.mxu0 0.0
        %695 = vmatpush1.xpose.msra.mxu0 0.0
        %696 = vmatprep.subr.mxu0 0.0
        %697 = vmatpush1.xpose.msra.mxu0 0.0
        %698 = vmatprep.subr.mxu0 0.0
        %699 = vmatpush1.xpose.msra.mxu0 0.0
        %700 = vmatprep.subr.mxu0 0.0
        %701 = vmatpush1.xpose.msra.mxu0 0.0
        %702 = vmatprep.subr.mxu0 0.0
        %703 = vmatpush1.xpose.msra.mxu0 0.0
        %704 = vmatprep.subr.mxu0 0.0
        %705 = vmatpush1.xpose.msra.mxu0 0.0
        %706 = vmatprep.subr.mxu0 0.0
        %707 = vmatpush1.xpose.msra.mxu0 0.0
        %708 = vmatprep.subr.mxu0 0.0
        %709 = vmatpush1.xpose.msra.mxu0 0.0
        %710 = vmatprep.subr.mxu0 0.0
        %711 = vmatpush1.xpose.msra.mxu0 0.0
        %712 = vmatprep.subr.mxu0 0.0
        %713 = vmatpush1.xpose.msra.mxu0 0.0
        %714 = vmatprep.subr.mxu0 0.0
        %715 = vmatpush1.xpose.msra.mxu0 0.0
        %716 = vmatprep.subr.mxu0 0.0
        %717 = vmatpush1.xpose.msra.mxu0 0.0
        %718 = vmatprep.subr.mxu0 0.0
        %719 = vmatpush1.xpose.msra.mxu0 0.0
        %720 = vmatprep.subr.mxu0 0.0
        %721 = vmatpush1.xpose.msra.mxu0 0.0
        %722 = vmatprep.subr.mxu0 0.0
        %723 = vmatpush1.xpose.msra.mxu0 0.0
        %724 = vmatprep.subr.mxu0 0.0
        %725 = vmatpush1.xpose.msra.mxu0 0.0
        %726 = vmatprep.subr.mxu0 0.0
        %727 = vmatpush1.xpose.msra.mxu0 0.0
        %728 = vmatprep.mubr.f32.mxu0 0.0
        %v729 = vand.u32 %v509, 4294901760
        %v730 = vsub.f32 %v509, %v729
        %731 = vmatmul.mubr.f32.gmra.mrb[0].mxu0 %v730
        %v732 = vpop.f32.mrb[0].mxu0
        %v733 = vadd.f32 %v659, %v732
        %v734 = vpop.f32.mrb[0].mxu0
        %735 = vdwg.mxu0
        %736 = vmatprep.subr.mxu0 0.0
        %v737 = vand.u32 %v229, 4294901760
        %738 = vmatpush1.xpose.msra.mxu0 %v737
        %739 = vmatprep.subr.mxu0 0.0
        %740 = vmatpush1.xpose.msra.mxu0 0.0
        %741 = vmatprep.subr.mxu0 0.0
        %742 = vmatpush1.xpose.msra.mxu0 0.0
        %743 = vmatprep.subr.mxu0 0.0
        %744 = vmatpush1.xpose.msra.mxu0 0.0
        %745 = vmatprep.subr.mxu0 0.0
        %746 = vmatpush1.xpose.msra.mxu0 0.0
        %747 = vmatprep.subr.mxu0 0.0
        %748 = vmatpush1.xpose.msra.mxu0 0.0
        %749 = vmatprep.subr.mxu0 0.0
        %750 = vmatpush1.xpose.msra.mxu0 0.0
        %751 = vmatprep.subr.mxu0 0.0
        %752 = vmatpush1.xpose.msra.mxu0 0.0
        %753 = vmatprep.subr.mxu0 0.0
        %754 = vmatpush1.xpose.msra.mxu0 0.0
        %755 = vmatprep.subr.mxu0 0.0
        %756 = vmatpush1.xpose.msra.mxu0 0.0
        %757 = vmatprep.subr.mxu0 0.0
        %758 = vmatpush1.xpose.msra.mxu0 0.0
        %759 = vmatprep.subr.mxu0 0.0
        %760 = vmatpush1.xpose.msra.mxu0 0.0
        %761 = vmatprep.subr.mxu0 0.0
        %762 = vmatpush1.xpose.msra.mxu0 0.0
        %763 = vmatprep.subr.mxu0 0.0
        %764 = vmatpush1.xpose.msra.mxu0 0.0
        %765 = vmatprep.subr.mxu0 0.0
        %766 = vmatpush1.xpose.msra.mxu0 0.0
        %767 = vmatprep.subr.mxu0 0.0
        %768 = vmatpush1.xpose.msra.mxu0 0.0
        %769 = vmatprep.subr.mxu0 0.0
        %770 = vmatpush1.xpose.msra.mxu0 0.0
        %771 = vmatprep.subr.mxu0 0.0
        %772 = vmatpush1.xpose.msra.mxu0 0.0
        %773 = vmatprep.subr.mxu0 0.0
        %774 = vmatpush1.xpose.msra.mxu0 0.0
        %775 = vmatprep.subr.mxu0 0.0
        %776 = vmatpush1.xpose.msra.mxu0 0.0
        %777 = vmatprep.subr.mxu0 0.0
        %778 = vmatpush1.xpose.msra.mxu0 0.0
        %779 = vmatprep.subr.mxu0 0.0
        %780 = vmatpush1.xpose.msra.mxu0 0.0
        %781 = vmatprep.subr.mxu0 0.0
        %782 = vmatpush1.xpose.msra.mxu0 0.0
        %783 = vmatprep.subr.mxu0 0.0
        %784 = vmatpush1.xpose.msra.mxu0 0.0
        %785 = vmatprep.subr.mxu0 0.0
        %786 = vmatpush1.xpose.msra.mxu0 0.0
        %787 = vmatprep.subr.mxu0 0.0
        %788 = vmatpush1.xpose.msra.mxu0 0.0
        %789 = vmatprep.subr.mxu0 0.0
        %790 = vmatpush1.xpose.msra.mxu0 0.0
        %791 = vmatprep.subr.mxu0 0.0
        %792 = vmatpush1.xpose.msra.mxu0 0.0
        %793 = vmatprep.subr.mxu0 0.0
        %794 = vmatpush1.xpose.msra.mxu0 0.0
        %795 = vmatprep.subr.mxu0 0.0
        %796 = vmatpush1.xpose.msra.mxu0 0.0
        %797 = vmatprep.subr.mxu0 0.0
        %798 = vmatpush1.xpose.msra.mxu0 0.0
        %799 = vmatprep.subr.mxu0 0.0
        %800 = vmatpush1.xpose.msra.mxu0 0.0
        %801 = vmatprep.mubr.f32.mxu0 0.0
        %v802 = vand.u32 %v509, 4294901760
        %v803 = vsub.f32 %v509, %v802
        %v804 = vand.u32 %v803, 4294901760
        %805 = vmatmul.mubr.f32.gmra.mrb[0].mxu0 %v804
        %v806 = vpop.f32.mrb[0].mxu0
        %v807 = vadd.f32 %v733, %v806
        %v808 = vpop.f32.mrb[0].mxu0
        %809 = vdwg.mxu0
        %810 = vmatprep.subr.mxu0 0.0
        %v811 = vand.u32 %v229, 4294901760
        %v812 = vsub.f32 %v229, %v811
        %v813 = vand.u32 %v812, 4294901760
        %814 = vmatpush1.xpose.msra.mxu0 %v813
        %815 = vmatprep.subr.mxu0 0.0
        %816 = vmatpush1.xpose.msra.mxu0 0.0
        %817 = vmatprep.subr.mxu0 0.0
        %818 = vmatpush1.xpose.msra.mxu0 0.0
        %819 = vmatprep.subr.mxu0 0.0
        %820 = vmatpush1.xpose.msra.mxu0 0.0
        %821 = vmatprep.subr.mxu0 0.0
        %822 = vmatpush1.xpose.msra.mxu0 0.0
        %823 = vmatprep.subr.mxu0 0.0
        %824 = vmatpush1.xpose.msra.mxu0 0.0
        %825 = vmatprep.subr.mxu0 0.0
        %826 = vmatpush1.xpose.msra.mxu0 0.0
        %827 = vmatprep.subr.mxu0 0.0
        %828 = vmatpush1.xpose.msra.mxu0 0.0
        %829 = vmatprep.subr.mxu0 0.0
        %830 = vmatpush1.xpose.msra.mxu0 0.0
        %831 = vmatprep.subr.mxu0 0.0
        %832 = vmatpush1.xpose.msra.mxu0 0.0
        %833 = vmatprep.subr.mxu0 0.0
        %834 = vmatpush1.xpose.msra.mxu0 0.0
        %835 = vmatprep.subr.mxu0 0.0
        %836 = vmatpush1.xpose.msra.mxu0 0.0
        %837 = vmatprep.subr.mxu0 0.0
        %838 = vmatpush1.xpose.msra.mxu0 0.0
        %839 = vmatprep.subr.mxu0 0.0
        %840 = vmatpush1.xpose.msra.mxu0 0.0
        %841 = vmatprep.subr.mxu0 0.0
        %842 = vmatpush1.xpose.msra.mxu0 0.0
        %843 = vmatprep.subr.mxu0 0.0
        %844 = vmatpush1.xpose.msra.mxu0 0.0
        %845 = vmatprep.subr.mxu0 0.0
        %846 = vmatpush1.xpose.msra.mxu0 0.0
        %847 = vmatprep.subr.mxu0 0.0
        %848 = vmatpush1.xpose.msra.mxu0 0.0
        %849 = vmatprep.subr.mxu0 0.0
        %850 = vmatpush1.xpose.msra.mxu0 0.0
        %851 = vmatprep.subr.mxu0 0.0
        %852 = vmatpush1.xpose.msra.mxu0 0.0
        %853 = vmatprep.subr.mxu0 0.0
        %854 = vmatpush1.xpose.msra.mxu0 0.0
        %855 = vmatprep.subr.mxu0 0.0
        %856 = vmatpush1.xpose.msra.mxu0 0.0
        %857 = vmatprep.subr.mxu0 0.0
        %858 = vmatpush1.xpose.msra.mxu0 0.0
        %859 = vmatprep.subr.mxu0 0.0
        %860 = vmatpush1.xpose.msra.mxu0 0.0
        %861 = vmatprep.subr.mxu0 0.0
        %862 = vmatpush1.xpose.msra.mxu0 0.0
        %863 = vmatprep.subr.mxu0 0.0
        %864 = vmatpush1.xpose.msra.mxu0 0.0
        %865 = vmatprep.subr.mxu0 0.0
        %866 = vmatpush1.xpose.msra.mxu0 0.0
        %867 = vmatprep.subr.mxu0 0.0
        %868 = vmatpush1.xpose.msra.mxu0 0.0
        %869 = vmatprep.subr.mxu0 0.0
        %870 = vmatpush1.xpose.msra.mxu0 0.0
        %871 = vmatprep.subr.mxu0 0.0
        %872 = vmatpush1.xpose.msra.mxu0 0.0
        %873 = vmatprep.subr.mxu0 0.0
        %874 = vmatpush1.xpose.msra.mxu0 0.0
        %875 = vmatprep.subr.mxu0 0.0
        %876 = vmatpush1.xpose.msra.mxu0 0.0
        %877 = vmatprep.mubr.f32.mxu0 0.0
        %v878 = vand.u32 %v509, 4294901760
        %879 = vmatmul.mubr.f32.gmra.mrb[0].mxu0 %v878
        %v880 = vpop.f32.mrb[0].mxu0
        %v881 = vadd.f32 %v807, %v880
        %v882 = vpop.f32.mrb[0].mxu0
        %883 = vdwg.mxu0
        %884 = vmatprep.subr.mxu0 0.0
        %v885 = vand.u32 %v229, 4294901760
        %886 = vmatpush1.xpose.msra.mxu0 %v885
        %887 = vmatprep.subr.mxu0 0.0
        %888 = vmatpush1.xpose.msra.mxu0 0.0
        %889 = vmatprep.subr.mxu0 0.0
        %890 = vmatpush1.xpose.msra.mxu0 0.0
        %891 = vmatprep.subr.mxu0 0.0
        %892 = vmatpush1.xpose.msra.mxu0 0.0
        %893 = vmatprep.subr.mxu0 0.0
        %894 = vmatpush1.xpose.msra.mxu0 0.0
        %895 = vmatprep.subr.mxu0 0.0
        %896 = vmatpush1.xpose.msra.mxu0 0.0
        %897 = vmatprep.subr.mxu0 0.0
        %898 = vmatpush1.xpose.msra.mxu0 0.0
        %899 = vmatprep.subr.mxu0 0.0
        %900 = vmatpush1.xpose.msra.mxu0 0.0
        %901 = vmatprep.subr.mxu0 0.0
        %902 = vmatpush1.xpose.msra.mxu0 0.0
        %903 = vmatprep.subr.mxu0 0.0
        %904 = vmatpush1.xpose.msra.mxu0 0.0
        %905 = vmatprep.subr.mxu0 0.0
        %906 = vmatpush1.xpose.msra.mxu0 0.0
        %907 = vmatprep.subr.mxu0 0.0
        %908 = vmatpush1.xpose.msra.mxu0 0.0
        %909 = vmatprep.subr.mxu0 0.0
        %910 = vmatpush1.xpose.msra.mxu0 0.0
        %911 = vmatprep.subr.mxu0 0.0
        %912 = vmatpush1.xpose.msra.mxu0 0.0
        %913 = vmatprep.subr.mxu0 0.0
        %914 = vmatpush1.xpose.msra.mxu0 0.0
        %915 = vmatprep.subr.mxu0 0.0
        %916 = vmatpush1.xpose.msra.mxu0 0.0
        %917 = vmatprep.subr.mxu0 0.0
        %918 = vmatpush1.xpose.msra.mxu0 0.0
        %919 = vmatprep.subr.mxu0 0.0
        %920 = vmatpush1.xpose.msra.mxu0 0.0
        %921 = vmatprep.subr.mxu0 0.0
        %922 = vmatpush1.xpose.msra.mxu0 0.0
        %923 = vmatprep.subr.mxu0 0.0
        %924 = vmatpush1.xpose.msra.mxu0 0.0
        %925 = vmatprep.subr.mxu0 0.0
        %926 = vmatpush1.xpose.msra.mxu0 0.0
        %927 = vmatprep.subr.mxu0 0.0
        %928 = vmatpush1.xpose.msra.mxu0 0.0
        %929 = vmatprep.subr.mxu0 0.0
        %930 = vmatpush1.xpose.msra.mxu0 0.0
        %931 = vmatprep.subr.mxu0 0.0
        %932 = vmatpush1.xpose.msra.mxu0 0.0
        %933 = vmatprep.subr.mxu0 0.0
        %934 = vmatpush1.xpose.msra.mxu0 0.0
        %935 = vmatprep.subr.mxu0 0.0
        %936 = vmatpush1.xpose.msra.mxu0 0.0
        %937 = vmatprep.subr.mxu0 0.0
        %938 = vmatpush1.xpose.msra.mxu0 0.0
        %939 = vmatprep.subr.mxu0 0.0
        %940 = vmatpush1.xpose.msra.mxu0 0.0
        %941 = vmatprep.subr.mxu0 0.0
        %942 = vmatpush1.xpose.msra.mxu0 0.0
        %943 = vmatprep.subr.mxu0 0.0
        %944 = vmatpush1.xpose.msra.mxu0 0.0
        %945 = vmatprep.subr.mxu0 0.0
        %946 = vmatpush1.xpose.msra.mxu0 0.0
        %947 = vmatprep.subr.mxu0 0.0
        %948 = vmatpush1.xpose.msra.mxu0 0.0
        %949 = vmatprep.mubr.f32.mxu0 0.0
        %v950 = vand.u32 %v509, 4294901760
        %951 = vmatmul.mubr.f32.gmra.mrb[0].mxu0 %v950
        %v952 = vpop.f32.mrb[0].mxu0
        %v953 = vadd.f32 %v881, %v952
        %v954 = vpop.f32.mrb[0].mxu0
        %955 = vdwg.mxu0
        %vm956 = vcmask 64512
        %v958 = vsel %vm956, %v953, 0
        %960 = vmatprep.subr.mxu0 0.0
        %v961 = vand.u32 %v229, 4294901760
        %962 = vmatpush1.msra.mxu0 %v961
        %963 = vmatprep.subr.mxu0 0.0
        %964 = vmatpush1.msra.mxu0 0.0
        %965 = vmatprep.subr.mxu0 0.0
        %966 = vmatpush1.msra.mxu0 0.0
        %967 = vmatprep.subr.mxu0 0.0
        %968 = vmatpush1.msra.mxu0 0.0
        %969 = vmatprep.subr.mxu0 0.0
        %970 = vmatpush1.msra.mxu0 0.0
        %971 = vmatprep.subr.mxu0 0.0
        %972 = vmatpush1.msra.mxu0 0.0
        %973 = vmatprep.subr.mxu0 0.0
        %974 = vmatpush1.msra.mxu0 0.0
        %975 = vmatprep.subr.mxu0 0.0
        %976 = vmatpush1.msra.mxu0 0.0
        %977 = vmatprep.subr.mxu0 0.0
        %978 = vmatpush1.msra.mxu0 0.0
        %979 = vmatprep.subr.mxu0 0.0
        %980 = vmatpush1.msra.mxu0 0.0
        %981 = vmatprep.subr.mxu0 0.0
        %982 = vmatpush1.msra.mxu0 0.0
        %983 = vmatprep.subr.mxu0 0.0
        %984 = vmatpush1.msra.mxu0 0.0
        %985 = vmatprep.subr.mxu0 0.0
        %986 = vmatpush1.msra.mxu0 0.0
        %987 = vmatprep.subr.mxu0 0.0
        %988 = vmatpush1.msra.mxu0 0.0
        %989 = vmatprep.subr.mxu0 0.0
        %990 = vmatpush1.msra.mxu0 0.0
        %991 = vmatprep.subr.mxu0 0.0
        %992 = vmatpush1.msra.mxu0 0.0
        %993 = vmatprep.subr.mxu0 0.0
        %994 = vmatpush1.msra.mxu0 0.0
        %995 = vmatprep.subr.mxu0 0.0
        %996 = vmatpush1.msra.mxu0 0.0
        %997 = vmatprep.subr.mxu0 0.0
        %998 = vmatpush1.msra.mxu0 0.0
        %999 = vmatprep.subr.mxu0 0.0
        %1000 = vmatpush1.msra.mxu0 0.0
        %1001 = vmatprep.subr.mxu0 0.0
        %1002 = vmatpush1.msra.mxu0 0.0
        %1003 = vmatprep.subr.mxu0 0.0
        %1004 = vmatpush1.msra.mxu0 0.0
        %1005 = vmatprep.subr.mxu0 0.0
        %1006 = vmatpush1.msra.mxu0 0.0
        %1007 = vmatprep.subr.mxu0 0.0
        %1008 = vmatpush1.msra.mxu0 0.0
        %1009 = vmatprep.subr.mxu0 0.0
        %1010 = vmatpush1.msra.mxu0 0.0
        %1011 = vmatprep.subr.mxu0 0.0
        %1012 = vmatpush1.msra.mxu0 0.0
        %1013 = vmatprep.subr.mxu0 0.0
        %1014 = vmatpush1.msra.mxu0 0.0
        %1015 = vmatprep.subr.mxu0 0.0
        %1016 = vmatpush1.msra.mxu0 0.0
        %1017 = vmatprep.subr.mxu0 0.0
        %1018 = vmatpush1.msra.mxu0 0.0
        %1019 = vmatprep.subr.mxu0 0.0
        %1020 = vmatpush1.msra.mxu0 0.0
        %1021 = vmatprep.subr.mxu0 0.0
        %1022 = vmatpush1.msra.mxu0 0.0
        %1023 = vmatprep.subr.mxu0 0.0
        %1024 = vmatpush1.msra.mxu0 0.0
        %1025 = vmatprep.mubr.f32.mxu0 0.0
        %v1026 = vand.u32 %v958, 4294901760
        %v1027 = vsub.f32 %v958, %v1026
        %v1028 = vand.u32 %v1027, 4294901760
        %v1029 = vsub.f32 %v1027, %v1028
        %v1030 = vand.u32 %v1029, 4294901760
        %1031 = vmatmul.mubr.f32.gmra.mrb[0].mxu0 %v1030
        %v1032 = vpop.f32.mrb[0].mxu0
        %v1033 = vadd.f32 0.0, %v1032
        %v1034 = vpop.f32.mrb[0].mxu0
        %1035 = vdwg.mxu0
        %1036 = vmatprep.subr.mxu0 0.0
        %v1037 = vand.u32 %v229, 4294901760
        %v1038 = vsub.f32 %v229, %v1037
        %v1039 = vand.u32 %v1038, 4294901760
        %v1040 = vsub.f32 %v1038, %v1039
        %v1041 = vand.u32 %v1040, 4294901760
        %1042 = vmatpush1.msra.mxu0 %v1041
        %1043 = vmatprep.subr.mxu0 0.0
        %1044 = vmatpush1.msra.mxu0 0.0
        %1045 = vmatprep.subr.mxu0 0.0
        %1046 = vmatpush1.msra.mxu0 0.0
        %1047 = vmatprep.subr.mxu0 0.0
        %1048 = vmatpush1.msra.mxu0 0.0
        %1049 = vmatprep.subr.mxu0 0.0
        %1050 = vmatpush1.msra.mxu0 0.0
        %1051 = vmatprep.subr.mxu0 0.0
        %1052 = vmatpush1.msra.mxu0 0.0
        %1053 = vmatprep.subr.mxu0 0.0
        %1054 = vmatpush1.msra.mxu0 0.0
        %1055 = vmatprep.subr.mxu0 0.0
        %1056 = vmatpush1.msra.mxu0 0.0
        %1057 = vmatprep.subr.mxu0 0.0
        %1058 = vmatpush1.msra.mxu0 0.0
        %1059 = vmatprep.subr.mxu0 0.0
        %1060 = vmatpush1.msra.mxu0 0.0
        %1061 = vmatprep.subr.mxu0 0.0
        %1062 = vmatpush1.msra.mxu0 0.0
        %1063 = vmatprep.subr.mxu0 0.0
        %1064 = vmatpush1.msra.mxu0 0.0
        %1065 = vmatprep.subr.mxu0 0.0
        %1066 = vmatpush1.msra.mxu0 0.0
        %1067 = vmatprep.subr.mxu0 0.0
        %1068 = vmatpush1.msra.mxu0 0.0
        %1069 = vmatprep.subr.mxu0 0.0
        %1070 = vmatpush1.msra.mxu0 0.0
        %1071 = vmatprep.subr.mxu0 0.0
        %1072 = vmatpush1.msra.mxu0 0.0
        %1073 = vmatprep.subr.mxu0 0.0
        %1074 = vmatpush1.msra.mxu0 0.0
        %1075 = vmatprep.subr.mxu0 0.0
        %1076 = vmatpush1.msra.mxu0 0.0
        %1077 = vmatprep.subr.mxu0 0.0
        %1078 = vmatpush1.msra.mxu0 0.0
        %1079 = vmatprep.subr.mxu0 0.0
        %1080 = vmatpush1.msra.mxu0 0.0
        %1081 = vmatprep.subr.mxu0 0.0
        %1082 = vmatpush1.msra.mxu0 0.0
        %1083 = vmatprep.subr.mxu0 0.0
        %1084 = vmatpush1.msra.mxu0 0.0
        %1085 = vmatprep.subr.mxu0 0.0
        %1086 = vmatpush1.msra.mxu0 0.0
        %1087 = vmatprep.subr.mxu0 0.0
        %1088 = vmatpush1.msra.mxu0 0.0
        %1089 = vmatprep.subr.mxu0 0.0
        %1090 = vmatpush1.msra.mxu0 0.0
        %1091 = vmatprep.subr.mxu0 0.0
        %1092 = vmatpush1.msra.mxu0 0.0
        %1093 = vmatprep.subr.mxu0 0.0
        %1094 = vmatpush1.msra.mxu0 0.0
        %1095 = vmatprep.subr.mxu0 0.0
        %1096 = vmatpush1.msra.mxu0 0.0
        %1097 = vmatprep.subr.mxu0 0.0
        %1098 = vmatpush1.msra.mxu0 0.0
        %1099 = vmatprep.subr.mxu0 0.0
        %1100 = vmatpush1.msra.mxu0 0.0
        %1101 = vmatprep.subr.mxu0 0.0
        %1102 = vmatpush1.msra.mxu0 0.0
        %1103 = vmatprep.subr.mxu0 0.0
        %1104 = vmatpush1.msra.mxu0 0.0
        %1105 = vmatprep.mubr.f32.mxu0 0.0
        %v1106 = vand.u32 %v958, 4294901760
        %1107 = vmatmul.mubr.f32.gmra.mrb[0].mxu0 %v1106
        %v1108 = vpop.f32.mrb[0].mxu0
        %v1109 = vadd.f32 %v1033, %v1108
        %v1110 = vpop.f32.mrb[0].mxu0
        %1111 = vdwg.mxu0
        %1112 = vmatprep.subr.mxu0 0.0
        %v1113 = vand.u32 %v229, 4294901760
        %v1114 = vsub.f32 %v229, %v1113
        %1115 = vmatpush1.msra.mxu0 %v1114
        %1116 = vmatprep.subr.mxu0 0.0
        %1117 = vmatpush1.msra.mxu0 0.0
        %1118 = vmatprep.subr.mxu0 0.0
        %1119 = vmatpush1.msra.mxu0 0.0
        %1120 = vmatprep.subr.mxu0 0.0
        %1121 = vmatpush1.msra.mxu0 0.0
        %1122 = vmatprep.subr.mxu0 0.0
        %1123 = vmatpush1.msra.mxu0 0.0
        %1124 = vmatprep.subr.mxu0 0.0
        %1125 = vmatpush1.msra.mxu0 0.0
        %1126 = vmatprep.subr.mxu0 0.0
        %1127 = vmatpush1.msra.mxu0 0.0
        %1128 = vmatprep.subr.mxu0 0.0
        %1129 = vmatpush1.msra.mxu0 0.0
        %1130 = vmatprep.subr.mxu0 0.0
        %1131 = vmatpush1.msra.mxu0 0.0
        %1132 = vmatprep.subr.mxu0 0.0
        %1133 = vmatpush1.msra.mxu0 0.0
        %1134 = vmatprep.subr.mxu0 0.0
        %1135 = vmatpush1.msra.mxu0 0.0
        %1136 = vmatprep.subr.mxu0 0.0
        %1137 = vmatpush1.msra.mxu0 0.0
        %1138 = vmatprep.subr.mxu0 0.0
        %1139 = vmatpush1.msra.mxu0 0.0
        %1140 = vmatprep.subr.mxu0 0.0
        %1141 = vmatpush1.msra.mxu0 0.0
        %1142 = vmatprep.subr.mxu0 0.0
        %1143 = vmatpush1.msra.mxu0 0.0
        %1144 = vmatprep.subr.mxu0 0.0
        %1145 = vmatpush1.msra.mxu0 0.0
        %1146 = vmatprep.subr.mxu0 0.0
        %1147 = vmatpush1.msra.mxu0 0.0
        %1148 = vmatprep.subr.mxu0 0.0
        %1149 = vmatpush1.msra.mxu0 0.0
        %1150 = vmatprep.subr.mxu0 0.0
        %1151 = vmatpush1.msra.mxu0 0.0
        %1152 = vmatprep.subr.mxu0 0.0
        %1153 = vmatpush1.msra.mxu0 0.0
        %1154 = vmatprep.subr.mxu0 0.0
        %1155 = vmatpush1.msra.mxu0 0.0
        %1156 = vmatprep.subr.mxu0 0.0
        %1157 = vmatpush1.msra.mxu0 0.0
        %1158 = vmatprep.subr.mxu0 0.0
        %1159 = vmatpush1.msra.mxu0 0.0
        %1160 = vmatprep.subr.mxu0 0.0
        %1161 = vmatpush1.msra.mxu0 0.0
        %1162 = vmatprep.subr.mxu0 0.0
        %1163 = vmatpush1.msra.mxu0 0.0
        %1164 = vmatprep.subr.mxu0 0.0
        %1165 = vmatpush1.msra.mxu0 0.0
        %1166 = vmatprep.subr.mxu0 0.0
        %1167 = vmatpush1.msra.mxu0 0.0
        %1168 = vmatprep.subr.mxu0 0.0
        %1169 = vmatpush1.msra.mxu0 0.0
        %1170 = vmatprep.subr.mxu0 0.0
        %1171 = vmatpush1.msra.mxu0 0.0
        %1172 = vmatprep.subr.mxu0 0.0
        %1173 = vmatpush1.msra.mxu0 0.0
        %1174 = vmatprep.subr.mxu0 0.0
        %1175 = vmatpush1.msra.mxu0 0.0
        %1176 = vmatprep.subr.mxu0 0.0
        %1177 = vmatpush1.msra.mxu0 0.0
        %1178 = vmatprep.mubr.f32.mxu0 0.0
        %v1179 = vand.u32 %v958, 4294901760
        %v1180 = vsub.f32 %v958, %v1179
        %1181 = vmatmul.mubr.f32.gmra.mrb[0].mxu0 %v1180
        %v1182 = vpop.f32.mrb[0].mxu0
        %v1183 = vadd.f32 %v1109, %v1182
        %v1184 = vpop.f32.mrb[0].mxu0
        %1185 = vdwg.mxu0
        %1186 = vmatprep.subr.mxu0 0.0
        %v1187 = vand.u32 %v229, 4294901760
        %1188 = vmatpush1.msra.mxu0 %v1187
        %1189 = vmatprep.subr.mxu0 0.0
        %1190 = vmatpush1.msra.mxu0 0.0
        %1191 = vmatprep.subr.mxu0 0.0
        %1192 = vmatpush1.msra.mxu0 0.0
        %1193 = vmatprep.subr.mxu0 0.0
        %1194 = vmatpush1.msra.mxu0 0.0
        %1195 = vmatprep.subr.mxu0 0.0
        %1196 = vmatpush1.msra.mxu0 0.0
        %1197 = vmatprep.subr.mxu0 0.0
        %1198 = vmatpush1.msra.mxu0 0.0
        %1199 = vmatprep.subr.mxu0 0.0
        %1200 = vmatpush1.msra.mxu0 0.0
        %1201 = vmatprep.subr.mxu0 0.0
        %1202 = vmatpush1.msra.mxu0 0.0
        %1203 = vmatprep.subr.mxu0 0.0
        %1204 = vmatpush1.msra.mxu0 0.0
        %1205 = vmatprep.subr.mxu0 0.0
        %1206 = vmatpush1.msra.mxu0 0.0
        %1207 = vmatprep.subr.mxu0 0.0
        %1208 = vmatpush1.msra.mxu0 0.0
        %1209 = vmatprep.subr.mxu0 0.0
        %1210 = vmatpush1.msra.mxu0 0.0
        %1211 = vmatprep.subr.mxu0 0.0
        %1212 = vmatpush1.msra.mxu0 0.0
        %1213 = vmatprep.subr.mxu0 0.0
        %1214 = vmatpush1.msra.mxu0 0.0
        %1215 = vmatprep.subr.mxu0 0.0
        %1216 = vmatpush1.msra.mxu0 0.0
        %1217 = vmatprep.subr.mxu0 0.0
        %1218 = vmatpush1.msra.mxu0 0.0
        %1219 = vmatprep.subr.mxu0 0.0
        %1220 = vmatpush1.msra.mxu0 0.0
        %1221 = vmatprep.subr.mxu0 0.0
        %1222 = vmatpush1.msra.mxu0 0.0
        %1223 = vmatprep.subr.mxu0 0.0
        %1224 = vmatpush1.msra.mxu0 0.0
        %1225 = vmatprep.subr.mxu0 0.0
        %1226 = vmatpush1.msra.mxu0 0.0
        %1227 = vmatprep.subr.mxu0 0.0
        %1228 = vmatpush1.msra.mxu0 0.0
        %1229 = vmatprep.subr.mxu0 0.0
        %1230 = vmatpush1.msra.mxu0 0.0
        %1231 = vmatprep.subr.mxu0 0.0
        %1232 = vmatpush1.msra.mxu0 0.0
        %1233 = vmatprep.subr.mxu0 0.0
        %1234 = vmatpush1.msra.mxu0 0.0
        %1235 = vmatprep.subr.mxu0 0.0
        %1236 = vmatpush1.msra.mxu0 0.0
        %1237 = vmatprep.subr.mxu0 0.0
        %1238 = vmatpush1.msra.mxu0 0.0
        %1239 = vmatprep.subr.mxu0 0.0
        %1240 = vmatpush1.msra.mxu0 0.0
        %1241 = vmatprep.subr.mxu0 0.0
        %1242 = vmatpush1.msra.mxu0 0.0
        %1243 = vmatprep.subr.mxu0 0.0
        %1244 = vmatpush1.msra.mxu0 0.0
        %1245 = vmatprep.subr.mxu0 0.0
        %1246 = vmatpush1.msra.mxu0 0.0
        %1247 = vmatprep.subr.mxu0 0.0
        %1248 = vmatpush1.msra.mxu0 0.0
        %1249 = vmatprep.subr.mxu0 0.0
        %1250 = vmatpush1.msra.mxu0 0.0
        %1251 = vmatprep.mubr.f32.mxu0 0.0
        %v1252 = vand.u32 %v958, 4294901760
        %v1253 = vsub.f32 %v958, %v1252
        %v1254 = vand.u32 %v1253, 4294901760
        %1255 = vmatmul.mubr.f32.gmra.mrb[0].mxu0 %v1254
        %v1256 = vpop.f32.mrb[0].mxu0
        %v1257 = vadd.f32 %v1183, %v1256
        %v1258 = vpop.f32.mrb[0].mxu0
        %1259 = vdwg.mxu0
        %1260 = vmatprep.subr.mxu0 0.0
        %v1261 = vand.u32 %v229, 4294901760
        %v1262 = vsub.f32 %v229, %v1261
        %v1263 = vand.u32 %v1262, 4294901760
        %1264 = vmatpush1.msra.mxu0 %v1263
        %1265 = vmatprep.subr.mxu0 0.0
        %1266 = vmatpush1.msra.mxu0 0.0
        %1267 = vmatprep.subr.mxu0 0.0
        %1268 = vmatpush1.msra.mxu0 0.0
        %1269 = vmatprep.subr.mxu0 0.0
        %1270 = vmatpush1.msra.mxu0 0.0
        %1271 = vmatprep.subr.mxu0 0.0
        %1272 = vmatpush1.msra.mxu0 0.0
        %1273 = vmatprep.subr.mxu0 0.0
        %1274 = vmatpush1.msra.mxu0 0.0
        %1275 = vmatprep.subr.mxu0 0.0
        %1276 = vmatpush1.msra.mxu0 0.0
        %1277 = vmatprep.subr.mxu0 0.0
        %1278 = vmatpush1.msra.mxu0 0.0
        %1279 = vmatprep.subr.mxu0 0.0
        %1280 = vmatpush1.msra.mxu0 0.0
        %1281 = vmatprep.subr.mxu0 0.0
        %1282 = vmatpush1.msra.mxu0 0.0
        %1283 = vmatprep.subr.mxu0 0.0
        %1284 = vmatpush1.msra.mxu0 0.0
        %1285 = vmatprep.subr.mxu0 0.0
        %1286 = vmatpush1.msra.mxu0 0.0
        %1287 = vmatprep.subr.mxu0 0.0
        %1288 = vmatpush1.msra.mxu0 0.0
        %1289 = vmatprep.subr.mxu0 0.0
        %1290 = vmatpush1.msra.mxu0 0.0
        %1291 = vmatprep.subr.mxu0 0.0
        %1292 = vmatpush1.msra.mxu0 0.0
        %1293 = vmatprep.subr.mxu0 0.0
        %1294 = vmatpush1.msra.mxu0 0.0
        %1295 = vmatprep.subr.mxu0 0.0
        %1296 = vmatpush1.msra.mxu0 0.0
        %1297 = vmatprep.subr.mxu0 0.0
        %1298 = vmatpush1.msra.mxu0 0.0
        %1299 = vmatprep.subr.mxu0 0.0
        %1300 = vmatpush1.msra.mxu0 0.0
        %1301 = vmatprep.subr.mxu0 0.0
        %1302 = vmatpush1.msra.mxu0 0.0
        %1303 = vmatprep.subr.mxu0 0.0
        %1304 = vmatpush1.msra.mxu0 0.0
        %1305 = vmatprep.subr.mxu0 0.0
        %1306 = vmatpush1.msra.mxu0 0.0
        %1307 = vmatprep.subr.mxu0 0.0
        %1308 = vmatpush1.msra.mxu0 0.0
        %1309 = vmatprep.subr.mxu0 0.0
        %1310 = vmatpush1.msra.mxu0 0.0
        %1311 = vmatprep.subr.mxu0 0.0
        %1312 = vmatpush1.msra.mxu0 0.0
        %1313 = vmatprep.subr.mxu0 0.0
        %1314 = vmatpush1.msra.mxu0 0.0
        %1315 = vmatprep.subr.mxu0 0.0
        %1316 = vmatpush1.msra.mxu0 0.0
        %1317 = vmatprep.subr.mxu0 0.0
        %1318 = vmatpush1.msra.mxu0 0.0
        %1319 = vmatprep.subr.mxu0 0.0
        %1320 = vmatpush1.msra.mxu0 0.0
        %1321 = vmatprep.subr.mxu0 0.0
        %1322 = vmatpush1.msra.mxu0 0.0
        %1323 = vmatprep.subr.mxu0 0.0
        %1324 = vmatpush1.msra.mxu0 0.0
        %1325 = vmatprep.subr.mxu0 0.0
        %1326 = vmatpush1.msra.mxu0 0.0
        %1327 = vmatprep.mubr.f32.mxu0 0.0
        %v1328 = vand.u32 %v958, 4294901760
        %1329 = vmatmul.mubr.f32.gmra.mrb[0].mxu0 %v1328
        %v1330 = vpop.f32.mrb[0].mxu0
        %v1331 = vadd.f32 %v1257, %v1330
        %v1332 = vpop.f32.mrb[0].mxu0
        %1333 = vdwg.mxu0
        %1334 = vmatprep.subr.mxu0 0.0
        %v1335 = vand.u32 %v229, 4294901760
        %1336 = vmatpush1.msra.mxu0 %v1335
        %1337 = vmatprep.subr.mxu0 0.0
        %1338 = vmatpush1.msra.mxu0 0.0
        %1339 = vmatprep.subr.mxu0 0.0
        %1340 = vmatpush1.msra.mxu0 0.0
        %1341 = vmatprep.subr.mxu0 0.0
        %1342 = vmatpush1.msra.mxu0 0.0
        %1343 = vmatprep.subr.mxu0 0.0
        %1344 = vmatpush1.msra.mxu0 0.0
        %1345 = vmatprep.subr.mxu0 0.0
        %1346 = vmatpush1.msra.mxu0 0.0
        %1347 = vmatprep.subr.mxu0 0.0
        %1348 = vmatpush1.msra.mxu0 0.0
        %1349 = vmatprep.subr.mxu0 0.0
        %1350 = vmatpush1.msra.mxu0 0.0
        %1351 = vmatprep.subr.mxu0 0.0
        %1352 = vmatpush1.msra.mxu0 0.0
        %1353 = vmatprep.subr.mxu0 0.0
        %1354 = vmatpush1.msra.mxu0 0.0
        %1355 = vmatprep.subr.mxu0 0.0
        %1356 = vmatpush1.msra.mxu0 0.0
        %1357 = vmatprep.subr.mxu0 0.0
        %1358 = vmatpush1.msra.mxu0 0.0
        %1359 = vmatprep.subr.mxu0 0.0
        %1360 = vmatpush1.msra.mxu0 0.0
        %1361 = vmatprep.subr.mxu0 0.0
        %1362 = vmatpush1.msra.mxu0 0.0
        %1363 = vmatprep.subr.mxu0 0.0
        %1364 = vmatpush1.msra.mxu0 0.0
        %1365 = vmatprep.subr.mxu0 0.0
        %1366 = vmatpush1.msra.mxu0 0.0
        %1367 = vmatprep.subr.mxu0 0.0
        %1368 = vmatpush1.msra.mxu0 0.0
        %1369 = vmatprep.subr.mxu0 0.0
        %1370 = vmatpush1.msra.mxu0 0.0
        %1371 = vmatprep.subr.mxu0 0.0
        %1372 = vmatpush1.msra.mxu0 0.0
        %1373 = vmatprep.subr.mxu0 0.0
        %1374 = vmatpush1.msra.mxu0 0.0
        %1375 = vmatprep.subr.mxu0 0.0
        %1376 = vmatpush1.msra.mxu0 0.0
        %1377 = vmatprep.subr.mxu0 0.0
        %1378 = vmatpush1.msra.mxu0 0.0
        %1379 = vmatprep.subr.mxu0 0.0
        %1380 = vmatpush1.msra.mxu0 0.0
        %1381 = vmatprep.subr.mxu0 0.0
        %1382 = vmatpush1.msra.mxu0 0.0
        %1383 = vmatprep.subr.mxu0 0.0
        %1384 = vmatpush1.msra.mxu0 0.0
        %1385 = vmatprep.subr.mxu0 0.0
        %1386 = vmatpush1.msra.mxu0 0.0
        %1387 = vmatprep.subr.mxu0 0.0
        %1388 = vmatpush1.msra.mxu0 0.0
        %1389 = vmatprep.subr.mxu0 0.0
        %1390 = vmatpush1.msra.mxu0 0.0
        %1391 = vmatprep.subr.mxu0 0.0
        %1392 = vmatpush1.msra.mxu0 0.0
        %1393 = vmatprep.subr.mxu0 0.0
        %1394 = vmatpush1.msra.mxu0 0.0
        %1395 = vmatprep.subr.mxu0 0.0
        %1396 = vmatpush1.msra.mxu0 0.0
        %1397 = vmatprep.subr.mxu0 0.0
        %1398 = vmatpush1.msra.mxu0 0.0
        %1399 = vmatprep.mubr.f32.mxu0 0.0
        %v1400 = vand.u32 %v958, 4294901760
        %1401 = vmatmul.mubr.f32.gmra.mrb[0].mxu0 %v1400
        %v1402 = vpop.f32.mrb[0].mxu0
        %v1403 = vadd.f32 %v1331, %v1402
        %v1404 = vpop.f32.mrb[0].mxu0
        %1405 = vdwg.mxu0
        %v1406 = vmul.f32 %v1403, 0.00390625
        %v1407 = vmul.f32 %v493, %v493
        %v1408 = vmul.f32 %v494, %v494
        %v1409 = vadd.f32 %v1407, %v1408
        %v1410 = vrot.slane %v1409, 4
        %v1411 = vadd.f32 %v1409, %v1410
        %v1412 = vrot.slane %v1411, 2
        %v1413 = vadd.f32 %v1411, %v1412
        %v1414 = vrot.slane %v1413, 1
        %v1415 = vadd.f32 %v1413, %v1414
        %1416 = vmatprep.subr.mxu0 0.0
        %v1417 = vand.u32 %v229, 4294901760
        %1418 = vmatpush1.xpose.msra.mxu0 %v1417
        %1419 = vmatprep.subr.mxu0 0.0
        %1420 = vmatpush1.xpose.msra.mxu0 0.0
        %1421 = vmatprep.subr.mxu0 0.0
        %1422 = vmatpush1.xpose.msra.mxu0 0.0
        %1423 = vmatprep.subr.mxu0 0.0
        %1424 = vmatpush1.xpose.msra.mxu0 0.0
        %1425 = vmatprep.subr.mxu0 0.0
        %1426 = vmatpush1.xpose.msra.mxu0 0.0
        %1427 = vmatprep.subr.mxu0 0.0
        %1428 = vmatpush1.xpose.msra.mxu0 0.0
        %1429 = vmatprep.subr.mxu0 0.0
        %1430 = vmatpush1.xpose.msra.mxu0 0.0
        %1431 = vmatprep.subr.mxu0 0.0
        %1432 = vmatpush1.xpose.msra.mxu0 0.0
        %1433 = vmatprep.subr.mxu0 0.0
        %1434 = vmatpush1.xpose.msra.mxu0 0.0
        %1435 = vmatprep.subr.mxu0 0.0
        %1436 = vmatpush1.xpose.msra.mxu0 0.0
        %1437 = vmatprep.subr.mxu0 0.0
        %1438 = vmatpush1.xpose.msra.mxu0 0.0
        %1439 = vmatprep.subr.mxu0 0.0
        %1440 = vmatpush1.xpose.msra.mxu0 0.0
        %1441 = vmatprep.subr.mxu0 0.0
        %1442 = vmatpush1.xpose.msra.mxu0 0.0
        %1443 = vmatprep.subr.mxu0 0.0
        %1444 = vmatpush1.xpose.msra.mxu0 0.0
        %1445 = vmatprep.subr.mxu0 0.0
        %1446 = vmatpush1.xpose.msra.mxu0 0.0
        %1447 = vmatprep.subr.mxu0 0.0
        %1448 = vmatpush1.xpose.msra.mxu0 0.0
        %1449 = vmatprep.subr.mxu0 0.0
        %1450 = vmatpush1.xpose.msra.mxu0 0.0
        %1451 = vmatprep.subr.mxu0 0.0
        %1452 = vmatpush1.xpose.msra.mxu0 0.0
        %1453 = vmatprep.subr.mxu0 0.0
        %1454 = vmatpush1.xpose.msra.mxu0 0.0
        %1455 = vmatprep.subr.mxu0 0.0
        %1456 = vmatpush1.xpose.msra.mxu0 0.0
        %1457 = vmatprep.subr.mxu0 0.0
        %1458 = vmatpush1.xpose.msra.mxu0 0.0
        %1459 = vmatprep.subr.mxu0 0.0
        %1460 = vmatpush1.xpose.msra.mxu0 0.0
        %1461 = vmatprep.subr.mxu0 0.0
        %1462 = vmatpush1.xpose.msra.mxu0 0.0
        %1463 = vmatprep.subr.mxu0 0.0
        %1464 = vmatpush1.xpose.msra.mxu0 0.0
        %1465 = vmatprep.subr.mxu0 0.0
        %1466 = vmatpush1.xpose.msra.mxu0 0.0
        %1467 = vmatprep.subr.mxu0 0.0
        %1468 = vmatpush1.xpose.msra.mxu0 0.0
        %1469 = vmatprep.subr.mxu0 0.0
        %1470 = vmatpush1.xpose.msra.mxu0 0.0
        %1471 = vmatprep.subr.mxu0 0.0
        %1472 = vmatpush1.xpose.msra.mxu0 0.0
        %1473 = vmatprep.subr.mxu0 0.0
        %1474 = vmatpush1.xpose.msra.mxu0 0.0
        %1475 = vmatprep.subr.mxu0 0.0
        %1476 = vmatpush1.xpose.msra.mxu0 0.0
        %1477 = vmatprep.subr.mxu0 0.0
        %1478 = vmatpush1.xpose.msra.mxu0 0.0
        %1479 = vmatprep.subr.mxu0 0.0
        %1480 = vmatpush1.xpose.msra.mxu0 0.0
        %1481 = vmatprep.mubr.f32.mxu0 0.0
        %v1482 = vand.u32 %v1415, 4294901760
        %v1483 = vsub.f32 %v1415, %v1482
        %v1484 = vand.u32 %v1483, 4294901760
        %v1485 = vsub.f32 %v1483, %v1484
        %v1486 = vand.u32 %v1485, 4294901760
        %1487 = vmatmul.mubr.f32.gmra.mrb[0].mxu0 %v1486
        %v1488 = vpop.f32.mrb[0].mxu0
        %v1489 = vadd.f32 0.0, %v1488
        %v1490 = vpop.f32.mrb[0].mxu0
        %1491 = vdwg.mxu0
        %1492 = vmatprep.subr.mxu0 0.0
        %v1493 = vand.u32 %v229, 4294901760
        %v1494 = vsub.f32 %v229, %v1493
        %v1495 = vand.u32 %v1494, 4294901760
        %v1496 = vsub.f32 %v1494, %v1495
        %v1497 = vand.u32 %v1496, 4294901760
        %1498 = vmatpush1.xpose.msra.mxu0 %v1497
        %1499 = vmatprep.subr.mxu0 0.0
        %1500 = vmatpush1.xpose.msra.mxu0 0.0
        %1501 = vmatprep.subr.mxu0 0.0
        %1502 = vmatpush1.xpose.msra.mxu0 0.0
        %1503 = vmatprep.subr.mxu0 0.0
        %1504 = vmatpush1.xpose.msra.mxu0 0.0
        %1505 = vmatprep.subr.mxu0 0.0
        %1506 = vmatpush1.xpose.msra.mxu0 0.0
        %1507 = vmatprep.subr.mxu0 0.0
        %1508 = vmatpush1.xpose.msra.mxu0 0.0
        %1509 = vmatprep.subr.mxu0 0.0
        %1510 = vmatpush1.xpose.msra.mxu0 0.0
        %1511 = vmatprep.subr.mxu0 0.0
        %1512 = vmatpush1.xpose.msra.mxu0 0.0
        %1513 = vmatprep.subr.mxu0 0.0
        %1514 = vmatpush1.xpose.msra.mxu0 0.0
        %1515 = vmatprep.subr.mxu0 0.0
        %1516 = vmatpush1.xpose.msra.mxu0 0.0
        %1517 = vmatprep.subr.mxu0 0.0
        %1518 = vmatpush1.xpose.msra.mxu0 0.0
        %1519 = vmatprep.subr.mxu0 0.0
        %1520 = vmatpush1.xpose.msra.mxu0 0.0
        %1521 = vmatprep.subr.mxu0 0.0
        %1522 = vmatpush1.xpose.msra.mxu0 0.0
        %1523 = vmatprep.subr.mxu0 0.0
        %1524 = vmatpush1.xpose.msra.mxu0 0.0
        %1525 = vmatprep.subr.mxu0 0.0
        %1526 = vmatpush1.xpose.msra.mxu0 0.0
        %1527 = vmatprep.subr.mxu0 0.0
        %1528 = vmatpush1.xpose.msra.mxu0 0.0
        %1529 = vmatprep.subr.mxu0 0.0
        %1530 = vmatpush1.xpose.msra.mxu0 0.0
        %1531 = vmatprep.subr.mxu0 0.0
        %1532 = vmatpush1.xpose.msra.mxu0 0.0
        %1533 = vmatprep.subr.mxu0 0.0
        %1534 = vmatpush1.xpose.msra.mxu0 0.0
        %1535 = vmatprep.subr.mxu0 0.0
        %1536 = vmatpush1.xpose.msra.mxu0 0.0
        %1537 = vmatprep.subr.mxu0 0.0
        %1538 = vmatpush1.xpose.msra.mxu0 0.0
        %1539 = vmatprep.subr.mxu0 0.0
        %1540 = vmatpush1.xpose.msra.mxu0 0.0
        %1541 = vmatprep.subr.mxu0 0.0
        %1542 = vmatpush1.xpose.msra.mxu0 0.0
        %1543 = vmatprep.subr.mxu0 0.0
        %1544 = vmatpush1.xpose.msra.mxu0 0.0
        %1545 = vmatprep.subr.mxu0 0.0
        %1546 = vmatpush1.xpose.msra.mxu0 0.0
        %1547 = vmatprep.subr.mxu0 0.0
        %1548 = vmatpush1.xpose.msra.mxu0 0.0
        %1549 = vmatprep.subr.mxu0 0.0
        %1550 = vmatpush1.xpose.msra.mxu0 0.0
        %1551 = vmatprep.subr.mxu0 0.0
        %1552 = vmatpush1.xpose.msra.mxu0 0.0
        %1553 = vmatprep.subr.mxu0 0.0
        %1554 = vmatpush1.xpose.msra.mxu0 0.0
        %1555 = vmatprep.subr.mxu0 0.0
        %1556 = vmatpush1.xpose.msra.mxu0 0.0
        %1557 = vmatprep.subr.mxu0 0.0
        %1558 = vmatpush1.xpose.msra.mxu0 0.0
        %1559 = vmatprep.subr.mxu0 0.0
        %1560 = vmatpush1.xpose.msra.mxu0 0.0
        %1561 = vmatprep.mubr.f32.mxu0 0.0
        %v1562 = vand.u32 %v1415, 4294901760
        %1563 = vmatmul.mubr.f32.gmra.mrb[0].mxu0 %v1562
        %v1564 = vpop.f32.mrb[0].mxu0
        %v1565 = vadd.f32 %v1489, %v1564
        %v1566 = vpop.f32.mrb[0].mxu0
        %1567 = vdwg.mxu0
        %1568 = vmatprep.subr.mxu0 0.0
        %v1569 = vand.u32 %v229, 4294901760
        %v1570 = vsub.f32 %v229, %v1569
        %1571 = vmatpush1.xpose.msra.mxu0 %v1570
        %1572 = vmatprep.subr.mxu0 0.0
        %1573 = vmatpush1.xpose.msra.mxu0 0.0
        %1574 = vmatprep.subr.mxu0 0.0
        %1575 = vmatpush1.xpose.msra.mxu0 0.0
        %1576 = vmatprep.subr.mxu0 0.0
        %1577 = vmatpush1.xpose.msra.mxu0 0.0
        %1578 = vmatprep.subr.mxu0 0.0
        %1579 = vmatpush1.xpose.msra.mxu0 0.0
        %1580 = vmatprep.subr.mxu0 0.0
        %1581 = vmatpush1.xpose.msra.mxu0 0.0
        %1582 = vmatprep.subr.mxu0 0.0
        %1583 = vmatpush1.xpose.msra.mxu0 0.0
        %1584 = vmatprep.subr.mxu0 0.0
        %1585 = vmatpush1.xpose.msra.mxu0 0.0
        %1586 = vmatprep.subr.mxu0 0.0
        %1587 = vmatpush1.xpose.msra.mxu0 0.0
        %1588 = vmatprep.subr.mxu0 0.0
        %1589 = vmatpush1.xpose.msra.mxu0 0.0
        %1590 = vmatprep.subr.mxu0 0.0
        %1591 = vmatpush1.xpose.msra.mxu0 0.0
        %1592 = vmatprep.subr.mxu0 0.0
        %1593 = vmatpush1.xpose.msra.mxu0 0.0
        %1594 = vmatprep.subr.mxu0 0.0
        %1595 = vmatpush1.xpose.msra.mxu0 0.0
        %1596 = vmatprep.subr.mxu0 0.0
        %1597 = vmatpush1.xpose.msra.mxu0 0.0
        %1598 = vmatprep.subr.mxu0 0.0
        %1599 = vmatpush1.xpose.msra.mxu0 0.0
        %1600 = vmatprep.subr.mxu0 0.0
        %1601 = vmatpush1.xpose.msra.mxu0 0.0
        %1602 = vmatprep.subr.mxu0 0.0
        %1603 = vmatpush1.xpose.msra.mxu0 0.0
        %1604 = vmatprep.subr.mxu0 0.0
        %1605 = vmatpush1.xpose.msra.mxu0 0.0
        %1606 = vmatprep.subr.mxu0 0.0
        %1607 = vmatpush1.xpose.msra.mxu0 0.0
        %1608 = vmatprep.subr.mxu0 0.0
        %1609 = vmatpush1.xpose.msra.mxu0 0.0
        %1610 = vmatprep.subr.mxu0 0.0
        %1611 = vmatpush1.xpose.msra.mxu0 0.0
        %1612 = vmatprep.subr.mxu0 0.0
        %1613 = vmatpush1.xpose.msra.mxu0 0.0
        %1614 = vmatprep.subr.mxu0 0.0
        %1615 = vmatpush1.xpose.msra.mxu0 0.0
        %1616 = vmatprep.subr.mxu0 0.0
        %1617 = vmatpush1.xpose.msra.mxu0 0.0
        %1618 = vmatprep.subr.mxu0 0.0
        %1619 = vmatpush1.xpose.msra.mxu0 0.0
        %1620 = vmatprep.subr.mxu0 0.0
        %1621 = vmatpush1.xpose.msra.mxu0 0.0
        %1622 = vmatprep.subr.mxu0 0.0
        %1623 = vmatpush1.xpose.msra.mxu0 0.0
        %1624 = vmatprep.subr.mxu0 0.0
        %1625 = vmatpush1.xpose.msra.mxu0 0.0
        %1626 = vmatprep.subr.mxu0 0.0
        %1627 = vmatpush1.xpose.msra.mxu0 0.0
        %1628 = vmatprep.subr.mxu0 0.0
        %1629 = vmatpush1.xpose.msra.mxu0 0.0
        %1630 = vmatprep.subr.mxu0 0.0
        %1631 = vmatpush1.xpose.msra.mxu0 0.0
        %1632 = vmatprep.subr.mxu0 0.0
        %1633 = vmatpush1.xpose.msra.mxu0 0.0
        %1634 = vmatprep.mubr.f32.mxu0 0.0
        %v1635 = vand.u32 %v1415, 4294901760
        %v1636 = vsub.f32 %v1415, %v1635
        %1637 = vmatmul.mubr.f32.gmra.mrb[0].mxu0 %v1636
        %v1638 = vpop.f32.mrb[0].mxu0
        %v1639 = vadd.f32 %v1565, %v1638
        %v1640 = vpop.f32.mrb[0].mxu0
        %1641 = vdwg.mxu0
        %1642 = vmatprep.subr.mxu0 0.0
        %v1643 = vand.u32 %v229, 4294901760
        %1644 = vmatpush1.xpose.msra.mxu0 %v1643
        %1645 = vmatprep.subr.mxu0 0.0
        %1646 = vmatpush1.xpose.msra.mxu0 0.0
        %1647 = vmatprep.subr.mxu0 0.0
        %1648 = vmatpush1.xpose.msra.mxu0 0.0
        %1649 = vmatprep.subr.mxu0 0.0
        %1650 = vmatpush1.xpose.msra.mxu0 0.0
        %1651 = vmatprep.subr.mxu0 0.0
        %1652 = vmatpush1.xpose.msra.mxu0 0.0
        %1653 = vmatprep.subr.mxu0 0.0
        %1654 = vmatpush1.xpose.msra.mxu0 0.0
        %1655 = vmatprep.subr.mxu0 0.0
        %1656 = vmatpush1.xpose.msra.mxu0 0.0
        %1657 = vmatprep.subr.mxu0 0.0
        %1658 = vmatpush1.xpose.msra.mxu0 0.0
        %1659 = vmatprep.subr.mxu0 0.0
        %1660 = vmatpush1.xpose.msra.mxu0 0.0
        %1661 = vmatprep.subr.mxu0 0.0
        %1662 = vmatpush1.xpose.msra.mxu0 0.0
        %1663 = vmatprep.subr.mxu0 0.0
        %1664 = vmatpush1.xpose.msra.mxu0 0.0
        %1665 = vmatprep.subr.mxu0 0.0
        %1666 = vmatpush1.xpose.msra.mxu0 0.0
        %1667 = vmatprep.subr.mxu0 0.0
        %1668 = vmatpush1.xpose.msra.mxu0 0.0
        %1669 = vmatprep.subr.mxu0 0.0
        %1670 = vmatpush1.xpose.msra.mxu0 0.0
        %1671 = vmatprep.subr.mxu0 0.0
        %1672 = vmatpush1.xpose.msra.mxu0 0.0
        %1673 = vmatprep.subr.mxu0 0.0
        %1674 = vmatpush1.xpose.msra.mxu0 0.0
        %1675 = vmatprep.subr.mxu0 0.0
        %1676 = vmatpush1.xpose.msra.mxu0 0.0
        %1677 = vmatprep.subr.mxu0 0.0
        %1678 = vmatpush1.xpose.msra.mxu0 0.0
        %1679 = vmatprep.subr.mxu0 0.0
        %1680 = vmatpush1.xpose.msra.mxu0 0.0
        %1681 = vmatprep.subr.mxu0 0.0
        %1682 = vmatpush1.xpose.msra.mxu0 0.0
        %1683 = vmatprep.subr.mxu0 0.0
        %1684 = vmatpush1.xpose.msra.mxu0 0.0
        %1685 = vmatprep.subr.mxu0 0.0
        %1686 = vmatpush1.xpose.msra.mxu0 0.0
        %1687 = vmatprep.subr.mxu0 0.0
        %1688 = vmatpush1.xpose.msra.mxu0 0.0
        %1689 = vmatprep.subr.mxu0 0.0
        %1690 = vmatpush1.xpose.msra.mxu0 0.0
        %1691 = vmatprep.subr.mxu0 0.0
        %1692 = vmatpush1.xpose.msra.mxu0 0.0
        %1693 = vmatprep.subr.mxu0 0.0
        %1694 = vmatpush1.xpose.msra.mxu0 0.0
        %1695 = vmatprep.subr.mxu0 0.0
        %1696 = vmatpush1.xpose.msra.mxu0 0.0
        %1697 = vmatprep.subr.mxu0 0.0
        %1698 = vmatpush1.xpose.msra.mxu0 0.0
        %1699 = vmatprep.subr.mxu0 0.0
        %1700 = vmatpush1.xpose.msra.mxu0 0.0
        %1701 = vmatprep.subr.mxu0 0.0
        %1702 = vmatpush1.xpose.msra.mxu0 0.0
        %1703 = vmatprep.subr.mxu0 0.0
        %1704 = vmatpush1.xpose.msra.mxu0 0.0
        %1705 = vmatprep.subr.mxu0 0.0
        %1706 = vmatpush1.xpose.msra.mxu0 0.0
        %1707 = vmatprep.mubr.f32.mxu0 0.0
        %v1708 = vand.u32 %v1415, 4294901760
        %v1709 = vsub.f32 %v1415, %v1708
        %v1710 = vand.u32 %v1709, 4294901760
        %1711 = vmatmul.mubr.f32.gmra.mrb[0].mxu0 %v1710
        %v1712 = vpop.f32.mrb[0].mxu0
        %v1713 = vadd.f32 %v1639, %v1712
        %v1714 = vpop.f32.mrb[0].mxu0
        %1715 = vdwg.mxu0
        %1716 = vmatprep.subr.mxu0 0.0
        %v1717 = vand.u32 %v229, 4294901760
        %v1718 = vsub.f32 %v229, %v1717
        %v1719 = vand.u32 %v1718, 4294901760
        %1720 = vmatpush1.xpose.msra.mxu0 %v1719
        %1721 = vmatprep.subr.mxu0 0.0
        %1722 = vmatpush1.xpose.msra.mxu0 0.0
        %1723 = vmatprep.subr.mxu0 0.0
        %1724 = vmatpush1.xpose.msra.mxu0 0.0
        %1725 = vmatprep.subr.mxu0 0.0
        %1726 = vmatpush1.xpose.msra.mxu0 0.0
        %1727 = vmatprep.subr.mxu0 0.0
        %1728 = vmatpush1.xpose.msra.mxu0 0.0
        %1729 = vmatprep.subr.mxu0 0.0
        %1730 = vmatpush1.xpose.msra.mxu0 0.0
        %1731 = vmatprep.subr.mxu0 0.0
        %1732 = vmatpush1.xpose.msra.mxu0 0.0
        %1733 = vmatprep.subr.mxu0 0.0
        %1734 = vmatpush1.xpose.msra.mxu0 0.0
        %1735 = vmatprep.subr.mxu0 0.0
        %1736 = vmatpush1.xpose.msra.mxu0 0.0
        %1737 = vmatprep.subr.mxu0 0.0
        %1738 = vmatpush1.xpose.msra.mxu0 0.0
        %1739 = vmatprep.subr.mxu0 0.0
        %1740 = vmatpush1.xpose.msra.mxu0 0.0
        %1741 = vmatprep.subr.mxu0 0.0
        %1742 = vmatpush1.xpose.msra.mxu0 0.0
        %1743 = vmatprep.subr.mxu0 0.0
        %1744 = vmatpush1.xpose.msra.mxu0 0.0
        %1745 = vmatprep.subr.mxu0 0.0
        %1746 = vmatpush1.xpose.msra.mxu0 0.0
        %1747 = vmatprep.subr.mxu0 0.0
        %1748 = vmatpush1.xpose.msra.mxu0 0.0
        %1749 = vmatprep.subr.mxu0 0.0
        %1750 = vmatpush1.xpose.msra.mxu0 0.0
        %1751 = vmatprep.subr.mxu0 0.0
        %1752 = vmatpush1.xpose.msra.mxu0 0.0
        %1753 = vmatprep.subr.mxu0 0.0
        %1754 = vmatpush1.xpose.msra.mxu0 0.0
        %1755 = vmatprep.subr.mxu0 0.0
        %1756 = vmatpush1.xpose.msra.mxu0 0.0
        %1757 = vmatprep.subr.mxu0 0.0
        %1758 = vmatpush1.xpose.msra.mxu0 0.0
        %1759 = vmatprep.subr.mxu0 0.0
        %1760 = vmatpush1.xpose.msra.mxu0 0.0
        %1761 = vmatprep.subr.mxu0 0.0
        %1762 = vmatpush1.xpose.msra.mxu0 0.0
        %1763 = vmatprep.subr.mxu0 0.0
        %1764 = vmatpush1.xpose.msra.mxu0 0.0
        %1765 = vmatprep.subr.mxu0 0.0
        %1766 = vmatpush1.xpose.msra.mxu0 0.0
        %1767 = vmatprep.subr.mxu0 0.0
        %1768 = vmatpush1.xpose.msra.mxu0 0.0
        %1769 = vmatprep.subr.mxu0 0.0
        %1770 = vmatpush1.xpose.msra.mxu0 0.0
        %1771 = vmatprep.subr.mxu0 0.0
        %1772 = vmatpush1.xpose.msra.mxu0 0.0
        %1773 = vmatprep.subr.mxu0 0.0
        %1774 = vmatpush1.xpose.msra.mxu0 0.0
        %1775 = vmatprep.subr.mxu0 0.0
        %1776 = vmatpush1.xpose.msra.mxu0 0.0
        %1777 = vmatprep.subr.mxu0 0.0
        %1778 = vmatpush1.xpose.msra.mxu0 0.0
        %1779 = vmatprep.subr.mxu0 0.0
        %1780 = vmatpush1.xpose.msra.mxu0 0.0
        %1781 = vmatprep.subr.mxu0 0.0
        %1782 = vmatpush1.xpose.msra.mxu0 0.0
        %1783 = vmatprep.mubr.f32.mxu0 0.0
        %v1784 = vand.u32 %v1415, 4294901760
        %1785 = vmatmul.mubr.f32.gmra.mrb[0].mxu0 %v1784
        %v1786 = vpop.f32.mrb[0].mxu0
        %v1787 = vadd.f32 %v1713, %v1786
        %v1788 = vpop.f32.mrb[0].mxu0
        %1789 = vdwg.mxu0
        %1790 = vmatprep.subr.mxu0 0.0
        %v1791 = vand.u32 %v229, 4294901760
        %1792 = vmatpush1.xpose.msra.mxu0 %v1791
        %1793 = vmatprep.subr.mxu0 0.0
        %1794 = vmatpush1.xpose.msra.mxu0 0.0
        %1795 = vmatprep.subr.mxu0 0.0
        %1796 = vmatpush1.xpose.msra.mxu0 0.0
        %1797 = vmatprep.subr.mxu0 0.0
        %1798 = vmatpush1.xpose.msra.mxu0 0.0
        %1799 = vmatprep.subr.mxu0 0.0
        %1800 = vmatpush1.xpose.msra.mxu0 0.0
        %1801 = vmatprep.subr.mxu0 0.0
        %1802 = vmatpush1.xpose.msra.mxu0 0.0
        %1803 = vmatprep.subr.mxu0 0.0
        %1804 = vmatpush1.xpose.msra.mxu0 0.0
        %1805 = vmatprep.subr.mxu0 0.0
        %1806 = vmatpush1.xpose.msra.mxu0 0.0
        %1807 = vmatprep.subr.mxu0 0.0
        %1808 = vmatpush1.xpose.msra.mxu0 0.0
        %1809 = vmatprep.subr.mxu0 0.0
        %1810 = vmatpush1.xpose.msra.mxu0 0.0
        %1811 = vmatprep.subr.mxu0 0.0
        %1812 = vmatpush1.xpose.msra.mxu0 0.0
        %1813 = vmatprep.subr.mxu0 0.0
        %1814 = vmatpush1.xpose.msra.mxu0 0.0
        %1815 = vmatprep.subr.mxu0 0.0
        %1816 = vmatpush1.xpose.msra.mxu0 0.0
        %1817 = vmatprep.subr.mxu0 0.0
        %1818 = vmatpush1.xpose.msra.mxu0 0.0
        %1819 = vmatprep.subr.mxu0 0.0
        %1820 = vmatpush1.xpose.msra.mxu0 0.0
        %1821 = vmatprep.subr.mxu0 0.0
        %1822 = vmatpush1.xpose.msra.mxu0 0.0
        %1823 = vmatprep.subr.mxu0 0.0
        %1824 = vmatpush1.xpose.msra.mxu0 0.0
        %1825 = vmatprep.subr.mxu0 0.0
        %1826 = vmatpush1.xpose.msra.mxu0 0.0
        %1827 = vmatprep.subr.mxu0 0.0
        %1828 = vmatpush1.xpose.msra.mxu0 0.0
        %1829 = vmatprep.subr.mxu0 0.0
        %1830 = vmatpush1.xpose.msra.mxu0 0.0
        %1831 = vmatprep.subr.mxu0 0.0
        %1832 = vmatpush1.xpose.msra.mxu0 0.0
        %1833 = vmatprep.subr.mxu0 0.0
        %1834 = vmatpush1.xpose.msra.mxu0 0.0
        %1835 = vmatprep.subr.mxu0 0.0
        %1836 = vmatpush1.xpose.msra.mxu0 0.0
        %1837 = vmatprep.subr.mxu0 0.0
        %1838 = vmatpush1.xpose.msra.mxu0 0.0
        %1839 = vmatprep.subr.mxu0 0.0
        %1840 = vmatpush1.xpose.msra.mxu0 0.0
        %1841 = vmatprep.subr.mxu0 0.0
        %1842 = vmatpush1.xpose.msra.mxu0 0.0
        %1843 = vmatprep.subr.mxu0 0.0
        %1844 = vmatpush1.xpose.msra.mxu0 0.0
        %1845 = vmatprep.subr.mxu0 0.0
        %1846 = vmatpush1.xpose.msra.mxu0 0.0
        %1847 = vmatprep.subr.mxu0 0.0
        %1848 = vmatpush1.xpose.msra.mxu0 0.0
        %1849 = vmatprep.subr.mxu0 0.0
        %1850 = vmatpush1.xpose.msra.mxu0 0.0
        %1851 = vmatprep.subr.mxu0 0.0
        %1852 = vmatpush1.xpose.msra.mxu0 0.0
        %1853 = vmatprep.subr.mxu0 0.0
        %1854 = vmatpush1.xpose.msra.mxu0 0.0
        %1855 = vmatprep.mubr.f32.mxu0 0.0
        %v1856 = vand.u32 %v1415, 4294901760
        %1857 = vmatmul.mubr.f32.gmra.mrb[0].mxu0 %v1856
        %v1858 = vpop.f32.mrb[0].mxu0
        %v1859 = vadd.f32 %v1787, %v1858
        %v1860 = vpop.f32.mrb[0].mxu0
        %1861 = vdwg.mxu0
        %v1863 = vsel %vm956, %v1859, 0
        %1865 = vmatprep.subr.mxu0 0.0
        %v1866 = vand.u32 %v229, 4294901760
        %1867 = vmatpush1.msra.mxu0 %v1866
        %1868 = vmatprep.subr.mxu0 0.0
        %1869 = vmatpush1.msra.mxu0 0.0
        %1870 = vmatprep.subr.mxu0 0.0
        %1871 = vmatpush1.msra.mxu0 0.0
        %1872 = vmatprep.subr.mxu0 0.0
        %1873 = vmatpush1.msra.mxu0 0.0
        %1874 = vmatprep.subr.mxu0 0.0
        %1875 = vmatpush1.msra.mxu0 0.0
        %1876 = vmatprep.subr.mxu0 0.0
        %1877 = vmatpush1.msra.mxu0 0.0
        %1878 = vmatprep.subr.mxu0 0.0
        %1879 = vmatpush1.msra.mxu0 0.0
        %1880 = vmatprep.subr.mxu0 0.0
        %1881 = vmatpush1.msra.mxu0 0.0
        %1882 = vmatprep.subr.mxu0 0.0
        %1883 = vmatpush1.msra.mxu0 0.0
        %1884 = vmatprep.subr.mxu0 0.0
        %1885 = vmatpush1.msra.mxu0 0.0
        %1886 = vmatprep.subr.mxu0 0.0
        %1887 = vmatpush1.msra.mxu0 0.0
        %1888 = vmatprep.subr.mxu0 0.0
        %1889 = vmatpush1.msra.mxu0 0.0
        %1890 = vmatprep.subr.mxu0 0.0
        %1891 = vmatpush1.msra.mxu0 0.0
        %1892 = vmatprep.subr.mxu0 0.0
        %1893 = vmatpush1.msra.mxu0 0.0
        %1894 = vmatprep.subr.mxu0 0.0
        %1895 = vmatpush1.msra.mxu0 0.0
        %1896 = vmatprep.subr.mxu0 0.0
        %1897 = vmatpush1.msra.mxu0 0.0
        %1898 = vmatprep.subr.mxu0 0.0
        %1899 = vmatpush1.msra.mxu0 0.0
        %1900 = vmatprep.subr.mxu0 0.0
        %1901 = vmatpush1.msra.mxu0 0.0
        %1902 = vmatprep.subr.mxu0 0.0
        %1903 = vmatpush1.msra.mxu0 0.0
        %1904 = vmatprep.subr.mxu0 0.0
        %1905 = vmatpush1.msra.mxu0 0.0
        %1906 = vmatprep.subr.mxu0 0.0
        %1907 = vmatpush1.msra.mxu0 0.0
        %1908 = vmatprep.subr.mxu0 0.0
        %1909 = vmatpush1.msra.mxu0 0.0
        %1910 = vmatprep.subr.mxu0 0.0
        %1911 = vmatpush1.msra.mxu0 0.0
        %1912 = vmatprep.subr.mxu0 0.0
        %1913 = vmatpush1.msra.mxu0 0.0
        %1914 = vmatprep.subr.mxu0 0.0
        %1915 = vmatpush1.msra.mxu0 0.0
        %1916 = vmatprep.subr.mxu0 0.0
        %1917 = vmatpush1.msra.mxu0 0.0
        %1918 = vmatprep.subr.mxu0 0.0
        %1919 = vmatpush1.msra.mxu0 0.0
        %1920 = vmatprep.subr.mxu0 0.0
        %1921 = vmatpush1.msra.mxu0 0.0
        %1922 = vmatprep.subr.mxu0 0.0
        %1923 = vmatpush1.msra.mxu0 0.0
        %1924 = vmatprep.subr.mxu0 0.0
        %1925 = vmatpush1.msra.mxu0 0.0
        %1926 = vmatprep.subr.mxu0 0.0
        %1927 = vmatpush1.msra.mxu0 0.0
        %1928 = vmatprep.subr.mxu0 0.0
        %1929 = vmatpush1.msra.mxu0 0.0
        %1930 = vmatprep.mubr.f32.mxu0 0.0
        %v1931 = vand.u32 %v1863, 4294901760
        %v1932 = vsub.f32 %v1863, %v1931
        %v1933 = vand.u32 %v1932, 4294901760
        %v1934 = vsub.f32 %v1932, %v1933
        %v1935 = vand.u32 %v1934, 4294901760
        %1936 = vmatmul.mubr.f32.gmra.mrb[0].mxu0 %v1935
        %v1937 = vpop.f32.mrb[0].mxu0
        %v1938 = vadd.f32 0.0, %v1937
        %v1939 = vpop.f32.mrb[0].mxu0
        %1940 = vdwg.mxu0
        %1941 = vmatprep.subr.mxu0 0.0
        %v1942 = vand.u32 %v229, 4294901760
        %v1943 = vsub.f32 %v229, %v1942
        %v1944 = vand.u32 %v1943, 4294901760
        %v1945 = vsub.f32 %v1943, %v1944
        %v1946 = vand.u32 %v1945, 4294901760
        %1947 = vmatpush1.msra.mxu0 %v1946
        %1948 = vmatprep.subr.mxu0 0.0
        %1949 = vmatpush1.msra.mxu0 0.0
        %1950 = vmatprep.subr.mxu0 0.0
        %1951 = vmatpush1.msra.mxu0 0.0
        %1952 = vmatprep.subr.mxu0 0.0
        %1953 = vmatpush1.msra.mxu0 0.0
        %1954 = vmatprep.subr.mxu0 0.0
        %1955 = vmatpush1.msra.mxu0 0.0
        %1956 = vmatprep.subr.mxu0 0.0
        %1957 = vmatpush1.msra.mxu0 0.0
        %1958 = vmatprep.subr.mxu0 0.0
        %1959 = vmatpush1.msra.mxu0 0.0
        %1960 = vmatprep.subr.mxu0 0.0
        %1961 = vmatpush1.msra.mxu0 0.0
        %1962 = vmatprep.subr.mxu0 0.0
        %1963 = vmatpush1.msra.mxu0 0.0
        %1964 = vmatprep.subr.mxu0 0.0
        %1965 = vmatpush1.msra.mxu0 0.0
        %1966 = vmatprep.subr.mxu0 0.0
        %1967 = vmatpush1.msra.mxu0 0.0
        %1968 = vmatprep.subr.mxu0 0.0
        %1969 = vmatpush1.msra.mxu0 0.0
        %1970 = vmatprep.subr.mxu0 0.0
        %1971 = vmatpush1.msra.mxu0 0.0
        %1972 = vmatprep.subr.mxu0 0.0
        %1973 = vmatpush1.msra.mxu0 0.0
        %1974 = vmatprep.subr.mxu0 0.0
        %1975 = vmatpush1.msra.mxu0 0.0
        %1976 = vmatprep.subr.mxu0 0.0
        %1977 = vmatpush1.msra.mxu0 0.0
        %1978 = vmatprep.subr.mxu0 0.0
        %1979 = vmatpush1.msra.mxu0 0.0
        %1980 = vmatprep.subr.mxu0 0.0
        %1981 = vmatpush1.msra.mxu0 0.0
        %1982 = vmatprep.subr.mxu0 0.0
        %1983 = vmatpush1.msra.mxu0 0.0
        %1984 = vmatprep.subr.mxu0 0.0
        %1985 = vmatpush1.msra.mxu0 0.0
        %1986 = vmatprep.subr.mxu0 0.0
        %1987 = vmatpush1.msra.mxu0 0.0
        %1988 = vmatprep.subr.mxu0 0.0
        %1989 = vmatpush1.msra.mxu0 0.0
        %1990 = vmatprep.subr.mxu0 0.0
        %1991 = vmatpush1.msra.mxu0 0.0
        %1992 = vmatprep.subr.mxu0 0.0
        %1993 = vmatpush1.msra.mxu0 0.0
        %1994 = vmatprep.subr.mxu0 0.0
        %1995 = vmatpush1.msra.mxu0 0.0
        %1996 = vmatprep.subr.mxu0 0.0
        %1997 = vmatpush1.msra.mxu0 0.0
        %1998 = vmatprep.subr.mxu0 0.0
        %1999 = vmatpush1.msra.mxu0 0.0
        %2000 = vmatprep.subr.mxu0 0.0
        %2001 = vmatpush1.msra.mxu0 0.0
        %2002 = vmatprep.subr.mxu0 0.0
        %2003 = vmatpush1.msra.mxu0 0.0
        %2004 = vmatprep.subr.mxu0 0.0
        %2005 = vmatpush1.msra.mxu0 0.0
        %2006 = vmatprep.subr.mxu0 0.0
        %2007 = vmatpush1.msra.mxu0 0.0
        %2008 = vmatprep.subr.mxu0 0.0
        %2009 = vmatpush1.msra.mxu0 0.0
        %2010 = vmatprep.mubr.f32.mxu0 0.0
        %v2011 = vand.u32 %v1863, 4294901760
        %2012 = vmatmul.mubr.f32.gmra.mrb[0].mxu0 %v2011
        %v2013 = vpop.f32.mrb[0].mxu0
        %v2014 = vadd.f32 %v1938, %v2013
        %v2015 = vpop.f32.mrb[0].mxu0
        %2016 = vdwg.mxu0
        %2017 = vmatprep.subr.mxu0 0.0
        %v2018 = vand.u32 %v229, 4294901760
        %v2019 = vsub.f32 %v229, %v2018
        %2020 = vmatpush1.msra.mxu0 %v2019
        %2021 = vmatprep.subr.mxu0 0.0
        %2022 = vmatpush1.msra.mxu0 0.0
        %2023 = vmatprep.subr.mxu0 0.0
        %2024 = vmatpush1.msra.mxu0 0.0
        %2025 = vmatprep.subr.mxu0 0.0
        %2026 = vmatpush1.msra.mxu0 0.0
        %2027 = vmatprep.subr.mxu0 0.0
        %2028 = vmatpush1.msra.mxu0 0.0
        %2029 = vmatprep.subr.mxu0 0.0
        %2030 = vmatpush1.msra.mxu0 0.0
        %2031 = vmatprep.subr.mxu0 0.0
        %2032 = vmatpush1.msra.mxu0 0.0
        %2033 = vmatprep.subr.mxu0 0.0
        %2034 = vmatpush1.msra.mxu0 0.0
        %2035 = vmatprep.subr.mxu0 0.0
        %2036 = vmatpush1.msra.mxu0 0.0
        %2037 = vmatprep.subr.mxu0 0.0
        %2038 = vmatpush1.msra.mxu0 0.0
        %2039 = vmatprep.subr.mxu0 0.0
        %2040 = vmatpush1.msra.mxu0 0.0
        %2041 = vmatprep.subr.mxu0 0.0
        %2042 = vmatpush1.msra.mxu0 0.0
        %2043 = vmatprep.subr.mxu0 0.0
        %2044 = vmatpush1.msra.mxu0 0.0
        %2045 = vmatprep.subr.mxu0 0.0
        %2046 = vmatpush1.msra.mxu0 0.0
        %2047 = vmatprep.subr.mxu0 0.0
        %2048 = vmatpush1.msra.mxu0 0.0
        %2049 = vmatprep.subr.mxu0 0.0
        %2050 = vmatpush1.msra.mxu0 0.0
        %2051 = vmatprep.subr.mxu0 0.0
        %2052 = vmatpush1.msra.mxu0 0.0
        %2053 = vmatprep.subr.mxu0 0.0
        %2054 = vmatpush1.msra.mxu0 0.0
        %2055 = vmatprep.subr.mxu0 0.0
        %2056 = vmatpush1.msra.mxu0 0.0
        %2057 = vmatprep.subr.mxu0 0.0
        %2058 = vmatpush1.msra.mxu0 0.0
        %2059 = vmatprep.subr.mxu0 0.0
        %2060 = vmatpush1.msra.mxu0 0.0
        %2061 = vmatprep.subr.mxu0 0.0
        %2062 = vmatpush1.msra.mxu0 0.0
        %2063 = vmatprep.subr.mxu0 0.0
        %2064 = vmatpush1.msra.mxu0 0.0
        %2065 = vmatprep.subr.mxu0 0.0
        %2066 = vmatpush1.msra.mxu0 0.0
        %2067 = vmatprep.subr.mxu0 0.0
        %2068 = vmatpush1.msra.mxu0 0.0
        %2069 = vmatprep.subr.mxu0 0.0
        %2070 = vmatpush1.msra.mxu0 0.0
        %2071 = vmatprep.subr.mxu0 0.0
        %2072 = vmatpush1.msra.mxu0 0.0
        %2073 = vmatprep.subr.mxu0 0.0
        %2074 = vmatpush1.msra.mxu0 0.0
        %2075 = vmatprep.subr.mxu0 0.0
        %2076 = vmatpush1.msra.mxu0 0.0
        %2077 = vmatprep.subr.mxu0 0.0
        %2078 = vmatpush1.msra.mxu0 0.0
        %2079 = vmatprep.subr.mxu0 0.0
        %2080 = vmatpush1.msra.mxu0 0.0
        %2081 = vmatprep.subr.mxu0 0.0
        %2082 = vmatpush1.msra.mxu0 0.0
        %2083 = vmatprep.mubr.f32.mxu0 0.0
        %v2084 = vand.u32 %v1863, 4294901760
        %v2085 = vsub.f32 %v1863, %v2084
        %2086 = vmatmul.mubr.f32.gmra.mrb[0].mxu0 %v2085
        %v2087 = vpop.f32.mrb[0].mxu0
        %v2088 = vadd.f32 %v2014, %v2087
        %v2089 = vpop.f32.mrb[0].mxu0
        %2090 = vdwg.mxu0
        %2091 = vmatprep.subr.mxu0 0.0
        %v2092 = vand.u32 %v229, 4294901760
        %2093 = vmatpush1.msra.mxu0 %v2092
        %2094 = vmatprep.subr.mxu0 0.0
        %2095 = vmatpush1.msra.mxu0 0.0
        %2096 = vmatprep.subr.mxu0 0.0
        %2097 = vmatpush1.msra.mxu0 0.0
        %2098 = vmatprep.subr.mxu0 0.0
        %2099 = vmatpush1.msra.mxu0 0.0
        %2100 = vmatprep.subr.mxu0 0.0
        %2101 = vmatpush1.msra.mxu0 0.0
        %2102 = vmatprep.subr.mxu0 0.0
        %2103 = vmatpush1.msra.mxu0 0.0
        %2104 = vmatprep.subr.mxu0 0.0
        %2105 = vmatpush1.msra.mxu0 0.0
        %2106 = vmatprep.subr.mxu0 0.0
        %2107 = vmatpush1.msra.mxu0 0.0
        %2108 = vmatprep.subr.mxu0 0.0
        %2109 = vmatpush1.msra.mxu0 0.0
        %2110 = vmatprep.subr.mxu0 0.0
        %2111 = vmatpush1.msra.mxu0 0.0
        %2112 = vmatprep.subr.mxu0 0.0
        %2113 = vmatpush1.msra.mxu0 0.0
        %2114 = vmatprep.subr.mxu0 0.0
        %2115 = vmatpush1.msra.mxu0 0.0
        %2116 = vmatprep.subr.mxu0 0.0
        %2117 = vmatpush1.msra.mxu0 0.0
        %2118 = vmatprep.subr.mxu0 0.0
        %2119 = vmatpush1.msra.mxu0 0.0
        %2120 = vmatprep.subr.mxu0 0.0
        %2121 = vmatpush1.msra.mxu0 0.0
        %2122 = vmatprep.subr.mxu0 0.0
        %2123 = vmatpush1.msra.mxu0 0.0
        %2124 = vmatprep.subr.mxu0 0.0
        %2125 = vmatpush1.msra.mxu0 0.0
        %2126 = vmatprep.subr.mxu0 0.0
        %2127 = vmatpush1.msra.mxu0 0.0
        %2128 = vmatprep.subr.mxu0 0.0
        %2129 = vmatpush1.msra.mxu0 0.0
        %2130 = vmatprep.subr.mxu0 0.0
        %2131 = vmatpush1.msra.mxu0 0.0
        %2132 = vmatprep.subr.mxu0 0.0
        %2133 = vmatpush1.msra.mxu0 0.0
        %2134 = vmatprep.subr.mxu0 0.0
        %2135 = vmatpush1.msra.mxu0 0.0
        %2136 = vmatprep.subr.mxu0 0.0
        %2137 = vmatpush1.msra.mxu0 0.0
        %2138 = vmatprep.subr.mxu0 0.0
        %2139 = vmatpush1.msra.mxu0 0.0
        %2140 = vmatprep.subr.mxu0 0.0
        %2141 = vmatpush1.msra.mxu0 0.0
        %2142 = vmatprep.subr.mxu0 0.0
        %2143 = vmatpush1.msra.mxu0 0.0
        %2144 = vmatprep.subr.mxu0 0.0
        %2145 = vmatpush1.msra.mxu0 0.0
        %2146 = vmatprep.subr.mxu0 0.0
        %2147 = vmatpush1.msra.mxu0 0.0
        %2148 = vmatprep.subr.mxu0 0.0
        %2149 = vmatpush1.msra.mxu0 0.0
        %2150 = vmatprep.subr.mxu0 0.0
        %2151 = vmatpush1.msra.mxu0 0.0
        %2152 = vmatprep.subr.mxu0 0.0
        %2153 = vmatpush1.msra.mxu0 0.0
        %2154 = vmatprep.subr.mxu0 0.0
        %2155 = vmatpush1.msra.mxu0 0.0
        %2156 = vmatprep.mubr.f32.mxu0 0.0
        %v2157 = vand.u32 %v1863, 4294901760
        %v2158 = vsub.f32 %v1863, %v2157
        %v2159 = vand.u32 %v2158, 4294901760
        %2160 = vmatmul.mubr.f32.gmra.mrb[0].mxu0 %v2159
        %v2161 = vpop.f32.mrb[0].mxu0
        %v2162 = vadd.f32 %v2088, %v2161
        %v2163 = vpop.f32.mrb[0].mxu0
        %2164 = vdwg.mxu0
        %2165 = vmatprep.subr.mxu0 0.0
        %v2166 = vand.u32 %v229, 4294901760
        %v2167 = vsub.f32 %v229, %v2166
        %v2168 = vand.u32 %v2167, 4294901760
        %2169 = vmatpush1.msra.mxu0 %v2168
        %2170 = vmatprep.subr.mxu0 0.0
        %2171 = vmatpush1.msra.mxu0 0.0
        %2172 = vmatprep.subr.mxu0 0.0
        %2173 = vmatpush1.msra.mxu0 0.0
        %2174 = vmatprep.subr.mxu0 0.0
        %2175 = vmatpush1.msra.mxu0 0.0
        %2176 = vmatprep.subr.mxu0 0.0
        %2177 = vmatpush1.msra.mxu0 0.0
        %2178 = vmatprep.subr.mxu0 0.0
        %2179 = vmatpush1.msra.mxu0 0.0
        %2180 = vmatprep.subr.mxu0 0.0
        %2181 = vmatpush1.msra.mxu0 0.0
        %2182 = vmatprep.subr.mxu0 0.0
        %2183 = vmatpush1.msra.mxu0 0.0
        %2184 = vmatprep.subr.mxu0 0.0
        %2185 = vmatpush1.msra.mxu0 0.0
        %2186 = vmatprep.subr.mxu0 0.0
        %2187 = vmatpush1.msra.mxu0 0.0
        %2188 = vmatprep.subr.mxu0 0.0
        %2189 = vmatpush1.msra.mxu0 0.0
        %2190 = vmatprep.subr.mxu0 0.0
        %2191 = vmatpush1.msra.mxu0 0.0
        %2192 = vmatprep.subr.mxu0 0.0
        %2193 = vmatpush1.msra.mxu0 0.0
        %2194 = vmatprep.subr.mxu0 0.0
        %2195 = vmatpush1.msra.mxu0 0.0
        %2196 = vmatprep.subr.mxu0 0.0
        %2197 = vmatpush1.msra.mxu0 0.0
        %2198 = vmatprep.subr.mxu0 0.0
        %2199 = vmatpush1.msra.mxu0 0.0
        %2200 = vmatprep.subr.mxu0 0.0
        %2201 = vmatpush1.msra.mxu0 0.0
        %2202 = vmatprep.subr.mxu0 0.0
        %2203 = vmatpush1.msra.mxu0 0.0
        %2204 = vmatprep.subr.mxu0 0.0
        %2205 = vmatpush1.msra.mxu0 0.0
        %2206 = vmatprep.subr.mxu0 0.0
        %2207 = vmatpush1.msra.mxu0 0.0
        %2208 = vmatprep.subr.mxu0 0.0
        %2209 = vmatpush1.msra.mxu0 0.0
        %2210 = vmatprep.subr.mxu0 0.0
        %2211 = vmatpush1.msra.mxu0 0.0
        %2212 = vmatprep.subr.mxu0 0.0
        %2213 = vmatpush1.msra.mxu0 0.0
        %2214 = vmatprep.subr.mxu0 0.0
        %2215 = vmatpush1.msra.mxu0 0.0
        %2216 = vmatprep.subr.mxu0 0.0
        %2217 = vmatpush1.msra.mxu0 0.0
        %2218 = vmatprep.subr.mxu0 0.0
        %2219 = vmatpush1.msra.mxu0 0.0
        %2220 = vmatprep.subr.mxu0 0.0
        %2221 = vmatpush1.msra.mxu0 0.0
        %2222 = vmatprep.subr.mxu0 0.0
        %2223 = vmatpush1.msra.mxu0 0.0
        %2224 = vmatprep.subr.mxu0 0.0
        %2225 = vmatpush1.msra.mxu0 0.0
        %2226 = vmatprep.subr.mxu0 0.0
        %2227 = vmatpush1.msra.mxu0 0.0
        %2228 = vmatprep.subr.mxu0 0.0
        %2229 = vmatpush1.msra.mxu0 0.0
        %2230 = vmatprep.subr.mxu0 0.0
        %2231 = vmatpush1.msra.mxu0 0.0
        %2232 = vmatprep.mubr.f32.mxu0 0.0
        %v2233 = vand.u32 %v1863, 4294901760
        %2234 = vmatmul.mubr.f32.gmra.mrb[0].mxu0 %v2233
        %v2235 = vpop.f32.mrb[0].mxu0
        %v2236 = vadd.f32 %v2162, %v2235
        %v2237 = vpop.f32.mrb[0].mxu0
        %2238 = vdwg.mxu0
        %2239 = vmatprep.subr.mxu0 0.0
        %v2240 = vand.u32 %v229, 4294901760
        %2241 = vmatpush1.msra.mxu0 %v2240
        %2242 = vmatprep.subr.mxu0 0.0
        %2243 = vmatpush1.msra.mxu0 0.0
        %2244 = vmatprep.subr.mxu0 0.0
        %2245 = vmatpush1.msra.mxu0 0.0
        %2246 = vmatprep.subr.mxu0 0.0
        %2247 = vmatpush1.msra.mxu0 0.0
        %2248 = vmatprep.subr.mxu0 0.0
        %2249 = vmatpush1.msra.mxu0 0.0
        %2250 = vmatprep.subr.mxu0 0.0
        %2251 = vmatpush1.msra.mxu0 0.0
        %2252 = vmatprep.subr.mxu0 0.0
        %2253 = vmatpush1.msra.mxu0 0.0
        %2254 = vmatprep.subr.mxu0 0.0
        %2255 = vmatpush1.msra.mxu0 0.0
        %2256 = vmatprep.subr.mxu0 0.0
        %2257 = vmatpush1.msra.mxu0 0.0
        %2258 = vmatprep.subr.mxu0 0.0
        %2259 = vmatpush1.msra.mxu0 0.0
        %2260 = vmatprep.subr.mxu0 0.0
        %2261 = vmatpush1.msra.mxu0 0.0
        %2262 = vmatprep.subr.mxu0 0.0
        %2263 = vmatpush1.msra.mxu0 0.0
        %2264 = vmatprep.subr.mxu0 0.0
        %2265 = vmatpush1.msra.mxu0 0.0
        %2266 = vmatprep.subr.mxu0 0.0
        %2267 = vmatpush1.msra.mxu0 0.0
        %2268 = vmatprep.subr.mxu0 0.0
        %2269 = vmatpush1.msra.mxu0 0.0
        %2270 = vmatprep.subr.mxu0 0.0
        %2271 = vmatpush1.msra.mxu0 0.0
        %2272 = vmatprep.subr.mxu0 0.0
        %2273 = vmatpush1.msra.mxu0 0.0
        %2274 = vmatprep.subr.mxu0 0.0
        %2275 = vmatpush1.msra.mxu0 0.0
        %2276 = vmatprep.subr.mxu0 0.0
        %2277 = vmatpush1.msra.mxu0 0.0
        %2278 = vmatprep.subr.mxu0 0.0
        %2279 = vmatpush1.msra.mxu0 0.0
        %2280 = vmatprep.subr.mxu0 0.0
        %2281 = vmatpush1.msra.mxu0 0.0
        %2282 = vmatprep.subr.mxu0 0.0
        %2283 = vmatpush1.msra.mxu0 0.0
        %2284 = vmatprep.subr.mxu0 0.0
        %2285 = vmatpush1.msra.mxu0 0.0
        %2286 = vmatprep.subr.mxu0 0.0
        %2287 = vmatpush1.msra.mxu0 0.0
        %2288 = vmatprep.subr.mxu0 0.0
        %2289 = vmatpush1.msra.mxu0 0.0
        %2290 = vmatprep.subr.mxu0 0.0
        %2291 = vmatpush1.msra.mxu0 0.0
        %2292 = vmatprep.subr.mxu0 0.0
        %2293 = vmatpush1.msra.mxu0 0.0
        %2294 = vmatprep.subr.mxu0 0.0
        %2295 = vmatpush1.msra.mxu0 0.0
        %2296 = vmatprep.subr.mxu0 0.0
        %2297 = vmatpush1.msra.mxu0 0.0
        %2298 = vmatprep.subr.mxu0 0.0
        %2299 = vmatpush1.msra.mxu0 0.0
        %2300 = vmatprep.subr.mxu0 0.0
        %2301 = vmatpush1.msra.mxu0 0.0
        %2302 = vmatprep.subr.mxu0 0.0
        %2303 = vmatpush1.msra.mxu0 0.0
        %2304 = vmatprep.mubr.f32.mxu0 0.0
        %v2305 = vand.u32 %v1863, 4294901760
        %2306 = vmatmul.mubr.f32.gmra.mrb[0].mxu0 %v2305
        %v2307 = vpop.f32.mrb[0].mxu0
        %v2308 = vadd.f32 %v2236, %v2307
        %v2309 = vpop.f32.mrb[0].mxu0
        %2310 = vdwg.mxu0
        %v2311 = vmul.f32 %v2308, 0.00390625
        %v2312 = vmul.f32 %v1406, %v1406
        %v2313 = vsub.f32 %v2311, %v2312
        %v2314 = vlaneseq
        %v2315 = vshrl.u32 %v2314, 7
        %v2316 = vsub.s32 0, %v2315
        %v2317 = vrot.slane %v1406, %v2316
        %v2318 = vsub.f32 %v493, %v2317
        %v2319 = vsub.f32 %v494, %v2317
        %v2320 = vadd.f32 %v2313, 1e-05
        %v2321 = vrsqrt.pop %v2320
        %v2322 = vlaneseq
        %v2323 = vshrl.u32 %v2322, 7
        %v2324 = vsub.s32 0, %v2323
        %v2325 = vrot.slane %v2321, %v2324
        %v2326 = vmul.f32 %v2318, %v2325
        %v2327 = vmul.f32 %v2319, %v2325
        %v2328 = vmax.f32 %v2326, 0.0
        %v2329 = vmax.f32 %v2327, 0.0
        %v2330 = vadd.f32 %v501, %v502
        %v2331 = vrot.slane %v2330, 4
        %v2332 = vadd.f32 %v2330, %v2331
        %v2333 = vrot.slane %v2332, 2
        %v2334 = vadd.f32 %v2332, %v2333
        %v2335 = vrot.slane %v2334, 1
        %v2336 = vadd.f32 %v2334, %v2335
        %2337 = vmatprep.subr.mxu0 0.0
        %v2338 = vand.u32 %v229, 4294901760
        %2339 = vmatpush1.xpose.msra.mxu0 %v2338
        %2340 = vmatprep.subr.mxu0 0.0
        %2341 = vmatpush1.xpose.msra.mxu0 0.0
        %2342 = vmatprep.subr.mxu0 0.0
        %2343 = vmatpush1.xpose.msra.mxu0 0.0
        %2344 = vmatprep.subr.mxu0 0.0
        %2345 = vmatpush1.xpose.msra.mxu0 0.0
        %2346 = vmatprep.subr.mxu0 0.0
        %2347 = vmatpush1.xpose.msra.mxu0 0.0
        %2348 = vmatprep.subr.mxu0 0.0
        %2349 = vmatpush1.xpose.msra.mxu0 0.0
        %2350 = vmatprep.subr.mxu0 0.0
        %2351 = vmatpush1.xpose.msra.mxu0 0.0
        %2352 = vmatprep.subr.mxu0 0.0
        %2353 = vmatpush1.xpose.msra.mxu0 0.0
        %2354 = vmatprep.subr.mxu0 0.0
        %2355 = vmatpush1.xpose.msra.mxu0 0.0
        %2356 = vmatprep.subr.mxu0 0.0
        %2357 = vmatpush1.xpose.msra.mxu0 0.0
        %2358 = vmatprep.subr.mxu0 0.0
        %2359 = vmatpush1.xpose.msra.mxu0 0.0
        %2360 = vmatprep.subr.mxu0 0.0
        %2361 = vmatpush1.xpose.msra.mxu0 0.0
        %2362 = vmatprep.subr.mxu0 0.0
        %2363 = vmatpush1.xpose.msra.mxu0 0.0
        %2364 = vmatprep.subr.mxu0 0.0
        %2365 = vmatpush1.xpose.msra.mxu0 0.0
        %2366 = vmatprep.subr.mxu0 0.0
        %2367 = vmatpush1.xpose.msra.mxu0 0.0
        %2368 = vmatprep.subr.mxu0 0.0
        %2369 = vmatpush1.xpose.msra.mxu0 0.0
        %2370 = vmatprep.subr.mxu0 0.0
        %2371 = vmatpush1.xpose.msra.mxu0 0.0
        %2372 = vmatprep.subr.mxu0 0.0
        %2373 = vmatpush1.xpose.msra.mxu0 0.0
        %2374 = vmatprep.subr.mxu0 0.0
        %2375 = vmatpush1.xpose.msra.mxu0 0.0
        %2376 = vmatprep.subr.mxu0 0.0
        %2377 = vmatpush1.xpose.msra.mxu0 0.0
        %2378 = vmatprep.subr.mxu0 0.0
        %2379 = vmatpush1.xpose.msra.mxu0 0.0
        %2380 = vmatprep.subr.mxu0 0.0
        %2381 = vmatpush1.xpose.msra.mxu0 0.0
        %2382 = vmatprep.subr.mxu0 0.0
        %2383 = vmatpush1.xpose.msra.mxu0 0.0
        %2384 = vmatprep.subr.mxu0 0.0
        %2385 = vmatpush1.xpose.msra.mxu0 0.0
        %2386 = vmatprep.subr.mxu0 0.0
        %2387 = vmatpush1.xpose.msra.mxu0 0.0
        %2388 = vmatprep.subr.mxu0 0.0
        %2389 = vmatpush1.xpose.msra.mxu0 0.0
        %2390 = vmatprep.subr.mxu0 0.0
        %2391 = vmatpush1.xpose.msra.mxu0 0.0
        %2392 = vmatprep.subr.mxu0 0.0
        %2393 = vmatpush1.xpose.msra.mxu0 0.0
        %2394 = vmatprep.subr.mxu0 0.0
        %2395 = vmatpush1.xpose.msra.mxu0 0.0
        %2396 = vmatprep.subr.mxu0 0.0
        %2397 = vmatpush1.xpose.msra.mxu0 0.0
        %2398 = vmatprep.subr.mxu0 0.0
        %2399 = vmatpush1.xpose.msra.mxu0 0.0
        %2400 = vmatprep.subr.mxu0 0.0
        %2401 = vmatpush1.xpose.msra.mxu0 0.0
        %2402 = vmatprep.mubr.f32.mxu0 0.0
        %v2403 = vand.u32 %v2336, 4294901760
        %v2404 = vsub.f32 %v2336, %v2403
        %v2405 = vand.u32 %v2404, 4294901760
        %v2406 = vsub.f32 %v2404, %v2405
        %v2407 = vand.u32 %v2406, 4294901760
        %2408 = vmatmul.mubr.f32.gmra.mrb[0].mxu0 %v2407
        %v2409 = vpop.f32.mrb[0].mxu0
        %v2410 = vadd.f32 0.0, %v2409
        %v2411 = vpop.f32.mrb[0].mxu0
        %2412 = vdwg.mxu0
        %2413 = vmatprep.subr.mxu0 0.0
        %v2414 = vand.u32 %v229, 4294901760
        %v2415 = vsub.f32 %v229, %v2414
        %v2416 = vand.u32 %v2415, 4294901760
        %v2417 = vsub.f32 %v2415, %v2416
        %v2418 = vand.u32 %v2417, 4294901760
        %2419 = vmatpush1.xpose.msra.mxu0 %v2418
        %2420 = vmatprep.subr.mxu0 0.0
        %2421 = vmatpush1.xpose.msra.mxu0 0.0
        %2422 = vmatprep.subr.mxu0 0.0
        %2423 = vmatpush1.xpose.msra.mxu0 0.0
        %2424 = vmatprep.subr.mxu0 0.0
        %2425 = vmatpush1.xpose.msra.mxu0 0.0
        %2426 = vmatprep.subr.mxu0 0.0
        %2427 = vmatpush1.xpose.msra.mxu0 0.0
        %2428 = vmatprep.subr.mxu0 0.0
        %2429 = vmatpush1.xpose.msra.mxu0 0.0
        %2430 = vmatprep.subr.mxu0 0.0
        %2431 = vmatpush1.xpose.msra.mxu0 0.0
        %2432 = vmatprep.subr.mxu0 0.0
        %2433 = vmatpush1.xpose.msra.mxu0 0.0
        %2434 = vmatprep.subr.mxu0 0.0
        %2435 = vmatpush1.xpose.msra.mxu0 0.0
        %2436 = vmatprep.subr.mxu0 0.0
        %2437 = vmatpush1.xpose.msra.mxu0 0.0
        %2438 = vmatprep.subr.mxu0 0.0
        %2439 = vmatpush1.xpose.msra.mxu0 0.0
        %2440 = vmatprep.subr.mxu0 0.0
        %2441 = vmatpush1.xpose.msra.mxu0 0.0
        %2442 = vmatprep.subr.mxu0 0.0
        %2443 = vmatpush1.xpose.msra.mxu0 0.0
        %2444 = vmatprep.subr.mxu0 0.0
        %2445 = vmatpush1.xpose.msra.mxu0 0.0
        %2446 = vmatprep.subr.mxu0 0.0
        %2447 = vmatpush1.xpose.msra.mxu0 0.0
        %2448 = vmatprep.subr.mxu0 0.0
        %2449 = vmatpush1.xpose.msra.mxu0 0.0
        %2450 = vmatprep.subr.mxu0 0.0
        %2451 = vmatpush1.xpose.msra.mxu0 0.0
        %2452 = vmatprep.subr.mxu0 0.0
        %2453 = vmatpush1.xpose.msra.mxu0 0.0
        %2454 = vmatprep.subr.mxu0 0.0
        %2455 = vmatpush1.xpose.msra.mxu0 0.0
        %2456 = vmatprep.subr.mxu0 0.0
        %2457 = vmatpush1.xpose.msra.mxu0 0.0
        %2458 = vmatprep.subr.mxu0 0.0
        %2459 = vmatpush1.xpose.msra.mxu0 0.0
        %2460 = vmatprep.subr.mxu0 0.0
        %2461 = vmatpush1.xpose.msra.mxu0 0.0
        %2462 = vmatprep.subr.mxu0 0.0
        %2463 = vmatpush1.xpose.msra.mxu0 0.0
        %2464 = vmatprep.subr.mxu0 0.0
        %2465 = vmatpush1.xpose.msra.mxu0 0.0
        %2466 = vmatprep.subr.mxu0 0.0
        %2467 = vmatpush1.xpose.msra.mxu0 0.0
        %2468 = vmatprep.subr.mxu0 0.0
        %2469 = vmatpush1.xpose.msra.mxu0 0.0
        %2470 = vmatprep.subr.mxu0 0.0
        %2471 = vmatpush1.xpose.msra.mxu0 0.0
        %2472 = vmatprep.subr.mxu0 0.0
        %2473 = vmatpush1.xpose.msra.mxu0 0.0
        %2474 = vmatprep.subr.mxu0 0.0
        %2475 = vmatpush1.xpose.msra.mxu0 0.0
        %2476 = vmatprep.subr.mxu0 0.0
        %2477 = vmatpush1.xpose.msra.mxu0 0.0
        %2478 = vmatprep.subr.mxu0 0.0
        %2479 = vmatpush1.xpose.msra.mxu0 0.0
        %2480 = vmatprep.subr.mxu0 0.0
        %2481 = vmatpush1.xpose.msra.mxu0 0.0
        %2482 = vmatprep.mubr.f32.mxu0 0.0
        %v2483 = vand.u32 %v2336, 4294901760
        %2484 = vmatmul.mubr.f32.gmra.mrb[0].mxu0 %v2483
        %v2485 = vpop.f32.mrb[0].mxu0
        %v2486 = vadd.f32 %v2410, %v2485
        %v2487 = vpop.f32.mrb[0].mxu0
        %2488 = vdwg.mxu0
        %2489 = vmatprep.subr.mxu0 0.0
        %v2490 = vand.u32 %v229, 4294901760
        %v2491 = vsub.f32 %v229, %v2490
        %2492 = vmatpush1.xpose.msra.mxu0 %v2491
        %2493 = vmatprep.subr.mxu0 0.0
        %2494 = vmatpush1.xpose.msra.mxu0 0.0
        %2495 = vmatprep.subr.mxu0 0.0
        %2496 = vmatpush1.xpose.msra.mxu0 0.0
        %2497 = vmatprep.subr.mxu0 0.0
        %2498 = vmatpush1.xpose.msra.mxu0 0.0
        %2499 = vmatprep.subr.mxu0 0.0
        %2500 = vmatpush1.xpose.msra.mxu0 0.0
        %2501 = vmatprep.subr.mxu0 0.0
        %2502 = vmatpush1.xpose.msra.mxu0 0.0
        %2503 = vmatprep.subr.mxu0 0.0
        %2504 = vmatpush1.xpose.msra.mxu0 0.0
        %2505 = vmatprep.subr.mxu0 0.0
        %2506 = vmatpush1.xpose.msra.mxu0 0.0
        %2507 = vmatprep.subr.mxu0 0.0
        %2508 = vmatpush1.xpose.msra.mxu0 0.0
        %2509 = vmatprep.subr.mxu0 0.0
        %2510 = vmatpush1.xpose.msra.mxu0 0.0
        %2511 = vmatprep.subr.mxu0 0.0
        %2512 = vmatpush1.xpose.msra.mxu0 0.0
        %2513 = vmatprep.subr.mxu0 0.0
        %2514 = vmatpush1.xpose.msra.mxu0 0.0
        %2515 = vmatprep.subr.mxu0 0.0
        %2516 = vmatpush1.xpose.msra.mxu0 0.0
        %2517 = vmatprep.subr.mxu0 0.0
        %2518 = vmatpush1.xpose.msra.mxu0 0.0
        %2519 = vmatprep.subr.mxu0 0.0
        %2520 = vmatpush1.xpose.msra.mxu0 0.0
        %2521 = vmatprep.subr.mxu0 0.0
        %2522 = vmatpush1.xpose.msra.mxu0 0.0
        %2523 = vmatprep.subr.mxu0 0.0
        %2524 = vmatpush1.xpose.msra.mxu0 0.0
        %2525 = vmatprep.subr.mxu0 0.0
        %2526 = vmatpush1.xpose.msra.mxu0 0.0
        %2527 = vmatprep.subr.mxu0 0.0
        %2528 = vmatpush1.xpose.msra.mxu0 0.0
        %2529 = vmatprep.subr.mxu0 0.0
        %2530 = vmatpush1.xpose.msra.mxu0 0.0
        %2531 = vmatprep.subr.mxu0 0.0
        %2532 = vmatpush1.xpose.msra.mxu0 0.0
        %2533 = vmatprep.subr.mxu0 0.0
        %2534 = vmatpush1.xpose.msra.mxu0 0.0
        %2535 = vmatprep.subr.mxu0 0.0
        %2536 = vmatpush1.xpose.msra.mxu0 0.0
        %2537 = vmatprep.subr.mxu0 0.0
        %2538 = vmatpush1.xpose.msra.mxu0 0.0
        %2539 = vmatprep.subr.mxu0 0.0
        %2540 = vmatpush1.xpose.msra.mxu0 0.0
        %2541 = vmatprep.subr.mxu0 0.0
        %2542 = vmatpush1.xpose.msra.mxu0 0.0
        %2543 = vmatprep.subr.mxu0 0.0
        %2544 = vmatpush1.xpose.msra.mxu0 0.0
        %2545 = vmatprep.subr.mxu0 0.0
        %2546 = vmatpush1.xpose.msra.mxu0 0.0
        %2547 = vmatprep.subr.mxu0 0.0
        %2548 = vmatpush1.xpose.msra.mxu0 0.0
        %2549 = vmatprep.subr.mxu0 0.0
        %2550 = vmatpush1.xpose.msra.mxu0 0.0
        %2551 = vmatprep.subr.mxu0 0.0
        %2552 = vmatpush1.xpose.msra.mxu0 0.0
        %2553 = vmatprep.subr.mxu0 0.0
        %2554 = vmatpush1.xpose.msra.mxu0 0.0
        %2555 = vmatprep.mubr.f32.mxu0 0.0
        %v2556 = vand.u32 %v2336, 4294901760
        %v2557 = vsub.f32 %v2336, %v2556
        %2558 = vmatmul.mubr.f32.gmra.mrb[0].mxu0 %v2557
        %v2559 = vpop.f32.mrb[0].mxu0
        %v2560 = vadd.f32 %v2486, %v2559
        %v2561 = vpop.f32.mrb[0].mxu0
        %2562 = vdwg.mxu0
        %2563 = vmatprep.subr.mxu0 0.0
        %v2564 = vand.u32 %v229, 4294901760
        %2565 = vmatpush1.xpose.msra.mxu0 %v2564
        %2566 = vmatprep.subr.mxu0 0.0
        %2567 = vmatpush1.xpose.msra.mxu0 0.0
        %2568 = vmatprep.subr.mxu0 0.0
        %2569 = vmatpush1.xpose.msra.mxu0 0.0
        %2570 = vmatprep.subr.mxu0 0.0
        %2571 = vmatpush1.xpose.msra.mxu0 0.0
        %2572 = vmatprep.subr.mxu0 0.0
        %2573 = vmatpush1.xpose.msra.mxu0 0.0
        %2574 = vmatprep.subr.mxu0 0.0
        %2575 = vmatpush1.xpose.msra.mxu0 0.0
        %2576 = vmatprep.subr.mxu0 0.0
        %2577 = vmatpush1.xpose.msra.mxu0 0.0
        %2578 = vmatprep.subr.mxu0 0.0
        %2579 = vmatpush1.xpose.msra.mxu0 0.0
        %2580 = vmatprep.subr.mxu0 0.0
        %2581 = vmatpush1.xpose.msra.mxu0 0.0
        %2582 = vmatprep.subr.mxu0 0.0
        %2583 = vmatpush1.xpose.msra.mxu0 0.0
        %2584 = vmatprep.subr.mxu0 0.0
        %2585 = vmatpush1.xpose.msra.mxu0 0.0
        %2586 = vmatprep.subr.mxu0 0.0
        %2587 = vmatpush1.xpose.msra.mxu0 0.0
        %2588 = vmatprep.subr.mxu0 0.0
        %2589 = vmatpush1.xpose.msra.mxu0 0.0
        %2590 = vmatprep.subr.mxu0 0.0
        %2591 = vmatpush1.xpose.msra.mxu0 0.0
        %2592 = vmatprep.subr.mxu0 0.0
        %2593 = vmatpush1.xpose.msra.mxu0 0.0
        %2594 = vmatprep.subr.mxu0 0.0
        %2595 = vmatpush1.xpose.msra.mxu0 0.0
        %2596 = vmatprep.subr.mxu0 0.0
        %2597 = vmatpush1.xpose.msra.mxu0 0.0
        %2598 = vmatprep.subr.mxu0 0.0
        %2599 = vmatpush1.xpose.msra.mxu0 0.0
        %2600 = vmatprep.subr.mxu0 0.0
        %2601 = vmatpush1.xpose.msra.mxu0 0.0
        %2602 = vmatprep.subr.mxu0 0.0
        %2603 = vmatpush1.xpose.msra.mxu0 0.0
        %2604 = vmatprep.subr.mxu0 0.0
        %2605 = vmatpush1.xpose.msra.mxu0 0.0
        %2606 = vmatprep.subr.mxu0 0.0
        %2607 = vmatpush1.xpose.msra.mxu0 0.0
        %2608 = vmatprep.subr.mxu0 0.0
        %2609 = vmatpush1.xpose.msra.mxu0 0.0
        %2610 = vmatprep.subr.mxu0 0.0
        %2611 = vmatpush1.xpose.msra.mxu0 0.0
        %2612 = vmatprep.subr.mxu0 0.0
        %2613 = vmatpush1.xpose.msra.mxu0 0.0
        %2614 = vmatprep.subr.mxu0 0.0
        %2615 = vmatpush1.xpose.msra.mxu0 0.0
        %2616 = vmatprep.subr.mxu0 0.0
        %2617 = vmatpush1.xpose.msra.mxu0 0.0
        %2618 = vmatprep.subr.mxu0 0.0
        %2619 = vmatpush1.xpose.msra.mxu0 0.0
        %2620 = vmatprep.subr.mxu0 0.0
        %2621 = vmatpush1.xpose.msra.mxu0 0.0
        %2622 = vmatprep.subr.mxu0 0.0
        %2623 = vmatpush1.xpose.msra.mxu0 0.0
        %2624 = vmatprep.subr.mxu0 0.0
        %2625 = vmatpush1.xpose.msra.mxu0 0.0
        %2626 = vmatprep.subr.mxu0 0.0
        %2627 = vmatpush1.xpose.msra.mxu0 0.0
        %2628 = vmatprep.mubr.f32.mxu0 0.0
        %v2629 = vand.u32 %v2336, 4294901760
        %v2630 = vsub.f32 %v2336, %v2629
        %v2631 = vand.u32 %v2630, 4294901760
        %2632 = vmatmul.mubr.f32.gmra.mrb[0].mxu0 %v2631
        %v2633 = vpop.f32.mrb[0].mxu0
        %v2634 = vadd.f32 %v2560, %v2633
        %v2635 = vpop.f32.mrb[0].mxu0
        %2636 = vdwg.mxu0
        %2637 = vmatprep.subr.mxu0 0.0
        %v2638 = vand.u32 %v229, 4294901760
        %v2639 = vsub.f32 %v229, %v2638
        %v2640 = vand.u32 %v2639, 4294901760
        %2641 = vmatpush1.xpose.msra.mxu0 %v2640
        %2642 = vmatprep.subr.mxu0 0.0
        %2643 = vmatpush1.xpose.msra.mxu0 0.0
        %2644 = vmatprep.subr.mxu0 0.0
        %2645 = vmatpush1.xpose.msra.mxu0 0.0
        %2646 = vmatprep.subr.mxu0 0.0
        %2647 = vmatpush1.xpose.msra.mxu0 0.0
        %2648 = vmatprep.subr.mxu0 0.0
        %2649 = vmatpush1.xpose.msra.mxu0 0.0
        %2650 = vmatprep.subr.mxu0 0.0
        %2651 = vmatpush1.xpose.msra.mxu0 0.0
        %2652 = vmatprep.subr.mxu0 0.0
        %2653 = vmatpush1.xpose.msra.mxu0 0.0
        %2654 = vmatprep.subr.mxu0 0.0
        %2655 = vmatpush1.xpose.msra.mxu0 0.0
        %2656 = vmatprep.subr.mxu0 0.0
        %2657 = vmatpush1.xpose.msra.mxu0 0.0
        %2658 = vmatprep.subr.mxu0 0.0
        %2659 = vmatpush1.xpose.msra.mxu0 0.0
        %2660 = vmatprep.subr.mxu0 0.0
        %2661 = vmatpush1.xpose.msra.mxu0 0.0
        %2662 = vmatprep.subr.mxu0 0.0
        %2663 = vmatpush1.xpose.msra.mxu0 0.0
        %2664 = vmatprep.subr.mxu0 0.0
        %2665 = vmatpush1.xpose.msra.mxu0 0.0
        %2666 = vmatprep.subr.mxu0 0.0
        %2667 = vmatpush1.xpose.msra.mxu0 0.0
        %2668 = vmatprep.subr.mxu0 0.0
        %2669 = vmatpush1.xpose.msra.mxu0 0.0
        %2670 = vmatprep.subr.mxu0 0.0
        %2671 = vmatpush1.xpose.msra.mxu0 0.0
        %2672 = vmatprep.subr.mxu0 0.0
        %2673 = vmatpush1.xpose.msra.mxu0 0.0
        %2674 = vmatprep.subr.mxu0 0.0
        %2675 = vmatpush1.xpose.msra.mxu0 0.0
        %2676 = vmatprep.subr.mxu0 0.0
        %2677 = vmatpush1.xpose.msra.mxu0 0.0
        %2678 = vmatprep.subr.mxu0 0.0
        %2679 = vmatpush1.xpose.msra.mxu0 0.0
        %2680 = vmatprep.subr.mxu0 0.0
        %2681 = vmatpush1.xpose.msra.mxu0 0.0
        %2682 = vmatprep.subr.mxu0 0.0
        %2683 = vmatpush1.xpose.msra.mxu0 0.0
        %2684 = vmatprep.subr.mxu0 0.0
        %2685 = vmatpush1.xpose.msra.mxu0 0.0
        %2686 = vmatprep.subr.mxu0 0.0
        %2687 = vmatpush1.xpose.msra.mxu0 0.0
        %2688 = vmatprep.subr.mxu0 0.0
        %2689 = vmatpush1.xpose.msra.mxu0 0.0
        %2690 = vmatprep.subr.mxu0 0.0
        %2691 = vmatpush1.xpose.msra.mxu0 0.0
        %2692 = vmatprep.subr.mxu0 0.0
        %2693 = vmatpush1.xpose.msra.mxu0 0.0
        %2694 = vmatprep.subr.mxu0 0.0
        %2695 = vmatpush1.xpose.msra.mxu0 0.0
        %2696 = vmatprep.subr.mxu0 0.0
        %2697 = vmatpush1.xpose.msra.mxu0 0.0
        %2698 = vmatprep.subr.mxu0 0.0
        %2699 = vmatpush1.xpose.msra.mxu0 0.0
        %2700 = vmatprep.subr.mxu0 0.0
        %2701 = vmatpush1.xpose.msra.mxu0 0.0
        %2702 = vmatprep.subr.mxu0 0.0
        %2703 = vmatpush1.xpose.msra.mxu0 0.0
        %2704 = vmatprep.mubr.f32.mxu0 0.0
        %v2705 = vand.u32 %v2336, 4294901760
        %2706 = vmatmul.mubr.f32.gmra.mrb[0].mxu0 %v2705
        %v2707 = vpop.f32.mrb[0].mxu0
        %v2708 = vadd.f32 %v2634, %v2707
        %v2709 = vpop.f32.mrb[0].mxu0
        %2710 = vdwg.mxu0
        %2711 = vmatprep.subr.mxu0 0.0
        %v2712 = vand.u32 %v229, 4294901760
        %2713 = vmatpush1.xpose.msra.mxu0 %v2712
        %2714 = vmatprep.subr.mxu0 0.0
        %2715 = vmatpush1.xpose.msra.mxu0 0.0
        %2716 = vmatprep.subr.mxu0 0.0
        %2717 = vmatpush1.xpose.msra.mxu0 0.0
        %2718 = vmatprep.subr.mxu0 0.0
        %2719 = vmatpush1.xpose.msra.mxu0 0.0
        %2720 = vmatprep.subr.mxu0 0.0
        %2721 = vmatpush1.xpose.msra.mxu0 0.0
        %2722 = vmatprep.subr.mxu0 0.0
        %2723 = vmatpush1.xpose.msra.mxu0 0.0
        %2724 = vmatprep.subr.mxu0 0.0
        %2725 = vmatpush1.xpose.msra.mxu0 0.0
        %2726 = vmatprep.subr.mxu0 0.0
        %2727 = vmatpush1.xpose.msra.mxu0 0.0
        %2728 = vmatprep.subr.mxu0 0.0
        %2729 = vmatpush1.xpose.msra.mxu0 0.0
        %2730 = vmatprep.subr.mxu0 0.0
        %2731 = vmatpush1.xpose.msra.mxu0 0.0
        %2732 = vmatprep.subr.mxu0 0.0
        %2733 = vmatpush1.xpose.msra.mxu0 0.0
        %2734 = vmatprep.subr.mxu0 0.0
        %2735 = vmatpush1.xpose.msra.mxu0 0.0
        %2736 = vmatprep.subr.mxu0 0.0
        %2737 = vmatpush1.xpose.msra.mxu0 0.0
        %2738 = vmatprep.subr.mxu0 0.0
        %2739 = vmatpush1.xpose.msra.mxu0 0.0
        %2740 = vmatprep.subr.mxu0 0.0
        %2741 = vmatpush1.xpose.msra.mxu0 0.0
        %2742 = vmatprep.subr.mxu0 0.0
        %2743 = vmatpush1.xpose.msra.mxu0 0.0
        %2744 = vmatprep.subr.mxu0 0.0
        %2745 = vmatpush1.xpose.msra.mxu0 0.0
        %2746 = vmatprep.subr.mxu0 0.0
        %2747 = vmatpush1.xpose.msra.mxu0 0.0
        %2748 = vmatprep.subr.mxu0 0.0
        %2749 = vmatpush1.xpose.msra.mxu0 0.0
        %2750 = vmatprep.subr.mxu0 0.0
        %2751 = vmatpush1.xpose.msra.mxu0 0.0
        %2752 = vmatprep.subr.mxu0 0.0
        %2753 = vmatpush1.xpose.msra.mxu0 0.0
        %2754 = vmatprep.subr.mxu0 0.0
        %2755 = vmatpush1.xpose.msra.mxu0 0.0
        %2756 = vmatprep.subr.mxu0 0.0
        %2757 = vmatpush1.xpose.msra.mxu0 0.0
        %2758 = vmatprep.subr.mxu0 0.0
        %2759 = vmatpush1.xpose.msra.mxu0 0.0
        %2760 = vmatprep.subr.mxu0 0.0
        %2761 = vmatpush1.xpose.msra.mxu0 0.0
        %2762 = vmatprep.subr.mxu0 0.0
        %2763 = vmatpush1.xpose.msra.mxu0 0.0
        %2764 = vmatprep.subr.mxu0 0.0
        %2765 = vmatpush1.xpose.msra.mxu0 0.0
        %2766 = vmatprep.subr.mxu0 0.0
        %2767 = vmatpush1.xpose.msra.mxu0 0.0
        %2768 = vmatprep.subr.mxu0 0.0
        %2769 = vmatpush1.xpose.msra.mxu0 0.0
        %2770 = vmatprep.subr.mxu0 0.0
        %2771 = vmatpush1.xpose.msra.mxu0 0.0
        %2772 = vmatprep.subr.mxu0 0.0
        %2773 = vmatpush1.xpose.msra.mxu0 0.0
        %2774 = vmatprep.subr.mxu0 0.0
        %2775 = vmatpush1.xpose.msra.mxu0 0.0
        %2776 = vmatprep.mubr.f32.mxu0 0.0
        %v2777 = vand.u32 %v2336, 4294901760
        %2778 = vmatmul.mubr.f32.gmra.mrb[0].mxu0 %v2777
        %v2779 = vpop.f32.mrb[0].mxu0
        %v2780 = vadd.f32 %v2708, %v2779
        %v2781 = vpop.f32.mrb[0].mxu0
        %2782 = vdwg.mxu0
        %v2784 = vsel %vm956, %v2780, 0
        %2786 = vmatprep.subr.mxu0 0.0
        %v2787 = vand.u32 %v229, 4294901760
        %2788 = vmatpush1.msra.mxu0 %v2787
        %2789 = vmatprep.subr.mxu0 0.0
        %2790 = vmatpush1.msra.mxu0 0.0
        %2791 = vmatprep.subr.mxu0 0.0
        %2792 = vmatpush1.msra.mxu0 0.0
        %2793 = vmatprep.subr.mxu0 0.0
        %2794 = vmatpush1.msra.mxu0 0.0
        %2795 = vmatprep.subr.mxu0 0.0
        %2796 = vmatpush1.msra.mxu0 0.0
        %2797 = vmatprep.subr.mxu0 0.0
        %2798 = vmatpush1.msra.mxu0 0.0
        %2799 = vmatprep.subr.mxu0 0.0
        %2800 = vmatpush1.msra.mxu0 0.0
        %2801 = vmatprep.subr.mxu0 0.0
        %2802 = vmatpush1.msra.mxu0 0.0
        %2803 = vmatprep.subr.mxu0 0.0
        %2804 = vmatpush1.msra.mxu0 0.0
        %2805 = vmatprep.subr.mxu0 0.0
        %2806 = vmatpush1.msra.mxu0 0.0
        %2807 = vmatprep.subr.mxu0 0.0
        %2808 = vmatpush1.msra.mxu0 0.0
        %2809 = vmatprep.subr.mxu0 0.0
        %2810 = vmatpush1.msra.mxu0 0.0
        %2811 = vmatprep.subr.mxu0 0.0
        %2812 = vmatpush1.msra.mxu0 0.0
        %2813 = vmatprep.subr.mxu0 0.0
        %2814 = vmatpush1.msra.mxu0 0.0
        %2815 = vmatprep.subr.mxu0 0.0
        %2816 = vmatpush1.msra.mxu0 0.0
        %2817 = vmatprep.subr.mxu0 0.0
        %2818 = vmatpush1.msra.mxu0 0.0
        %2819 = vmatprep.subr.mxu0 0.0
        %2820 = vmatpush1.msra.mxu0 0.0
        %2821 = vmatprep.subr.mxu0 0.0
        %2822 = vmatpush1.msra.mxu0 0.0
        %2823 = vmatprep.subr.mxu0 0.0
        %2824 = vmatpush1.msra.mxu0 0.0
        %2825 = vmatprep.subr.mxu0 0.0
        %2826 = vmatpush1.msra.mxu0 0.0
        %2827 = vmatprep.subr.mxu0 0.0
        %2828 = vmatpush1.msra.mxu0 0.0
        %2829 = vmatprep.subr.mxu0 0.0
        %2830 = vmatpush1.msra.mxu0 0.0
        %2831 = vmatprep.subr.mxu0 0.0
        %2832 = vmatpush1.msra.mxu0 0.0
        %2833 = vmatprep.subr.mxu0 0.0
        %2834 = vmatpush1.msra.mxu0 0.0
        %2835 = vmatprep.subr.mxu0 0.0
        %2836 = vmatpush1.msra.mxu0 0.0
        %2837 = vmatprep.subr.mxu0 0.0
        %2838 = vmatpush1.msra.mxu0 0.0
        %2839 = vmatprep.subr.mxu0 0.0
        %2840 = vmatpush1.msra.mxu0 0.0
        %2841 = vmatprep.subr.mxu0 0.0
        %2842 = vmatpush1.msra.mxu0 0.0
        %2843 = vmatprep.subr.mxu0 0.0
        %2844 = vmatpush1.msra.mxu0 0.0
        %2845 = vmatprep.subr.mxu0 0.0
        %2846 = vmatpush1.msra.mxu0 0.0
        %2847 = vmatprep.subr.mxu0 0.0
        %2848 = vmatpush1.msra.mxu0 0.0
        %2849 = vmatprep.subr.mxu0 0.0
        %2850 = vmatpush1.msra.mxu0 0.0
        %2851 = vmatprep.mubr.f32.mxu0 0.0
        %v2852 = vand.u32 %v2784, 4294901760
        %v2853 = vsub.f32 %v2784, %v2852
        %v2854 = vand.u32 %v2853, 4294901760
        %v2855 = vsub.f32 %v2853, %v2854
        %v2856 = vand.u32 %v2855, 4294901760
        %2857 = vmatmul.mubr.f32.gmra.mrb[0].mxu0 %v2856
        %v2858 = vpop.f32.mrb[0].mxu0
        %v2859 = vadd.f32 0.0, %v2858
        %v2860 = vpop.f32.mrb[0].mxu0
        %2861 = vdwg.mxu0
        %2862 = vmatprep.subr.mxu0 0.0
        %v2863 = vand.u32 %v229, 4294901760
        %v2864 = vsub.f32 %v229, %v2863
        %v2865 = vand.u32 %v2864, 4294901760
        %v2866 = vsub.f32 %v2864, %v2865
        %v2867 = vand.u32 %v2866, 4294901760
        %2868 = vmatpush1.msra.mxu0 %v2867
        %2869 = vmatprep.subr.mxu0 0.0
        %2870 = vmatpush1.msra.mxu0 0.0
        %2871 = vmatprep.subr.mxu0 0.0
        %2872 = vmatpush1.msra.mxu0 0.0
        %2873 = vmatprep.subr.mxu0 0.0
        %2874 = vmatpush1.msra.mxu0 0.0
        %2875 = vmatprep.subr.mxu0 0.0
        %2876 = vmatpush1.msra.mxu0 0.0
        %2877 = vmatprep.subr.mxu0 0.0
        %2878 = vmatpush1.msra.mxu0 0.0
        %2879 = vmatprep.subr.mxu0 0.0
        %2880 = vmatpush1.msra.mxu0 0.0
        %2881 = vmatprep.subr.mxu0 0.0
        %2882 = vmatpush1.msra.mxu0 0.0
        %2883 = vmatprep.subr.mxu0 0.0
        %2884 = vmatpush1.msra.mxu0 0.0
        %2885 = vmatprep.subr.mxu0 0.0
        %2886 = vmatpush1.msra.mxu0 0.0
        %2887 = vmatprep.subr.mxu0 0.0
        %2888 = vmatpush1.msra.mxu0 0.0
        %2889 = vmatprep.subr.mxu0 0.0
        %2890 = vmatpush1.msra.mxu0 0.0
        %2891 = vmatprep.subr.mxu0 0.0
        %2892 = vmatpush1.msra.mxu0 0.0
        %2893 = vmatprep.subr.mxu0 0.0
        %2894 = vmatpush1.msra.mxu0 0.0
        %2895 = vmatprep.subr.mxu0 0.0
        %2896 = vmatpush1.msra.mxu0 0.0
        %2897 = vmatprep.subr.mxu0 0.0
        %2898 = vmatpush1.msra.mxu0 0.0
        %2899 = vmatprep.subr.mxu0 0.0
        %2900 = vmatpush1.msra.mxu0 0.0
        %2901 = vmatprep.subr.mxu0 0.0
        %2902 = vmatpush1.msra.mxu0 0.0
        %2903 = vmatprep.subr.mxu0 0.0
        %2904 = vmatpush1.msra.mxu0 0.0
        %2905 = vmatprep.subr.mxu0 0.0
        %2906 = vmatpush1.msra.mxu0 0.0
        %2907 = vmatprep.subr.mxu0 0.0
        %2908 = vmatpush1.msra.mxu0 0.0
        %2909 = vmatprep.subr.mxu0 0.0
        %2910 = vmatpush1.msra.mxu0 0.0
        %2911 = vmatprep.subr.mxu0 0.0
        %2912 = vmatpush1.msra.mxu0 0.0
        %2913 = vmatprep.subr.mxu0 0.0
        %2914 = vmatpush1.msra.mxu0 0.0
        %2915 = vmatprep.subr.mxu0 0.0
        %2916 = vmatpush1.msra.mxu0 0.0
        %2917 = vmatprep.subr.mxu0 0.0
        %2918 = vmatpush1.msra.mxu0 0.0
        %2919 = vmatprep.subr.mxu0 0.0
        %2920 = vmatpush1.msra.mxu0 0.0
        %2921 = vmatprep.subr.mxu0 0.0
        %2922 = vmatpush1.msra.mxu0 0.0
        %2923 = vmatprep.subr.mxu0 0.0
        %2924 = vmatpush1.msra.mxu0 0.0
        %2925 = vmatprep.subr.mxu0 0.0
        %2926 = vmatpush1.msra.mxu0 0.0
        %2927 = vmatprep.subr.mxu0 0.0
        %2928 = vmatpush1.msra.mxu0 0.0
        %2929 = vmatprep.subr.mxu0 0.0
        %2930 = vmatpush1.msra.mxu0 0.0
        %2931 = vmatprep.mubr.f32.mxu0 0.0
        %v2932 = vand.u32 %v2784, 4294901760
        %2933 = vmatmul.mubr.f32.gmra.mrb[0].mxu0 %v2932
        %v2934 = vpop.f32.mrb[0].mxu0
        %v2935 = vadd.f32 %v2859, %v2934
        %v2936 = vpop.f32.mrb[0].mxu0
        %2937 = vdwg.mxu0
        %2938 = vmatprep.subr.mxu0 0.0
        %v2939 = vand.u32 %v229, 4294901760
        %v2940 = vsub.f32 %v229, %v2939
        %2941 = vmatpush1.msra.mxu0 %v2940
        %2942 = vmatprep.subr.mxu0 0.0
        %2943 = vmatpush1.msra.mxu0 0.0
        %2944 = vmatprep.subr.mxu0 0.0
        %2945 = vmatpush1.msra.mxu0 0.0
        %2946 = vmatprep.subr.mxu0 0.0
        %2947 = vmatpush1.msra.mxu0 0.0
        %2948 = vmatprep.subr.mxu0 0.0
        %2949 = vmatpush1.msra.mxu0 0.0
        %2950 = vmatprep.subr.mxu0 0.0
        %2951 = vmatpush1.msra.mxu0 0.0
        %2952 = vmatprep.subr.mxu0 0.0
        %2953 = vmatpush1.msra.mxu0 0.0
        %2954 = vmatprep.subr.mxu0 0.0
        %2955 = vmatpush1.msra.mxu0 0.0
        %2956 = vmatprep.subr.mxu0 0.0
        %2957 = vmatpush1.msra.mxu0 0.0
        %2958 = vmatprep.subr.mxu0 0.0
        %2959 = vmatpush1.msra.mxu0 0.0
        %2960 = vmatprep.subr.mxu0 0.0
        %2961 = vmatpush1.msra.mxu0 0.0
        %2962 = vmatprep.subr.mxu0 0.0
        %2963 = vmatpush1.msra.mxu0 0.0
        %2964 = vmatprep.subr.mxu0 0.0
        %2965 = vmatpush1.msra.mxu0 0.0
        %2966 = vmatprep.subr.mxu0 0.0
        %2967 = vmatpush1.msra.mxu0 0.0
        %2968 = vmatprep.subr.mxu0 0.0
        %2969 = vmatpush1.msra.mxu0 0.0
        %2970 = vmatprep.subr.mxu0 0.0
        %2971 = vmatpush1.msra.mxu0 0.0
        %2972 = vmatprep.subr.mxu0 0.0
        %2973 = vmatpush1.msra.mxu0 0.0
        %2974 = vmatprep.subr.mxu0 0.0
        %2975 = vmatpush1.msra.mxu0 0.0
        %2976 = vmatprep.subr.mxu0 0.0
        %2977 = vmatpush1.msra.mxu0 0.0
        %2978 = vmatprep.subr.mxu0 0.0
        %2979 = vmatpush1.msra.mxu0 0.0
        %2980 = vmatprep.subr.mxu0 0.0
        %2981 = vmatpush1.msra.mxu0 0.0
        %2982 = vmatprep.subr.mxu0 0.0
        %2983 = vmatpush1.msra.mxu0 0.0
        %2984 = vmatprep.subr.mxu0 0.0
        %2985 = vmatpush1.msra.mxu0 0.0
        %2986 = vmatprep.subr.mxu0 0.0
        %2987 = vmatpush1.msra.mxu0 0.0
        %2988 = vmatprep.subr.mxu0 0.0
        %2989 = vmatpush1.msra.mxu0 0.0
        %2990 = vmatprep.subr.mxu0 0.0
        %2991 = vmatpush1.msra.mxu0 0.0
        %2992 = vmatprep.subr.mxu0 0.0
        %2993 = vmatpush1.msra.mxu0 0.0
        %2994 = vmatprep.subr.mxu0 0.0
        %2995 = vmatpush1.msra.mxu0 0.0
        %2996 = vmatprep.subr.mxu0 0.0
        %2997 = vmatpush1.msra.mxu0 0.0
        %2998 = vmatprep.subr.mxu0 0.0
        %2999 = vmatpush1.msra.mxu0 0.0
        %3000 = vmatprep.subr.mxu0 0.0
        %3001 = vmatpush1.msra.mxu0 0.0
        %3002 = vmatprep.subr.mxu0 0.0
        %3003 = vmatpush1.msra.mxu0 0.0
        %3004 = vmatprep.mubr.f32.mxu0 0.0
        %v3005 = vand.u32 %v2784, 4294901760
        %v3006 = vsub.f32 %v2784, %v3005
        %3007 = vmatmul.mubr.f32.gmra.mrb[0].mxu0 %v3006
        %v3008 = vpop.f32.mrb[0].mxu0
        %v3009 = vadd.f32 %v2935, %v3008
        %v3010 = vpop.f32.mrb[0].mxu0
        %3011 = vdwg.mxu0
        %3012 = vmatprep.subr.mxu0 0.0
        %v3013 = vand.u32 %v229, 4294901760
        %3014 = vmatpush1.msra.mxu0 %v3013
        %3015 = vmatprep.subr.mxu0 0.0
        %3016 = vmatpush1.msra.mxu0 0.0
        %3017 = vmatprep.subr.mxu0 0.0
        %3018 = vmatpush1.msra.mxu0 0.0
        %3019 = vmatprep.subr.mxu0 0.0
        %3020 = vmatpush1.msra.mxu0 0.0
        %3021 = vmatprep.subr.mxu0 0.0
        %3022 = vmatpush1.msra.mxu0 0.0
        %3023 = vmatprep.subr.mxu0 0.0
        %3024 = vmatpush1.msra.mxu0 0.0
        %3025 = vmatprep.subr.mxu0 0.0
        %3026 = vmatpush1.msra.mxu0 0.0
        %3027 = vmatprep.subr.mxu0 0.0
        %3028 = vmatpush1.msra.mxu0 0.0
        %3029 = vmatprep.subr.mxu0 0.0
        %3030 = vmatpush1.msra.mxu0 0.0
        %3031 = vmatprep.subr.mxu0 0.0
        %3032 = vmatpush1.msra.mxu0 0.0
        %3033 = vmatprep.subr.mxu0 0.0
        %3034 = vmatpush1.msra.mxu0 0.0
        %3035 = vmatprep.subr.mxu0 0.0
        %3036 = vmatpush1.msra.mxu0 0.0
        %3037 = vmatprep.subr.mxu0 0.0
        %3038 = vmatpush1.msra.mxu0 0.0
        %3039 = vmatprep.subr.mxu0 0.0
        %3040 = vmatpush1.msra.mxu0 0.0
        %3041 = vmatprep.subr.mxu0 0.0
        %3042 = vmatpush1.msra.mxu0 0.0
        %3043 = vmatprep.subr.mxu0 0.0
        %3044 = vmatpush1.msra.mxu0 0.0
        %3045 = vmatprep.subr.mxu0 0.0
        %3046 = vmatpush1.msra.mxu0 0.0
        %3047 = vmatprep.subr.mxu0 0.0
        %3048 = vmatpush1.msra.mxu0 0.0
        %3049 = vmatprep.subr.mxu0 0.0
        %3050 = vmatpush1.msra.mxu0 0.0
        %3051 = vmatprep.subr.mxu0 0.0
        %3052 = vmatpush1.msra.mxu0 0.0
        %3053 = vmatprep.subr.mxu0 0.0
        %3054 = vmatpush1.msra.mxu0 0.0
        %3055 = vmatprep.subr.mxu0 0.0
        %3056 = vmatpush1.msra.mxu0 0.0
        %3057 = vmatprep.subr.mxu0 0.0
        %3058 = vmatpush1.msra.mxu0 0.0
        %3059 = vmatprep.subr.mxu0 0.0
        %3060 = vmatpush1.msra.mxu0 0.0
        %3061 = vmatprep.subr.mxu0 0.0
        %3062 = vmatpush1.msra.mxu0 0.0
        %3063 = vmatprep.subr.mxu0 0.0
        %3064 = vmatpush1.msra.mxu0 0.0
        %3065 = vmatprep.subr.mxu0 0.0
        %3066 = vmatpush1.msra.mxu0 0.0
        %3067 = vmatprep.subr.mxu0 0.0
        %3068 = vmatpush1.msra.mxu0 0.0
        %3069 = vmatprep.subr.mxu0 0.0
        %3070 = vmatpush1.msra.mxu0 0.0
        %3071 = vmatprep.subr.mxu0 0.0
        %3072 = vmatpush1.msra.mxu0 0.0
        %3073 = vmatprep.subr.mxu0 0.0
        %3074 = vmatpush1.msra.mxu0 0.0
        %3075 = vmatprep.subr.mxu0 0.0
        %3076 = vmatpush1.msra.mxu0 0.0
        %3077 = vmatprep.mubr.f32.mxu0 0.0
        %v3078 = vand.u32 %v2784, 4294901760
        %v3079 = vsub.f32 %v2784, %v3078
        %v3080 = vand.u32 %v3079, 4294901760
        %3081 = vmatmul.mubr.f32.gmra.mrb[0].mxu0 %v3080
        %v3082 = vpop.f32.mrb[0].mxu0
        %v3083 = vadd.f32 %v3009, %v3082
        %v3084 = vpop.f32.mrb[0].mxu0
        %3085 = vdwg.mxu0
        %3086 = vmatprep.subr.mxu0 0.0
        %v3087 = vand.u32 %v229, 4294901760
        %v3088 = vsub.f32 %v229, %v3087
        %v3089 = vand.u32 %v3088, 4294901760
        %3090 = vmatpush1.msra.mxu0 %v3089
        %3091 = vmatprep.subr.mxu0 0.0
        %3092 = vmatpush1.msra.mxu0 0.0
        %3093 = vmatprep.subr.mxu0 0.0
        %3094 = vmatpush1.msra.mxu0 0.0
        %3095 = vmatprep.subr.mxu0 0.0
        %3096 = vmatpush1.msra.mxu0 0.0
        %3097 = vmatprep.subr.mxu0 0.0
        %3098 = vmatpush1.msra.mxu0 0.0
        %3099 = vmatprep.subr.mxu0 0.0
        %3100 = vmatpush1.msra.mxu0 0.0
        %3101 = vmatprep.subr.mxu0 0.0
        %3102 = vmatpush1.msra.mxu0 0.0
        %3103 = vmatprep.subr.mxu0 0.0
        %3104 = vmatpush1.msra.mxu0 0.0
        %3105 = vmatprep.subr.mxu0 0.0
        %3106 = vmatpush1.msra.mxu0 0.0
        %3107 = vmatprep.subr.mxu0 0.0
        %3108 = vmatpush1.msra.mxu0 0.0
        %3109 = vmatprep.subr.mxu0 0.0
        %3110 = vmatpush1.msra.mxu0 0.0
        %3111 = vmatprep.subr.mxu0 0.0
        %3112 = vmatpush1.msra.mxu0 0.0
        %3113 = vmatprep.subr.mxu0 0.0
        %3114 = vmatpush1.msra.mxu0 0.0
        %3115 = vmatprep.subr.mxu0 0.0
        %3116 = vmatpush1.msra.mxu0 0.0
        %3117 = vmatprep.subr.mxu0 0.0
        %3118 = vmatpush1.msra.mxu0 0.0
        %3119 = vmatprep.subr.mxu0 0.0
        %3120 = vmatpush1.msra.mxu0 0.0
        %3121 = vmatprep.subr.mxu0 0.0
        %3122 = vmatpush1.msra.mxu0 0.0
        %3123 = vmatprep.subr.mxu0 0.0
        %3124 = vmatpush1.msra.mxu0 0.0
        %3125 = vmatprep.subr.mxu0 0.0
        %3126 = vmatpush1.msra.mxu0 0.0
        %3127 = vmatprep.subr.mxu0 0.0
        %3128 = vmatpush1.msra.mxu0 0.0
        %3129 = vmatprep.subr.mxu0 0.0
        %3130 = vmatpush1.msra.mxu0 0.0
        %3131 = vmatprep.subr.mxu0 0.0
        %3132 = vmatpush1.msra.mxu0 0.0
        %3133 = vmatprep.subr.mxu0 0.0
        %3134 = vmatpush1.msra.mxu0 0.0
        %3135 = vmatprep.subr.mxu0 0.0
        %3136 = vmatpush1.msra.mxu0 0.0
        %3137 = vmatprep.subr.mxu0 0.0
        %3138 = vmatpush1.msra.mxu0 0.0
        %3139 = vmatprep.subr.mxu0 0.0
        %3140 = vmatpush1.msra.mxu0 0.0
        %3141 = vmatprep.subr.mxu0 0.0
        %3142 = vmatpush1.msra.mxu0 0.0
        %3143 = vmatprep.subr.mxu0 0.0
        %3144 = vmatpush1.msra.mxu0 0.0
        %3145 = vmatprep.subr.mxu0 0.0
        %3146 = vmatpush1.msra.mxu0 0.0
        %3147 = vmatprep.subr.mxu0 0.0
        %3148 = vmatpush1.msra.mxu0 0.0
        %3149 = vmatprep.subr.mxu0 0.0
        %3150 = vmatpush1.msra.mxu0 0.0
        %3151 = vmatprep.subr.mxu0 0.0
        %3152 = vmatpush1.msra.mxu0 0.0
        %3153 = vmatprep.mubr.f32.mxu0 0.0
        %v3154 = vand.u32 %v2784, 4294901760
        %3155 = vmatmul.mubr.f32.gmra.mrb[0].mxu0 %v3154
        %v3156 = vpop.f32.mrb[0].mxu0
        %v3157 = vadd.f32 %v3083, %v3156
        %v3158 = vpop.f32.mrb[0].mxu0
        %3159 = vdwg.mxu0
        %3160 = vmatprep.subr.mxu0 0.0
        %v3161 = vand.u32 %v229, 4294901760
        %3162 = vmatpush1.msra.mxu0 %v3161
        %3163 = vmatprep.subr.mxu0 0.0
        %3164 = vmatpush1.msra.mxu0 0.0
        %3165 = vmatprep.subr.mxu0 0.0
        %3166 = vmatpush1.msra.mxu0 0.0
        %3167 = vmatprep.subr.mxu0 0.0
        %3168 = vmatpush1.msra.mxu0 0.0
        %3169 = vmatprep.subr.mxu0 0.0
        %3170 = vmatpush1.msra.mxu0 0.0
        %3171 = vmatprep.subr.mxu0 0.0
        %3172 = vmatpush1.msra.mxu0 0.0
        %3173 = vmatprep.subr.mxu0 0.0
        %3174 = vmatpush1.msra.mxu0 0.0
        %3175 = vmatprep.subr.mxu0 0.0
        %3176 = vmatpush1.msra.mxu0 0.0
        %3177 = vmatprep.subr.mxu0 0.0
        %3178 = vmatpush1.msra.mxu0 0.0
        %3179 = vmatprep.subr.mxu0 0.0
        %3180 = vmatpush1.msra.mxu0 0.0
        %3181 = vmatprep.subr.mxu0 0.0
        %3182 = vmatpush1.msra.mxu0 0.0
        %3183 = vmatprep.subr.mxu0 0.0
        %3184 = vmatpush1.msra.mxu0 0.0
        %3185 = vmatprep.subr.mxu0 0.0
        %3186 = vmatpush1.msra.mxu0 0.0
        %3187 = vmatprep.subr.mxu0 0.0
        %3188 = vmatpush1.msra.mxu0 0.0
        %3189 = vmatprep.subr.mxu0 0.0
        %3190 = vmatpush1.msra.mxu0 0.0
        %3191 = vmatprep.subr.mxu0 0.0
        %3192 = vmatpush1.msra.mxu0 0.0
        %3193 = vmatprep.subr.mxu0 0.0
        %3194 = vmatpush1.msra.mxu0 0.0
        %3195 = vmatprep.subr.mxu0 0.0
        %3196 = vmatpush1.msra.mxu0 0.0
        %3197 = vmatprep.subr.mxu0 0.0
        %3198 = vmatpush1.msra.mxu0 0.0
        %3199 = vmatprep.subr.mxu0 0.0
        %3200 = vmatpush1.msra.mxu0 0.0
        %3201 = vmatprep.subr.mxu0 0.0
        %3202 = vmatpush1.msra.mxu0 0.0
        %3203 = vmatprep.subr.mxu0 0.0
        %3204 = vmatpush1.msra.mxu0 0.0
        %3205 = vmatprep.subr.mxu0 0.0
        %3206 = vmatpush1.msra.mxu0 0.0
        %3207 = vmatprep.subr.mxu0 0.0
        %3208 = vmatpush1.msra.mxu0 0.0
        %3209 = vmatprep.subr.mxu0 0.0
        %3210 = vmatpush1.msra.mxu0 0.0
        %3211 = vmatprep.subr.mxu0 0.0
        %3212 = vmatpush1.msra.mxu0 0.0
        %3213 = vmatprep.subr.mxu0 0.0
        %3214 = vmatpush1.msra.mxu0 0.0
        %3215 = vmatprep.subr.mxu0 0.0
        %3216 = vmatpush1.msra.mxu0 0.0
        %3217 = vmatprep.subr.mxu0 0.0
        %3218 = vmatpush1.msra.mxu0 0.0
        %3219 = vmatprep.subr.mxu0 0.0
        %3220 = vmatpush1.msra.mxu0 0.0
        %3221 = vmatprep.subr.mxu0 0.0
        %3222 = vmatpush1.msra.mxu0 0.0
        %3223 = vmatprep.subr.mxu0 0.0
        %3224 = vmatpush1.msra.mxu0 0.0
        %3225 = vmatprep.mubr.f32.mxu0 0.0
        %v3226 = vand.u32 %v2784, 4294901760
        %3227 = vmatmul.mubr.f32.gmra.mrb[0].mxu0 %v3226
        %v3228 = vpop.f32.mrb[0].mxu0
        %v3229 = vadd.f32 %v3157, %v3228
        %v3230 = vpop.f32.mrb[0].mxu0
        %3231 = vdwg.mxu0
        %v3232 = vmul.f32 %v3229, 0.00390625
        %v3233 = vmul.f32 %v501, %v501
        %v3234 = vmul.f32 %v502, %v502
        %v3235 = vadd.f32 %v3233, %v3234
        %v3236 = vrot.slane %v3235, 4
        %v3237 = vadd.f32 %v3235, %v3236
        %v3238 = vrot.slane %v3237, 2
        %v3239 = vadd.f32 %v3237, %v3238
        %v3240 = vrot.slane %v3239, 1
        %v3241 = vadd.f32 %v3239, %v3240
        %3242 = vmatprep.subr.mxu0 0.0
        %v3243 = vand.u32 %v229, 4294901760
        %3244 = vmatpush1.xpose.msra.mxu0 %v3243
        %3245 = vmatprep.subr.mxu0 0.0
        %3246 = vmatpush1.xpose.msra.mxu0 0.0
        %3247 = vmatprep.subr.mxu0 0.0
        %3248 = vmatpush1.xpose.msra.mxu0 0.0
        %3249 = vmatprep.subr.mxu0 0.0
        %3250 = vmatpush1.xpose.msra.mxu0 0.0
        %3251 = vmatprep.subr.mxu0 0.0
        %3252 = vmatpush1.xpose.msra.mxu0 0.0
        %3253 = vmatprep.subr.mxu0 0.0
        %3254 = vmatpush1.xpose.msra.mxu0 0.0
        %3255 = vmatprep.subr.mxu0 0.0
        %3256 = vmatpush1.xpose.msra.mxu0 0.0
        %3257 = vmatprep.subr.mxu0 0.0
        %3258 = vmatpush1.xpose.msra.mxu0 0.0
        %3259 = vmatprep.subr.mxu0 0.0
        %3260 = vmatpush1.xpose.msra.mxu0 0.0
        %3261 = vmatprep.subr.mxu0 0.0
        %3262 = vmatpush1.xpose.msra.mxu0 0.0
        %3263 = vmatprep.subr.mxu0 0.0
        %3264 = vmatpush1.xpose.msra.mxu0 0.0
        %3265 = vmatprep.subr.mxu0 0.0
        %3266 = vmatpush1.xpose.msra.mxu0 0.0
        %3267 = vmatprep.subr.mxu0 0.0
        %3268 = vmatpush1.xpose.msra.mxu0 0.0
        %3269 = vmatprep.subr.mxu0 0.0
        %3270 = vmatpush1.xpose.msra.mxu0 0.0
        %3271 = vmatprep.subr.mxu0 0.0
        %3272 = vmatpush1.xpose.msra.mxu0 0.0
        %3273 = vmatprep.subr.mxu0 0.0
        %3274 = vmatpush1.xpose.msra.mxu0 0.0
        %3275 = vmatprep.subr.mxu0 0.0
        %3276 = vmatpush1.xpose.msra.mxu0 0.0
        %3277 = vmatprep.subr.mxu0 0.0
        %3278 = vmatpush1.xpose.msra.mxu0 0.0
        %3279 = vmatprep.subr.mxu0 0.0
        %3280 = vmatpush1.xpose.msra.mxu0 0.0
        %3281 = vmatprep.subr.mxu0 0.0
        %3282 = vmatpush1.xpose.msra.mxu0 0.0
        %3283 = vmatprep.subr.mxu0 0.0
        %3284 = vmatpush1.xpose.msra.mxu0 0.0
        %3285 = vmatprep.subr.mxu0 0.0
        %3286 = vmatpush1.xpose.msra.mxu0 0.0
        %3287 = vmatprep.subr.mxu0 0.0
        %3288 = vmatpush1.xpose.msra.mxu0 0.0
        %3289 = vmatprep.subr.mxu0 0.0
        %3290 = vmatpush1.xpose.msra.mxu0 0.0
        %3291 = vmatprep.subr.mxu0 0.0
        %3292 = vmatpush1.xpose.msra.mxu0 0.0
        %3293 = vmatprep.subr.mxu0 0.0
        %3294 = vmatpush1.xpose.msra.mxu0 0.0
        %3295 = vmatprep.subr.mxu0 0.0
        %3296 = vmatpush1.xpose.msra.mxu0 0.0
        %3297 = vmatprep.subr.mxu0 0.0
        %3298 = vmatpush1.xpose.msra.mxu0 0.0
        %3299 = vmatprep.subr.mxu0 0.0
        %3300 = vmatpush1.xpose.msra.mxu0 0.0
        %3301 = vmatprep.subr.mxu0 0.0
        %3302 = vmatpush1.xpose.msra.mxu0 0.0
        %3303 = vmatprep.subr.mxu0 0.0
        %3304 = vmatpush1.xpose.msra.mxu0 0.0
        %3305 = vmatprep.subr.mxu0 0.0
        %3306 = vmatpush1.xpose.msra.mxu0 0.0
        %3307 = vmatprep.mubr.f32.mxu0 0.0
        %v3308 = vand.u32 %v3241, 4294901760
        %v3309 = vsub.f32 %v3241, %v3308
        %v3310 = vand.u32 %v3309, 4294901760
        %v3311 = vsub.f32 %v3309, %v3310
        %v3312 = vand.u32 %v3311, 4294901760
        %3313 = vmatmul.mubr.f32.gmra.mrb[0].mxu0 %v3312
        %v3314 = vpop.f32.mrb[0].mxu0
        %v3315 = vadd.f32 0.0, %v3314
        %v3316 = vpop.f32.mrb[0].mxu0
        %3317 = vdwg.mxu0
        %3318 = vmatprep.subr.mxu0 0.0
        %v3319 = vand.u32 %v229, 4294901760
        %v3320 = vsub.f32 %v229, %v3319
        %v3321 = vand.u32 %v3320, 4294901760
        %v3322 = vsub.f32 %v3320, %v3321
        %v3323 = vand.u32 %v3322, 4294901760
        %3324 = vmatpush1.xpose.msra.mxu0 %v3323
        %3325 = vmatprep.subr.mxu0 0.0
        %3326 = vmatpush1.xpose.msra.mxu0 0.0
        %3327 = vmatprep.subr.mxu0 0.0
        %3328 = vmatpush1.xpose.msra.mxu0 0.0
        %3329 = vmatprep.subr.mxu0 0.0
        %3330 = vmatpush1.xpose.msra.mxu0 0.0
        %3331 = vmatprep.subr.mxu0 0.0
        %3332 = vmatpush1.xpose.msra.mxu0 0.0
        %3333 = vmatprep.subr.mxu0 0.0
        %3334 = vmatpush1.xpose.msra.mxu0 0.0
        %3335 = vmatprep.subr.mxu0 0.0
        %3336 = vmatpush1.xpose.msra.mxu0 0.0
        %3337 = vmatprep.subr.mxu0 0.0
        %3338 = vmatpush1.xpose.msra.mxu0 0.0
        %3339 = vmatprep.subr.mxu0 0.0
        %3340 = vmatpush1.xpose.msra.mxu0 0.0
        %3341 = vmatprep.subr.mxu0 0.0
        %3342 = vmatpush1.xpose.msra.mxu0 0.0
        %3343 = vmatprep.subr.mxu0 0.0
        %3344 = vmatpush1.xpose.msra.mxu0 0.0
        %3345 = vmatprep.subr.mxu0 0.0
        %3346 = vmatpush1.xpose.msra.mxu0 0.0
        %3347 = vmatprep.subr.mxu0 0.0
        %3348 = vmatpush1.xpose.msra.mxu0 0.0
        %3349 = vmatprep.subr.mxu0 0.0
        %3350 = vmatpush1.xpose.msra.mxu0 0.0
        %3351 = vmatprep.subr.mxu0 0.0
        %3352 = vmatpush1.xpose.msra.mxu0 0.0
        %3353 = vmatprep.subr.mxu0 0.0
        %3354 = vmatpush1.xpose.msra.mxu0 0.0
        %3355 = vmatprep.subr.mxu0 0.0
        %3356 = vmatpush1.xpose.msra.mxu0 0.0
        %3357 = vmatprep.subr.mxu0 0.0
        %3358 = vmatpush1.xpose.msra.mxu0 0.0
        %3359 = vmatprep.subr.mxu0 0.0
        %3360 = vmatpush1.xpose.msra.mxu0 0.0
        %3361 = vmatprep.subr.mxu0 0.0
        %3362 = vmatpush1.xpose.msra.mxu0 0.0
        %3363 = vmatprep.subr.mxu0 0.0
        %3364 = vmatpush1.xpose.msra.mxu0 0.0
        %3365 = vmatprep.subr.mxu0 0.0
        %3366 = vmatpush1.xpose.msra.mxu0 0.0
        %3367 = vmatprep.subr.mxu0 0.0
        %3368 = vmatpush1.xpose.msra.mxu0 0.0
        %3369 = vmatprep.subr.mxu0 0.0
        %3370 = vmatpush1.xpose.msra.mxu0 0.0
        %3371 = vmatprep.subr.mxu0 0.0
        %3372 = vmatpush1.xpose.msra.mxu0 0.0
        %3373 = vmatprep.subr.mxu0 0.0
        %3374 = vmatpush1.xpose.msra.mxu0 0.0
        %3375 = vmatprep.subr.mxu0 0.0
        %3376 = vmatpush1.xpose.msra.mxu0 0.0
        %3377 = vmatprep.subr.mxu0 0.0
        %3378 = vmatpush1.xpose.msra.mxu0 0.0
        %3379 = vmatprep.subr.mxu0 0.0
        %3380 = vmatpush1.xpose.msra.mxu0 0.0
        %3381 = vmatprep.subr.mxu0 0.0
        %3382 = vmatpush1.xpose.msra.mxu0 0.0
        %3383 = vmatprep.subr.mxu0 0.0
        %3384 = vmatpush1.xpose.msra.mxu0 0.0
        %3385 = vmatprep.subr.mxu0 0.0
        %3386 = vmatpush1.xpose.msra.mxu0 0.0
        %3387 = vmatprep.mubr.f32.mxu0 0.0
        %v3388 = vand.u32 %v3241, 4294901760
        %3389 = vmatmul.mubr.f32.gmra.mrb[0].mxu0 %v3388
        %v3390 = vpop.f32.mrb[0].mxu0
        %v3391 = vadd.f32 %v3315, %v3390
        %v3392 = vpop.f32.mrb[0].mxu0
        %3393 = vdwg.mxu0
        %3394 = vmatprep.subr.mxu0 0.0
        %v3395 = vand.u32 %v229, 4294901760
        %v3396 = vsub.f32 %v229, %v3395
        %3397 = vmatpush1.xpose.msra.mxu0 %v3396
        %3398 = vmatprep.subr.mxu0 0.0
        %3399 = vmatpush1.xpose.msra.mxu0 0.0
        %3400 = vmatprep.subr.mxu0 0.0
        %3401 = vmatpush1.xpose.msra.mxu0 0.0
        %3402 = vmatprep.subr.mxu0 0.0
        %3403 = vmatpush1.xpose.msra.mxu0 0.0
        %3404 = vmatprep.subr.mxu0 0.0
        %3405 = vmatpush1.xpose.msra.mxu0 0.0
        %3406 = vmatprep.subr.mxu0 0.0
        %3407 = vmatpush1.xpose.msra.mxu0 0.0
        %3408 = vmatprep.subr.mxu0 0.0
        %3409 = vmatpush1.xpose.msra.mxu0 0.0
        %3410 = vmatprep.subr.mxu0 0.0
        %3411 = vmatpush1.xpose.msra.mxu0 0.0
        %3412 = vmatprep.subr.mxu0 0.0
        %3413 = vmatpush1.xpose.msra.mxu0 0.0
        %3414 = vmatprep.subr.mxu0 0.0
        %3415 = vmatpush1.xpose.msra.mxu0 0.0
        %3416 = vmatprep.subr.mxu0 0.0
        %3417 = vmatpush1.xpose.msra.mxu0 0.0
        %3418 = vmatprep.subr.mxu0 0.0
        %3419 = vmatpush1.xpose.msra.mxu0 0.0
        %3420 = vmatprep.subr.mxu0 0.0
        %3421 = vmatpush1.xpose.msra.mxu0 0.0
        %3422 = vmatprep.subr.mxu0 0.0
        %3423 = vmatpush1.xpose.msra.mxu0 0.0
        %3424 = vmatprep.subr.mxu0 0.0
        %3425 = vmatpush1.xpose.msra.mxu0 0.0
        %3426 = vmatprep.subr.mxu0 0.0
        %3427 = vmatpush1.xpose.msra.mxu0 0.0
        %3428 = vmatprep.subr.mxu0 0.0
        %3429 = vmatpush1.xpose.msra.mxu0 0.0
        %3430 = vmatprep.subr.mxu0 0.0
        %3431 = vmatpush1.xpose.msra.mxu0 0.0
        %3432 = vmatprep.subr.mxu0 0.0
        %3433 = vmatpush1.xpose.msra.mxu0 0.0
        %3434 = vmatprep.subr.mxu0 0.0
        %3435 = vmatpush1.xpose.msra.mxu0 0.0
        %3436 = vmatprep.subr.mxu0 0.0
        %3437 = vmatpush1.xpose.msra.mxu0 0.0
        %3438 = vmatprep.subr.mxu0 0.0
        %3439 = vmatpush1.xpose.msra.mxu0 0.0
        %3440 = vmatprep.subr.mxu0 0.0
        %3441 = vmatpush1.xpose.msra.mxu0 0.0
        %3442 = vmatprep.subr.mxu0 0.0
        %3443 = vmatpush1.xpose.msra.mxu0 0.0
        %3444 = vmatprep.subr.mxu0 0.0
        %3445 = vmatpush1.xpose.msra.mxu0 0.0
        %3446 = vmatprep.subr.mxu0 0.0
        %3447 = vmatpush1.xpose.msra.mxu0 0.0
        %3448 = vmatprep.subr.mxu0 0.0
        %3449 = vmatpush1.xpose.msra.mxu0 0.0
        %3450 = vmatprep.subr.mxu0 0.0
        %3451 = vmatpush1.xpose.msra.mxu0 0.0
        %3452 = vmatprep.subr.mxu0 0.0
        %3453 = vmatpush1.xpose.msra.mxu0 0.0
        %3454 = vmatprep.subr.mxu0 0.0
        %3455 = vmatpush1.xpose.msra.mxu0 0.0
        %3456 = vmatprep.subr.mxu0 0.0
        %3457 = vmatpush1.xpose.msra.mxu0 0.0
        %3458 = vmatprep.subr.mxu0 0.0
        %3459 = vmatpush1.xpose.msra.mxu0 0.0
        %3460 = vmatprep.mubr.f32.mxu0 0.0
        %v3461 = vand.u32 %v3241, 4294901760
        %v3462 = vsub.f32 %v3241, %v3461
        %3463 = vmatmul.mubr.f32.gmra.mrb[0].mxu0 %v3462
        %v3464 = vpop.f32.mrb[0].mxu0
        %v3465 = vadd.f32 %v3391, %v3464
        %v3466 = vpop.f32.mrb[0].mxu0
        %3467 = vdwg.mxu0
        %3468 = vmatprep.subr.mxu0 0.0
        %v3469 = vand.u32 %v229, 4294901760
        %3470 = vmatpush1.xpose.msra.mxu0 %v3469
        %3471 = vmatprep.subr.mxu0 0.0
        %3472 = vmatpush1.xpose.msra.mxu0 0.0
        %3473 = vmatprep.subr.mxu0 0.0
        %3474 = vmatpush1.xpose.msra.mxu0 0.0
        %3475 = vmatprep.subr.mxu0 0.0
        %3476 = vmatpush1.xpose.msra.mxu0 0.0
        %3477 = vmatprep.subr.mxu0 0.0
        %3478 = vmatpush1.xpose.msra.mxu0 0.0
        %3479 = vmatprep.subr.mxu0 0.0
        %3480 = vmatpush1.xpose.msra.mxu0 0.0
        %3481 = vmatprep.subr.mxu0 0.0
        %3482 = vmatpush1.xpose.msra.mxu0 0.0
        %3483 = vmatprep.subr.mxu0 0.0
        %3484 = vmatpush1.xpose.msra.mxu0 0.0
        %3485 = vmatprep.subr.mxu0 0.0
        %3486 = vmatpush1.xpose.msra.mxu0 0.0
        %3487 = vmatprep.subr.mxu0 0.0
        %3488 = vmatpush1.xpose.msra.mxu0 0.0
        %3489 = vmatprep.subr.mxu0 0.0
        %3490 = vmatpush1.xpose.msra.mxu0 0.0
        %3491 = vmatprep.subr.mxu0 0.0
        %3492 = vmatpush1.xpose.msra.mxu0 0.0
        %3493 = vmatprep.subr.mxu0 0.0
        %3494 = vmatpush1.xpose.msra.mxu0 0.0
        %3495 = vmatprep.subr.mxu0 0.0
        %3496 = vmatpush1.xpose.msra.mxu0 0.0
        %3497 = vmatprep.subr.mxu0 0.0
        %3498 = vmatpush1.xpose.msra.mxu0 0.0
        %3499 = vmatprep.subr.mxu0 0.0
        %3500 = vmatpush1.xpose.msra.mxu0 0.0
        %3501 = vmatprep.subr.mxu0 0.0
        %3502 = vmatpush1.xpose.msra.mxu0 0.0
        %3503 = vmatprep.subr.mxu0 0.0
        %3504 = vmatpush1.xpose.msra.mxu0 0.0
        %3505 = vmatprep.subr.mxu0 0.0
        %3506 = vmatpush1.xpose.msra.mxu0 0.0
        %3507 = vmatprep.subr.mxu0 0.0
        %3508 = vmatpush1.xpose.msra.mxu0 0.0
        %3509 = vmatprep.subr.mxu0 0.0
        %3510 = vmatpush1.xpose.msra.mxu0 0.0
        %3511 = vmatprep.subr.mxu0 0.0
        %3512 = vmatpush1.xpose.msra.mxu0 0.0
        %3513 = vmatprep.subr.mxu0 0.0
        %3514 = vmatpush1.xpose.msra.mxu0 0.0
        %3515 = vmatprep.subr.mxu0 0.0
        %3516 = vmatpush1.xpose.msra.mxu0 0.0
        %3517 = vmatprep.subr.mxu0 0.0
        %3518 = vmatpush1.xpose.msra.mxu0 0.0
        %3519 = vmatprep.subr.mxu0 0.0
        %3520 = vmatpush1.xpose.msra.mxu0 0.0
        %3521 = vmatprep.subr.mxu0 0.0
        %3522 = vmatpush1.xpose.msra.mxu0 0.0
        %3523 = vmatprep.subr.mxu0 0.0
        %3524 = vmatpush1.xpose.msra.mxu0 0.0
        %3525 = vmatprep.subr.mxu0 0.0
        %3526 = vmatpush1.xpose.msra.mxu0 0.0
        %3527 = vmatprep.subr.mxu0 0.0
        %3528 = vmatpush1.xpose.msra.mxu0 0.0
        %3529 = vmatprep.subr.mxu0 0.0
        %3530 = vmatpush1.xpose.msra.mxu0 0.0
        %3531 = vmatprep.subr.mxu0 0.0
        %3532 = vmatpush1.xpose.msra.mxu0 0.0
        %3533 = vmatprep.mubr.f32.mxu0 0.0
        %v3534 = vand.u32 %v3241, 4294901760
        %v3535 = vsub.f32 %v3241, %v3534
        %v3536 = vand.u32 %v3535, 4294901760
        %3537 = vmatmul.mubr.f32.gmra.mrb[0].mxu0 %v3536
        %v3538 = vpop.f32.mrb[0].mxu0
        %v3539 = vadd.f32 %v3465, %v3538
        %v3540 = vpop.f32.mrb[0].mxu0
        %3541 = vdwg.mxu0
        %3542 = vmatprep.subr.mxu0 0.0
        %v3543 = vand.u32 %v229, 4294901760
        %v3544 = vsub.f32 %v229, %v3543
        %v3545 = vand.u32 %v3544, 4294901760
        %3546 = vmatpush1.xpose.msra.mxu0 %v3545
        %3547 = vmatprep.subr.mxu0 0.0
        %3548 = vmatpush1.xpose.msra.mxu0 0.0
        %3549 = vmatprep.subr.mxu0 0.0
        %3550 = vmatpush1.xpose.msra.mxu0 0.0
        %3551 = vmatprep.subr.mxu0 0.0
        %3552 = vmatpush1.xpose.msra.mxu0 0.0
        %3553 = vmatprep.subr.mxu0 0.0
        %3554 = vmatpush1.xpose.msra.mxu0 0.0
        %3555 = vmatprep.subr.mxu0 0.0
        %3556 = vmatpush1.xpose.msra.mxu0 0.0
        %3557 = vmatprep.subr.mxu0 0.0
        %3558 = vmatpush1.xpose.msra.mxu0 0.0
        %3559 = vmatprep.subr.mxu0 0.0
        %3560 = vmatpush1.xpose.msra.mxu0 0.0
        %3561 = vmatprep.subr.mxu0 0.0
        %3562 = vmatpush1.xpose.msra.mxu0 0.0
        %3563 = vmatprep.subr.mxu0 0.0
        %3564 = vmatpush1.xpose.msra.mxu0 0.0
        %3565 = vmatprep.subr.mxu0 0.0
        %3566 = vmatpush1.xpose.msra.mxu0 0.0
        %3567 = vmatprep.subr.mxu0 0.0
        %3568 = vmatpush1.xpose.msra.mxu0 0.0
        %3569 = vmatprep.subr.mxu0 0.0
        %3570 = vmatpush1.xpose.msra.mxu0 0.0
        %3571 = vmatprep.subr.mxu0 0.0
        %3572 = vmatpush1.xpose.msra.mxu0 0.0
        %3573 = vmatprep.subr.mxu0 0.0
        %3574 = vmatpush1.xpose.msra.mxu0 0.0
        %3575 = vmatprep.subr.mxu0 0.0
        %3576 = vmatpush1.xpose.msra.mxu0 0.0
        %3577 = vmatprep.subr.mxu0 0.0
        %3578 = vmatpush1.xpose.msra.mxu0 0.0
        %3579 = vmatprep.subr.mxu0 0.0
        %3580 = vmatpush1.xpose.msra.mxu0 0.0
        %3581 = vmatprep.subr.mxu0 0.0
        %3582 = vmatpush1.xpose.msra.mxu0 0.0
        %3583 = vmatprep.subr.mxu0 0.0
        %3584 = vmatpush1.xpose.msra.mxu0 0.0
        %3585 = vmatprep.subr.mxu0 0.0
        %3586 = vmatpush1.xpose.msra.mxu0 0.0
        %3587 = vmatprep.subr.mxu0 0.0
        %3588 = vmatpush1.xpose.msra.mxu0 0.0
        %3589 = vmatprep.subr.mxu0 0.0
        %3590 = vmatpush1.xpose.msra.mxu0 0.0
        %3591 = vmatprep.subr.mxu0 0.0
        %3592 = vmatpush1.xpose.msra.mxu0 0.0
        %3593 = vmatprep.subr.mxu0 0.0
        %3594 = vmatpush1.xpose.msra.mxu0 0.0
        %3595 = vmatprep.subr.mxu0 0.0
        %3596 = vmatpush1.xpose.msra.mxu0 0.0
        %3597 = vmatprep.subr.mxu0 0.0
        %3598 = vmatpush1.xpose.msra.mxu0 0.0
        %3599 = vmatprep.subr.mxu0 0.0
        %3600 = vmatpush1.xpose.msra.mxu0 0.0
        %3601 = vmatprep.subr.mxu0 0.0
        %3602 = vmatpush1.xpose.msra.mxu0 0.0
        %3603 = vmatprep.subr.mxu0 0.0
        %3604 = vmatpush1.xpose.msra.mxu0 0.0
        %3605 = vmatprep.subr.mxu0 0.0
        %3606 = vmatpush1.xpose.msra.mxu0 0.0
        %3607 = vmatprep.subr.mxu0 0.0
        %3608 = vmatpush1.xpose.msra.mxu0 0.0
        %3609 = vmatprep.mubr.f32.mxu0 0.0
        %v3610 = vand.u32 %v3241, 4294901760
        %3611 = vmatmul.mubr.f32.gmra.mrb[0].mxu0 %v3610
        %v3612 = vpop.f32.mrb[0].mxu0
        %v3613 = vadd.f32 %v3539, %v3612
        %v3614 = vpop.f32.mrb[0].mxu0
        %3615 = vdwg.mxu0
        %3616 = vmatprep.subr.mxu0 0.0
        %v3617 = vand.u32 %v229, 4294901760
        %3618 = vmatpush1.xpose.msra.mxu0 %v3617
        %3619 = vmatprep.subr.mxu0 0.0
        %3620 = vmatpush1.xpose.msra.mxu0 0.0
        %3621 = vmatprep.subr.mxu0 0.0
        %3622 = vmatpush1.xpose.msra.mxu0 0.0
        %3623 = vmatprep.subr.mxu0 0.0
        %3624 = vmatpush1.xpose.msra.mxu0 0.0
        %3625 = vmatprep.subr.mxu0 0.0
        %3626 = vmatpush1.xpose.msra.mxu0 0.0
        %3627 = vmatprep.subr.mxu0 0.0
        %3628 = vmatpush1.xpose.msra.mxu0 0.0
        %3629 = vmatprep.subr.mxu0 0.0
        %3630 = vmatpush1.xpose.msra.mxu0 0.0
        %3631 = vmatprep.subr.mxu0 0.0
        %3632 = vmatpush1.xpose.msra.mxu0 0.0
        %3633 = vmatprep.subr.mxu0 0.0
        %3634 = vmatpush1.xpose.msra.mxu0 0.0
        %3635 = vmatprep.subr.mxu0 0.0
        %3636 = vmatpush1.xpose.msra.mxu0 0.0
        %3637 = vmatprep.subr.mxu0 0.0
        %3638 = vmatpush1.xpose.msra.mxu0 0.0
        %3639 = vmatprep.subr.mxu0 0.0
        %3640 = vmatpush1.xpose.msra.mxu0 0.0
        %3641 = vmatprep.subr.mxu0 0.0
        %3642 = vmatpush1.xpose.msra.mxu0 0.0
        %3643 = vmatprep.subr.mxu0 0.0
        %3644 = vmatpush1.xpose.msra.mxu0 0.0
        %3645 = vmatprep.subr.mxu0 0.0
        %3646 = vmatpush1.xpose.msra.mxu0 0.0
        %3647 = vmatprep.subr.mxu0 0.0
        %3648 = vmatpush1.xpose.msra.mxu0 0.0
        %3649 = vmatprep.subr.mxu0 0.0
        %3650 = vmatpush1.xpose.msra.mxu0 0.0
        %3651 = vmatprep.subr.mxu0 0.0
        %3652 = vmatpush1.xpose.msra.mxu0 0.0
        %3653 = vmatprep.subr.mxu0 0.0
        %3654 = vmatpush1.xpose.msra.mxu0 0.0
        %3655 = vmatprep.subr.mxu0 0.0
        %3656 = vmatpush1.xpose.msra.mxu0 0.0
        %3657 = vmatprep.subr.mxu0 0.0
        %3658 = vmatpush1.xpose.msra.mxu0 0.0
        %3659 = vmatprep.subr.mxu0 0.0
        %3660 = vmatpush1.xpose.msra.mxu0 0.0
        %3661 = vmatprep.subr.mxu0 0.0
        %3662 = vmatpush1.xpose.msra.mxu0 0.0
        %3663 = vmatprep.subr.mxu0 0.0
        %3664 = vmatpush1.xpose.msra.mxu0 0.0
        %3665 = vmatprep.subr.mxu0 0.0
        %3666 = vmatpush1.xpose.msra.mxu0 0.0
        %3667 = vmatprep.subr.mxu0 0.0
        %3668 = vmatpush1.xpose.msra.mxu0 0.0
        %3669 = vmatprep.subr.mxu0 0.0
        %3670 = vmatpush1.xpose.msra.mxu0 0.0
        %3671 = vmatprep.subr.mxu0 0.0
        %3672 = vmatpush1.xpose.msra.mxu0 0.0
        %3673 = vmatprep.subr.mxu0 0.0
        %3674 = vmatpush1.xpose.msra.mxu0 0.0
        %3675 = vmatprep.subr.mxu0 0.0
        %3676 = vmatpush1.xpose.msra.mxu0 0.0
        %3677 = vmatprep.subr.mxu0 0.0
        %3678 = vmatpush1.xpose.msra.mxu0 0.0
        %3679 = vmatprep.subr.mxu0 0.0
        %3680 = vmatpush1.xpose.msra.mxu0 0.0
        %3681 = vmatprep.mubr.f32.mxu0 0.0
        %v3682 = vand.u32 %v3241, 4294901760
        %3683 = vmatmul.mubr.f32.gmra.mrb[0].mxu0 %v3682
        %v3684 = vpop.f32.mrb[0].mxu0
        %v3685 = vadd.f32 %v3613, %v3684
        %v3686 = vpop.f32.mrb[0].mxu0
        %3687 = vdwg.mxu0
        %v3689 = vsel %vm956, %v3685, 0
        %3691 = vmatprep.subr.mxu0 0.0
        %v3692 = vand.u32 %v229, 4294901760
        %3693 = vmatpush1.msra.mxu0 %v3692
        %3694 = vmatprep.subr.mxu0 0.0
        %3695 = vmatpush1.msra.mxu0 0.0
        %3696 = vmatprep.subr.mxu0 0.0
        %3697 = vmatpush1.msra.mxu0 0.0
        %3698 = vmatprep.subr.mxu0 0.0
        %3699 = vmatpush1.msra.mxu0 0.0
        %3700 = vmatprep.subr.mxu0 0.0
        %3701 = vmatpush1.msra.mxu0 0.0
        %3702 = vmatprep.subr.mxu0 0.0
        %3703 = vmatpush1.msra.mxu0 0.0
        %3704 = vmatprep.subr.mxu0 0.0
        %3705 = vmatpush1.msra.mxu0 0.0
        %3706 = vmatprep.subr.mxu0 0.0
        %3707 = vmatpush1.msra.mxu0 0.0
        %3708 = vmatprep.subr.mxu0 0.0
        %3709 = vmatpush1.msra.mxu0 0.0
        %3710 = vmatprep.subr.mxu0 0.0
        %3711 = vmatpush1.msra.mxu0 0.0
        %3712 = vmatprep.subr.mxu0 0.0
        %3713 = vmatpush1.msra.mxu0 0.0
        %3714 = vmatprep.subr.mxu0 0.0
        %3715 = vmatpush1.msra.mxu0 0.0
        %3716 = vmatprep.subr.mxu0 0.0
        %3717 = vmatpush1.msra.mxu0 0.0
        %3718 = vmatprep.subr.mxu0 0.0
        %3719 = vmatpush1.msra.mxu0 0.0
        %3720 = vmatprep.subr.mxu0 0.0
        %3721 = vmatpush1.msra.mxu0 0.0
        %3722 = vmatprep.subr.mxu0 0.0
        %3723 = vmatpush1.msra.mxu0 0.0
        %3724 = vmatprep.subr.mxu0 0.0
        %3725 = vmatpush1.msra.mxu0 0.0
        %3726 = vmatprep.subr.mxu0 0.0
        %3727 = vmatpush1.msra.mxu0 0.0
        %3728 = vmatprep.subr.mxu0 0.0
        %3729 = vmatpush1.msra.mxu0 0.0
        %3730 = vmatprep.subr.mxu0 0.0
        %3731 = vmatpush1.msra.mxu0 0.0
        %3732 = vmatprep.subr.mxu0 0.0
        %3733 = vmatpush1.msra.mxu0 0.0
        %3734 = vmatprep.subr.mxu0 0.0
        %3735 = vmatpush1.msra.mxu0 0.0
        %3736 = vmatprep.subr.mxu0 0.0
        %3737 = vmatpush1.msra.mxu0 0.0
        %3738 = vmatprep.subr.mxu0 0.0
        %3739 = vmatpush1.msra.mxu0 0.0
        %3740 = vmatprep.subr.mxu0 0.0
        %3741 = vmatpush1.msra.mxu0 0.0
        %3742 = vmatprep.subr.mxu0 0.0
        %3743 = vmatpush1.msra.mxu0 0.0
        %3744 = vmatprep.subr.mxu0 0.0
        %3745 = vmatpush1.msra.mxu0 0.0
        %3746 = vmatprep.subr.mxu0 0.0
        %3747 = vmatpush1.msra.mxu0 0.0
        %3748 = vmatprep.subr.mxu0 0.0
        %3749 = vmatpush1.msra.mxu0 0.0
        %3750 = vmatprep.subr.mxu0 0.0
        %3751 = vmatpush1.msra.mxu0 0.0
        %3752 = vmatprep.subr.mxu0 0.0
        %3753 = vmatpush1.msra.mxu0 0.0
        %3754 = vmatprep.subr.mxu0 0.0
        %3755 = vmatpush1.msra.mxu0 0.0
        %3756 = vmatprep.mubr.f32.mxu0 0.0
        %v3757 = vand.u32 %v3689, 4294901760
        %v3758 = vsub.f32 %v3689, %v3757
        %v3759 = vand.u32 %v3758, 4294901760
        %v3760 = vsub.f32 %v3758, %v3759
        %v3761 = vand.u32 %v3760, 4294901760
        %3762 = vmatmul.mubr.f32.gmra.mrb[0].mxu0 %v3761
        %v3763 = vpop.f32.mrb[0].mxu0
        %v3764 = vadd.f32 0.0, %v3763
        %v3765 = vpop.f32.mrb[0].mxu0
        %3766 = vdwg.mxu0
        %3767 = vmatprep.subr.mxu0 0.0
        %v3768 = vand.u32 %v229, 4294901760
        %v3769 = vsub.f32 %v229, %v3768
        %v3770 = vand.u32 %v3769, 4294901760
        %v3771 = vsub.f32 %v3769, %v3770
        %v3772 = vand.u32 %v3771, 4294901760
        %3773 = vmatpush1.msra.mxu0 %v3772
        %3774 = vmatprep.subr.mxu0 0.0
        %3775 = vmatpush1.msra.mxu0 0.0
        %3776 = vmatprep.subr.mxu0 0.0
        %3777 = vmatpush1.msra.mxu0 0.0
        %3778 = vmatprep.subr.mxu0 0.0
        %3779 = vmatpush1.msra.mxu0 0.0
        %3780 = vmatprep.subr.mxu0 0.0
        %3781 = vmatpush1.msra.mxu0 0.0
        %3782 = vmatprep.subr.mxu0 0.0
        %3783 = vmatpush1.msra.mxu0 0.0
        %3784 = vmatprep.subr.mxu0 0.0
        %3785 = vmatpush1.msra.mxu0 0.0
        %3786 = vmatprep.subr.mxu0 0.0
        %3787 = vmatpush1.msra.mxu0 0.0
        %3788 = vmatprep.subr.mxu0 0.0
        %3789 = vmatpush1.msra.mxu0 0.0
        %3790 = vmatprep.subr.mxu0 0.0
        %3791 = vmatpush1.msra.mxu0 0.0
        %3792 = vmatprep.subr.mxu0 0.0
        %3793 = vmatpush1.msra.mxu0 0.0
        %3794 = vmatprep.subr.mxu0 0.0
        %3795 = vmatpush1.msra.mxu0 0.0
        %3796 = vmatprep.subr.mxu0 0.0
        %3797 = vmatpush1.msra.mxu0 0.0
        %3798 = vmatprep.subr.mxu0 0.0
        %3799 = vmatpush1.msra.mxu0 0.0
        %3800 = vmatprep.subr.mxu0 0.0
        %3801 = vmatpush1.msra.mxu0 0.0
        %3802 = vmatprep.subr.mxu0 0.0
        %3803 = vmatpush1.msra.mxu0 0.0
        %3804 = vmatprep.subr.mxu0 0.0
        %3805 = vmatpush1.msra.mxu0 0.0
        %3806 = vmatprep.subr.mxu0 0.0
        %3807 = vmatpush1.msra.mxu0 0.0
        %3808 = vmatprep.subr.mxu0 0.0
        %3809 = vmatpush1.msra.mxu0 0.0
        %3810 = vmatprep.subr.mxu0 0.0
        %3811 = vmatpush1.msra.mxu0 0.0
        %3812 = vmatprep.subr.mxu0 0.0
        %3813 = vmatpush1.msra.mxu0 0.0
        %3814 = vmatprep.subr.mxu0 0.0
        %3815 = vmatpush1.msra.mxu0 0.0
        %3816 = vmatprep.subr.mxu0 0.0
        %3817 = vmatpush1.msra.mxu0 0.0
        %3818 = vmatprep.subr.mxu0 0.0
        %3819 = vmatpush1.msra.mxu0 0.0
        %3820 = vmatprep.subr.mxu0 0.0
        %3821 = vmatpush1.msra.mxu0 0.0
        %3822 = vmatprep.subr.mxu0 0.0
        %3823 = vmatpush1.msra.mxu0 0.0
        %3824 = vmatprep.subr.mxu0 0.0
        %3825 = vmatpush1.msra.mxu0 0.0
        %3826 = vmatprep.subr.mxu0 0.0
        %3827 = vmatpush1.msra.mxu0 0.0
        %3828 = vmatprep.subr.mxu0 0.0
        %3829 = vmatpush1.msra.mxu0 0.0
        %3830 = vmatprep.subr.mxu0 0.0
        %3831 = vmatpush1.msra.mxu0 0.0
        %3832 = vmatprep.subr.mxu0 0.0
        %3833 = vmatpush1.msra.mxu0 0.0
        %3834 = vmatprep.subr.mxu0 0.0
        %3835 = vmatpush1.msra.mxu0 0.0
        %3836 = vmatprep.mubr.f32.mxu0 0.0
        %v3837 = vand.u32 %v3689, 4294901760
        %3838 = vmatmul.mubr.f32.gmra.mrb[0].mxu0 %v3837
        %v3839 = vpop.f32.mrb[0].mxu0
        %v3840 = vadd.f32 %v3764, %v3839
        %v3841 = vpop.f32.mrb[0].mxu0
        %3842 = vdwg.mxu0
        %3843 = vmatprep.subr.mxu0 0.0
        %v3844 = vand.u32 %v229, 4294901760
        %v3845 = vsub.f32 %v229, %v3844
        %3846 = vmatpush1.msra.mxu0 %v3845
        %3847 = vmatprep.subr.mxu0 0.0
        %3848 = vmatpush1.msra.mxu0 0.0
        %3849 = vmatprep.subr.mxu0 0.0
        %3850 = vmatpush1.msra.mxu0 0.0
        %3851 = vmatprep.subr.mxu0 0.0
        %3852 = vmatpush1.msra.mxu0 0.0
        %3853 = vmatprep.subr.mxu0 0.0
        %3854 = vmatpush1.msra.mxu0 0.0
        %3855 = vmatprep.subr.mxu0 0.0
        %3856 = vmatpush1.msra.mxu0 0.0
        %3857 = vmatprep.subr.mxu0 0.0
        %3858 = vmatpush1.msra.mxu0 0.0
        %3859 = vmatprep.subr.mxu0 0.0
        %3860 = vmatpush1.msra.mxu0 0.0
        %3861 = vmatprep.subr.mxu0 0.0
        %3862 = vmatpush1.msra.mxu0 0.0
        %3863 = vmatprep.subr.mxu0 0.0
        %3864 = vmatpush1.msra.mxu0 0.0
        %3865 = vmatprep.subr.mxu0 0.0
        %3866 = vmatpush1.msra.mxu0 0.0
        %3867 = vmatprep.subr.mxu0 0.0
        %3868 = vmatpush1.msra.mxu0 0.0
        %3869 = vmatprep.subr.mxu0 0.0
        %3870 = vmatpush1.msra.mxu0 0.0
        %3871 = vmatprep.subr.mxu0 0.0
        %3872 = vmatpush1.msra.mxu0 0.0
        %3873 = vmatprep.subr.mxu0 0.0
        %3874 = vmatpush1.msra.mxu0 0.0
        %3875 = vmatprep.subr.mxu0 0.0
        %3876 = vmatpush1.msra.mxu0 0.0
        %3877 = vmatprep.subr.mxu0 0.0
        %3878 = vmatpush1.msra.mxu0 0.0
        %3879 = vmatprep.subr.mxu0 0.0
        %3880 = vmatpush1.msra.mxu0 0.0
        %3881 = vmatprep.subr.mxu0 0.0
        %3882 = vmatpush1.msra.mxu0 0.0
        %3883 = vmatprep.subr.mxu0 0.0
        %3884 = vmatpush1.msra.mxu0 0.0
        %3885 = vmatprep.subr.mxu0 0.0
        %3886 = vmatpush1.msra.mxu0 0.0
        %3887 = vmatprep.subr.mxu0 0.0
        %3888 = vmatpush1.msra.mxu0 0.0
        %3889 = vmatprep.subr.mxu0 0.0
        %3890 = vmatpush1.msra.mxu0 0.0
        %3891 = vmatprep.subr.mxu0 0.0
        %3892 = vmatpush1.msra.mxu0 0.0
        %3893 = vmatprep.subr.mxu0 0.0
        %3894 = vmatpush1.msra.mxu0 0.0
        %3895 = vmatprep.subr.mxu0 0.0
        %3896 = vmatpush1.msra.mxu0 0.0
        %3897 = vmatprep.subr.mxu0 0.0
        %3898 = vmatpush1.msra.mxu0 0.0
        %3899 = vmatprep.subr.mxu0 0.0
        %3900 = vmatpush1.msra.mxu0 0.0
        %3901 = vmatprep.subr.mxu0 0.0
        %3902 = vmatpush1.msra.mxu0 0.0
        %3903 = vmatprep.subr.mxu0 0.0
        %3904 = vmatpush1.msra.mxu0 0.0
        %3905 = vmatprep.subr.mxu0 0.0
        %3906 = vmatpush1.msra.mxu0 0.0
        %3907 = vmatprep.subr.mxu0 0.0
        %3908 = vmatpush1.msra.mxu0 0.0
        %3909 = vmatprep.mubr.f32.mxu0 0.0
        %v3910 = vand.u32 %v3689, 4294901760
        %v3911 = vsub.f32 %v3689, %v3910
        %3912 = vmatmul.mubr.f32.gmra.mrb[0].mxu0 %v3911
        %v3913 = vpop.f32.mrb[0].mxu0
        %v3914 = vadd.f32 %v3840, %v3913
        %v3915 = vpop.f32.mrb[0].mxu0
        %3916 = vdwg.mxu0
        %3917 = vmatprep.subr.mxu0 0.0
        %v3918 = vand.u32 %v229, 4294901760
        %3919 = vmatpush1.msra.mxu0 %v3918
        %3920 = vmatprep.subr.mxu0 0.0
        %3921 = vmatpush1.msra.mxu0 0.0
        %3922 = vmatprep.subr.mxu0 0.0
        %3923 = vmatpush1.msra.mxu0 0.0
        %3924 = vmatprep.subr.mxu0 0.0
        %3925 = vmatpush1.msra.mxu0 0.0
        %3926 = vmatprep.subr.mxu0 0.0
        %3927 = vmatpush1.msra.mxu0 0.0
        %3928 = vmatprep.subr.mxu0 0.0
        %3929 = vmatpush1.msra.mxu0 0.0
        %3930 = vmatprep.subr.mxu0 0.0
        %3931 = vmatpush1.msra.mxu0 0.0
        %3932 = vmatprep.subr.mxu0 0.0
        %3933 = vmatpush1.msra.mxu0 0.0
        %3934 = vmatprep.subr.mxu0 0.0
        %3935 = vmatpush1.msra.mxu0 0.0
        %3936 = vmatprep.subr.mxu0 0.0
        %3937 = vmatpush1.msra.mxu0 0.0
        %3938 = vmatprep.subr.mxu0 0.0
        %3939 = vmatpush1.msra.mxu0 0.0
        %3940 = vmatprep.subr.mxu0 0.0
        %3941 = vmatpush1.msra.mxu0 0.0
        %3942 = vmatprep.subr.mxu0 0.0
        %3943 = vmatpush1.msra.mxu0 0.0
        %3944 = vmatprep.subr.mxu0 0.0
        %3945 = vmatpush1.msra.mxu0 0.0
        %3946 = vmatprep.subr.mxu0 0.0
        %3947 = vmatpush1.msra.mxu0 0.0
        %3948 = vmatprep.subr.mxu0 0.0
        %3949 = vmatpush1.msra.mxu0 0.0
        %3950 = vmatprep.subr.mxu0 0.0
        %3951 = vmatpush1.msra.mxu0 0.0
        %3952 = vmatprep.subr.mxu0 0.0
        %3953 = vmatpush1.msra.mxu0 0.0
        %3954 = vmatprep.subr.mxu0 0.0
        %3955 = vmatpush1.msra.mxu0 0.0
        %3956 = vmatprep.subr.mxu0 0.0
        %3957 = vmatpush1.msra.mxu0 0.0
        %3958 = vmatprep.subr.mxu0 0.0
        %3959 = vmatpush1.msra.mxu0 0.0
        %3960 = vmatprep.subr.mxu0 0.0
        %3961 = vmatpush1.msra.mxu0 0.0
        %3962 = vmatprep.subr.mxu0 0.0
        %3963 = vmatpush1.msra.mxu0 0.0
        %3964 = vmatprep.subr.mxu0 0.0
        %3965 = vmatpush1.msra.mxu0 0.0
        %3966 = vmatprep.subr.mxu0 0.0
        %3967 = vmatpush1.msra.mxu0 0.0
        %3968 = vmatprep.subr.mxu0 0.0
        %3969 = vmatpush1.msra.mxu0 0.0
        %3970 = vmatprep.subr.mxu0 0.0
        %3971 = vmatpush1.msra.mxu0 0.0
        %3972 = vmatprep.subr.mxu0 0.0
        %3973 = vmatpush1.msra.mxu0 0.0
        %3974 = vmatprep.subr.mxu0 0.0
        %3975 = vmatpush1.msra.mxu0 0.0
        %3976 = vmatprep.subr.mxu0 0.0
        %3977 = vmatpush1.msra.mxu0 0.0
        %3978 = vmatprep.subr.mxu0 0.0
        %3979 = vmatpush1.msra.mxu0 0.0
        %3980 = vmatprep.subr.mxu0 0.0
        %3981 = vmatpush1.msra.mxu0 0.0
        %3982 = vmatprep.mubr.f32.mxu0 0.0
        %v3983 = vand.u32 %v3689, 4294901760
        %v3984 = vsub.f32 %v3689, %v3983
        %v3985 = vand.u32 %v3984, 4294901760
        %3986 = vmatmul.mubr.f32.gmra.mrb[0].mxu0 %v3985
        %v3987 = vpop.f32.mrb[0].mxu0
        %v3988 = vadd.f32 %v3914, %v3987
        %v3989 = vpop.f32.mrb[0].mxu0
        %3990 = vdwg.mxu0
        %3991 = vmatprep.subr.mxu0 0.0
        %v3992 = vand.u32 %v229, 4294901760
        %v3993 = vsub.f32 %v229, %v3992
        %v3994 = vand.u32 %v3993, 4294901760
        %3995 = vmatpush1.msra.mxu0 %v3994
        %3996 = vmatprep.subr.mxu0 0.0
        %3997 = vmatpush1.msra.mxu0 0.0
        %3998 = vmatprep.subr.mxu0 0.0
        %3999 = vmatpush1.msra.mxu0 0.0
        %4000 = vmatprep.subr.mxu0 0.0
        %4001 = vmatpush1.msra.mxu0 0.0
        %4002 = vmatprep.subr.mxu0 0.0
        %4003 = vmatpush1.msra.mxu0 0.0
        %4004 = vmatprep.subr.mxu0 0.0
        %4005 = vmatpush1.msra.mxu0 0.0
        %4006 = vmatprep.subr.mxu0 0.0
        %4007 = vmatpush1.msra.mxu0 0.0
        %4008 = vmatprep.subr.mxu0 0.0
        %4009 = vmatpush1.msra.mxu0 0.0
        %4010 = vmatprep.subr.mxu0 0.0
        %4011 = vmatpush1.msra.mxu0 0.0
        %4012 = vmatprep.subr.mxu0 0.0
        %4013 = vmatpush1.msra.mxu0 0.0
        %4014 = vmatprep.subr.mxu0 0.0
        %4015 = vmatpush1.msra.mxu0 0.0
        %4016 = vmatprep.subr.mxu0 0.0
        %4017 = vmatpush1.msra.mxu0 0.0
        %4018 = vmatprep.subr.mxu0 0.0
        %4019 = vmatpush1.msra.mxu0 0.0
        %4020 = vmatprep.subr.mxu0 0.0
        %4021 = vmatpush1.msra.mxu0 0.0
        %4022 = vmatprep.subr.mxu0 0.0
        %4023 = vmatpush1.msra.mxu0 0.0
        %4024 = vmatprep.subr.mxu0 0.0
        %4025 = vmatpush1.msra.mxu0 0.0
        %4026 = vmatprep.subr.mxu0 0.0
        %4027 = vmatpush1.msra.mxu0 0.0
        %4028 = vmatprep.subr.mxu0 0.0
        %4029 = vmatpush1.msra.mxu0 0.0
        %4030 = vmatprep.subr.mxu0 0.0
        %4031 = vmatpush1.msra.mxu0 0.0
        %4032 = vmatprep.subr.mxu0 0.0
        %4033 = vmatpush1.msra.mxu0 0.0
        %4034 = vmatprep.subr.mxu0 0.0
        %4035 = vmatpush1.msra.mxu0 0.0
        %4036 = vmatprep.subr.mxu0 0.0
        %4037 = vmatpush1.msra.mxu0 0.0
        %4038 = vmatprep.subr.mxu0 0.0
        %4039 = vmatpush1.msra.mxu0 0.0
        %4040 = vmatprep.subr.mxu0 0.0
        %4041 = vmatpush1.msra.mxu0 0.0
        %4042 = vmatprep.subr.mxu0 0.0
        %4043 = vmatpush1.msra.mxu0 0.0
        %4044 = vmatprep.subr.mxu0 0.0
        %4045 = vmatpush1.msra.mxu0 0.0
        %4046 = vmatprep.subr.mxu0 0.0
        %4047 = vmatpush1.msra.mxu0 0.0
        %4048 = vmatprep.subr.mxu0 0.0
        %4049 = vmatpush1.msra.mxu0 0.0
        %4050 = vmatprep.subr.mxu0 0.0
        %4051 = vmatpush1.msra.mxu0 0.0
        %4052 = vmatprep.subr.mxu0 0.0
        %4053 = vmatpush1.msra.mxu0 0.0
        %4054 = vmatprep.subr.mxu0 0.0
        %4055 = vmatpush1.msra.mxu0 0.0
        %4056 = vmatprep.subr.mxu0 0.0
        %4057 = vmatpush1.msra.mxu0 0.0
        %4058 = vmatprep.mubr.f32.mxu0 0.0
        %v4059 = vand.u32 %v3689, 4294901760
        %4060 = vmatmul.mubr.f32.gmra.mrb[0].mxu0 %v4059
        %v4061 = vpop.f32.mrb[0].mxu0
        %v4062 = vadd.f32 %v3988, %v4061
        %v4063 = vpop.f32.mrb[0].mxu0
        %4064 = vdwg.mxu0
        %4065 = vmatprep.subr.mxu0 0.0
        %v4066 = vand.u32 %v229, 4294901760
        %4067 = vmatpush1.msra.mxu0 %v4066
        %4068 = vmatprep.subr.mxu0 0.0
        %4069 = vmatpush1.msra.mxu0 0.0
        %4070 = vmatprep.subr.mxu0 0.0
        %4071 = vmatpush1.msra.mxu0 0.0
        %4072 = vmatprep.subr.mxu0 0.0
        %4073 = vmatpush1.msra.mxu0 0.0
        %4074 = vmatprep.subr.mxu0 0.0
        %4075 = vmatpush1.msra.mxu0 0.0
        %4076 = vmatprep.subr.mxu0 0.0
        %4077 = vmatpush1.msra.mxu0 0.0
        %4078 = vmatprep.subr.mxu0 0.0
        %4079 = vmatpush1.msra.mxu0 0.0
        %4080 = vmatprep.subr.mxu0 0.0
        %4081 = vmatpush1.msra.mxu0 0.0
        %4082 = vmatprep.subr.mxu0 0.0
        %4083 = vmatpush1.msra.mxu0 0.0
        %4084 = vmatprep.subr.mxu0 0.0
        %4085 = vmatpush1.msra.mxu0 0.0
        %4086 = vmatprep.subr.mxu0 0.0
        %4087 = vmatpush1.msra.mxu0 0.0
        %4088 = vmatprep.subr.mxu0 0.0
        %4089 = vmatpush1.msra.mxu0 0.0
        %4090 = vmatprep.subr.mxu0 0.0
        %4091 = vmatpush1.msra.mxu0 0.0
        %4092 = vmatprep.subr.mxu0 0.0
        %4093 = vmatpush1.msra.mxu0 0.0
        %4094 = vmatprep.subr.mxu0 0.0
        %4095 = vmatpush1.msra.mxu0 0.0
        %4096 = vmatprep.subr.mxu0 0.0
        %4097 = vmatpush1.msra.mxu0 0.0
        %4098 = vmatprep.subr.mxu0 0.0
        %4099 = vmatpush1.msra.mxu0 0.0
        %4100 = vmatprep.subr.mxu0 0.0
        %4101 = vmatpush1.msra.mxu0 0.0
        %4102 = vmatprep.subr.mxu0 0.0
        %4103 = vmatpush1.msra.mxu0 0.0
        %4104 = vmatprep.subr.mxu0 0.0
        %4105 = vmatpush1.msra.mxu0 0.0
        %4106 = vmatprep.subr.mxu0 0.0
        %4107 = vmatpush1.msra.mxu0 0.0
        %4108 = vmatprep.subr.mxu0 0.0
        %4109 = vmatpush1.msra.mxu0 0.0
        %4110 = vmatprep.subr.mxu0 0.0
        %4111 = vmatpush1.msra.mxu0 0.0
        %4112 = vmatprep.subr.mxu0 0.0
        %4113 = vmatpush1.msra.mxu0 0.0
        %4114 = vmatprep.subr.mxu0 0.0
        %4115 = vmatpush1.msra.mxu0 0.0
        %4116 = vmatprep.subr.mxu0 0.0
        %4117 = vmatpush1.msra.mxu0 0.0
        %4118 = vmatprep.subr.mxu0 0.0
        %4119 = vmatpush1.msra.mxu0 0.0
        %4120 = vmatprep.subr.mxu0 0.0
        %4121 = vmatpush1.msra.mxu0 0.0
        %4122 = vmatprep.subr.mxu0 0.0
        %4123 = vmatpush1.msra.mxu0 0.0
        %4124 = vmatprep.subr.mxu0 0.0
        %4125 = vmatpush1.msra.mxu0 0.0
        %4126 = vmatprep.subr.mxu0 0.0
        %4127 = vmatpush1.msra.mxu0 0.0
        %4128 = vmatprep.subr.mxu0 0.0
        %4129 = vmatpush1.msra.mxu0 0.0
        %4130 = vmatprep.mubr.f32.mxu0 0.0
        %v4131 = vand.u32 %v3689, 4294901760
        %4132 = vmatmul.mubr.f32.gmra.mrb[0].mxu0 %v4131
        %v4133 = vpop.f32.mrb[0].mxu0
        %v4134 = vadd.f32 %v4062, %v4133
        %v4135 = vpop.f32.mrb[0].mxu0
        %4136 = vdwg.mxu0
        %v4137 = vmul.f32 %v4134, 0.00390625
        %v4138 = vmul.f32 %v3232, %v3232
        %v4139 = vsub.f32 %v4137, %v4138
        %v4140 = vlaneseq
        %v4141 = vshrl.u32 %v4140, 7
        %v4142 = vsub.s32 0, %v4141
        %v4143 = vrot.slane %v3232, %v4142
        %v4144 = vsub.f32 %v501, %v4143
        %v4145 = vsub.f32 %v502, %v4143
        %v4146 = vadd.f32 %v4139, 1e-05
        %v4147 = vrsqrt.pop %v4146
        %v4148 = vlaneseq
        %v4149 = vshrl.u32 %v4148, 7
        %v4150 = vsub.s32 0, %v4149
        %v4151 = vrot.slane %v4147, %v4150
        %v4152 = vmul.f32 %v4144, %v4151
        %v4153 = vmul.f32 %v4145, %v4151
        %v4154 = vmax.f32 %v4152, 0.0
        %v4155 = vmax.f32 %v4153, 0.0
        %vm4156 = vcmp.ge.s32.totalorder %v217, 3
        %vm4157 = vcmp.ge.s32.totalorder %v218, 3
        %v4158 = vrot.slane %v2328, 5
        %v4159 = vrot.slane %v2329, 5
        %vm4160 = vcmp.lt.s32.totalorder %v217, 3
        %v4161 = vsel %vm4160, %v4158, %v4159
        %v4162 = vsel %vm4160, %v4159, %v4158
        %v4163 = vsel %vm4156, %v4162, 0.0
        %v4164 = vsel %vm4157, %v4161, 0.0
        %s4165 = sld [smem:[#allocation7]]
        %v4166 = vstv %s4165
        %v4167 = vmul.f32 %v4166, %v4163
        %v4168 = vmul.f32 %v4166, %v4164
        %s4169 = sld [smem:[#allocation7 + $0x1]]
        %v4170 = vstv %s4169
        %v4171 = vmul.f32 %v4170, %v4163
        %v4172 = vmul.f32 %v4170, %v4164
        %s4173 = sld [smem:[#allocation7 + $0x2]]
        %v4174 = vstv %s4173
        %v4175 = vmul.f32 %v4174, %v4163
        %v4176 = vmul.f32 %v4174, %v4164
        %s4177 = sld [smem:[#allocation7 + $0x3]]
        %v4178 = vstv %s4177
        %v4179 = vmul.f32 %v4178, %v4163
        %v4180 = vmul.f32 %v4178, %v4164
        %s4181 = sld [smem:[#allocation7 + $0x4]]
        %v4182 = vstv %s4181
        %v4183 = vmul.f32 %v4182, %v4163
        %v4184 = vmul.f32 %v4182, %v4164
        %s4185 = sld [smem:[#allocation7 + $0x5]]
        %v4186 = vstv %s4185
        %v4187 = vmul.f32 %v4186, %v4163
        %v4188 = vmul.f32 %v4186, %v4164
        %s4189 = sld [smem:[#allocation7 + $0x6]]
        %v4190 = vstv %s4189
        %v4191 = vmul.f32 %v4190, %v4163
        %v4192 = vmul.f32 %v4190, %v4164
        %v4193 = vrot.slane %v4154, 5
        %v4194 = vrot.slane %v4155, 5
        %v4195 = vsel %vm4160, %v4193, %v4194
        %v4196 = vsel %vm4160, %v4194, %v4193
        %v4197 = vsel %vm4156, %v4196, 0.0
        %v4198 = vsel %vm4157, %v4195, 0.0
        %s4199 = sld [smem:[#allocation7 + $0x31]]
        %v4200 = vstv %s4199
        %v4201 = vmul.f32 %v4200, %v4197
        %v4202 = vmul.f32 %v4200, %v4198
        %v4203 = vadd.f32 %v4167, %v4201
        %v4204 = vadd.f32 %v4168, %v4202
        %s4205 = sld [smem:[#allocation7 + $0x32]]
        %v4206 = vstv %s4205
        %v4207 = vmul.f32 %v4206, %v4197
        %v4208 = vmul.f32 %v4206, %v4198
        %v4209 = vadd.f32 %v4171, %v4207
        %v4210 = vadd.f32 %v4172, %v4208
        %s4211 = sld [smem:[#allocation7 + $0x33]]
        %v4212 = vstv %s4211
        %v4213 = vmul.f32 %v4212, %v4197
        %v4214 = vmul.f32 %v4212, %v4198
        %v4215 = vadd.f32 %v4175, %v4213
        %v4216 = vadd.f32 %v4176, %v4214
        %s4217 = sld [smem:[#allocation7 + $0x34]]
        %v4218 = vstv %s4217
        %v4219 = vmul.f32 %v4218, %v4197
        %v4220 = vmul.f32 %v4218, %v4198
        %v4221 = vadd.f32 %v4179, %v4219
        %v4222 = vadd.f32 %v4180, %v4220
        %s4223 = sld [smem:[#allocation7 + $0x35]]
        %v4224 = vstv %s4223
        %v4225 = vmul.f32 %v4224, %v4197
        %v4226 = vmul.f32 %v4224, %v4198
        %v4227 = vadd.f32 %v4183, %v4225
        %v4228 = vadd.f32 %v4184, %v4226
        %s4229 = sld [smem:[#allocation7 + $0x36]]
        %v4230 = vstv %s4229
        %v4231 = vmul.f32 %v4230, %v4197
        %v4232 = vmul.f32 %v4230, %v4198
        %v4233 = vadd.f32 %v4187, %v4231
        %v4234 = vadd.f32 %v4188, %v4232
        %s4235 = sld [smem:[#allocation7 + $0x37]]
        %v4236 = vstv %s4235
        %v4237 = vmul.f32 %v4236, %v4197
        %v4238 = vmul.f32 %v4236, %v4198
        %v4239 = vadd.f32 %v4191, %v4237
        %v4240 = vadd.f32 %v4192, %v4238
        %vm4241 = vcmp.ge.s32.totalorder %v217, 2
        %vm4242 = vcmp.ge.s32.totalorder %v218, 2
        %v4243 = vrot.slane %v2328, 6
        %v4244 = vrot.slane %v2329, 6
        %vm4245 = vcmp.lt.s32.totalorder %v217, 2
        %v4246 = vsel %vm4245, %v4243, %v4244
        %v4247 = vsel %vm4245, %v4244, %v4243
        %v4248 = vsel %vm4241, %v4247, 0.0
        %v4249 = vsel %vm4242, %v4246, 0.0
        %s4250 = sld [smem:[#allocation7 + $0x7]]
        %v4251 = vstv %s4250
        %v4252 = vmul.f32 %v4251, %v4248
        %v4253 = vmul.f32 %v4251, %v4249
        %v4254 = vadd.f32 %v4203, %v4252
        %v4255 = vadd.f32 %v4204, %v4253
        %s4256 = sld [smem:[#allocation7 + $0x8]]
        %v4257 = vstv %s4256
        %v4258 = vmul.f32 %v4257, %v4248
        %v4259 = vmul.f32 %v4257, %v4249
        %v4260 = vadd.f32 %v4209, %v4258
        %v4261 = vadd.f32 %v4210, %v4259
        %s4262 = sld [smem:[#allocation7 + $0x9]]
        %v4263 = vstv %s4262
        %v4264 = vmul.f32 %v4263, %v4248
        %v4265 = vmul.f32 %v4263, %v4249
        %v4266 = vadd.f32 %v4215, %v4264
        %v4267 = vadd.f32 %v4216, %v4265
        %s4268 = sld [smem:[#allocation7 + $0xa]]
        %v4269 = vstv %s4268
        %v4270 = vmul.f32 %v4269, %v4248
        %v4271 = vmul.f32 %v4269, %v4249
        %v4272 = vadd.f32 %v4221, %v4270
        %v4273 = vadd.f32 %v4222, %v4271
        %s4274 = sld [smem:[#allocation7 + $0xb]]
        %v4275 = vstv %s4274
        %v4276 = vmul.f32 %v4275, %v4248
        %v4277 = vmul.f32 %v4275, %v4249
        %v4278 = vadd.f32 %v4227, %v4276
        %v4279 = vadd.f32 %v4228, %v4277
        %s4280 = sld [smem:[#allocation7 + $0xc]]
        %v4281 = vstv %s4280
        %v4282 = vmul.f32 %v4281, %v4248
        %v4283 = vmul.f32 %v4281, %v4249
        %v4284 = vadd.f32 %v4233, %v4282
        %v4285 = vadd.f32 %v4234, %v4283
        %s4286 = sld [smem:[#allocation7 + $0xd]]
        %v4287 = vstv %s4286
        %v4288 = vmul.f32 %v4287, %v4248
        %v4289 = vmul.f32 %v4287, %v4249
        %v4290 = vadd.f32 %v4239, %v4288
        %v4291 = vadd.f32 %v4240, %v4289
        %v4292 = vrot.slane %v4154, 6
        %v4293 = vrot.slane %v4155, 6
        %v4294 = vsel %vm4245, %v4292, %v4293
        %v4295 = vsel %vm4245, %v4293, %v4292
        %v4296 = vsel %vm4241, %v4295, 0.0
        %v4297 = vsel %vm4242, %v4294, 0.0
        %s4298 = sld [smem:[#allocation7 + $0x38]]
        %v4299 = vstv %s4298
        %v4300 = vmul.f32 %v4299, %v4296
        %v4301 = vmul.f32 %v4299, %v4297
        %v4302 = vadd.f32 %v4254, %v4300
        %v4303 = vadd.f32 %v4255, %v4301
        %s4304 = sld [smem:[#allocation7 + $0x39]]
        %v4305 = vstv %s4304
        %v4306 = vmul.f32 %v4305, %v4296
        %v4307 = vmul.f32 %v4305, %v4297
        %v4308 = vadd.f32 %v4260, %v4306
        %v4309 = vadd.f32 %v4261, %v4307
        %s4310 = sld [smem:[#allocation7 + $0x3a]]
        %v4311 = vstv %s4310
        %v4312 = vmul.f32 %v4311, %v4296
        %v4313 = vmul.f32 %v4311, %v4297
        %v4314 = vadd.f32 %v4266, %v4312
        %v4315 = vadd.f32 %v4267, %v4313
        %s4316 = sld [smem:[#allocation7 + $0x3b]]
        %v4317 = vstv %s4316
        %v4318 = vmul.f32 %v4317, %v4296
        %v4319 = vmul.f32 %v4317, %v4297
        %v4320 = vadd.f32 %v4272, %v4318
        %v4321 = vadd.f32 %v4273, %v4319
        %s4322 = sld [smem:[#allocation7 + $0x3c]]
        %v4323 = vstv %s4322
        %v4324 = vmul.f32 %v4323, %v4296
        %v4325 = vmul.f32 %v4323, %v4297
        %v4326 = vadd.f32 %v4278, %v4324
        %v4327 = vadd.f32 %v4279, %v4325
        %s4328 = sld [smem:[#allocation7 + $0x3d]]
        %v4329 = vstv %s4328
        %v4330 = vmul.f32 %v4329, %v4296
        %v4331 = vmul.f32 %v4329, %v4297
        %v4332 = vadd.f32 %v4284, %v4330
        %v4333 = vadd.f32 %v4285, %v4331
        %s4334 = sld [smem:[#allocation7 + $0x3e]]
        %v4335 = vstv %s4334
        %v4336 = vmul.f32 %v4335, %v4296
        %v4337 = vmul.f32 %v4335, %v4297
        %v4338 = vadd.f32 %v4290, %v4336
        %v4339 = vadd.f32 %v4291, %v4337
        %v4340 = vrot.slane %v2328, 7
        %v4341 = vrot.slane %v2329, 7
        %v4342 = vsel %vm239, %v4340, %v4341
        %v4343 = vsel %vm239, %v4341, %v4340
        %v4344 = vsel %vm235, %v4343, 0.0
        %v4345 = vsel %vm236, %v4342, 0.0
        %s4346 = sld [smem:[#allocation7 + $0xe]]
        %v4347 = vstv %s4346
        %v4348 = vmul.f32 %v4347, %v4344
        %v4349 = vmul.f32 %v4347, %v4345
        %v4350 = vadd.f32 %v4302, %v4348
        %v4351 = vadd.f32 %v4303, %v4349
        %s4352 = sld [smem:[#allocation7 + $0xf]]
        %v4353 = vstv %s4352
        %v4354 = vmul.f32 %v4353, %v4344
        %v4355 = vmul.f32 %v4353, %v4345
        %v4356 = vadd.f32 %v4308, %v4354
        %v4357 = vadd.f32 %v4309, %v4355
        %s4358 = sld [smem:[#allocation7 + $0x10]]
        %v4359 = vstv %s4358
        %v4360 = vmul.f32 %v4359, %v4344
        %v4361 = vmul.f32 %v4359, %v4345
        %v4362 = vadd.f32 %v4314, %v4360
        %v4363 = vadd.f32 %v4315, %v4361
        %s4364 = sld [smem:[#allocation7 + $0x11]]
        %v4365 = vstv %s4364
        %v4366 = vmul.f32 %v4365, %v4344
        %v4367 = vmul.f32 %v4365, %v4345
        %v4368 = vadd.f32 %v4320, %v4366
        %v4369 = vadd.f32 %v4321, %v4367
        %s4370 = sld [smem:[#allocation7 + $0x12]]
        %v4371 = vstv %s4370
        %v4372 = vmul.f32 %v4371, %v4344
        %v4373 = vmul.f32 %v4371, %v4345
        %v4374 = vadd.f32 %v4326, %v4372
        %v4375 = vadd.f32 %v4327, %v4373
        %s4376 = sld [smem:[#allocation7 + $0x13]]
        %v4377 = vstv %s4376
        %v4378 = vmul.f32 %v4377, %v4344
        %v4379 = vmul.f32 %v4377, %v4345
        %v4380 = vadd.f32 %v4332, %v4378
        %v4381 = vadd.f32 %v4333, %v4379
        %s4382 = sld [smem:[#allocation7 + $0x14]]
        %v4383 = vstv %s4382
        %v4384 = vmul.f32 %v4383, %v4344
        %v4385 = vmul.f32 %v4383, %v4345
        %v4386 = vadd.f32 %v4338, %v4384
        %v4387 = vadd.f32 %v4339, %v4385
        %v4388 = vrot.slane %v4154, 7
        %v4389 = vrot.slane %v4155, 7
        %v4390 = vsel %vm239, %v4388, %v4389
        %v4391 = vsel %vm239, %v4389, %v4388
        %v4392 = vsel %vm235, %v4391, 0.0
        %v4393 = vsel %vm236, %v4390, 0.0
        %s4394 = sld [smem:[#allocation7 + $0x3f]]
        %v4395 = vstv %s4394
        %v4396 = vmul.f32 %v4395, %v4392
        %v4397 = vmul.f32 %v4395, %v4393
        %v4398 = vadd.f32 %v4350, %v4396
        %v4399 = vadd.f32 %v4351, %v4397
        %s4400 = sld [smem:[#allocation7 + $0x40]]
        %v4401 = vstv %s4400
        %v4402 = vmul.f32 %v4401, %v4392
        %v4403 = vmul.f32 %v4401, %v4393
        %v4404 = vadd.f32 %v4356, %v4402
        %v4405 = vadd.f32 %v4357, %v4403
        %s4406 = sld [smem:[#allocation7 + $0x41]]
        %v4407 = vstv %s4406
        %v4408 = vmul.f32 %v4407, %v4392
        %v4409 = vmul.f32 %v4407, %v4393
        %v4410 = vadd.f32 %v4362, %v4408
        %v4411 = vadd.f32 %v4363, %v4409
        %s4412 = sld [smem:[#allocation7 + $0x42]]
        %v4413 = vstv %s4412
        %v4414 = vmul.f32 %v4413, %v4392
        %v4415 = vmul.f32 %v4413, %v4393
        %v4416 = vadd.f32 %v4368, %v4414
        %v4417 = vadd.f32 %v4369, %v4415
        %s4418 = sld [smem:[#allocation7 + $0x43]]
        %v4419 = vstv %s4418
        %v4420 = vmul.f32 %v4419, %v4392
        %v4421 = vmul.f32 %v4419, %v4393
        %v4422 = vadd.f32 %v4374, %v4420
        %v4423 = vadd.f32 %v4375, %v4421
        %s4424 = sld [smem:[#allocation7 + $0x44]]
        %v4425 = vstv %s4424
        %v4426 = vmul.f32 %v4425, %v4392
        %v4427 = vmul.f32 %v4425, %v4393
        %v4428 = vadd.f32 %v4380, %v4426
        %v4429 = vadd.f32 %v4381, %v4427
        %s4430 = sld [smem:[#allocation7 + $0x45]]
        %v4431 = vstv %s4430
        %v4432 = vmul.f32 %v4431, %v4392
        %v4433 = vmul.f32 %v4431, %v4393
        %v4434 = vadd.f32 %v4386, %v4432
        %v4435 = vadd.f32 %v4387, %v4433
        %s4436 = sld [smem:[#allocation7 + $0x15]]
        %v4437 = vstv %s4436
        %v4438 = vmul.f32 %v4437, %v2328
        %v4439 = vmul.f32 %v4437, %v2329
        %v4440 = vadd.f32 %v4398, %v4438
        %v4441 = vadd.f32 %v4399, %v4439
        %s4442 = sld [smem:[#allocation7 + $0x16]]
        %v4443 = vstv %s4442
        %v4444 = vmul.f32 %v4443, %v2328
        %v4445 = vmul.f32 %v4443, %v2329
        %v4446 = vadd.f32 %v4404, %v4444
        %v4447 = vadd.f32 %v4405, %v4445
        %s4448 = sld [smem:[#allocation7 + $0x17]]
        %v4449 = vstv %s4448
        %v4450 = vmul.f32 %v4449, %v2328
        %v4451 = vmul.f32 %v4449, %v2329
        %v4452 = vadd.f32 %v4410, %v4450
        %v4453 = vadd.f32 %v4411, %v4451
        %s4454 = sld [smem:[#allocation7 + $0x18]]
        %v4455 = vstv %s4454
        %v4456 = vmul.f32 %v4455, %v2328
        %v4457 = vmul.f32 %v4455, %v2329
        %v4458 = vadd.f32 %v4416, %v4456
        %v4459 = vadd.f32 %v4417, %v4457
        %s4460 = sld [smem:[#allocation7 + $0x19]]
        %v4461 = vstv %s4460
        %v4462 = vmul.f32 %v4461, %v2328
        %v4463 = vmul.f32 %v4461, %v2329
        %v4464 = vadd.f32 %v4422, %v4462
        %v4465 = vadd.f32 %v4423, %v4463
        %s4466 = sld [smem:[#allocation7 + $0x1a]]
        %v4467 = vstv %s4466
        %v4468 = vmul.f32 %v4467, %v2328
        %v4469 = vmul.f32 %v4467, %v2329
        %v4470 = vadd.f32 %v4428, %v4468
        %v4471 = vadd.f32 %v4429, %v4469
        %s4472 = sld [smem:[#allocation7 + $0x1b]]
        %v4473 = vstv %s4472
        %v4474 = vmul.f32 %v4473, %v2328
        %v4475 = vmul.f32 %v4473, %v2329
        %v4476 = vadd.f32 %v4434, %v4474
        %v4477 = vadd.f32 %v4435, %v4475
        %s4478 = sld [smem:[#allocation7 + $0x46]]
        %v4479 = vstv %s4478
        %v4480 = vmul.f32 %v4479, %v4154
        %v4481 = vmul.f32 %v4479, %v4155
        %v4482 = vadd.f32 %v4440, %v4480
        %v4483 = vadd.f32 %v4441, %v4481
        %s4484 = sld [smem:[#allocation7 + $0x47]]
        %v4485 = vstv %s4484
        %v4486 = vmul.f32 %v4485, %v4154
        %v4487 = vmul.f32 %v4485, %v4155
        %v4488 = vadd.f32 %v4446, %v4486
        %v4489 = vadd.f32 %v4447, %v4487
        %s4490 = sld [smem:[#allocation7 + $0x48]]
        %v4491 = vstv %s4490
        %v4492 = vmul.f32 %v4491, %v4154
        %v4493 = vmul.f32 %v4491, %v4155
        %v4494 = vadd.f32 %v4452, %v4492
        %v4495 = vadd.f32 %v4453, %v4493
        %s4496 = sld [smem:[#allocation7 + $0x49]]
        %v4497 = vstv %s4496
        %v4498 = vmul.f32 %v4497, %v4154
        %v4499 = vmul.f32 %v4497, %v4155
        %v4500 = vadd.f32 %v4458, %v4498
        %v4501 = vadd.f32 %v4459, %v4499
        %s4502 = sld [smem:[#allocation7 + $0x4a]]
        %v4503 = vstv %s4502
        %v4504 = vmul.f32 %v4503, %v4154
        %v4505 = vmul.f32 %v4503, %v4155
        %v4506 = vadd.f32 %v4464, %v4504
        %v4507 = vadd.f32 %v4465, %v4505
        %s4508 = sld [smem:[#allocation7 + $0x4b]]
        %v4509 = vstv %s4508
        %v4510 = vmul.f32 %v4509, %v4154
        %v4511 = vmul.f32 %v4509, %v4155
        %v4512 = vadd.f32 %v4470, %v4510
        %v4513 = vadd.f32 %v4471, %v4511
        %s4514 = sld [smem:[#allocation7 + $0x4c]]
        %v4515 = vstv %s4514
        %v4516 = vmul.f32 %v4515, %v4154
        %v4517 = vmul.f32 %v4515, %v4155
        %v4518 = vadd.f32 %v4476, %v4516
        %v4519 = vadd.f32 %v4477, %v4517
        %v4520 = vrot.slane %v2328, 1
        %v4521 = vrot.slane %v2329, 1
        %v4522 = vsel %vm386, %v4520, %v4521
        %v4523 = vsel %vm386, %v4521, %v4520
        %v4524 = vsel %vm382, %v4522, 0.0
        %v4525 = vsel %vm383, %v4523, 0.0
        %s4526 = sld [smem:[#allocation7 + $0x1c]]
        %v4527 = vstv %s4526
        %v4528 = vmul.f32 %v4527, %v4524
        %v4529 = vmul.f32 %v4527, %v4525
        %v4530 = vadd.f32 %v4482, %v4528
        %v4531 = vadd.f32 %v4483, %v4529
        %s4532 = sld [smem:[#allocation7 + $0x1d]]
        %v4533 = vstv %s4532
        %v4534 = vmul.f32 %v4533, %v4524
        %v4535 = vmul.f32 %v4533, %v4525
        %v4536 = vadd.f32 %v4488, %v4534
        %v4537 = vadd.f32 %v4489, %v4535
        %s4538 = sld [smem:[#allocation7 + $0x1e]]
        %v4539 = vstv %s4538
        %v4540 = vmul.f32 %v4539, %v4524
        %v4541 = vmul.f32 %v4539, %v4525
        %v4542 = vadd.f32 %v4494, %v4540
        %v4543 = vadd.f32 %v4495, %v4541
        %s4544 = sld [smem:[#allocation7 + $0x1f]]
        %v4545 = vstv %s4544
        %v4546 = vmul.f32 %v4545, %v4524
        %v4547 = vmul.f32 %v4545, %v4525
        %v4548 = vadd.f32 %v4500, %v4546
        %v4549 = vadd.f32 %v4501, %v4547
        %s4550 = sld [smem:[#allocation7 + $0x20]]
        %v4551 = vstv %s4550
        %v4552 = vmul.f32 %v4551, %v4524
        %v4553 = vmul.f32 %v4551, %v4525
        %v4554 = vadd.f32 %v4506, %v4552
        %v4555 = vadd.f32 %v4507, %v4553
        %s4556 = sld [smem:[#allocation7 + $0x21]]
        %v4557 = vstv %s4556
        %v4558 = vmul.f32 %v4557, %v4524
        %v4559 = vmul.f32 %v4557, %v4525
        %v4560 = vadd.f32 %v4512, %v4558
        %v4561 = vadd.f32 %v4513, %v4559
        %s4562 = sld [smem:[#allocation7 + $0x22]]
        %v4563 = vstv %s4562
        %v4564 = vmul.f32 %v4563, %v4524
        %v4565 = vmul.f32 %v4563, %v4525
        %v4566 = vadd.f32 %v4518, %v4564
        %v4567 = vadd.f32 %v4519, %v4565
        %v4568 = vrot.slane %v4154, 1
        %v4569 = vrot.slane %v4155, 1
        %v4570 = vsel %vm386, %v4568, %v4569
        %v4571 = vsel %vm386, %v4569, %v4568
        %v4572 = vsel %vm382, %v4570, 0.0
        %v4573 = vsel %vm383, %v4571, 0.0
        %s4574 = sld [smem:[#allocation7 + $0x4d]]
        %v4575 = vstv %s4574
        %v4576 = vmul.f32 %v4575, %v4572
        %v4577 = vmul.f32 %v4575, %v4573
        %v4578 = vadd.f32 %v4530, %v4576
        %v4579 = vadd.f32 %v4531, %v4577
        %s4580 = sld [smem:[#allocation7 + $0x4e]]
        %v4581 = vstv %s4580
        %v4582 = vmul.f32 %v4581, %v4572
        %v4583 = vmul.f32 %v4581, %v4573
        %v4584 = vadd.f32 %v4536, %v4582
        %v4585 = vadd.f32 %v4537, %v4583
        %s4586 = sld [smem:[#allocation7 + $0x4f]]
        %v4587 = vstv %s4586
        %v4588 = vmul.f32 %v4587, %v4572
        %v4589 = vmul.f32 %v4587, %v4573
        %v4590 = vadd.f32 %v4542, %v4588
        %v4591 = vadd.f32 %v4543, %v4589
        %s4592 = sld [smem:[#allocation7 + $0x50]]
        %v4593 = vstv %s4592
        %v4594 = vmul.f32 %v4593, %v4572
        %v4595 = vmul.f32 %v4593, %v4573
        %v4596 = vadd.f32 %v4548, %v4594
        %v4597 = vadd.f32 %v4549, %v4595
        %s4598 = sld [smem:[#allocation7 + $0x51]]
        %v4599 = vstv %s4598
        %v4600 = vmul.f32 %v4599, %v4572
        %v4601 = vmul.f32 %v4599, %v4573
        %v4602 = vadd.f32 %v4554, %v4600
        %v4603 = vadd.f32 %v4555, %v4601
        %s4604 = sld [smem:[#allocation7 + $0x52]]
        %v4605 = vstv %s4604
        %v4606 = vmul.f32 %v4605, %v4572
        %v4607 = vmul.f32 %v4605, %v4573
        %v4608 = vadd.f32 %v4560, %v4606
        %v4609 = vadd.f32 %v4561, %v4607
        %s4610 = sld [smem:[#allocation7 + $0x53]]
        %v4611 = vstv %s4610
        %v4612 = vmul.f32 %v4611, %v4572
        %v4613 = vmul.f32 %v4611, %v4573
        %v4614 = vadd.f32 %v4566, %v4612
        %v4615 = vadd.f32 %v4567, %v4613
        %vm4616 = vcmp.lt.s32.totalorder %v217, 14
        %vm4617 = vcmp.lt.s32.totalorder %v218, 14
        %v4618 = vrot.slane %v2328, 2
        %v4619 = vrot.slane %v2329, 2
        %vm4620 = vcmp.lt.s32.totalorder %v217, 6
        %v4621 = vsel %vm4620, %v4618, %v4619
        %v4622 = vsel %vm4620, %v4619, %v4618
        %v4623 = vsel %vm4616, %v4621, 0.0
        %v4624 = vsel %vm4617, %v4622, 0.0
        %s4625 = sld [smem:[#allocation7 + $0x23]]
        %v4626 = vstv %s4625
        %v4627 = vmul.f32 %v4626, %v4623
        %v4628 = vmul.f32 %v4626, %v4624
        %v4629 = vadd.f32 %v4578, %v4627
        %v4630 = vadd.f32 %v4579, %v4628
        %s4631 = sld [smem:[#allocation7 + $0x24]]
        %v4632 = vstv %s4631
        %v4633 = vmul.f32 %v4632, %v4623
        %v4634 = vmul.f32 %v4632, %v4624
        %v4635 = vadd.f32 %v4584, %v4633
        %v4636 = vadd.f32 %v4585, %v4634
        %s4637 = sld [smem:[#allocation7 + $0x25]]
        %v4638 = vstv %s4637
        %v4639 = vmul.f32 %v4638, %v4623
        %v4640 = vmul.f32 %v4638, %v4624
        %v4641 = vadd.f32 %v4590, %v4639
        %v4642 = vadd.f32 %v4591, %v4640
        %s4643 = sld [smem:[#allocation7 + $0x26]]
        %v4644 = vstv %s4643
        %v4645 = vmul.f32 %v4644, %v4623
        %v4646 = vmul.f32 %v4644, %v4624
        %v4647 = vadd.f32 %v4596, %v4645
        %v4648 = vadd.f32 %v4597, %v4646
        %s4649 = sld [smem:[#allocation7 + $0x27]]
        %v4650 = vstv %s4649
        %v4651 = vmul.f32 %v4650, %v4623
        %v4652 = vmul.f32 %v4650, %v4624
        %v4653 = vadd.f32 %v4602, %v4651
        %v4654 = vadd.f32 %v4603, %v4652
        %s4655 = sld [smem:[#allocation7 + $0x28]]
        %v4656 = vstv %s4655
        %v4657 = vmul.f32 %v4656, %v4623
        %v4658 = vmul.f32 %v4656, %v4624
        %v4659 = vadd.f32 %v4608, %v4657
        %v4660 = vadd.f32 %v4609, %v4658
        %s4661 = sld [smem:[#allocation7 + $0x29]]
        %v4662 = vstv %s4661
        %v4663 = vmul.f32 %v4662, %v4623
        %v4664 = vmul.f32 %v4662, %v4624
        %v4665 = vadd.f32 %v4614, %v4663
        %v4666 = vadd.f32 %v4615, %v4664
        %v4667 = vrot.slane %v4154, 2
        %v4668 = vrot.slane %v4155, 2
        %v4669 = vsel %vm4620, %v4667, %v4668
        %v4670 = vsel %vm4620, %v4668, %v4667
        %v4671 = vsel %vm4616, %v4669, 0.0
        %v4672 = vsel %vm4617, %v4670, 0.0
        %s4673 = sld [smem:[#allocation7 + $0x54]]
        %v4674 = vstv %s4673
        %v4675 = vmul.f32 %v4674, %v4671
        %v4676 = vmul.f32 %v4674, %v4672
        %v4677 = vadd.f32 %v4629, %v4675
        %v4678 = vadd.f32 %v4630, %v4676
        %s4679 = sld [smem:[#allocation7 + $0x55]]
        %v4680 = vstv %s4679
        %v4681 = vmul.f32 %v4680, %v4671
        %v4682 = vmul.f32 %v4680, %v4672
        %v4683 = vadd.f32 %v4635, %v4681
        %v4684 = vadd.f32 %v4636, %v4682
        %s4685 = sld [smem:[#allocation7 + $0x56]]
        %v4686 = vstv %s4685
        %v4687 = vmul.f32 %v4686, %v4671
        %v4688 = vmul.f32 %v4686, %v4672
        %v4689 = vadd.f32 %v4641, %v4687
        %v4690 = vadd.f32 %v4642, %v4688
        %s4691 = sld [smem:[#allocation7 + $0x57]]
        %v4692 = vstv %s4691
        %v4693 = vmul.f32 %v4692, %v4671
        %v4694 = vmul.f32 %v4692, %v4672
        %v4695 = vadd.f32 %v4647, %v4693
        %v4696 = vadd.f32 %v4648, %v4694
        %s4697 = sld [smem:[#allocation7 + $0x58]]
        %v4698 = vstv %s4697
        %v4699 = vmul.f32 %v4698, %v4671
        %v4700 = vmul.f32 %v4698, %v4672
        %v4701 = vadd.f32 %v4653, %v4699
        %v4702 = vadd.f32 %v4654, %v4700
        %s4703 = sld [smem:[#allocation7 + $0x59]]
        %v4704 = vstv %s4703
        %v4705 = vmul.f32 %v4704, %v4671
        %v4706 = vmul.f32 %v4704, %v4672
        %v4707 = vadd.f32 %v4659, %v4705
        %v4708 = vadd.f32 %v4660, %v4706
        %s4709 = sld [smem:[#allocation7 + $0x5a]]
        %v4710 = vstv %s4709
        %v4711 = vmul.f32 %v4710, %v4671
        %v4712 = vmul.f32 %v4710, %v4672
        %v4713 = vadd.f32 %v4665, %v4711
        %v4714 = vadd.f32 %v4666, %v4712
        %vm4715 = vcmp.lt.s32.totalorder %v217, 13
        %vm4716 = vcmp.lt.s32.totalorder %v218, 13
        %v4717 = vrot.slane %v2328, 3
        %v4718 = vrot.slane %v2329, 3
        %vm4719 = vcmp.lt.s32.totalorder %v217, 5
        %v4720 = vsel %vm4719, %v4717, %v4718
        %v4721 = vsel %vm4719, %v4718, %v4717
        %v4722 = vsel %vm4715, %v4720, 0.0
        %v4723 = vsel %vm4716, %v4721, 0.0
        %s4724 = sld [smem:[#allocation7 + $0x2a]]
        %v4725 = vstv %s4724
        %v4726 = vmul.f32 %v4725, %v4722
        %v4727 = vmul.f32 %v4725, %v4723
        %v4728 = vadd.f32 %v4677, %v4726
        %v4729 = vadd.f32 %v4678, %v4727
        %s4730 = sld [smem:[#allocation7 + $0x2b]]
        %v4731 = vstv %s4730
        %v4732 = vmul.f32 %v4731, %v4722
        %v4733 = vmul.f32 %v4731, %v4723
        %v4734 = vadd.f32 %v4683, %v4732
        %v4735 = vadd.f32 %v4684, %v4733
        %s4736 = sld [smem:[#allocation7 + $0x2c]]
        %v4737 = vstv %s4736
        %v4738 = vmul.f32 %v4737, %v4722
        %v4739 = vmul.f32 %v4737, %v4723
        %v4740 = vadd.f32 %v4689, %v4738
        %v4741 = vadd.f32 %v4690, %v4739
        %s4742 = sld [smem:[#allocation7 + $0x2d]]
        %v4743 = vstv %s4742
        %v4744 = vmul.f32 %v4743, %v4722
        %v4745 = vmul.f32 %v4743, %v4723
        %v4746 = vadd.f32 %v4695, %v4744
        %v4747 = vadd.f32 %v4696, %v4745
        %s4748 = sld [smem:[#allocation7 + $0x2e]]
        %v4749 = vstv %s4748
        %v4750 = vmul.f32 %v4749, %v4722
        %v4751 = vmul.f32 %v4749, %v4723
        %v4752 = vadd.f32 %v4701, %v4750
        %v4753 = vadd.f32 %v4702, %v4751
        %s4754 = sld [smem:[#allocation7 + $0x2f]]
        %v4755 = vstv %s4754
        %v4756 = vmul.f32 %v4755, %v4722
        %v4757 = vmul.f32 %v4755, %v4723
        %v4758 = vadd.f32 %v4707, %v4756
        %v4759 = vadd.f32 %v4708, %v4757
        %s4760 = sld [smem:[#allocation7 + $0x30]]
        %v4761 = vstv %s4760
        %v4762 = vmul.f32 %v4761, %v4722
        %v4763 = vmul.f32 %v4761, %v4723
        %v4764 = vadd.f32 %v4713, %v4762
        %v4765 = vadd.f32 %v4714, %v4763
        %v4766 = vrot.slane %v4154, 3
        %v4767 = vrot.slane %v4155, 3
        %v4768 = vsel %vm4719, %v4766, %v4767
        %v4769 = vsel %vm4719, %v4767, %v4766
        %v4770 = vsel %vm4715, %v4768, 0.0
        %v4771 = vsel %vm4716, %v4769, 0.0
        %s4772 = sld [smem:[#allocation7 + $0x5b]]
        %v4773 = vstv %s4772
        %v4774 = vmul.f32 %v4773, %v4770
        %v4775 = vmul.f32 %v4773, %v4771
        %v4776 = vadd.f32 %v4728, %v4774
        %v4777 = vadd.f32 %v4729, %v4775
        %s4778 = sld [smem:[#allocation7 + $0x5c]]
        %v4779 = vstv %s4778
        %v4780 = vmul.f32 %v4779, %v4770
        %v4781 = vmul.f32 %v4779, %v4771
        %v4782 = vadd.f32 %v4734, %v4780
        %v4783 = vadd.f32 %v4735, %v4781
        %s4784 = sld [smem:[#allocation7 + $0x5d]]
        %v4785 = vstv %s4784
        %v4786 = vmul.f32 %v4785, %v4770
        %v4787 = vmul.f32 %v4785, %v4771
        %v4788 = vadd.f32 %v4740, %v4786
        %v4789 = vadd.f32 %v4741, %v4787
        %s4790 = sld [smem:[#allocation7 + $0x5e]]
        %v4791 = vstv %s4790
        %v4792 = vmul.f32 %v4791, %v4770
        %v4793 = vmul.f32 %v4791, %v4771
        %v4794 = vadd.f32 %v4746, %v4792
        %v4795 = vadd.f32 %v4747, %v4793
        %s4796 = sld [smem:[#allocation7 + $0x5f]]
        %v4797 = vstv %s4796
        %v4798 = vmul.f32 %v4797, %v4770
        %v4799 = vmul.f32 %v4797, %v4771
        %v4800 = vadd.f32 %v4752, %v4798
        %v4801 = vadd.f32 %v4753, %v4799
        %s4802 = sld [smem:[#allocation7 + $0x60]]
        %v4803 = vstv %s4802
        %v4804 = vmul.f32 %v4803, %v4770
        %v4805 = vmul.f32 %v4803, %v4771
        %v4806 = vadd.f32 %v4758, %v4804
        %v4807 = vadd.f32 %v4759, %v4805
        %s4808 = sld [smem:[#allocation7 + $0x61]]
        %v4809 = vstv %s4808
        %v4810 = vmul.f32 %v4809, %v4770
        %v4811 = vmul.f32 %v4809, %v4771
        %v4812 = vadd.f32 %v4764, %v4810
        %v4813 = vadd.f32 %v4765, %v4811
        %vm4814 = vcmp.ge.s32.totalorder %v221, 3
        %4815 = vrot.lane.b32.xlu0 %v4776, 3
        %v4816 = vpop.permute.xlu0 %4815
        %4817 = vrot.lane.b32.xlu0 %v4777, 3
        %v4818 = vpop.permute.xlu0 %4817
        %v4819 = vsel %vm4814, %v4816, 0.0
        %v4820 = vsel %vm4814, %v4818, 0.0
        %vm4821 = vcmp.ge.s32.totalorder %v221, 2
        %4822 = vrot.lane.b32.xlu0 %v4782, 2
        %v4823 = vpop.permute.xlu0 %4822
        %4824 = vrot.lane.b32.xlu0 %v4783, 2
        %v4825 = vpop.permute.xlu0 %4824
        %v4826 = vsel %vm4821, %v4823, 0.0
        %v4827 = vsel %vm4821, %v4825, 0.0
        %v4828 = vadd.f32 %v4819, %v4826
        %v4829 = vadd.f32 %v4820, %v4827
        %4830 = vrot.lane.b32.xlu0 %v4788, 1
        %v4831 = vpop.permute.xlu0 %4830
        %4832 = vrot.lane.b32.xlu0 %v4789, 1
        %v4833 = vpop.permute.xlu0 %4832
        %v4834 = vsel %vm469, %v4831, 0.0
        %v4835 = vsel %vm469, %v4833, 0.0
        %v4836 = vadd.f32 %v4828, %v4834
        %v4837 = vadd.f32 %v4829, %v4835
        %v4838 = vadd.f32 %v4836, %v4794
        %v4839 = vadd.f32 %v4837, %v4795
        %4840 = vrot.lane.b32.xlu0 %v4800, 127
        %v4841 = vpop.permute.xlu0 %4840
        %4842 = vrot.lane.b32.xlu0 %v4801, 127
        %v4843 = vpop.permute.xlu0 %4842
        %v4844 = vsel %vm486, %v4841, 0.0
        %v4845 = vsel %vm486, %v4843, 0.0
        %v4846 = vadd.f32 %v4838, %v4844
        %v4847 = vadd.f32 %v4839, %v4845
        %vm4848 = vcmp.lt.s32.totalorder %v221, 14
        %4849 = vrot.lane.b32.xlu0 %v4806, 126
        %v4850 = vpop.permute.xlu0 %4849
        %4851 = vrot.lane.b32.xlu0 %v4807, 126
        %v4852 = vpop.permute.xlu0 %4851
        %v4853 = vsel %vm4848, %v4850, 0.0
        %v4854 = vsel %vm4848, %v4852, 0.0
        %v4855 = vadd.f32 %v4846, %v4853
        %v4856 = vadd.f32 %v4847, %v4854
        %vm4857 = vcmp.lt.s32.totalorder %v221, 13
        %4858 = vrot.lane.b32.xlu0 %v4812, 125
        %v4859 = vpop.permute.xlu0 %4858
        %4860 = vrot.lane.b32.xlu0 %v4813, 125
        %v4861 = vpop.permute.xlu0 %4860
        %v4862 = vsel %vm4857, %v4859, 0.0
        %v4863 = vsel %vm4857, %v4861, 0.0
        %v4864 = vadd.f32 %v4855, %v4862
        %v4865 = vadd.f32 %v4856, %v4863
        %v4866 = vadd.f32 %v4864, %v4865
        %v4867 = vrot.slane %v4866, 4
        %v4868 = vadd.f32 %v4866, %v4867
        %v4869 = vrot.slane %v4868, 2
        %v4870 = vadd.f32 %v4868, %v4869
        %v4871 = vrot.slane %v4870, 1
        %v4872 = vadd.f32 %v4870, %v4871
        %4873 = vmatprep.subr.mxu0 0.0
        %v4874 = vand.u32 %v229, 4294901760
        %4875 = vmatpush1.xpose.msra.mxu0 %v4874
        %4876 = vmatprep.subr.mxu0 0.0
        %4877 = vmatpush1.xpose.msra.mxu0 0.0
        %4878 = vmatprep.subr.mxu0 0.0
        %4879 = vmatpush1.xpose.msra.mxu0 0.0
        %4880 = vmatprep.subr.mxu0 0.0
        %4881 = vmatpush1.xpose.msra.mxu0 0.0
        %4882 = vmatprep.subr.mxu0 0.0
        %4883 = vmatpush1.xpose.msra.mxu0 0.0
        %4884 = vmatprep.subr.mxu0 0.0
        %4885 = vmatpush1.xpose.msra.mxu0 0.0
        %4886 = vmatprep.subr.mxu0 0.0
        %4887 = vmatpush1.xpose.msra.mxu0 0.0
        %4888 = vmatprep.subr.mxu0 0.0
        %4889 = vmatpush1.xpose.msra.mxu0 0.0
        %4890 = vmatprep.subr.mxu0 0.0
        %4891 = vmatpush1.xpose.msra.mxu0 0.0
        %4892 = vmatprep.subr.mxu0 0.0
        %4893 = vmatpush1.xpose.msra.mxu0 0.0
        %4894 = vmatprep.subr.mxu0 0.0
        %4895 = vmatpush1.xpose.msra.mxu0 0.0
        %4896 = vmatprep.subr.mxu0 0.0
        %4897 = vmatpush1.xpose.msra.mxu0 0.0
        %4898 = vmatprep.subr.mxu0 0.0
        %4899 = vmatpush1.xpose.msra.mxu0 0.0
        %4900 = vmatprep.subr.mxu0 0.0
        %4901 = vmatpush1.xpose.msra.mxu0 0.0
        %4902 = vmatprep.subr.mxu0 0.0
        %4903 = vmatpush1.xpose.msra.mxu0 0.0
        %4904 = vmatprep.subr.mxu0 0.0
        %4905 = vmatpush1.xpose.msra.mxu0 0.0
        %4906 = vmatprep.subr.mxu0 0.0
        %4907 = vmatpush1.xpose.msra.mxu0 0.0
        %4908 = vmatprep.subr.mxu0 0.0
        %4909 = vmatpush1.xpose.msra.mxu0 0.0
        %4910 = vmatprep.subr.mxu0 0.0
        %4911 = vmatpush1.xpose.msra.mxu0 0.0
        %4912 = vmatprep.subr.mxu0 0.0
        %4913 = vmatpush1.xpose.msra.mxu0 0.0
        %4914 = vmatprep.subr.mxu0 0.0
        %4915 = vmatpush1.xpose.msra.mxu0 0.0
        %4916 = vmatprep.subr.mxu0 0.0
        %4917 = vmatpush1.xpose.msra.mxu0 0.0
        %4918 = vmatprep.subr.mxu0 0.0
        %4919 = vmatpush1.xpose.msra.mxu0 0.0
        %4920 = vmatprep.subr.mxu0 0.0
        %4921 = vmatpush1.xpose.msra.mxu0 0.0
        %4922 = vmatprep.subr.mxu0 0.0
        %4923 = vmatpush1.xpose.msra.mxu0 0.0
        %4924 = vmatprep.subr.mxu0 0.0
        %4925 = vmatpush1.xpose.msra.mxu0 0.0
        %4926 = vmatprep.subr.mxu0 0.0
        %4927 = vmatpush1.xpose.msra.mxu0 0.0
        %4928 = vmatprep.subr.mxu0 0.0
        %4929 = vmatpush1.xpose.msra.mxu0 0.0
        %4930 = vmatprep.subr.mxu0 0.0
        %4931 = vmatpush1.xpose.msra.mxu0 0.0
        %4932 = vmatprep.subr.mxu0 0.0
        %4933 = vmatpush1.xpose.msra.mxu0 0.0
        %4934 = vmatprep.subr.mxu0 0.0
        %4935 = vmatpush1.xpose.msra.mxu0 0.0
        %4936 = vmatprep.subr.mxu0 0.0
        %4937 = vmatpush1.xpose.msra.mxu0 0.0
        %4938 = vmatprep.mubr.f32.mxu0 0.0
        %v4939 = vand.u32 %v4872, 4294901760
        %v4940 = vsub.f32 %v4872, %v4939
        %v4941 = vand.u32 %v4940, 4294901760
        %v4942 = vsub.f32 %v4940, %v4941
        %v4943 = vand.u32 %v4942, 4294901760
        %4944 = vmatmul.mubr.f32.gmra.mrb[0].mxu0 %v4943
        %v4945 = vpop.f32.mrb[0].mxu0
        %v4946 = vadd.f32 0.0, %v4945
        %v4947 = vpop.f32.mrb[0].mxu0
        %4948 = vdwg.mxu0
        %4949 = vmatprep.subr.mxu0 0.0
        %v4950 = vand.u32 %v229, 4294901760
        %v4951 = vsub.f32 %v229, %v4950
        %v4952 = vand.u32 %v4951, 4294901760
        %v4953 = vsub.f32 %v4951, %v4952
        %v4954 = vand.u32 %v4953, 4294901760
        %4955 = vmatpush1.xpose.msra.mxu0 %v4954
        %4956 = vmatprep.subr.mxu0 0.0
        %4957 = vmatpush1.xpose.msra.mxu0 0.0
        %4958 = vmatprep.subr.mxu0 0.0
        %4959 = vmatpush1.xpose.msra.mxu0 0.0
        %4960 = vmatprep.subr.mxu0 0.0
        %4961 = vmatpush1.xpose.msra.mxu0 0.0
        %4962 = vmatprep.subr.mxu0 0.0
        %4963 = vmatpush1.xpose.msra.mxu0 0.0
        %4964 = vmatprep.subr.mxu0 0.0
        %4965 = vmatpush1.xpose.msra.mxu0 0.0
        %4966 = vmatprep.subr.mxu0 0.0
        %4967 = vmatpush1.xpose.msra.mxu0 0.0
        %4968 = vmatprep.subr.mxu0 0.0
        %4969 = vmatpush1.xpose.msra.mxu0 0.0
        %4970 = vmatprep.subr.mxu0 0.0
        %4971 = vmatpush1.xpose.msra.mxu0 0.0
        %4972 = vmatprep.subr.mxu0 0.0
        %4973 = vmatpush1.xpose.msra.mxu0 0.0
        %4974 = vmatprep.subr.mxu0 0.0
        %4975 = vmatpush1.xpose.msra.mxu0 0.0
        %4976 = vmatprep.subr.mxu0 0.0
        %4977 = vmatpush1.xpose.msra.mxu0 0.0
        %4978 = vmatprep.subr.mxu0 0.0
        %4979 = vmatpush1.xpose.msra.mxu0 0.0
        %4980 = vmatprep.subr.mxu0 0.0
        %4981 = vmatpush1.xpose.msra.mxu0 0.0
        %4982 = vmatprep.subr.mxu0 0.0
        %4983 = vmatpush1.xpose.msra.mxu0 0.0
        %4984 = vmatprep.subr.mxu0 0.0
        %4985 = vmatpush1.xpose.msra.mxu0 0.0
        %4986 = vmatprep.subr.mxu0 0.0
        %4987 = vmatpush1.xpose.msra.mxu0 0.0
        %4988 = vmatprep.subr.mxu0 0.0
        %4989 = vmatpush1.xpose.msra.mxu0 0.0
        %4990 = vmatprep.subr.mxu0 0.0
        %4991 = vmatpush1.xpose.msra.mxu0 0.0
        %4992 = vmatprep.subr.mxu0 0.0
        %4993 = vmatpush1.xpose.msra.mxu0 0.0
        %4994 = vmatprep.subr.mxu0 0.0
        %4995 = vmatpush1.xpose.msra.mxu0 0.0
        %4996 = vmatprep.subr.mxu0 0.0
        %4997 = vmatpush1.xpose.msra.mxu0 0.0
        %4998 = vmatprep.subr.mxu0 0.0
        %4999 = vmatpush1.xpose.msra.mxu0 0.0
        %5000 = vmatprep.subr.mxu0 0.0
        %5001 = vmatpush1.xpose.msra.mxu0 0.0
        %5002 = vmatprep.subr.mxu0 0.0
        %5003 = vmatpush1.xpose.msra.mxu0 0.0
        %5004 = vmatprep.subr.mxu0 0.0
        %5005 = vmatpush1.xpose.msra.mxu0 0.0
        %5006 = vmatprep.subr.mxu0 0.0
        %5007 = vmatpush1.xpose.msra.mxu0 0.0
        %5008 = vmatprep.subr.mxu0 0.0
        %5009 = vmatpush1.xpose.msra.mxu0 0.0
        %5010 = vmatprep.subr.mxu0 0.0
        %5011 = vmatpush1.xpose.msra.mxu0 0.0
        %5012 = vmatprep.subr.mxu0 0.0
        %5013 = vmatpush1.xpose.msra.mxu0 0.0
        %5014 = vmatprep.subr.mxu0 0.0
        %5015 = vmatpush1.xpose.msra.mxu0 0.0
        %5016 = vmatprep.subr.mxu0 0.0
        %5017 = vmatpush1.xpose.msra.mxu0 0.0
        %5018 = vmatprep.mubr.f32.mxu0 0.0
        %v5019 = vand.u32 %v4872, 4294901760
        %5020 = vmatmul.mubr.f32.gmra.mrb[0].mxu0 %v5019
        %v5021 = vpop.f32.mrb[0].mxu0
        %v5022 = vadd.f32 %v4946, %v5021
        %v5023 = vpop.f32.mrb[0].mxu0
        %5024 = vdwg.mxu0
        %5025 = vmatprep.subr.mxu0 0.0
        %v5026 = vand.u32 %v229, 4294901760
        %v5027 = vsub.f32 %v229, %v5026
        %5028 = vmatpush1.xpose.msra.mxu0 %v5027
        %5029 = vmatprep.subr.mxu0 0.0
        %5030 = vmatpush1.xpose.msra.mxu0 0.0
        %5031 = vmatprep.subr.mxu0 0.0
        %5032 = vmatpush1.xpose.msra.mxu0 0.0
        %5033 = vmatprep.subr.mxu0 0.0
        %5034 = vmatpush1.xpose.msra.mxu0 0.0
        %5035 = vmatprep.subr.mxu0 0.0
        %5036 = vmatpush1.xpose.msra.mxu0 0.0
        %5037 = vmatprep.subr.mxu0 0.0
        %5038 = vmatpush1.xpose.msra.mxu0 0.0
        %5039 = vmatprep.subr.mxu0 0.0
        %5040 = vmatpush1.xpose.msra.mxu0 0.0
        %5041 = vmatprep.subr.mxu0 0.0
        %5042 = vmatpush1.xpose.msra.mxu0 0.0
        %5043 = vmatprep.subr.mxu0 0.0
        %5044 = vmatpush1.xpose.msra.mxu0 0.0
        %5045 = vmatprep.subr.mxu0 0.0
        %5046 = vmatpush1.xpose.msra.mxu0 0.0
        %5047 = vmatprep.subr.mxu0 0.0
        %5048 = vmatpush1.xpose.msra.mxu0 0.0
        %5049 = vmatprep.subr.mxu0 0.0
        %5050 = vmatpush1.xpose.msra.mxu0 0.0
        %5051 = vmatprep.subr.mxu0 0.0
        %5052 = vmatpush1.xpose.msra.mxu0 0.0
        %5053 = vmatprep.subr.mxu0 0.0
        %5054 = vmatpush1.xpose.msra.mxu0 0.0
        %5055 = vmatprep.subr.mxu0 0.0
        %5056 = vmatpush1.xpose.msra.mxu0 0.0
        %5057 = vmatprep.subr.mxu0 0.0
        %5058 = vmatpush1.xpose.msra.mxu0 0.0
        %5059 = vmatprep.subr.mxu0 0.0
        %5060 = vmatpush1.xpose.msra.mxu0 0.0
        %5061 = vmatprep.subr.mxu0 0.0
        %5062 = vmatpush1.xpose.msra.mxu0 0.0
        %5063 = vmatprep.subr.mxu0 0.0
        %5064 = vmatpush1.xpose.msra.mxu0 0.0
        %5065 = vmatprep.subr.mxu0 0.0
        %5066 = vmatpush1.xpose.msra.mxu0 0.0
        %5067 = vmatprep.subr.mxu0 0.0
        %5068 = vmatpush1.xpose.msra.mxu0 0.0
        %5069 = vmatprep.subr.mxu0 0.0
        %5070 = vmatpush1.xpose.msra.mxu0 0.0
        %5071 = vmatprep.subr.mxu0 0.0
        %5072 = vmatpush1.xpose.msra.mxu0 0.0
        %5073 = vmatprep.subr.mxu0 0.0
        %5074 = vmatpush1.xpose.msra.mxu0 0.0
        %5075 = vmatprep.subr.mxu0 0.0
        %5076 = vmatpush1.xpose.msra.mxu0 0.0
        %5077 = vmatprep.subr.mxu0 0.0
        %5078 = vmatpush1.xpose.msra.mxu0 0.0
        %5079 = vmatprep.subr.mxu0 0.0
        %5080 = vmatpush1.xpose.msra.mxu0 0.0
        %5081 = vmatprep.subr.mxu0 0.0
        %5082 = vmatpush1.xpose.msra.mxu0 0.0
        %5083 = vmatprep.subr.mxu0 0.0
        %5084 = vmatpush1.xpose.msra.mxu0 0.0
        %5085 = vmatprep.subr.mxu0 0.0
        %5086 = vmatpush1.xpose.msra.mxu0 0.0
        %5087 = vmatprep.subr.mxu0 0.0
        %5088 = vmatpush1.xpose.msra.mxu0 0.0
        %5089 = vmatprep.subr.mxu0 0.0
        %5090 = vmatpush1.xpose.msra.mxu0 0.0
        %5091 = vmatprep.mubr.f32.mxu0 0.0
        %v5092 = vand.u32 %v4872, 4294901760
        %v5093 = vsub.f32 %v4872, %v5092
        %5094 = vmatmul.mubr.f32.gmra.mrb[0].mxu0 %v5093
        %v5095 = vpop.f32.mrb[0].mxu0
        %v5096 = vadd.f32 %v5022, %v5095
        %v5097 = vpop.f32.mrb[0].mxu0
        %5098 = vdwg.mxu0
        %5099 = vmatprep.subr.mxu0 0.0
        %v5100 = vand.u32 %v229, 4294901760
        %5101 = vmatpush1.xpose.msra.mxu0 %v5100
        %5102 = vmatprep.subr.mxu0 0.0
        %5103 = vmatpush1.xpose.msra.mxu0 0.0
        %5104 = vmatprep.subr.mxu0 0.0
        %5105 = vmatpush1.xpose.msra.mxu0 0.0
        %5106 = vmatprep.subr.mxu0 0.0
        %5107 = vmatpush1.xpose.msra.mxu0 0.0
        %5108 = vmatprep.subr.mxu0 0.0
        %5109 = vmatpush1.xpose.msra.mxu0 0.0
        %5110 = vmatprep.subr.mxu0 0.0
        %5111 = vmatpush1.xpose.msra.mxu0 0.0
        %5112 = vmatprep.subr.mxu0 0.0
        %5113 = vmatpush1.xpose.msra.mxu0 0.0
        %5114 = vmatprep.subr.mxu0 0.0
        %5115 = vmatpush1.xpose.msra.mxu0 0.0
        %5116 = vmatprep.subr.mxu0 0.0
        %5117 = vmatpush1.xpose.msra.mxu0 0.0
        %5118 = vmatprep.subr.mxu0 0.0
        %5119 = vmatpush1.xpose.msra.mxu0 0.0
        %5120 = vmatprep.subr.mxu0 0.0
        %5121 = vmatpush1.xpose.msra.mxu0 0.0
        %5122 = vmatprep.subr.mxu0 0.0
        %5123 = vmatpush1.xpose.msra.mxu0 0.0
        %5124 = vmatprep.subr.mxu0 0.0
        %5125 = vmatpush1.xpose.msra.mxu0 0.0
        %5126 = vmatprep.subr.mxu0 0.0
        %5127 = vmatpush1.xpose.msra.mxu0 0.0
        %5128 = vmatprep.subr.mxu0 0.0
        %5129 = vmatpush1.xpose.msra.mxu0 0.0
        %5130 = vmatprep.subr.mxu0 0.0
        %5131 = vmatpush1.xpose.msra.mxu0 0.0
        %5132 = vmatprep.subr.mxu0 0.0
        %5133 = vmatpush1.xpose.msra.mxu0 0.0
        %5134 = vmatprep.subr.mxu0 0.0
        %5135 = vmatpush1.xpose.msra.mxu0 0.0
        %5136 = vmatprep.subr.mxu0 0.0
        %5137 = vmatpush1.xpose.msra.mxu0 0.0
        %5138 = vmatprep.subr.mxu0 0.0
        %5139 = vmatpush1.xpose.msra.mxu0 0.0
        %5140 = vmatprep.subr.mxu0 0.0
        %5141 = vmatpush1.xpose.msra.mxu0 0.0
        %5142 = vmatprep.subr.mxu0 0.0
        %5143 = vmatpush1.xpose.msra.mxu0 0.0
        %5144 = vmatprep.subr.mxu0 0.0
        %5145 = vmatpush1.xpose.msra.mxu0 0.0
        %5146 = vmatprep.subr.mxu0 0.0
        %5147 = vmatpush1.xpose.msra.mxu0 0.0
        %5148 = vmatprep.subr.mxu0 0.0
        %5149 = vmatpush1.xpose.msra.mxu0 0.0
        %5150 = vmatprep.subr.mxu0 0.0
        %5151 = vmatpush1.xpose.msra.mxu0 0.0
        %5152 = vmatprep.subr.mxu0 0.0
        %5153 = vmatpush1.xpose.msra.mxu0 0.0
        %5154 = vmatprep.subr.mxu0 0.0
        %5155 = vmatpush1.xpose.msra.mxu0 0.0
        %5156 = vmatprep.subr.mxu0 0.0
        %5157 = vmatpush1.xpose.msra.mxu0 0.0
        %5158 = vmatprep.subr.mxu0 0.0
        %5159 = vmatpush1.xpose.msra.mxu0 0.0
        %5160 = vmatprep.subr.mxu0 0.0
        %5161 = vmatpush1.xpose.msra.mxu0 0.0
        %5162 = vmatprep.subr.mxu0 0.0
        %5163 = vmatpush1.xpose.msra.mxu0 0.0
        %5164 = vmatprep.mubr.f32.mxu0 0.0
        %v5165 = vand.u32 %v4872, 4294901760
        %v5166 = vsub.f32 %v4872, %v5165
        %v5167 = vand.u32 %v5166, 4294901760
        %5168 = vmatmul.mubr.f32.gmra.mrb[0].mxu0 %v5167
        %v5169 = vpop.f32.mrb[0].mxu0
        %v5170 = vadd.f32 %v5096, %v5169
        %v5171 = vpop.f32.mrb[0].mxu0
        %5172 = vdwg.mxu0
        %5173 = vmatprep.subr.mxu0 0.0
        %v5174 = vand.u32 %v229, 4294901760
        %v5175 = vsub.f32 %v229, %v5174
        %v5176 = vand.u32 %v5175, 4294901760
        %5177 = vmatpush1.xpose.msra.mxu0 %v5176
        %5178 = vmatprep.subr.mxu0 0.0
        %5179 = vmatpush1.xpose.msra.mxu0 0.0
        %5180 = vmatprep.subr.mxu0 0.0
        %5181 = vmatpush1.xpose.msra.mxu0 0.0
        %5182 = vmatprep.subr.mxu0 0.0
        %5183 = vmatpush1.xpose.msra.mxu0 0.0
        %5184 = vmatprep.subr.mxu0 0.0
        %5185 = vmatpush1.xpose.msra.mxu0 0.0
        %5186 = vmatprep.subr.mxu0 0.0
        %5187 = vmatpush1.xpose.msra.mxu0 0.0
        %5188 = vmatprep.subr.mxu0 0.0
        %5189 = vmatpush1.xpose.msra.mxu0 0.0
        %5190 = vmatprep.subr.mxu0 0.0
        %5191 = vmatpush1.xpose.msra.mxu0 0.0
        %5192 = vmatprep.subr.mxu0 0.0
        %5193 = vmatpush1.xpose.msra.mxu0 0.0
        %5194 = vmatprep.subr.mxu0 0.0
        %5195 = vmatpush1.xpose.msra.mxu0 0.0
        %5196 = vmatprep.subr.mxu0 0.0
        %5197 = vmatpush1.xpose.msra.mxu0 0.0
        %5198 = vmatprep.subr.mxu0 0.0
        %5199 = vmatpush1.xpose.msra.mxu0 0.0
        %5200 = vmatprep.subr.mxu0 0.0
        %5201 = vmatpush1.xpose.msra.mxu0 0.0
        %5202 = vmatprep.subr.mxu0 0.0
        %5203 = vmatpush1.xpose.msra.mxu0 0.0
        %5204 = vmatprep.subr.mxu0 0.0
        %5205 = vmatpush1.xpose.msra.mxu0 0.0
        %5206 = vmatprep.subr.mxu0 0.0
        %5207 = vmatpush1.xpose.msra.mxu0 0.0
        %5208 = vmatprep.subr.mxu0 0.0
        %5209 = vmatpush1.xpose.msra.mxu0 0.0
        %5210 = vmatprep.subr.mxu0 0.0
        %5211 = vmatpush1.xpose.msra.mxu0 0.0
        %5212 = vmatprep.subr.mxu0 0.0
        %5213 = vmatpush1.xpose.msra.mxu0 0.0
        %5214 = vmatprep.subr.mxu0 0.0
        %5215 = vmatpush1.xpose.msra.mxu0 0.0
        %5216 = vmatprep.subr.mxu0 0.0
        %5217 = vmatpush1.xpose.msra.mxu0 0.0
        %5218 = vmatprep.subr.mxu0 0.0
        %5219 = vmatpush1.xpose.msra.mxu0 0.0
        %5220 = vmatprep.subr.mxu0 0.0
        %5221 = vmatpush1.xpose.msra.mxu0 0.0
        %5222 = vmatprep.subr.mxu0 0.0
        %5223 = vmatpush1.xpose.msra.mxu0 0.0
        %5224 = vmatprep.subr.mxu0 0.0
        %5225 = vmatpush1.xpose.msra.mxu0 0.0
        %5226 = vmatprep.subr.mxu0 0.0
        %5227 = vmatpush1.xpose.msra.mxu0 0.0
        %5228 = vmatprep.subr.mxu0 0.0
        %5229 = vmatpush1.xpose.msra.mxu0 0.0
        %5230 = vmatprep.subr.mxu0 0.0
        %5231 = vmatpush1.xpose.msra.mxu0 0.0
        %5232 = vmatprep.subr.mxu0 0.0
        %5233 = vmatpush1.xpose.msra.mxu0 0.0
        %5234 = vmatprep.subr.mxu0 0.0
        %5235 = vmatpush1.xpose.msra.mxu0 0.0
        %5236 = vmatprep.subr.mxu0 0.0
        %5237 = vmatpush1.xpose.msra.mxu0 0.0
        %5238 = vmatprep.subr.mxu0 0.0
        %5239 = vmatpush1.xpose.msra.mxu0 0.0
        %5240 = vmatprep.mubr.f32.mxu0 0.0
        %v5241 = vand.u32 %v4872, 4294901760
        %5242 = vmatmul.mubr.f32.gmra.mrb[0].mxu0 %v5241
        %v5243 = vpop.f32.mrb[0].mxu0
        %v5244 = vadd.f32 %v5170, %v5243
        %v5245 = vpop.f32.mrb[0].mxu0
        %5246 = vdwg.mxu0
        %5247 = vmatprep.subr.mxu0 0.0
        %v5248 = vand.u32 %v229, 4294901760
        %5249 = vmatpush1.xpose.msra.mxu0 %v5248
        %5250 = vmatprep.subr.mxu0 0.0
        %5251 = vmatpush1.xpose.msra.mxu0 0.0
        %5252 = vmatprep.subr.mxu0 0.0
        %5253 = vmatpush1.xpose.msra.mxu0 0.0
        %5254 = vmatprep.subr.mxu0 0.0
        %5255 = vmatpush1.xpose.msra.mxu0 0.0
        %5256 = vmatprep.subr.mxu0 0.0
        %5257 = vmatpush1.xpose.msra.mxu0 0.0
        %5258 = vmatprep.subr.mxu0 0.0
        %5259 = vmatpush1.xpose.msra.mxu0 0.0
        %5260 = vmatprep.subr.mxu0 0.0
        %5261 = vmatpush1.xpose.msra.mxu0 0.0
        %5262 = vmatprep.subr.mxu0 0.0
        %5263 = vmatpush1.xpose.msra.mxu0 0.0
        %5264 = vmatprep.subr.mxu0 0.0
        %5265 = vmatpush1.xpose.msra.mxu0 0.0
        %5266 = vmatprep.subr.mxu0 0.0
        %5267 = vmatpush1.xpose.msra.mxu0 0.0
        %5268 = vmatprep.subr.mxu0 0.0
        %5269 = vmatpush1.xpose.msra.mxu0 0.0
        %5270 = vmatprep.subr.mxu0 0.0
        %5271 = vmatpush1.xpose.msra.mxu0 0.0
        %5272 = vmatprep.subr.mxu0 0.0
        %5273 = vmatpush1.xpose.msra.mxu0 0.0
        %5274 = vmatprep.subr.mxu0 0.0
        %5275 = vmatpush1.xpose.msra.mxu0 0.0
        %5276 = vmatprep.subr.mxu0 0.0
        %5277 = vmatpush1.xpose.msra.mxu0 0.0
        %5278 = vmatprep.subr.mxu0 0.0
        %5279 = vmatpush1.xpose.msra.mxu0 0.0
        %5280 = vmatprep.subr.mxu0 0.0
        %5281 = vmatpush1.xpose.msra.mxu0 0.0
        %5282 = vmatprep.subr.mxu0 0.0
        %5283 = vmatpush1.xpose.msra.mxu0 0.0
        %5284 = vmatprep.subr.mxu0 0.0
        %5285 = vmatpush1.xpose.msra.mxu0 0.0
        %5286 = vmatprep.subr.mxu0 0.0
        %5287 = vmatpush1.xpose.msra.mxu0 0.0
        %5288 = vmatprep.subr.mxu0 0.0
        %5289 = vmatpush1.xpose.msra.mxu0 0.0
        %5290 = vmatprep.subr.mxu0 0.0
        %5291 = vmatpush1.xpose.msra.mxu0 0.0
        %5292 = vmatprep.subr.mxu0 0.0
        %5293 = vmatpush1.xpose.msra.mxu0 0.0
        %5294 = vmatprep.subr.mxu0 0.0
        %5295 = vmatpush1.xpose.msra.mxu0 0.0
        %5296 = vmatprep.subr.mxu0 0.0
        %5297 = vmatpush1.xpose.msra.mxu0 0.0
        %5298 = vmatprep.subr.mxu0 0.0
        %5299 = vmatpush1.xpose.msra.mxu0 0.0
        %5300 = vmatprep.subr.mxu0 0.0
        %5301 = vmatpush1.xpose.msra.mxu0 0.0
        %5302 = vmatprep.subr.mxu0 0.0
        %5303 = vmatpush1.xpose.msra.mxu0 0.0
        %5304 = vmatprep.subr.mxu0 0.0
        %5305 = vmatpush1.xpose.msra.mxu0 0.0
        %5306 = vmatprep.subr.mxu0 0.0
        %5307 = vmatpush1.xpose.msra.mxu0 0.0
        %5308 = vmatprep.subr.mxu0 0.0
        %5309 = vmatpush1.xpose.msra.mxu0 0.0
        %5310 = vmatprep.subr.mxu0 0.0
        %5311 = vmatpush1.xpose.msra.mxu0 0.0
        %5312 = vmatprep.mubr.f32.mxu0 0.0
        %v5313 = vand.u32 %v4872, 4294901760
        %5314 = vmatmul.mubr.f32.gmra.mrb[0].mxu0 %v5313
        %v5315 = vpop.f32.mrb[0].mxu0
        %v5316 = vadd.f32 %v5244, %v5315
        %v5317 = vpop.f32.mrb[0].mxu0
        %5318 = vdwg.mxu0
        %v5320 = vsel %vm956, %v5316, 0
        %5322 = vmatprep.subr.mxu0 0.0
        %v5323 = vand.u32 %v229, 4294901760
        %5324 = vmatpush1.msra.mxu0 %v5323
        %5325 = vmatprep.subr.mxu0 0.0
        %5326 = vmatpush1.msra.mxu0 0.0
        %5327 = vmatprep.subr.mxu0 0.0
        %5328 = vmatpush1.msra.mxu0 0.0
        %5329 = vmatprep.subr.mxu0 0.0
        %5330 = vmatpush1.msra.mxu0 0.0
        %5331 = vmatprep.subr.mxu0 0.0
        %5332 = vmatpush1.msra.mxu0 0.0
        %5333 = vmatprep.subr.mxu0 0.0
        %5334 = vmatpush1.msra.mxu0 0.0
        %5335 = vmatprep.subr.mxu0 0.0
        %5336 = vmatpush1.msra.mxu0 0.0
        %5337 = vmatprep.subr.mxu0 0.0
        %5338 = vmatpush1.msra.mxu0 0.0
        %5339 = vmatprep.subr.mxu0 0.0
        %5340 = vmatpush1.msra.mxu0 0.0
        %5341 = vmatprep.subr.mxu0 0.0
        %5342 = vmatpush1.msra.mxu0 0.0
        %5343 = vmatprep.subr.mxu0 0.0
        %5344 = vmatpush1.msra.mxu0 0.0
        %5345 = vmatprep.subr.mxu0 0.0
        %5346 = vmatpush1.msra.mxu0 0.0
        %5347 = vmatprep.subr.mxu0 0.0
        %5348 = vmatpush1.msra.mxu0 0.0
        %5349 = vmatprep.subr.mxu0 0.0
        %5350 = vmatpush1.msra.mxu0 0.0
        %5351 = vmatprep.subr.mxu0 0.0
        %5352 = vmatpush1.msra.mxu0 0.0
        %5353 = vmatprep.subr.mxu0 0.0
        %5354 = vmatpush1.msra.mxu0 0.0
        %5355 = vmatprep.subr.mxu0 0.0
        %5356 = vmatpush1.msra.mxu0 0.0
        %5357 = vmatprep.subr.mxu0 0.0
        %5358 = vmatpush1.msra.mxu0 0.0
        %5359 = vmatprep.subr.mxu0 0.0
        %5360 = vmatpush1.msra.mxu0 0.0
        %5361 = vmatprep.subr.mxu0 0.0
        %5362 = vmatpush1.msra.mxu0 0.0
        %5363 = vmatprep.subr.mxu0 0.0
        %5364 = vmatpush1.msra.mxu0 0.0
        %5365 = vmatprep.subr.mxu0 0.0
        %5366 = vmatpush1.msra.mxu0 0.0
        %5367 = vmatprep.subr.mxu0 0.0
        %5368 = vmatpush1.msra.mxu0 0.0
        %5369 = vmatprep.subr.mxu0 0.0
        %5370 = vmatpush1.msra.mxu0 0.0
        %5371 = vmatprep.subr.mxu0 0.0
        %5372 = vmatpush1.msra.mxu0 0.0
        %5373 = vmatprep.subr.mxu0 0.0
        %5374 = vmatpush1.msra.mxu0 0.0
        %5375 = vmatprep.subr.mxu0 0.0
        %5376 = vmatpush1.msra.mxu0 0.0
        %5377 = vmatprep.subr.mxu0 0.0
        %5378 = vmatpush1.msra.mxu0 0.0
        %5379 = vmatprep.subr.mxu0 0.0
        %5380 = vmatpush1.msra.mxu0 0.0
        %5381 = vmatprep.subr.mxu0 0.0
        %5382 = vmatpush1.msra.mxu0 0.0
        %5383 = vmatprep.subr.mxu0 0.0
        %5384 = vmatpush1.msra.mxu0 0.0
        %5385 = vmatprep.subr.mxu0 0.0
        %5386 = vmatpush1.msra.mxu0 0.0
        %5387 = vmatprep.mubr.f32.mxu0 0.0
        %v5388 = vand.u32 %v5320, 4294901760
        %v5389 = vsub.f32 %v5320, %v5388
        %v5390 = vand.u32 %v5389, 4294901760
        %v5391 = vsub.f32 %v5389, %v5390
        %v5392 = vand.u32 %v5391, 4294901760
        %5393 = vmatmul.mubr.f32.gmra.mrb[0].mxu0 %v5392
        %v5394 = vpop.f32.mrb[0].mxu0
        %v5395 = vadd.f32 0.0, %v5394
        %v5396 = vpop.f32.mrb[0].mxu0
        %5397 = vdwg.mxu0
        %5398 = vmatprep.subr.mxu0 0.0
        %v5399 = vand.u32 %v229, 4294901760
        %v5400 = vsub.f32 %v229, %v5399
        %v5401 = vand.u32 %v5400, 4294901760
        %v5402 = vsub.f32 %v5400, %v5401
        %v5403 = vand.u32 %v5402, 4294901760
        %5404 = vmatpush1.msra.mxu0 %v5403
        %5405 = vmatprep.subr.mxu0 0.0
        %5406 = vmatpush1.msra.mxu0 0.0
        %5407 = vmatprep.subr.mxu0 0.0
        %5408 = vmatpush1.msra.mxu0 0.0
        %5409 = vmatprep.subr.mxu0 0.0
        %5410 = vmatpush1.msra.mxu0 0.0
        %5411 = vmatprep.subr.mxu0 0.0
        %5412 = vmatpush1.msra.mxu0 0.0
        %5413 = vmatprep.subr.mxu0 0.0
        %5414 = vmatpush1.msra.mxu0 0.0
        %5415 = vmatprep.subr.mxu0 0.0
        %5416 = vmatpush1.msra.mxu0 0.0
        %5417 = vmatprep.subr.mxu0 0.0
        %5418 = vmatpush1.msra.mxu0 0.0
        %5419 = vmatprep.subr.mxu0 0.0
        %5420 = vmatpush1.msra.mxu0 0.0
        %5421 = vmatprep.subr.mxu0 0.0
        %5422 = vmatpush1.msra.mxu0 0.0
        %5423 = vmatprep.subr.mxu0 0.0
        %5424 = vmatpush1.msra.mxu0 0.0
        %5425 = vmatprep.subr.mxu0 0.0
        %5426 = vmatpush1.msra.mxu0 0.0
        %5427 = vmatprep.subr.mxu0 0.0
        %5428 = vmatpush1.msra.mxu0 0.0
        %5429 = vmatprep.subr.mxu0 0.0
        %5430 = vmatpush1.msra.mxu0 0.0
        %5431 = vmatprep.subr.mxu0 0.0
        %5432 = vmatpush1.msra.mxu0 0.0
        %5433 = vmatprep.subr.mxu0 0.0
        %5434 = vmatpush1.msra.mxu0 0.0
        %5435 = vmatprep.subr.mxu0 0.0
        %5436 = vmatpush1.msra.mxu0 0.0
        %5437 = vmatprep.subr.mxu0 0.0
        %5438 = vmatpush1.msra.mxu0 0.0
        %5439 = vmatprep.subr.mxu0 0.0
        %5440 = vmatpush1.msra.mxu0 0.0
        %5441 = vmatprep.subr.mxu0 0.0
        %5442 = vmatpush1.msra.mxu0 0.0
        %5443 = vmatprep.subr.mxu0 0.0
        %5444 = vmatpush1.msra.mxu0 0.0
        %5445 = vmatprep.subr.mxu0 0.0
        %5446 = vmatpush1.msra.mxu0 0.0
        %5447 = vmatprep.subr.mxu0 0.0
        %5448 = vmatpush1.msra.mxu0 0.0
        %5449 = vmatprep.subr.mxu0 0.0
        %5450 = vmatpush1.msra.mxu0 0.0
        %5451 = vmatprep.subr.mxu0 0.0
        %5452 = vmatpush1.msra.mxu0 0.0
        %5453 = vmatprep.subr.mxu0 0.0
        %5454 = vmatpush1.msra.mxu0 0.0
        %5455 = vmatprep.subr.mxu0 0.0
        %5456 = vmatpush1.msra.mxu0 0.0
        %5457 = vmatprep.subr.mxu0 0.0
        %5458 = vmatpush1.msra.mxu0 0.0
        %5459 = vmatprep.subr.mxu0 0.0
        %5460 = vmatpush1.msra.mxu0 0.0
        %5461 = vmatprep.subr.mxu0 0.0
        %5462 = vmatpush1.msra.mxu0 0.0
        %5463 = vmatprep.subr.mxu0 0.0
        %5464 = vmatpush1.msra.mxu0 0.0
        %5465 = vmatprep.subr.mxu0 0.0
        %5466 = vmatpush1.msra.mxu0 0.0
        %5467 = vmatprep.mubr.f32.mxu0 0.0
        %v5468 = vand.u32 %v5320, 4294901760
        %5469 = vmatmul.mubr.f32.gmra.mrb[0].mxu0 %v5468
        %v5470 = vpop.f32.mrb[0].mxu0
        %v5471 = vadd.f32 %v5395, %v5470
        %v5472 = vpop.f32.mrb[0].mxu0
        %5473 = vdwg.mxu0
        %5474 = vmatprep.subr.mxu0 0.0
        %v5475 = vand.u32 %v229, 4294901760
        %v5476 = vsub.f32 %v229, %v5475
        %5477 = vmatpush1.msra.mxu0 %v5476
        %5478 = vmatprep.subr.mxu0 0.0
        %5479 = vmatpush1.msra.mxu0 0.0
        %5480 = vmatprep.subr.mxu0 0.0
        %5481 = vmatpush1.msra.mxu0 0.0
        %5482 = vmatprep.subr.mxu0 0.0
        %5483 = vmatpush1.msra.mxu0 0.0
        %5484 = vmatprep.subr.mxu0 0.0
        %5485 = vmatpush1.msra.mxu0 0.0
        %5486 = vmatprep.subr.mxu0 0.0
        %5487 = vmatpush1.msra.mxu0 0.0
        %5488 = vmatprep.subr.mxu0 0.0
        %5489 = vmatpush1.msra.mxu0 0.0
        %5490 = vmatprep.subr.mxu0 0.0
        %5491 = vmatpush1.msra.mxu0 0.0
        %5492 = vmatprep.subr.mxu0 0.0
        %5493 = vmatpush1.msra.mxu0 0.0
        %5494 = vmatprep.subr.mxu0 0.0
        %5495 = vmatpush1.msra.mxu0 0.0
        %5496 = vmatprep.subr.mxu0 0.0
        %5497 = vmatpush1.msra.mxu0 0.0
        %5498 = vmatprep.subr.mxu0 0.0
        %5499 = vmatpush1.msra.mxu0 0.0
        %5500 = vmatprep.subr.mxu0 0.0
        %5501 = vmatpush1.msra.mxu0 0.0
        %5502 = vmatprep.subr.mxu0 0.0
        %5503 = vmatpush1.msra.mxu0 0.0
        %5504 = vmatprep.subr.mxu0 0.0
        %5505 = vmatpush1.msra.mxu0 0.0
        %5506 = vmatprep.subr.mxu0 0.0
        %5507 = vmatpush1.msra.mxu0 0.0
        %5508 = vmatprep.subr.mxu0 0.0
        %5509 = vmatpush1.msra.mxu0 0.0
        %5510 = vmatprep.subr.mxu0 0.0
        %5511 = vmatpush1.msra.mxu0 0.0
        %5512 = vmatprep.subr.mxu0 0.0
        %5513 = vmatpush1.msra.mxu0 0.0
        %5514 = vmatprep.subr.mxu0 0.0
        %5515 = vmatpush1.msra.mxu0 0.0
        %5516 = vmatprep.subr.mxu0 0.0
        %5517 = vmatpush1.msra.mxu0 0.0
        %5518 = vmatprep.subr.mxu0 0.0
        %5519 = vmatpush1.msra.mxu0 0.0
        %5520 = vmatprep.subr.mxu0 0.0
        %5521 = vmatpush1.msra.mxu0 0.0
        %5522 = vmatprep.subr.mxu0 0.0
        %5523 = vmatpush1.msra.mxu0 0.0
        %5524 = vmatprep.subr.mxu0 0.0
        %5525 = vmatpush1.msra.mxu0 0.0
        %5526 = vmatprep.subr.mxu0 0.0
        %5527 = vmatpush1.msra.mxu0 0.0
        %5528 = vmatprep.subr.mxu0 0.0
        %5529 = vmatpush1.msra.mxu0 0.0
        %5530 = vmatprep.subr.mxu0 0.0
        %5531 = vmatpush1.msra.mxu0 0.0
        %5532 = vmatprep.subr.mxu0 0.0
        %5533 = vmatpush1.msra.mxu0 0.0
        %5534 = vmatprep.subr.mxu0 0.0
        %5535 = vmatpush1.msra.mxu0 0.0
        %5536 = vmatprep.subr.mxu0 0.0
        %5537 = vmatpush1.msra.mxu0 0.0
        %5538 = vmatprep.subr.mxu0 0.0
        %5539 = vmatpush1.msra.mxu0 0.0
        %5540 = vmatprep.mubr.f32.mxu0 0.0
        %v5541 = vand.u32 %v5320, 4294901760
        %v5542 = vsub.f32 %v5320, %v5541
        %5543 = vmatmul.mubr.f32.gmra.mrb[0].mxu0 %v5542
        %v5544 = vpop.f32.mrb[0].mxu0
        %v5545 = vadd.f32 %v5471, %v5544
        %v5546 = vpop.f32.mrb[0].mxu0
        %5547 = vdwg.mxu0
        %5548 = vmatprep.subr.mxu0 0.0
        %v5549 = vand.u32 %v229, 4294901760
        %5550 = vmatpush1.msra.mxu0 %v5549
        %5551 = vmatprep.subr.mxu0 0.0
        %5552 = vmatpush1.msra.mxu0 0.0
        %5553 = vmatprep.subr.mxu0 0.0
        %5554 = vmatpush1.msra.mxu0 0.0
        %5555 = vmatprep.subr.mxu0 0.0
        %5556 = vmatpush1.msra.mxu0 0.0
        %5557 = vmatprep.subr.mxu0 0.0
        %5558 = vmatpush1.msra.mxu0 0.0
        %5559 = vmatprep.subr.mxu0 0.0
        %5560 = vmatpush1.msra.mxu0 0.0
        %5561 = vmatprep.subr.mxu0 0.0
        %5562 = vmatpush1.msra.mxu0 0.0
        %5563 = vmatprep.subr.mxu0 0.0
        %5564 = vmatpush1.msra.mxu0 0.0
        %5565 = vmatprep.subr.mxu0 0.0
        %5566 = vmatpush1.msra.mxu0 0.0
        %5567 = vmatprep.subr.mxu0 0.0
        %5568 = vmatpush1.msra.mxu0 0.0
        %5569 = vmatprep.subr.mxu0 0.0
        %5570 = vmatpush1.msra.mxu0 0.0
        %5571 = vmatprep.subr.mxu0 0.0
        %5572 = vmatpush1.msra.mxu0 0.0
        %5573 = vmatprep.subr.mxu0 0.0
        %5574 = vmatpush1.msra.mxu0 0.0
        %5575 = vmatprep.subr.mxu0 0.0
        %5576 = vmatpush1.msra.mxu0 0.0
        %5577 = vmatprep.subr.mxu0 0.0
        %5578 = vmatpush1.msra.mxu0 0.0
        %5579 = vmatprep.subr.mxu0 0.0
        %5580 = vmatpush1.msra.mxu0 0.0
        %5581 = vmatprep.subr.mxu0 0.0
        %5582 = vmatpush1.msra.mxu0 0.0
        %5583 = vmatprep.subr.mxu0 0.0
        %5584 = vmatpush1.msra.mxu0 0.0
        %5585 = vmatprep.subr.mxu0 0.0
        %5586 = vmatpush1.msra.mxu0 0.0
        %5587 = vmatprep.subr.mxu0 0.0
        %5588 = vmatpush1.msra.mxu0 0.0
        %5589 = vmatprep.subr.mxu0 0.0
        %5590 = vmatpush1.msra.mxu0 0.0
        %5591 = vmatprep.subr.mxu0 0.0
        %5592 = vmatpush1.msra.mxu0 0.0
        %5593 = vmatprep.subr.mxu0 0.0
        %5594 = vmatpush1.msra.mxu0 0.0
        %5595 = vmatprep.subr.mxu0 0.0
        %5596 = vmatpush1.msra.mxu0 0.0
        %5597 = vmatprep.subr.mxu0 0.0
        %5598 = vmatpush1.msra.mxu0 0.0
        %5599 = vmatprep.subr.mxu0 0.0
        %5600 = vmatpush1.msra.mxu0 0.0
        %5601 = vmatprep.subr.mxu0 0.0
        %5602 = vmatpush1.msra.mxu0 0.0
        %5603 = vmatprep.subr.mxu0 0.0
        %5604 = vmatpush1.msra.mxu0 0.0
        %5605 = vmatprep.subr.mxu0 0.0
        %5606 = vmatpush1.msra.mxu0 0.0
        %5607 = vmatprep.subr.mxu0 0.0
        %5608 = vmatpush1.msra.mxu0 0.0
        %5609 = vmatprep.subr.mxu0 0.0
        %5610 = vmatpush1.msra.mxu0 0.0
        %5611 = vmatprep.subr.mxu0 0.0
        %5612 = vmatpush1.msra.mxu0 0.0
        %5613 = vmatprep.mubr.f32.mxu0 0.0
        %v5614 = vand.u32 %v5320, 4294901760
        %v5615 = vsub.f32 %v5320, %v5614
        %v5616 = vand.u32 %v5615, 4294901760
        %5617 = vmatmul.mubr.f32.gmra.mrb[0].mxu0 %v5616
        %v5618 = vpop.f32.mrb[0].mxu0
        %v5619 = vadd.f32 %v5545, %v5618
        %v5620 = vpop.f32.mrb[0].mxu0
        %5621 = vdwg.mxu0
        %5622 = vmatprep.subr.mxu0 0.0
        %v5623 = vand.u32 %v229, 4294901760
        %v5624 = vsub.f32 %v229, %v5623
        %v5625 = vand.u32 %v5624, 4294901760
        %5626 = vmatpush1.msra.mxu0 %v5625
        %5627 = vmatprep.subr.mxu0 0.0
        %5628 = vmatpush1.msra.mxu0 0.0
        %5629 = vmatprep.subr.mxu0 0.0
        %5630 = vmatpush1.msra.mxu0 0.0
        %5631 = vmatprep.subr.mxu0 0.0
        %5632 = vmatpush1.msra.mxu0 0.0
        %5633 = vmatprep.subr.mxu0 0.0
        %5634 = vmatpush1.msra.mxu0 0.0
        %5635 = vmatprep.subr.mxu0 0.0
        %5636 = vmatpush1.msra.mxu0 0.0
        %5637 = vmatprep.subr.mxu0 0.0
        %5638 = vmatpush1.msra.mxu0 0.0
        %5639 = vmatprep.subr.mxu0 0.0
        %5640 = vmatpush1.msra.mxu0 0.0
        %5641 = vmatprep.subr.mxu0 0.0
        %5642 = vmatpush1.msra.mxu0 0.0
        %5643 = vmatprep.subr.mxu0 0.0
        %5644 = vmatpush1.msra.mxu0 0.0
        %5645 = vmatprep.subr.mxu0 0.0
        %5646 = vmatpush1.msra.mxu0 0.0
        %5647 = vmatprep.subr.mxu0 0.0
        %5648 = vmatpush1.msra.mxu0 0.0
        %5649 = vmatprep.subr.mxu0 0.0
        %5650 = vmatpush1.msra.mxu0 0.0
        %5651 = vmatprep.subr.mxu0 0.0
        %5652 = vmatpush1.msra.mxu0 0.0
        %5653 = vmatprep.subr.mxu0 0.0
        %5654 = vmatpush1.msra.mxu0 0.0
        %5655 = vmatprep.subr.mxu0 0.0
        %5656 = vmatpush1.msra.mxu0 0.0
        %5657 = vmatprep.subr.mxu0 0.0
        %5658 = vmatpush1.msra.mxu0 0.0
        %5659 = vmatprep.subr.mxu0 0.0
        %5660 = vmatpush1.msra.mxu0 0.0
        %5661 = vmatprep.subr.mxu0 0.0
        %5662 = vmatpush1.msra.mxu0 0.0
        %5663 = vmatprep.subr.mxu0 0.0
        %5664 = vmatpush1.msra.mxu0 0.0
        %5665 = vmatprep.subr.mxu0 0.0
        %5666 = vmatpush1.msra.mxu0 0.0
        %5667 = vmatprep.subr.mxu0 0.0
        %5668 = vmatpush1.msra.mxu0 0.0
        %5669 = vmatprep.subr.mxu0 0.0
        %5670 = vmatpush1.msra.mxu0 0.0
        %5671 = vmatprep.subr.mxu0 0.0
        %5672 = vmatpush1.msra.mxu0 0.0
        %5673 = vmatprep.subr.mxu0 0.0
        %5674 = vmatpush1.msra.mxu0 0.0
        %5675 = vmatprep.subr.mxu0 0.0
        %5676 = vmatpush1.msra.mxu0 0.0
        %5677 = vmatprep.subr.mxu0 0.0
        %5678 = vmatpush1.msra.mxu0 0.0
        %5679 = vmatprep.subr.mxu0 0.0
        %5680 = vmatpush1.msra.mxu0 0.0
        %5681 = vmatprep.subr.mxu0 0.0
        %5682 = vmatpush1.msra.mxu0 0.0
        %5683 = vmatprep.subr.mxu0 0.0
        %5684 = vmatpush1.msra.mxu0 0.0
        %5685 = vmatprep.subr.mxu0 0.0
        %5686 = vmatpush1.msra.mxu0 0.0
        %5687 = vmatprep.subr.mxu0 0.0
        %5688 = vmatpush1.msra.mxu0 0.0
        %5689 = vmatprep.mubr.f32.mxu0 0.0
        %v5690 = vand.u32 %v5320, 4294901760
        %5691 = vmatmul.mubr.f32.gmra.mrb[0].mxu0 %v5690
        %v5692 = vpop.f32.mrb[0].mxu0
        %v5693 = vadd.f32 %v5619, %v5692
        %v5694 = vpop.f32.mrb[0].mxu0
        %5695 = vdwg.mxu0
        %5696 = vmatprep.subr.mxu0 0.0
        %v5697 = vand.u32 %v229, 4294901760
        %5698 = vmatpush1.msra.mxu0 %v5697
        %5699 = vmatprep.subr.mxu0 0.0
        %5700 = vmatpush1.msra.mxu0 0.0
        %5701 = vmatprep.subr.mxu0 0.0
        %5702 = vmatpush1.msra.mxu0 0.0
        %5703 = vmatprep.subr.mxu0 0.0
        %5704 = vmatpush1.msra.mxu0 0.0
        %5705 = vmatprep.subr.mxu0 0.0
        %5706 = vmatpush1.msra.mxu0 0.0
        %5707 = vmatprep.subr.mxu0 0.0
        %5708 = vmatpush1.msra.mxu0 0.0
        %5709 = vmatprep.subr.mxu0 0.0
        %5710 = vmatpush1.msra.mxu0 0.0
        %5711 = vmatprep.subr.mxu0 0.0
        %5712 = vmatpush1.msra.mxu0 0.0
        %5713 = vmatprep.subr.mxu0 0.0
        %5714 = vmatpush1.msra.mxu0 0.0
        %5715 = vmatprep.subr.mxu0 0.0
        %5716 = vmatpush1.msra.mxu0 0.0
        %5717 = vmatprep.subr.mxu0 0.0
        %5718 = vmatpush1.msra.mxu0 0.0
        %5719 = vmatprep.subr.mxu0 0.0
        %5720 = vmatpush1.msra.mxu0 0.0
        %5721 = vmatprep.subr.mxu0 0.0
        %5722 = vmatpush1.msra.mxu0 0.0
        %5723 = vmatprep.subr.mxu0 0.0
        %5724 = vmatpush1.msra.mxu0 0.0
        %5725 = vmatprep.subr.mxu0 0.0
        %5726 = vmatpush1.msra.mxu0 0.0
        %5727 = vmatprep.subr.mxu0 0.0
        %5728 = vmatpush1.msra.mxu0 0.0
        %5729 = vmatprep.subr.mxu0 0.0
        %5730 = vmatpush1.msra.mxu0 0.0
        %5731 = vmatprep.subr.mxu0 0.0
        %5732 = vmatpush1.msra.mxu0 0.0
        %5733 = vmatprep.subr.mxu0 0.0
        %5734 = vmatpush1.msra.mxu0 0.0
        %5735 = vmatprep.subr.mxu0 0.0
        %5736 = vmatpush1.msra.mxu0 0.0
        %5737 = vmatprep.subr.mxu0 0.0
        %5738 = vmatpush1.msra.mxu0 0.0
        %5739 = vmatprep.subr.mxu0 0.0
        %5740 = vmatpush1.msra.mxu0 0.0
        %5741 = vmatprep.subr.mxu0 0.0
        %5742 = vmatpush1.msra.mxu0 0.0
        %5743 = vmatprep.subr.mxu0 0.0
        %5744 = vmatpush1.msra.mxu0 0.0
        %5745 = vmatprep.subr.mxu0 0.0
        %5746 = vmatpush1.msra.mxu0 0.0
        %5747 = vmatprep.subr.mxu0 0.0
        %5748 = vmatpush1.msra.mxu0 0.0
        %5749 = vmatprep.subr.mxu0 0.0
        %5750 = vmatpush1.msra.mxu0 0.0
        %5751 = vmatprep.subr.mxu0 0.0
        %5752 = vmatpush1.msra.mxu0 0.0
        %5753 = vmatprep.subr.mxu0 0.0
        %5754 = vmatpush1.msra.mxu0 0.0
        %5755 = vmatprep.subr.mxu0 0.0
        %5756 = vmatpush1.msra.mxu0 0.0
        %5757 = vmatprep.subr.mxu0 0.0
        %5758 = vmatpush1.msra.mxu0 0.0
        %5759 = vmatprep.subr.mxu0 0.0
        %5760 = vmatpush1.msra.mxu0 0.0
        %5761 = vmatprep.mubr.f32.mxu0 0.0
        %v5762 = vand.u32 %v5320, 4294901760
        %5763 = vmatmul.mubr.f32.gmra.mrb[0].mxu0 %v5762
        %v5764 = vpop.f32.mrb[0].mxu0
        %v5765 = vadd.f32 %v5693, %v5764
        %v5766 = vpop.f32.mrb[0].mxu0
        %5767 = vdwg.mxu0
        %v5768 = vmul.f32 %v5765, 0.00390625
        %v5769 = vmul.f32 %v4864, %v4864
        %v5770 = vmul.f32 %v4865, %v4865
        %v5771 = vadd.f32 %v5769, %v5770
        %v5772 = vrot.slane %v5771, 4
        %v5773 = vadd.f32 %v5771, %v5772
        %v5774 = vrot.slane %v5773, 2
        %v5775 = vadd.f32 %v5773, %v5774
        %v5776 = vrot.slane %v5775, 1
        %v5777 = vadd.f32 %v5775, %v5776
        %5778 = vmatprep.subr.mxu0 0.0
        %v5779 = vand.u32 %v229, 4294901760
        %5780 = vmatpush1.xpose.msra.mxu0 %v5779
        %5781 = vmatprep.subr.mxu0 0.0
        %5782 = vmatpush1.xpose.msra.mxu0 0.0
        %5783 = vmatprep.subr.mxu0 0.0
        %5784 = vmatpush1.xpose.msra.mxu0 0.0
        %5785 = vmatprep.subr.mxu0 0.0
        %5786 = vmatpush1.xpose.msra.mxu0 0.0
        %5787 = vmatprep.subr.mxu0 0.0
        %5788 = vmatpush1.xpose.msra.mxu0 0.0
        %5789 = vmatprep.subr.mxu0 0.0
        %5790 = vmatpush1.xpose.msra.mxu0 0.0
        %5791 = vmatprep.subr.mxu0 0.0
        %5792 = vmatpush1.xpose.msra.mxu0 0.0
        %5793 = vmatprep.subr.mxu0 0.0
        %5794 = vmatpush1.xpose.msra.mxu0 0.0
        %5795 = vmatprep.subr.mxu0 0.0
        %5796 = vmatpush1.xpose.msra.mxu0 0.0
        %5797 = vmatprep.subr.mxu0 0.0
        %5798 = vmatpush1.xpose.msra.mxu0 0.0
        %5799 = vmatprep.subr.mxu0 0.0
        %5800 = vmatpush1.xpose.msra.mxu0 0.0
        %5801 = vmatprep.subr.mxu0 0.0
        %5802 = vmatpush1.xpose.msra.mxu0 0.0
        %5803 = vmatprep.subr.mxu0 0.0
        %5804 = vmatpush1.xpose.msra.mxu0 0.0
        %5805 = vmatprep.subr.mxu0 0.0
        %5806 = vmatpush1.xpose.msra.mxu0 0.0
        %5807 = vmatprep.subr.mxu0 0.0
        %5808 = vmatpush1.xpose.msra.mxu0 0.0
        %5809 = vmatprep.subr.mxu0 0.0
        %5810 = vmatpush1.xpose.msra.mxu0 0.0
        %5811 = vmatprep.subr.mxu0 0.0
        %5812 = vmatpush1.xpose.msra.mxu0 0.0
        %5813 = vmatprep.subr.mxu0 0.0
        %5814 = vmatpush1.xpose.msra.mxu0 0.0
        %5815 = vmatprep.subr.mxu0 0.0
        %5816 = vmatpush1.xpose.msra.mxu0 0.0
        %5817 = vmatprep.subr.mxu0 0.0
        %5818 = vmatpush1.xpose.msra.mxu0 0.0
        %5819 = vmatprep.subr.mxu0 0.0
        %5820 = vmatpush1.xpose.msra.mxu0 0.0
        %5821 = vmatprep.subr.mxu0 0.0
        %5822 = vmatpush1.xpose.msra.mxu0 0.0
        %5823 = vmatprep.subr.mxu0 0.0
        %5824 = vmatpush1.xpose.msra.mxu0 0.0
        %5825 = vmatprep.subr.mxu0 0.0
        %5826 = vmatpush1.xpose.msra.mxu0 0.0
        %5827 = vmatprep.subr.mxu0 0.0
        %5828 = vmatpush1.xpose.msra.mxu0 0.0
        %5829 = vmatprep.subr.mxu0 0.0
        %5830 = vmatpush1.xpose.msra.mxu0 0.0
        %5831 = vmatprep.subr.mxu0 0.0
        %5832 = vmatpush1.xpose.msra.mxu0 0.0
        %5833 = vmatprep.subr.mxu0 0.0
        %5834 = vmatpush1.xpose.msra.mxu0 0.0
        %5835 = vmatprep.subr.mxu0 0.0
        %5836 = vmatpush1.xpose.msra.mxu0 0.0
        %5837 = vmatprep.subr.mxu0 0.0
        %5838 = vmatpush1.xpose.msra.mxu0 0.0
        %5839 = vmatprep.subr.mxu0 0.0
        %5840 = vmatpush1.xpose.msra.mxu0 0.0
        %5841 = vmatprep.subr.mxu0 0.0
        %5842 = vmatpush1.xpose.msra.mxu0 0.0
        %5843 = vmatprep.mubr.f32.mxu0 0.0
        %v5844 = vand.u32 %v5777, 4294901760
        %v5845 = vsub.f32 %v5777, %v5844
        %v5846 = vand.u32 %v5845, 4294901760
        %v5847 = vsub.f32 %v5845, %v5846
        %v5848 = vand.u32 %v5847, 4294901760
        %5849 = vmatmul.mubr.f32.gmra.mrb[0].mxu0 %v5848
        %v5850 = vpop.f32.mrb[0].mxu0
        %v5851 = vadd.f32 0.0, %v5850
        %v5852 = vpop.f32.mrb[0].mxu0
        %5853 = vdwg.mxu0
        %5854 = vmatprep.subr.mxu0 0.0
        %v5855 = vand.u32 %v229, 4294901760
        %v5856 = vsub.f32 %v229, %v5855
        %v5857 = vand.u32 %v5856, 4294901760
        %v5858 = vsub.f32 %v5856, %v5857
        %v5859 = vand.u32 %v5858, 4294901760
        %5860 = vmatpush1.xpose.msra.mxu0 %v5859
        %5861 = vmatprep.subr.mxu0 0.0
        %5862 = vmatpush1.xpose.msra.mxu0 0.0
        %5863 = vmatprep.subr.mxu0 0.0
        %5864 = vmatpush1.xpose.msra.mxu0 0.0
        %5865 = vmatprep.subr.mxu0 0.0
        %5866 = vmatpush1.xpose.msra.mxu0 0.0
        %5867 = vmatprep.subr.mxu0 0.0
        %5868 = vmatpush1.xpose.msra.mxu0 0.0
        %5869 = vmatprep.subr.mxu0 0.0
        %5870 = vmatpush1.xpose.msra.mxu0 0.0
        %5871 = vmatprep.subr.mxu0 0.0
        %5872 = vmatpush1.xpose.msra.mxu0 0.0
        %5873 = vmatprep.subr.mxu0 0.0
        %5874 = vmatpush1.xpose.msra.mxu0 0.0
        %5875 = vmatprep.subr.mxu0 0.0
        %5876 = vmatpush1.xpose.msra.mxu0 0.0
        %5877 = vmatprep.subr.mxu0 0.0
        %5878 = vmatpush1.xpose.msra.mxu0 0.0
        %5879 = vmatprep.subr.mxu0 0.0
        %5880 = vmatpush1.xpose.msra.mxu0 0.0
        %5881 = vmatprep.subr.mxu0 0.0
        %5882 = vmatpush1.xpose.msra.mxu0 0.0
        %5883 = vmatprep.subr.mxu0 0.0
        %5884 = vmatpush1.xpose.msra.mxu0 0.0
        %5885 = vmatprep.subr.mxu0 0.0
        %5886 = vmatpush1.xpose.msra.mxu0 0.0
        %5887 = vmatprep.subr.mxu0 0.0
        %5888 = vmatpush1.xpose.msra.mxu0 0.0
        %5889 = vmatprep.subr.mxu0 0.0
        %5890 = vmatpush1.xpose.msra.mxu0 0.0
        %5891 = vmatprep.subr.mxu0 0.0
        %5892 = vmatpush1.xpose.msra.mxu0 0.0
        %5893 = vmatprep.subr.mxu0 0.0
        %5894 = vmatpush1.xpose.msra.mxu0 0.0
        %5895 = vmatprep.subr.mxu0 0.0
        %5896 = vmatpush1.xpose.msra.mxu0 0.0
        %5897 = vmatprep.subr.mxu0 0.0
        %5898 = vmatpush1.xpose.msra.mxu0 0.0
        %5899 = vmatprep.subr.mxu0 0.0
        %5900 = vmatpush1.xpose.msra.mxu0 0.0
        %5901 = vmatprep.subr.mxu0 0.0
        %5902 = vmatpush1.xpose.msra.mxu0 0.0
        %5903 = vmatprep.subr.mxu0 0.0
        %5904 = vmatpush1.xpose.msra.mxu0 0.0
        %5905 = vmatprep.subr.mxu0 0.0
        %5906 = vmatpush1.xpose.msra.mxu0 0.0
        %5907 = vmatprep.subr.mxu0 0.0
        %5908 = vmatpush1.xpose.msra.mxu0 0.0
        %5909 = vmatprep.subr.mxu0 0.0
        %5910 = vmatpush1.xpose.msra.mxu0 0.0
        %5911 = vmatprep.subr.mxu0 0.0
        %5912 = vmatpush1.xpose.msra.mxu0 0.0
        %5913 = vmatprep.subr.mxu0 0.0
        %5914 = vmatpush1.xpose.msra.mxu0 0.0
        %5915 = vmatprep.subr.mxu0 0.0
        %5916 = vmatpush1.xpose.msra.mxu0 0.0
        %5917 = vmatprep.subr.mxu0 0.0
        %5918 = vmatpush1.xpose.msra.mxu0 0.0
        %5919 = vmatprep.subr.mxu0 0.0
        %5920 = vmatpush1.xpose.msra.mxu0 0.0
        %5921 = vmatprep.subr.mxu0 0.0
        %5922 = vmatpush1.xpose.msra.mxu0 0.0
        %5923 = vmatprep.mubr.f32.mxu0 0.0
        %v5924 = vand.u32 %v5777, 4294901760
        %5925 = vmatmul.mubr.f32.gmra.mrb[0].mxu0 %v5924
        %v5926 = vpop.f32.mrb[0].mxu0
        %v5927 = vadd.f32 %v5851, %v5926
        %v5928 = vpop.f32.mrb[0].mxu0
        %5929 = vdwg.mxu0
        %5930 = vmatprep.subr.mxu0 0.0
        %v5931 = vand.u32 %v229, 4294901760
        %v5932 = vsub.f32 %v229, %v5931
        %5933 = vmatpush1.xpose.msra.mxu0 %v5932
        %5934 = vmatprep.subr.mxu0 0.0
        %5935 = vmatpush1.xpose.msra.mxu0 0.0
        %5936 = vmatprep.subr.mxu0 0.0
        %5937 = vmatpush1.xpose.msra.mxu0 0.0
        %5938 = vmatprep.subr.mxu0 0.0
        %5939 = vmatpush1.xpose.msra.mxu0 0.0
        %5940 = vmatprep.subr.mxu0 0.0
        %5941 = vmatpush1.xpose.msra.mxu0 0.0
        %5942 = vmatprep.subr.mxu0 0.0
        %5943 = vmatpush1.xpose.msra.mxu0 0.0
        %5944 = vmatprep.subr.mxu0 0.0
        %5945 = vmatpush1.xpose.msra.mxu0 0.0
        %5946 = vmatprep.subr.mxu0 0.0
        %5947 = vmatpush1.xpose.msra.mxu0 0.0
        %5948 = vmatprep.subr.mxu0 0.0
        %5949 = vmatpush1.xpose.msra.mxu0 0.0
        %5950 = vmatprep.subr.mxu0 0.0
        %5951 = vmatpush1.xpose.msra.mxu0 0.0
        %5952 = vmatprep.subr.mxu0 0.0
        %5953 = vmatpush1.xpose.msra.mxu0 0.0
        %5954 = vmatprep.subr.mxu0 0.0
        %5955 = vmatpush1.xpose.msra.mxu0 0.0
        %5956 = vmatprep.subr.mxu0 0.0
        %5957 = vmatpush1.xpose.msra.mxu0 0.0
        %5958 = vmatprep.subr.mxu0 0.0
        %5959 = vmatpush1.xpose.msra.mxu0 0.0
        %5960 = vmatprep.subr.mxu0 0.0
        %5961 = vmatpush1.xpose.msra.mxu0 0.0
        %5962 = vmatprep.subr.mxu0 0.0
        %5963 = vmatpush1.xpose.msra.mxu0 0.0
        %5964 = vmatprep.subr.mxu0 0.0
        %5965 = vmatpush1.xpose.msra.mxu0 0.0
        %5966 = vmatprep.subr.mxu0 0.0
        %5967 = vmatpush1.xpose.msra.mxu0 0.0
        %5968 = vmatprep.subr.mxu0 0.0
        %5969 = vmatpush1.xpose.msra.mxu0 0.0
        %5970 = vmatprep.subr.mxu0 0.0
        %5971 = vmatpush1.xpose.msra.mxu0 0.0
        %5972 = vmatprep.subr.mxu0 0.0
        %5973 = vmatpush1.xpose.msra.mxu0 0.0
        %5974 = vmatprep.subr.mxu0 0.0
        %5975 = vmatpush1.xpose.msra.mxu0 0.0
        %5976 = vmatprep.subr.mxu0 0.0
        %5977 = vmatpush1.xpose.msra.mxu0 0.0
        %5978 = vmatprep.subr.mxu0 0.0
        %5979 = vmatpush1.xpose.msra.mxu0 0.0
        %5980 = vmatprep.subr.mxu0 0.0
        %5981 = vmatpush1.xpose.msra.mxu0 0.0
        %5982 = vmatprep.subr.mxu0 0.0
        %5983 = vmatpush1.xpose.msra.mxu0 0.0
        %5984 = vmatprep.subr.mxu0 0.0
        %5985 = vmatpush1.xpose.msra.mxu0 0.0
        %5986 = vmatprep.subr.mxu0 0.0
        %5987 = vmatpush1.xpose.msra.mxu0 0.0
        %5988 = vmatprep.subr.mxu0 0.0
        %5989 = vmatpush1.xpose.msra.mxu0 0.0
        %5990 = vmatprep.subr.mxu0 0.0
        %5991 = vmatpush1.xpose.msra.mxu0 0.0
        %5992 = vmatprep.subr.mxu0 0.0
        %5993 = vmatpush1.xpose.msra.mxu0 0.0
        %5994 = vmatprep.subr.mxu0 0.0
        %5995 = vmatpush1.xpose.msra.mxu0 0.0
        %5996 = vmatprep.mubr.f32.mxu0 0.0
        %v5997 = vand.u32 %v5777, 4294901760
        %v5998 = vsub.f32 %v5777, %v5997
        %5999 = vmatmul.mubr.f32.gmra.mrb[0].mxu0 %v5998
        %v6000 = vpop.f32.mrb[0].mxu0
        %v6001 = vadd.f32 %v5927, %v6000
        %v6002 = vpop.f32.mrb[0].mxu0
        %6003 = vdwg.mxu0
        %6004 = vmatprep.subr.mxu0 0.0
        %v6005 = vand.u32 %v229, 4294901760
        %6006 = vmatpush1.xpose.msra.mxu0 %v6005
        %6007 = vmatprep.subr.mxu0 0.0
        %6008 = vmatpush1.xpose.msra.mxu0 0.0
        %6009 = vmatprep.subr.mxu0 0.0
        %6010 = vmatpush1.xpose.msra.mxu0 0.0
        %6011 = vmatprep.subr.mxu0 0.0
        %6012 = vmatpush1.xpose.msra.mxu0 0.0
        %6013 = vmatprep.subr.mxu0 0.0
        %6014 = vmatpush1.xpose.msra.mxu0 0.0
        %6015 = vmatprep.subr.mxu0 0.0
        %6016 = vmatpush1.xpose.msra.mxu0 0.0
        %6017 = vmatprep.subr.mxu0 0.0
        %6018 = vmatpush1.xpose.msra.mxu0 0.0
        %6019 = vmatprep.subr.mxu0 0.0
        %6020 = vmatpush1.xpose.msra.mxu0 0.0
        %6021 = vmatprep.subr.mxu0 0.0
        %6022 = vmatpush1.xpose.msra.mxu0 0.0
        %6023 = vmatprep.subr.mxu0 0.0
        %6024 = vmatpush1.xpose.msra.mxu0 0.0
        %6025 = vmatprep.subr.mxu0 0.0
        %6026 = vmatpush1.xpose.msra.mxu0 0.0
        %6027 = vmatprep.subr.mxu0 0.0
        %6028 = vmatpush1.xpose.msra.mxu0 0.0
        %6029 = vmatprep.subr.mxu0 0.0
        %6030 = vmatpush1.xpose.msra.mxu0 0.0
        %6031 = vmatprep.subr.mxu0 0.0
        %6032 = vmatpush1.xpose.msra.mxu0 0.0
        %6033 = vmatprep.subr.mxu0 0.0
        %6034 = vmatpush1.xpose.msra.mxu0 0.0
        %6035 = vmatprep.subr.mxu0 0.0
        %6036 = vmatpush1.xpose.msra.mxu0 0.0
        %6037 = vmatprep.subr.mxu0 0.0
        %6038 = vmatpush1.xpose.msra.mxu0 0.0
        %6039 = vmatprep.subr.mxu0 0.0
        %6040 = vmatpush1.xpose.msra.mxu0 0.0
        %6041 = vmatprep.subr.mxu0 0.0
        %6042 = vmatpush1.xpose.msra.mxu0 0.0
        %6043 = vmatprep.subr.mxu0 0.0
        %6044 = vmatpush1.xpose.msra.mxu0 0.0
        %6045 = vmatprep.subr.mxu0 0.0
        %6046 = vmatpush1.xpose.msra.mxu0 0.0
        %6047 = vmatprep.subr.mxu0 0.0
        %6048 = vmatpush1.xpose.msra.mxu0 0.0
        %6049 = vmatprep.subr.mxu0 0.0
        %6050 = vmatpush1.xpose.msra.mxu0 0.0
        %6051 = vmatprep.subr.mxu0 0.0
        %6052 = vmatpush1.xpose.msra.mxu0 0.0
        %6053 = vmatprep.subr.mxu0 0.0
        %6054 = vmatpush1.xpose.msra.mxu0 0.0
        %6055 = vmatprep.subr.mxu0 0.0
        %6056 = vmatpush1.xpose.msra.mxu0 0.0
        %6057 = vmatprep.subr.mxu0 0.0
        %6058 = vmatpush1.xpose.msra.mxu0 0.0
        %6059 = vmatprep.subr.mxu0 0.0
        %6060 = vmatpush1.xpose.msra.mxu0 0.0
        %6061 = vmatprep.subr.mxu0 0.0
        %6062 = vmatpush1.xpose.msra.mxu0 0.0
        %6063 = vmatprep.subr.mxu0 0.0
        %6064 = vmatpush1.xpose.msra.mxu0 0.0
        %6065 = vmatprep.subr.mxu0 0.0
        %6066 = vmatpush1.xpose.msra.mxu0 0.0
        %6067 = vmatprep.subr.mxu0 0.0
        %6068 = vmatpush1.xpose.msra.mxu0 0.0
        %6069 = vmatprep.mubr.f32.mxu0 0.0
        %v6070 = vand.u32 %v5777, 4294901760
        %v6071 = vsub.f32 %v5777, %v6070
        %v6072 = vand.u32 %v6071, 4294901760
        %6073 = vmatmul.mubr.f32.gmra.mrb[0].mxu0 %v6072
        %v6074 = vpop.f32.mrb[0].mxu0
        %v6075 = vadd.f32 %v6001, %v6074
        %v6076 = vpop.f32.mrb[0].mxu0
        %6077 = vdwg.mxu0
        %6078 = vmatprep.subr.mxu0 0.0
        %v6079 = vand.u32 %v229, 4294901760
        %v6080 = vsub.f32 %v229, %v6079
        %v6081 = vand.u32 %v6080, 4294901760
        %6082 = vmatpush1.xpose.msra.mxu0 %v6081
        %6083 = vmatprep.subr.mxu0 0.0
        %6084 = vmatpush1.xpose.msra.mxu0 0.0
        %6085 = vmatprep.subr.mxu0 0.0
        %6086 = vmatpush1.xpose.msra.mxu0 0.0
        %6087 = vmatprep.subr.mxu0 0.0
        %6088 = vmatpush1.xpose.msra.mxu0 0.0
        %6089 = vmatprep.subr.mxu0 0.0
        %6090 = vmatpush1.xpose.msra.mxu0 0.0
        %6091 = vmatprep.subr.mxu0 0.0
        %6092 = vmatpush1.xpose.msra.mxu0 0.0
        %6093 = vmatprep.subr.mxu0 0.0
        %6094 = vmatpush1.xpose.msra.mxu0 0.0
        %6095 = vmatprep.subr.mxu0 0.0
        %6096 = vmatpush1.xpose.msra.mxu0 0.0
        %6097 = vmatprep.subr.mxu0 0.0
        %6098 = vmatpush1.xpose.msra.mxu0 0.0
        %6099 = vmatprep.subr.mxu0 0.0
        %6100 = vmatpush1.xpose.msra.mxu0 0.0
        %6101 = vmatprep.subr.mxu0 0.0
        %6102 = vmatpush1.xpose.msra.mxu0 0.0
        %6103 = vmatprep.subr.mxu0 0.0
        %6104 = vmatpush1.xpose.msra.mxu0 0.0
        %6105 = vmatprep.subr.mxu0 0.0
        %6106 = vmatpush1.xpose.msra.mxu0 0.0
        %6107 = vmatprep.subr.mxu0 0.0
        %6108 = vmatpush1.xpose.msra.mxu0 0.0
        %6109 = vmatprep.subr.mxu0 0.0
        %6110 = vmatpush1.xpose.msra.mxu0 0.0
        %6111 = vmatprep.subr.mxu0 0.0
        %6112 = vmatpush1.xpose.msra.mxu0 0.0
        %6113 = vmatprep.subr.mxu0 0.0
        %6114 = vmatpush1.xpose.msra.mxu0 0.0
        %6115 = vmatprep.subr.mxu0 0.0
        %6116 = vmatpush1.xpose.msra.mxu0 0.0
        %6117 = vmatprep.subr.mxu0 0.0
        %6118 = vmatpush1.xpose.msra.mxu0 0.0
        %6119 = vmatprep.subr.mxu0 0.0
        %6120 = vmatpush1.xpose.msra.mxu0 0.0
        %6121 = vmatprep.subr.mxu0 0.0
        %6122 = vmatpush1.xpose.msra.mxu0 0.0
        %6123 = vmatprep.subr.mxu0 0.0
        %6124 = vmatpush1.xpose.msra.mxu0 0.0
        %6125 = vmatprep.subr.mxu0 0.0
        %6126 = vmatpush1.xpose.msra.mxu0 0.0
        %6127 = vmatprep.subr.mxu0 0.0
        %6128 = vmatpush1.xpose.msra.mxu0 0.0
        %6129 = vmatprep.subr.mxu0 0.0
        %6130 = vmatpush1.xpose.msra.mxu0 0.0
        %6131 = vmatprep.subr.mxu0 0.0
        %6132 = vmatpush1.xpose.msra.mxu0 0.0
        %6133 = vmatprep.subr.mxu0 0.0
        %6134 = vmatpush1.xpose.msra.mxu0 0.0
        %6135 = vmatprep.subr.mxu0 0.0
        %6136 = vmatpush1.xpose.msra.mxu0 0.0
        %6137 = vmatprep.subr.mxu0 0.0
        %6138 = vmatpush1.xpose.msra.mxu0 0.0
        %6139 = vmatprep.subr.mxu0 0.0
        %6140 = vmatpush1.xpose.msra.mxu0 0.0
        %6141 = vmatprep.subr.mxu0 0.0
        %6142 = vmatpush1.xpose.msra.mxu0 0.0
        %6143 = vmatprep.subr.mxu0 0.0
        %6144 = vmatpush1.xpose.msra.mxu0 0.0
        %6145 = vmatprep.mubr.f32.mxu0 0.0
        %v6146 = vand.u32 %v5777, 4294901760
        %6147 = vmatmul.mubr.f32.gmra.mrb[0].mxu0 %v6146
        %v6148 = vpop.f32.mrb[0].mxu0
        %v6149 = vadd.f32 %v6075, %v6148
        %v6150 = vpop.f32.mrb[0].mxu0
        %6151 = vdwg.mxu0
        %6152 = vmatprep.subr.mxu0 0.0
        %v6153 = vand.u32 %v229, 4294901760
        %6154 = vmatpush1.xpose.msra.mxu0 %v6153
        %6155 = vmatprep.subr.mxu0 0.0
        %6156 = vmatpush1.xpose.msra.mxu0 0.0
        %6157 = vmatprep.subr.mxu0 0.0
        %6158 = vmatpush1.xpose.msra.mxu0 0.0
        %6159 = vmatprep.subr.mxu0 0.0
        %6160 = vmatpush1.xpose.msra.mxu0 0.0
        %6161 = vmatprep.subr.mxu0 0.0
        %6162 = vmatpush1.xpose.msra.mxu0 0.0
        %6163 = vmatprep.subr.mxu0 0.0
        %6164 = vmatpush1.xpose.msra.mxu0 0.0
        %6165 = vmatprep.subr.mxu0 0.0
        %6166 = vmatpush1.xpose.msra.mxu0 0.0
        %6167 = vmatprep.subr.mxu0 0.0
        %6168 = vmatpush1.xpose.msra.mxu0 0.0
        %6169 = vmatprep.subr.mxu0 0.0
        %6170 = vmatpush1.xpose.msra.mxu0 0.0
        %6171 = vmatprep.subr.mxu0 0.0
        %6172 = vmatpush1.xpose.msra.mxu0 0.0
        %6173 = vmatprep.subr.mxu0 0.0
        %6174 = vmatpush1.xpose.msra.mxu0 0.0
        %6175 = vmatprep.subr.mxu0 0.0
        %6176 = vmatpush1.xpose.msra.mxu0 0.0
        %6177 = vmatprep.subr.mxu0 0.0
        %6178 = vmatpush1.xpose.msra.mxu0 0.0
        %6179 = vmatprep.subr.mxu0 0.0
        %6180 = vmatpush1.xpose.msra.mxu0 0.0
        %6181 = vmatprep.subr.mxu0 0.0
        %6182 = vmatpush1.xpose.msra.mxu0 0.0
        %6183 = vmatprep.subr.mxu0 0.0
        %6184 = vmatpush1.xpose.msra.mxu0 0.0
        %6185 = vmatprep.subr.mxu0 0.0
        %6186 = vmatpush1.xpose.msra.mxu0 0.0
        %6187 = vmatprep.subr.mxu0 0.0
        %6188 = vmatpush1.xpose.msra.mxu0 0.0
        %6189 = vmatprep.subr.mxu0 0.0
        %6190 = vmatpush1.xpose.msra.mxu0 0.0
        %6191 = vmatprep.subr.mxu0 0.0
        %6192 = vmatpush1.xpose.msra.mxu0 0.0
        %6193 = vmatprep.subr.mxu0 0.0
        %6194 = vmatpush1.xpose.msra.mxu0 0.0
        %6195 = vmatprep.subr.mxu0 0.0
        %6196 = vmatpush1.xpose.msra.mxu0 0.0
        %6197 = vmatprep.subr.mxu0 0.0
        %6198 = vmatpush1.xpose.msra.mxu0 0.0
        %6199 = vmatprep.subr.mxu0 0.0
        %6200 = vmatpush1.xpose.msra.mxu0 0.0
        %6201 = vmatprep.subr.mxu0 0.0
        %6202 = vmatpush1.xpose.msra.mxu0 0.0
        %6203 = vmatprep.subr.mxu0 0.0
        %6204 = vmatpush1.xpose.msra.mxu0 0.0
        %6205 = vmatprep.subr.mxu0 0.0
        %6206 = vmatpush1.xpose.msra.mxu0 0.0
        %6207 = vmatprep.subr.mxu0 0.0
        %6208 = vmatpush1.xpose.msra.mxu0 0.0
        %6209 = vmatprep.subr.mxu0 0.0
        %6210 = vmatpush1.xpose.msra.mxu0 0.0
        %6211 = vmatprep.subr.mxu0 0.0
        %6212 = vmatpush1.xpose.msra.mxu0 0.0
        %6213 = vmatprep.subr.mxu0 0.0
        %6214 = vmatpush1.xpose.msra.mxu0 0.0
        %6215 = vmatprep.subr.mxu0 0.0
        %6216 = vmatpush1.xpose.msra.mxu0 0.0
        %6217 = vmatprep.mubr.f32.mxu0 0.0
        %v6218 = vand.u32 %v5777, 4294901760
        %6219 = vmatmul.mubr.f32.gmra.mrb[0].mxu0 %v6218
        %v6220 = vpop.f32.mrb[0].mxu0
        %v6221 = vadd.f32 %v6149, %v6220
        %v6222 = vpop.f32.mrb[0].mxu0
        %6223 = vdwg.mxu0
        %v6225 = vsel %vm956, %v6221, 0
        %6227 = vmatprep.subr.mxu0 0.0
        %v6228 = vand.u32 %v229, 4294901760
        %6229 = vmatpush1.msra.mxu0 %v6228
        %6230 = vmatprep.subr.mxu0 0.0
        %6231 = vmatpush1.msra.mxu0 0.0
        %6232 = vmatprep.subr.mxu0 0.0
        %6233 = vmatpush1.msra.mxu0 0.0
        %6234 = vmatprep.subr.mxu0 0.0
        %6235 = vmatpush1.msra.mxu0 0.0
        %6236 = vmatprep.subr.mxu0 0.0
        %6237 = vmatpush1.msra.mxu0 0.0
        %6238 = vmatprep.subr.mxu0 0.0
        %6239 = vmatpush1.msra.mxu0 0.0
        %6240 = vmatprep.subr.mxu0 0.0
        %6241 = vmatpush1.msra.mxu0 0.0
        %6242 = vmatprep.subr.mxu0 0.0
        %6243 = vmatpush1.msra.mxu0 0.0
        %6244 = vmatprep.subr.mxu0 0.0
        %6245 = vmatpush1.msra.mxu0 0.0
        %6246 = vmatprep.subr.mxu0 0.0
        %6247 = vmatpush1.msra.mxu0 0.0
        %6248 = vmatprep.subr.mxu0 0.0
        %6249 = vmatpush1.msra.mxu0 0.0
        %6250 = vmatprep.subr.mxu0 0.0
        %6251 = vmatpush1.msra.mxu0 0.0
        %6252 = vmatprep.subr.mxu0 0.0
        %6253 = vmatpush1.msra.mxu0 0.0
        %6254 = vmatprep.subr.mxu0 0.0
        %6255 = vmatpush1.msra.mxu0 0.0
        %6256 = vmatprep.subr.mxu0 0.0
        %6257 = vmatpush1.msra.mxu0 0.0
        %6258 = vmatprep.subr.mxu0 0.0
        %6259 = vmatpush1.msra.mxu0 0.0
        %6260 = vmatprep.subr.mxu0 0.0
        %6261 = vmatpush1.msra.mxu0 0.0
        %6262 = vmatprep.subr.mxu0 0.0
        %6263 = vmatpush1.msra.mxu0 0.0
        %6264 = vmatprep.subr.mxu0 0.0
        %6265 = vmatpush1.msra.mxu0 0.0
        %6266 = vmatprep.subr.mxu0 0.0
        %6267 = vmatpush1.msra.mxu0 0.0
        %6268 = vmatprep.subr.mxu0 0.0
        %6269 = vmatpush1.msra.mxu0 0.0
        %6270 = vmatprep.subr.mxu0 0.0
        %6271 = vmatpush1.msra.mxu0 0.0
        %6272 = vmatprep.subr.mxu0 0.0
        %6273 = vmatpush1.msra.mxu0 0.0
        %6274 = vmatprep.subr.mxu0 0.0
        %6275 = vmatpush1.msra.mxu0 0.0
        %6276 = vmatprep.subr.mxu0 0.0
        %6277 = vmatpush1.msra.mxu0 0.0
        %6278 = vmatprep.subr.mxu0 0.0
        %6279 = vmatpush1.msra.mxu0 0.0
        %6280 = vmatprep.subr.mxu0 0.0
        %6281 = vmatpush1.msra.mxu0 0.0
        %6282 = vmatprep.subr.mxu0 0.0
        %6283 = vmatpush1.msra.mxu0 0.0
        %6284 = vmatprep.subr.mxu0 0.0
        %6285 = vmatpush1.msra.mxu0 0.0
        %6286 = vmatprep.subr.mxu0 0.0
        %6287 = vmatpush1.msra.mxu0 0.0
        %6288 = vmatprep.subr.mxu0 0.0
        %6289 = vmatpush1.msra.mxu0 0.0
        %6290 = vmatprep.subr.mxu0 0.0
        %6291 = vmatpush1.msra.mxu0 0.0
        %6292 = vmatprep.mubr.f32.mxu0 0.0
        %v6293 = vand.u32 %v6225, 4294901760
        %v6294 = vsub.f32 %v6225, %v6293
        %v6295 = vand.u32 %v6294, 4294901760
        %v6296 = vsub.f32 %v6294, %v6295
        %v6297 = vand.u32 %v6296, 4294901760
        %6298 = vmatmul.mubr.f32.gmra.mrb[0].mxu0 %v6297
        %v6299 = vpop.f32.mrb[0].mxu0
        %v6300 = vadd.f32 0.0, %v6299
        %v6301 = vpop.f32.mrb[0].mxu0
        %6302 = vdwg.mxu0
        %6303 = vmatprep.subr.mxu0 0.0
        %v6304 = vand.u32 %v229, 4294901760
        %v6305 = vsub.f32 %v229, %v6304
        %v6306 = vand.u32 %v6305, 4294901760
        %v6307 = vsub.f32 %v6305, %v6306
        %v6308 = vand.u32 %v6307, 4294901760
        %6309 = vmatpush1.msra.mxu0 %v6308
        %6310 = vmatprep.subr.mxu0 0.0
        %6311 = vmatpush1.msra.mxu0 0.0
        %6312 = vmatprep.subr.mxu0 0.0
        %6313 = vmatpush1.msra.mxu0 0.0
        %6314 = vmatprep.subr.mxu0 0.0
        %6315 = vmatpush1.msra.mxu0 0.0
        %6316 = vmatprep.subr.mxu0 0.0
        %6317 = vmatpush1.msra.mxu0 0.0
        %6318 = vmatprep.subr.mxu0 0.0
        %6319 = vmatpush1.msra.mxu0 0.0
        %6320 = vmatprep.subr.mxu0 0.0
        %6321 = vmatpush1.msra.mxu0 0.0
        %6322 = vmatprep.subr.mxu0 0.0
        %6323 = vmatpush1.msra.mxu0 0.0
        %6324 = vmatprep.subr.mxu0 0.0
        %6325 = vmatpush1.msra.mxu0 0.0
        %6326 = vmatprep.subr.mxu0 0.0
        %6327 = vmatpush1.msra.mxu0 0.0
        %6328 = vmatprep.subr.mxu0 0.0
        %6329 = vmatpush1.msra.mxu0 0.0
        %6330 = vmatprep.subr.mxu0 0.0
        %6331 = vmatpush1.msra.mxu0 0.0
        %6332 = vmatprep.subr.mxu0 0.0
        %6333 = vmatpush1.msra.mxu0 0.0
        %6334 = vmatprep.subr.mxu0 0.0
        %6335 = vmatpush1.msra.mxu0 0.0
        %6336 = vmatprep.subr.mxu0 0.0
        %6337 = vmatpush1.msra.mxu0 0.0
        %6338 = vmatprep.subr.mxu0 0.0
        %6339 = vmatpush1.msra.mxu0 0.0
        %6340 = vmatprep.subr.mxu0 0.0
        %6341 = vmatpush1.msra.mxu0 0.0
        %6342 = vmatprep.subr.mxu0 0.0
        %6343 = vmatpush1.msra.mxu0 0.0
        %6344 = vmatprep.subr.mxu0 0.0
        %6345 = vmatpush1.msra.mxu0 0.0
        %6346 = vmatprep.subr.mxu0 0.0
        %6347 = vmatpush1.msra.mxu0 0.0
        %6348 = vmatprep.subr.mxu0 0.0
        %6349 = vmatpush1.msra.mxu0 0.0
        %6350 = vmatprep.subr.mxu0 0.0
        %6351 = vmatpush1.msra.mxu0 0.0
        %6352 = vmatprep.subr.mxu0 0.0
        %6353 = vmatpush1.msra.mxu0 0.0
        %6354 = vmatprep.subr.mxu0 0.0
        %6355 = vmatpush1.msra.mxu0 0.0
        %6356 = vmatprep.subr.mxu0 0.0
        %6357 = vmatpush1.msra.mxu0 0.0
        %6358 = vmatprep.subr.mxu0 0.0
        %6359 = vmatpush1.msra.mxu0 0.0
        %6360 = vmatprep.subr.mxu0 0.0
        %6361 = vmatpush1.msra.mxu0 0.0
        %6362 = vmatprep.subr.mxu0 0.0
        %6363 = vmatpush1.msra.mxu0 0.0
        %6364 = vmatprep.subr.mxu0 0.0
        %6365 = vmatpush1.msra.mxu0 0.0
        %6366 = vmatprep.subr.mxu0 0.0
        %6367 = vmatpush1.msra.mxu0 0.0
        %6368 = vmatprep.subr.mxu0 0.0
        %6369 = vmatpush1.msra.mxu0 0.0
        %6370 = vmatprep.subr.mxu0 0.0
        %6371 = vmatpush1.msra.mxu0 0.0
        %6372 = vmatprep.mubr.f32.mxu0 0.0
        %v6373 = vand.u32 %v6225, 4294901760
        %6374 = vmatmul.mubr.f32.gmra.mrb[0].mxu0 %v6373
        %v6375 = vpop.f32.mrb[0].mxu0
        %v6376 = vadd.f32 %v6300, %v6375
        %v6377 = vpop.f32.mrb[0].mxu0
        %6378 = vdwg.mxu0
        %6379 = vmatprep.subr.mxu0 0.0
        %v6380 = vand.u32 %v229, 4294901760
        %v6381 = vsub.f32 %v229, %v6380
        %6382 = vmatpush1.msra.mxu0 %v6381
        %6383 = vmatprep.subr.mxu0 0.0
        %6384 = vmatpush1.msra.mxu0 0.0
        %6385 = vmatprep.subr.mxu0 0.0
        %6386 = vmatpush1.msra.mxu0 0.0
        %6387 = vmatprep.subr.mxu0 0.0
        %6388 = vmatpush1.msra.mxu0 0.0
        %6389 = vmatprep.subr.mxu0 0.0
        %6390 = vmatpush1.msra.mxu0 0.0
        %6391 = vmatprep.subr.mxu0 0.0
        %6392 = vmatpush1.msra.mxu0 0.0
        %6393 = vmatprep.subr.mxu0 0.0
        %6394 = vmatpush1.msra.mxu0 0.0
        %6395 = vmatprep.subr.mxu0 0.0
        %6396 = vmatpush1.msra.mxu0 0.0
        %6397 = vmatprep.subr.mxu0 0.0
        %6398 = vmatpush1.msra.mxu0 0.0
        %6399 = vmatprep.subr.mxu0 0.0
        %6400 = vmatpush1.msra.mxu0 0.0
        %6401 = vmatprep.subr.mxu0 0.0
        %6402 = vmatpush1.msra.mxu0 0.0
        %6403 = vmatprep.subr.mxu0 0.0
        %6404 = vmatpush1.msra.mxu0 0.0
        %6405 = vmatprep.subr.mxu0 0.0
        %6406 = vmatpush1.msra.mxu0 0.0
        %6407 = vmatprep.subr.mxu0 0.0
        %6408 = vmatpush1.msra.mxu0 0.0
        %6409 = vmatprep.subr.mxu0 0.0
        %6410 = vmatpush1.msra.mxu0 0.0
        %6411 = vmatprep.subr.mxu0 0.0
        %6412 = vmatpush1.msra.mxu0 0.0
        %6413 = vmatprep.subr.mxu0 0.0
        %6414 = vmatpush1.msra.mxu0 0.0
        %6415 = vmatprep.subr.mxu0 0.0
        %6416 = vmatpush1.msra.mxu0 0.0
        %6417 = vmatprep.subr.mxu0 0.0
        %6418 = vmatpush1.msra.mxu0 0.0
        %6419 = vmatprep.subr.mxu0 0.0
        %6420 = vmatpush1.msra.mxu0 0.0
        %6421 = vmatprep.subr.mxu0 0.0
        %6422 = vmatpush1.msra.mxu0 0.0
        %6423 = vmatprep.subr.mxu0 0.0
        %6424 = vmatpush1.msra.mxu0 0.0
        %6425 = vmatprep.subr.mxu0 0.0
        %6426 = vmatpush1.msra.mxu0 0.0
        %6427 = vmatprep.subr.mxu0 0.0
        %6428 = vmatpush1.msra.mxu0 0.0
        %6429 = vmatprep.subr.mxu0 0.0
        %6430 = vmatpush1.msra.mxu0 0.0
        %6431 = vmatprep.subr.mxu0 0.0
        %6432 = vmatpush1.msra.mxu0 0.0
        %6433 = vmatprep.subr.mxu0 0.0
        %6434 = vmatpush1.msra.mxu0 0.0
        %6435 = vmatprep.subr.mxu0 0.0
        %6436 = vmatpush1.msra.mxu0 0.0
        %6437 = vmatprep.subr.mxu0 0.0
        %6438 = vmatpush1.msra.mxu0 0.0
        %6439 = vmatprep.subr.mxu0 0.0
        %6440 = vmatpush1.msra.mxu0 0.0
        %6441 = vmatprep.subr.mxu0 0.0
        %6442 = vmatpush1.msra.mxu0 0.0
        %6443 = vmatprep.subr.mxu0 0.0
        %6444 = vmatpush1.msra.mxu0 0.0
        %6445 = vmatprep.mubr.f32.mxu0 0.0
        %v6446 = vand.u32 %v6225, 4294901760
        %v6447 = vsub.f32 %v6225, %v6446
        %6448 = vmatmul.mubr.f32.gmra.mrb[0].mxu0 %v6447
        %v6449 = vpop.f32.mrb[0].mxu0
        %v6450 = vadd.f32 %v6376, %v6449
        %v6451 = vpop.f32.mrb[0].mxu0
        %6452 = vdwg.mxu0
        %6453 = vmatprep.subr.mxu0 0.0
        %v6454 = vand.u32 %v229, 4294901760
        %6455 = vmatpush1.msra.mxu0 %v6454
        %6456 = vmatprep.subr.mxu0 0.0
        %6457 = vmatpush1.msra.mxu0 0.0
        %6458 = vmatprep.subr.mxu0 0.0
        %6459 = vmatpush1.msra.mxu0 0.0
        %6460 = vmatprep.subr.mxu0 0.0
        %6461 = vmatpush1.msra.mxu0 0.0
        %6462 = vmatprep.subr.mxu0 0.0
        %6463 = vmatpush1.msra.mxu0 0.0
        %6464 = vmatprep.subr.mxu0 0.0
        %6465 = vmatpush1.msra.mxu0 0.0
        %6466 = vmatprep.subr.mxu0 0.0
        %6467 = vmatpush1.msra.mxu0 0.0
        %6468 = vmatprep.subr.mxu0 0.0
        %6469 = vmatpush1.msra.mxu0 0.0
        %6470 = vmatprep.subr.mxu0 0.0
        %6471 = vmatpush1.msra.mxu0 0.0
        %6472 = vmatprep.subr.mxu0 0.0
        %6473 = vmatpush1.msra.mxu0 0.0
        %6474 = vmatprep.subr.mxu0 0.0
        %6475 = vmatpush1.msra.mxu0 0.0
        %6476 = vmatprep.subr.mxu0 0.0
        %6477 = vmatpush1.msra.mxu0 0.0
        %6478 = vmatprep.subr.mxu0 0.0
        %6479 = vmatpush1.msra.mxu0 0.0
        %6480 = vmatprep.subr.mxu0 0.0
        %6481 = vmatpush1.msra.mxu0 0.0
        %6482 = vmatprep.subr.mxu0 0.0
        %6483 = vmatpush1.msra.mxu0 0.0
        %6484 = vmatprep.subr.mxu0 0.0
        %6485 = vmatpush1.msra.mxu0 0.0
        %6486 = vmatprep.subr.mxu0 0.0
        %6487 = vmatpush1.msra.mxu0 0.0
        %6488 = vmatprep.subr.mxu0 0.0
        %6489 = vmatpush1.msra.mxu0 0.0
        %6490 = vmatprep.subr.mxu0 0.0
        %6491 = vmatpush1.msra.mxu0 0.0
        %6492 = vmatprep.subr.mxu0 0.0
        %6493 = vmatpush1.msra.mxu0 0.0
        %6494 = vmatprep.subr.mxu0 0.0
        %6495 = vmatpush1.msra.mxu0 0.0
        %6496 = vmatprep.subr.mxu0 0.0
        %6497 = vmatpush1.msra.mxu0 0.0
        %6498 = vmatprep.subr.mxu0 0.0
        %6499 = vmatpush1.msra.mxu0 0.0
        %6500 = vmatprep.subr.mxu0 0.0
        %6501 = vmatpush1.msra.mxu0 0.0
        %6502 = vmatprep.subr.mxu0 0.0
        %6503 = vmatpush1.msra.mxu0 0.0
        %6504 = vmatprep.subr.mxu0 0.0
        %6505 = vmatpush1.msra.mxu0 0.0
        %6506 = vmatprep.subr.mxu0 0.0
        %6507 = vmatpush1.msra.mxu0 0.0
        %6508 = vmatprep.subr.mxu0 0.0
        %6509 = vmatpush1.msra.mxu0 0.0
        %6510 = vmatprep.subr.mxu0 0.0
        %6511 = vmatpush1.msra.mxu0 0.0
        %6512 = vmatprep.subr.mxu0 0.0
        %6513 = vmatpush1.msra.mxu0 0.0
        %6514 = vmatprep.subr.mxu0 0.0
        %6515 = vmatpush1.msra.mxu0 0.0
        %6516 = vmatprep.subr.mxu0 0.0
        %6517 = vmatpush1.msra.mxu0 0.0
        %6518 = vmatprep.mubr.f32.mxu0 0.0
        %v6519 = vand.u32 %v6225, 4294901760
        %v6520 = vsub.f32 %v6225, %v6519
        %v6521 = vand.u32 %v6520, 4294901760
        %6522 = vmatmul.mubr.f32.gmra.mrb[0].mxu0 %v6521
        %v6523 = vpop.f32.mrb[0].mxu0
        %v6524 = vadd.f32 %v6450, %v6523
        %v6525 = vpop.f32.mrb[0].mxu0
        %6526 = vdwg.mxu0
        %6527 = vmatprep.subr.mxu0 0.0
        %v6528 = vand.u32 %v229, 4294901760
        %v6529 = vsub.f32 %v229, %v6528
        %v6530 = vand.u32 %v6529, 4294901760
        %6531 = vmatpush1.msra.mxu0 %v6530
        %6532 = vmatprep.subr.mxu0 0.0
        %6533 = vmatpush1.msra.mxu0 0.0
        %6534 = vmatprep.subr.mxu0 0.0
        %6535 = vmatpush1.msra.mxu0 0.0
        %6536 = vmatprep.subr.mxu0 0.0
        %6537 = vmatpush1.msra.mxu0 0.0
        %6538 = vmatprep.subr.mxu0 0.0
        %6539 = vmatpush1.msra.mxu0 0.0
        %6540 = vmatprep.subr.mxu0 0.0
        %6541 = vmatpush1.msra.mxu0 0.0
        %6542 = vmatprep.subr.mxu0 0.0
        %6543 = vmatpush1.msra.mxu0 0.0
        %6544 = vmatprep.subr.mxu0 0.0
        %6545 = vmatpush1.msra.mxu0 0.0
        %6546 = vmatprep.subr.mxu0 0.0
        %6547 = vmatpush1.msra.mxu0 0.0
        %6548 = vmatprep.subr.mxu0 0.0
        %6549 = vmatpush1.msra.mxu0 0.0
        %6550 = vmatprep.subr.mxu0 0.0
        %6551 = vmatpush1.msra.mxu0 0.0
        %6552 = vmatprep.subr.mxu0 0.0
        %6553 = vmatpush1.msra.mxu0 0.0
        %6554 = vmatprep.subr.mxu0 0.0
        %6555 = vmatpush1.msra.mxu0 0.0
        %6556 = vmatprep.subr.mxu0 0.0
        %6557 = vmatpush1.msra.mxu0 0.0
        %6558 = vmatprep.subr.mxu0 0.0
        %6559 = vmatpush1.msra.mxu0 0.0
        %6560 = vmatprep.subr.mxu0 0.0
        %6561 = vmatpush1.msra.mxu0 0.0
        %6562 = vmatprep.subr.mxu0 0.0
        %6563 = vmatpush1.msra.mxu0 0.0
        %6564 = vmatprep.subr.mxu0 0.0
        %6565 = vmatpush1.msra.mxu0 0.0
        %6566 = vmatprep.subr.mxu0 0.0
        %6567 = vmatpush1.msra.mxu0 0.0
        %6568 = vmatprep.subr.mxu0 0.0
        %6569 = vmatpush1.msra.mxu0 0.0
        %6570 = vmatprep.subr.mxu0 0.0
        %6571 = vmatpush1.msra.mxu0 0.0
        %6572 = vmatprep.subr.mxu0 0.0
        %6573 = vmatpush1.msra.mxu0 0.0
        %6574 = vmatprep.subr.mxu0 0.0
        %6575 = vmatpush1.msra.mxu0 0.0
        %6576 = vmatprep.subr.mxu0 0.0
        %6577 = vmatpush1.msra.mxu0 0.0
        %6578 = vmatprep.subr.mxu0 0.0
        %6579 = vmatpush1.msra.mxu0 0.0
        %6580 = vmatprep.subr.mxu0 0.0
        %6581 = vmatpush1.msra.mxu0 0.0
        %6582 = vmatprep.subr.mxu0 0.0
        %6583 = vmatpush1.msra.mxu0 0.0
        %6584 = vmatprep.subr.mxu0 0.0
        %6585 = vmatpush1.msra.mxu0 0.0
        %6586 = vmatprep.subr.mxu0 0.0
        %6587 = vmatpush1.msra.mxu0 0.0
        %6588 = vmatprep.subr.mxu0 0.0
        %6589 = vmatpush1.msra.mxu0 0.0
        %6590 = vmatprep.subr.mxu0 0.0
        %6591 = vmatpush1.msra.mxu0 0.0
        %6592 = vmatprep.subr.mxu0 0.0
        %6593 = vmatpush1.msra.mxu0 0.0
        %6594 = vmatprep.mubr.f32.mxu0 0.0
        %v6595 = vand.u32 %v6225, 4294901760
        %6596 = vmatmul.mubr.f32.gmra.mrb[0].mxu0 %v6595
        %v6597 = vpop.f32.mrb[0].mxu0
        %v6598 = vadd.f32 %v6524, %v6597
        %v6599 = vpop.f32.mrb[0].mxu0
        %6600 = vdwg.mxu0
        %6601 = vmatprep.subr.mxu0 0.0
        %v6602 = vand.u32 %v229, 4294901760
        %6603 = vmatpush1.msra.mxu0 %v6602
        %6604 = vmatprep.subr.mxu0 0.0
        %6605 = vmatpush1.msra.mxu0 0.0
        %6606 = vmatprep.subr.mxu0 0.0
        %6607 = vmatpush1.msra.mxu0 0.0
        %6608 = vmatprep.subr.mxu0 0.0
        %6609 = vmatpush1.msra.mxu0 0.0
        %6610 = vmatprep.subr.mxu0 0.0
        %6611 = vmatpush1.msra.mxu0 0.0
        %6612 = vmatprep.subr.mxu0 0.0
        %6613 = vmatpush1.msra.mxu0 0.0
        %6614 = vmatprep.subr.mxu0 0.0
        %6615 = vmatpush1.msra.mxu0 0.0
        %6616 = vmatprep.subr.mxu0 0.0
        %6617 = vmatpush1.msra.mxu0 0.0
        %6618 = vmatprep.subr.mxu0 0.0
        %6619 = vmatpush1.msra.mxu0 0.0
        %6620 = vmatprep.subr.mxu0 0.0
        %6621 = vmatpush1.msra.mxu0 0.0
        %6622 = vmatprep.subr.mxu0 0.0
        %6623 = vmatpush1.msra.mxu0 0.0
        %6624 = vmatprep.subr.mxu0 0.0
        %6625 = vmatpush1.msra.mxu0 0.0
        %6626 = vmatprep.subr.mxu0 0.0
        %6627 = vmatpush1.msra.mxu0 0.0
        %6628 = vmatprep.subr.mxu0 0.0
        %6629 = vmatpush1.msra.mxu0 0.0
        %6630 = vmatprep.subr.mxu0 0.0
        %6631 = vmatpush1.msra.mxu0 0.0
        %6632 = vmatprep.subr.mxu0 0.0
        %6633 = vmatpush1.msra.mxu0 0.0
        %6634 = vmatprep.subr.mxu0 0.0
        %6635 = vmatpush1.msra.mxu0 0.0
        %6636 = vmatprep.subr.mxu0 0.0
        %6637 = vmatpush1.msra.mxu0 0.0
        %6638 = vmatprep.subr.mxu0 0.0
        %6639 = vmatpush1.msra.mxu0 0.0
        %6640 = vmatprep.subr.mxu0 0.0
        %6641 = vmatpush1.msra.mxu0 0.0
        %6642 = vmatprep.subr.mxu0 0.0
        %6643 = vmatpush1.msra.mxu0 0.0
        %6644 = vmatprep.subr.mxu0 0.0
        %6645 = vmatpush1.msra.mxu0 0.0
        %6646 = vmatprep.subr.mxu0 0.0
        %6647 = vmatpush1.msra.mxu0 0.0
        %6648 = vmatprep.subr.mxu0 0.0
        %6649 = vmatpush1.msra.mxu0 0.0
        %6650 = vmatprep.subr.mxu0 0.0
        %6651 = vmatpush1.msra.mxu0 0.0
        %6652 = vmatprep.subr.mxu0 0.0
        %6653 = vmatpush1.msra.mxu0 0.0
        %6654 = vmatprep.subr.mxu0 0.0
        %6655 = vmatpush1.msra.mxu0 0.0
        %6656 = vmatprep.subr.mxu0 0.0
        %6657 = vmatpush1.msra.mxu0 0.0
        %6658 = vmatprep.subr.mxu0 0.0
        %6659 = vmatpush1.msra.mxu0 0.0
        %6660 = vmatprep.subr.mxu0 0.0
        %6661 = vmatpush1.msra.mxu0 0.0
        %6662 = vmatprep.subr.mxu0 0.0
        %6663 = vmatpush1.msra.mxu0 0.0
        %6664 = vmatprep.subr.mxu0 0.0
        %6665 = vmatpush1.msra.mxu0 0.0
        %6666 = vmatprep.mubr.f32.mxu0 0.0
        %v6667 = vand.u32 %v6225, 4294901760
        %6668 = vmatmul.mubr.f32.gmra.mrb[0].mxu0 %v6667
        %v6669 = vpop.f32.mrb[0].mxu0
        %v6670 = vadd.f32 %v6598, %v6669
        %v6671 = vpop.f32.mrb[0].mxu0
        %6672 = vdwg.mxu0
        %v6673 = vmul.f32 %v6670, 0.00390625
        %v6674 = vmul.f32 %v5768, %v5768
        %v6675 = vsub.f32 %v6673, %v6674
        %v6676 = vlaneseq
        %v6677 = vshrl.u32 %v6676, 7
        %v6678 = vsub.s32 0, %v6677
        %v6679 = vrot.slane %v5768, %v6678
        %v6680 = vsub.f32 %v4864, %v6679
        %v6681 = vsub.f32 %v4865, %v6679
        %v6682 = vadd.f32 %v6675, 1e-05
        %v6683 = vrsqrt.pop %v6682
        %v6684 = vlaneseq
        %v6685 = vshrl.u32 %v6684, 7
        %v6686 = vsub.s32 0, %v6685
        %v6687 = vrot.slane %v6683, %v6686
        %v6688 = vmul.f32 %v6680, %v6687
        %v6689 = vmul.f32 %v6681, %v6687
        %v6690 = vxor.u32 %v6688, 2147483648
        %v6691 = vxor.u32 %v6689, 2147483648
        %v6692 = vmul.f32 %v6690, 1.442695
        %v6693 = vpow.pop %v6692
        %v6694 = vmul.f32 %v6691, 1.442695
        %v6695 = vpow.pop %v6694
        %v6696 = vadd.f32 %v6693, 1.0
        %v6697 = vadd.f32 %v6695, 1.0
        %v6698 = vrcp.pop %v6696
        %v6699 = vmul.f32 1.0, %v6698
        %v6700 = vrcp.pop %v6697
        %v6701 = vmul.f32 1.0, %v6700
        %v6702 = vmul.f32 %v230, %v6699
        %v6703 = vmul.f32 %v231, %v6701
        %6704 = vst [vmem:[%s215] sm:$0xff] %v6702
        %6705 = vst [vmem:[%s215 + $0x8] sm:$0xff] %v6703
        %v6706 = vld [vmem:[%s232] sm:$0xff]
        %v6707 = vld [vmem:[%s232 + $0x8] sm:$0xff]
        %v6708 = vmul.f32 %v6706, %v6699
        %v6709 = vmul.f32 %v6707, %v6701
        %s6710 = scalar_lea.vmem %s215, 16 [#allocation9]
        %6711 = vst [vmem:[%s6710] sm:$0xff] %v6708
        %6712 = vst [vmem:[%s6710 + $0x8] sm:$0xff] %v6709
        %s6713 = sand.u32 %s98, 1
        %s6714 = scalar_lea.sflag [#allocation4], %s6713
        %s6715 = sand.u32 %s98, 1
        %s6716 = smul.addr %s6715, 32
        %s6717 = scalar_lea.vmem [#allocation9], %s6716
        // Predicated region
        $region45: #{tpu_custom_call.1} parent=31 // pred_check
          %p6718 = pneg %p108
        $region46: #{tpu_custom_call.1} parent=31 // pred_check_branch
          %6720 = sbr.rel (%p6718) target = $region48
        $region47: #{tpu_custom_call.1} parent=31 // pred_region
          %s6722 = ssub.s32 512, 512
          %6723 = vsyncadd %s6714, %s6722
          %s6724 = smul.addr %s22, 4
          %s6725 = smul.addr %s6724, 128
          %s6726 = scalar_lea.hbm %s3, %s6725
          %s6727 = sshll.u32 %s6717, 4
          %s6728 = int_to_ptr.vmem [resolvable:$true] %s6727
          %6733 = dma.vmem_to_hbm [thread:$0]  %s6728, 512, %s6726, %s6714, 128, 128, 8
        $region48: #{tpu_custom_call.1} parent=31 // pred_fallthru
          _
      $region32: #{tpu_custom_call.1} parent=5 // pred_fallthru
        _
      %p6734 = scmp.le.s32.totalorder 2, %s17
      // Predicated region
      $region49: #{tpu_custom_call.1} parent=5 // pred_check
        %p6735 = pneg %p6734
      $region50: #{tpu_custom_call.1} parent=5 // pred_check_branch
        %6737 = sbr.rel (%p6735) target = $region52
      $region51: #{tpu_custom_call.1} parent=5 // pred_region
        %s6738 = ssub.s32 %s17, 2
        // Predicated region
        $region53: #{tpu_custom_call.1} parent=51 // pred_check
          %p6739 = pneg %p114
        $region54: #{tpu_custom_call.1} parent=51 // pred_check_branch
          %6741 = sbr.rel (%p6739) target = $region56
        $region55: #{tpu_custom_call.1} parent=51 // pred_region
          %s6742 = sand.u32 %s99, 1
          %s6743 = scalar_lea.sflag [#allocation4], %s6742
          %s6744 = sand.u32 %s99, 1
          %s6745 = smul.addr %s6744, 32
          %s6746 = scalar_lea.vmem [#allocation9], %s6745
          %6747 = dma.done %s6743, 512
        $region56: #{tpu_custom_call.1} parent=51 // pred_fallthru
          _
      $region52: #{tpu_custom_call.1} parent=5 // pred_fallthru
        _
    $region6: #{tpu_custom_call.1} parent=1 // loop_footer
      %s21 = sadd.s32 1, %s17
    $region7: #{tpu_custom_call.1} parent=1 // loop_footer_branch
      %16 = sbr.rel target = $region3
    $region8: #{tpu_custom_call.1} parent=1 // loop_exit
      _
    %6748 = vsyncpa [#allocation3], 1
    %s6749 = scalar_lea.sflag [#allocation3], 1
    %6750 = vsyncpa %s6749, 1
    %6751 = vsyncpa [#allocation4], 1
    %s6752 = scalar_lea.sflag [#allocation4], 1
    %6753 = vsyncpa %s6752, 1
    %6754 = vsyncpa [#allocation5], 1
    %s6755 = scalar_lea.sflag [#allocation5], 1
    %6756 = vsyncpa %s6755, 1
    %6757 = vsyncpa [#allocation8], 1

</llo_original>
